<compile_context>
chip_gen: v7x
topology: tpu7x:2x2x1
jax: 0.10.0
libtpu: 0.0.40
codegen_flags: <defaults>
</compile_context>

<pallas_src>
import functools
import math

import jax
import jax.numpy as jnp
from jax import lax
from jax.experimental import pallas as pl
from jax.experimental.pallas import tpu as pltpu

LN_EPS = 1e-5      # PyTorch layer_norm_eps default
NEG_INF = -1e30    # safe because the score path stays f32

# rows of the packed per-layer vector tensor (all width D)
(V_SA_BQ, V_SA_BK, V_SA_BV, V_SA_BO, V_LN1_G, V_LN1_B,
 V_CA_BQ, V_CA_BK, V_CA_BV, V_CA_BO, V_LN2_G, V_LN2_B,
 V_B2, V_LN3_G, V_LN3_B, N_VEC) = range(16)

MAT_NAMES = ('sa_wqkv', 'sa_wo', 'ca_wq', 'ca_wkv', 'ca_wo', 'w1', 'w2')


# ----------------------------- in-kernel helpers -----------------------------

def _layer_norm(x, g, b):
    # x: [R, D]; g, b: [1, D]
    mu = jnp.mean(x, axis=-1, keepdims=True)
    xc = x - mu
    var = jnp.mean(xc * xc, axis=-1, keepdims=True)
    return xc * lax.rsqrt(var + LN_EPS) * g + b


def _mha(q, k, v, mask_bias, batch, seq, num_heads):
    """Scores + softmax + context per batch element.

    q, k, v: [B*S, D] f32 (q already has 1/sqrt(hd) folded in).
    mask_bias: [S, S] f32 additive causal bias (0 / -1e30).
    Returns [B*S, D] f32 context.
    """
    D = q.shape[-1]
    hd = D // num_heads
    outs = []
    for b in range(batch):           # static unroll; projections were done on all B*S rows
        sl = slice(b * seq, (b + 1) * seq)
        qb = q[sl].reshape(seq, num_heads, hd).astype(jnp.bfloat16)
        kb = k[sl].reshape(seq, num_heads, hd).astype(jnp.bfloat16)
        vb = v[sl].reshape(seq, num_heads, hd).astype(jnp.bfloat16)
        s = jnp.einsum('qhf,khf->hqk', qb, kb,
                       preferred_element_type=jnp.float32)          # [H, S, S]
        s = s + mask_bias[None, :, :]
        m = jnp.max(s, axis=-1, keepdims=True)
        e = jnp.exp(s - m)
        p = e * pl.reciprocal(jnp.sum(e, axis=-1, keepdims=True), approx=True)
        ctx = jnp.einsum('hqk,khf->qhf', p.astype(jnp.bfloat16), vb,
                         preferred_element_type=jnp.float32)         # [S, H, hd]
        outs.append(ctx.reshape(seq, D))
    return jnp.concatenate(outs, axis=0)                             # [B*S, D]


# ----------------------------- fused decoder kernel -----------------------------

def fused_decoder_kernel(x0_ref,
                         sa_wqkv, sa_wo, ca_wq, ca_wkv, ca_wo, w1, w2,
                         vecs_ref, b1_ref, lin_w, lin_b,
                         out_ref,
                         x_scr, mem_scr, mask_scr,
                         *, num_heads, batch, seq):
    # grid = (L,): program_id(0) = layer index (carried via scratch activations).
    layer = pl.program_id(0)
    BS, D = x_scr.shape

    @pl.when(layer == 0)
    def _init():
        x0 = x0_ref[...].reshape(BS, D)
        x_scr[...] = x0
        mem_scr[...] = x0.astype(jnp.bfloat16)       # memory == pos-encoded input, constant
        row = lax.broadcasted_iota(jnp.int32, (seq, seq), 0)
        col = lax.broadcasted_iota(jnp.int32, (seq, seq), 1)
        mask_scr[...] = jnp.where(col <= row, 0.0, NEG_INF).astype(jnp.float32)

    vecs = vecs_ref[...]                             # [N_VEC, D] f32

    def vec(i):
        return vecs[i:i + 1, :]                      # [1, D]

    mask_bias = mask_scr[...]
    x = x_scr[...]                                   # [B*S, D] f32, carried activation
    mem_bf = mem_scr[...]                            # [B*S, D] bf16, constant across layers

    # --- self attention (fused QKV projection, post-norm; dropout identity at eval) ---
    x_bf = x.astype(jnp.bfloat16)
    qkv = jnp.dot(x_bf, sa_wqkv[...], preferred_element_type=jnp.float32)   # [BS, 3D]
    q = qkv[:, :D] + vec(V_SA_BQ)
    k = qkv[:, D:2 * D] + vec(V_SA_BK)
    v = qkv[:, 2 * D:] + vec(V_SA_BV)
    ctx = _mha(q, k, v, mask_bias, batch, seq, num_heads)
    sa = jnp.dot(ctx.astype(jnp.bfloat16), sa_wo[...],
                 preferred_element_type=jnp.float32) + vec(V_SA_BO)
    x = _layer_norm(x + sa, vec(V_LN1_G), vec(V_LN1_B))

    # --- cross attention with memory (memory_mask is also causal here) ---
    x_bf = x.astype(jnp.bfloat16)
    q = jnp.dot(x_bf, ca_wq[...], preferred_element_type=jnp.float32) + vec(V_CA_BQ)
    kv = jnp.dot(mem_bf, ca_wkv[...], preferred_element_type=jnp.float32)   # [BS, 2D]
    k = kv[:, :D] + vec(V_CA_BK)
    v = kv[:, D:] + vec(V_CA_BV)
    ctx = _mha(q, k, v, mask_bias, batch, seq, num_heads)
    ca = jnp.dot(ctx.astype(jnp.bfloat16), ca_wo[...],
                 preferred_element_type=jnp.float32) + vec(V_CA_BO)
    x = _layer_norm(x + ca, vec(V_LN2_G), vec(V_LN2_B))

    # --- feed forward (relu, dim_feedforward = 2048) ---
    # TODO(synk): at production sizes (D>=1024, F=2048) tile w1/w2 over F for v7x's 64 MiB VMEM.
    x_bf = x.astype(jnp.bfloat16)
    h1 = jnp.maximum(
        jnp.dot(x_bf, w1[...], preferred_element_type=jnp.float32) + b1_ref[...], 0.0)
    ff = jnp.dot(h1.astype(jnp.bfloat16), w2[...],
                 preferred_element_type=jnp.float32) + vec(V_B2)
    x = _layer_norm(x + ff, vec(V_LN3_G), vec(V_LN3_B))

    x_scr[...] = x

    # --- fused linear head on the last layer, last position only (lane-dense 128 output) ---
    @pl.when(layer == pl.num_programs(0) - 1)
    def _head():
        x_last = x.reshape(batch, seq, D)[:, seq - 1, :]                     # [B, D]
        out_ref[...] = (jnp.dot(x_last.astype(jnp.bfloat16), lin_w[...],
                                preferred_element_type=jnp.float32) + lin_b[...])


# ----------------------------- wrapper -----------------------------

def transformer_forward(token_ids, params, num_heads):
    # Embedding lookup (gather) + positional-encoding add: plain-JAX glue.
    emb = jnp.take(params['emb'], token_ids, axis=0)              # [B, S, D]
    B, S = token_ids.shape
    D = emb.shape[-1]
    x0 = emb + params['pe'][None, :S, :]                          # memory == pos-encoded input

    st = params['stacked']
    L = st['sa_wqkv'].shape[0]
    Dw, O_pad = params['lin_w_pad'].shape

    def layer_spec(arr):
        _, r, c = arr.shape
        return pl.BlockSpec((None, r, c), lambda l: (l, 0, 0))

    in_specs = [pl.BlockSpec((B, S, D), lambda l: (0, 0, 0))]      # whole batch in one tile
    in_specs += [layer_spec(st[n]) for n in MAT_NAMES]
    in_specs += [layer_spec(st['vecs']), layer_spec(st['b1'])]
    in_specs += [pl.BlockSpec((Dw, O_pad), lambda l: (0, 0)),
                 pl.BlockSpec((1, O_pad), lambda l: (0, 0))]

    out_spec = pl.BlockSpec((B, O_pad), lambda l: (0, 0))

    out = pl.pallas_call(
        functools.partial(fused_decoder_kernel, num_heads=num_heads, batch=B, seq=S),
        out_shape=jax.ShapeDtypeStruct((B, O_pad), jnp.float32),
        grid_spec=pltpu.PrefetchScalarGridSpec(
            num_scalar_prefetch=0,
            grid=(L,),                                             # layer axis only
            in_specs=in_specs,
            out_specs=out_spec,
            scratch_shapes=[
                pltpu.VMEM((B * S, D), jnp.float32),               # carried activation
                pltpu.VMEM((B * S, D), jnp.bfloat16),              # bf16 memory copy
                pltpu.VMEM((S, S), jnp.float32),                   # additive causal mask
            ],
        ),
        compiler_params=pltpu.CompilerParams(
            dimension_semantics=("arbitrary",),
            vmem_limit_bytes=60 * 1024 * 1024),
    )(x0, *[st[n] for n in MAT_NAMES], st['vecs'], st['b1'],
      params['lin_w_pad'], params['lin_b_pad'])

    # head was computed only for the last position; slice real logits out of the 128 pad
    return out[:, :params['output_dim']]


# ----------------------------- parameter init -----------------------------

def init_params(key, vocab_size, seq_len, D, O, num_layers, H, F=2048):
    hd = D // H
    scale = 1.0 / math.sqrt(hd)
    keys = jax.random.split(key, 2 + num_layers)

    emb = 0.1 * jax.random.normal(keys[0], (vocab_size, D), jnp.float32)

    # positional encoding buffer (same formula as the PyTorch module)
    pos = jnp.arange(seq_len, dtype=jnp.float32)[:, None]
    div = jnp.exp(jnp.arange(0, D, 2, dtype=jnp.float32) * (-math.log(10000.0) / D))
    pe = jnp.zeros((seq_len, D), jnp.float32)
    pe = pe.at[:, 0::2].set(jnp.sin(pos * div))
    pe = pe.at[:, 1::2].set(jnp.cos(pos * div))

    per_layer = []
    for li in range(num_layers):
        lk = jax.random.split(keys[2 + li], 8)
        wq_s = 0.02 * jax.random.normal(lk[0], (D, D), jnp.float32)
        wk_s = 0.02 * jax.random.normal(lk[1], (D, D), jnp.float32)
        wv_s = 0.02 * jax.random.normal(lk[2], (D, D), jnp.float32)
        wo_s = 0.02 * jax.random.normal(lk[3], (D, D), jnp.float32)
        wq_c = 0.02 * jax.random.normal(lk[4], (D, D), jnp.float32)
        wk_c = 0.02 * jax.random.normal(lk[5], (D, D), jnp.float32)
        wv_c = 0.02 * jax.random.normal(lk[6], (D, D), jnp.float32)
        wo_c = 0.02 * jax.random.normal(lk[7], (D, D), jnp.float32)
        fk = jax.random.split(jax.random.fold_in(keys[2 + li], 1), 2)
        w1 = 0.02 * jax.random.normal(fk[0], (D, F), jnp.float32)
        w2 = 0.02 * jax.random.normal(fk[1], (F, D), jnp.float32)

        # packed per-layer vectors: biases zero, LN gamma=1 / beta=0.
        # (A nonzero Q bias would also carry the 1/sqrt(hd) fold.)
        vecs = jnp.zeros((N_VEC, D), jnp.float32)
        vecs = vecs.at[V_LN1_G].set(1.0).at[V_LN2_G].set(1.0).at[V_LN3_G].set(1.0)

        per_layer.append({
            'sa_wqkv': jnp.concatenate([wq_s * scale, wk_s, wv_s], axis=1).astype(jnp.bfloat16),
            'sa_wo': wo_s.astype(jnp.bfloat16),
            'ca_wq': (wq_c * scale).astype(jnp.bfloat16),
            'ca_wkv': jnp.concatenate([wk_c, wv_c], axis=1).astype(jnp.bfloat16),
            'ca_wo': wo_c.astype(jnp.bfloat16),
            'w1': w1.astype(jnp.bfloat16),
            'w2': w2.astype(jnp.bfloat16),
            'vecs': vecs,
            'b1': jnp.zeros((1, F), jnp.float32),
        })

    stacked = {name: jnp.stack([lp[name] for lp in per_layer], axis=0)
               for name in per_layer[0]}

    # pad head output dim to a lane-dense multiple of 128; store bf16; logits sliced in JAX
    O_pad = ((O + 127) // 128) * 128
    lin_w = 0.02 * jax.random.normal(keys[1], (D, O), jnp.float32)
    lin_w_pad = jnp.zeros((D, O_pad), jnp.float32).at[:, :O].set(lin_w).astype(jnp.bfloat16)
    lin_b_pad = jnp.zeros((1, O_pad), jnp.float32)

    return {'emb': emb, 'pe': pe, 'stacked': stacked,
            'lin_w_pad': lin_w_pad, 'lin_b_pad': lin_b_pad, 'output_dim': O}


# ----------------------------- main -----------------------------

if __name__ == "__main__":
    vocab_size, seq_len, embed_dim, output_dim = 50, 8, 32, 10
    num_layers, num_heads = 2, 4
    batch = 2

    key = jax.random.PRNGKey(0)
    params = init_params(key, vocab_size, seq_len, embed_dim, output_dim,
                         num_layers, num_heads)

    tok_key = jax.random.fold_in(key, 999)
    token_ids = jax.random.randint(tok_key, (batch, seq_len), 0, vocab_size, dtype=jnp.int32)

    out = transformer_forward(token_ids, params, num_heads)
    out = jax.block_until_ready(out)

    assert out.shape == (batch, output_dim), out.shape
    assert bool(jnp.all(jnp.isfinite(out)))
    print("KERNEL_OK")
</pallas_src>

<mosaic_0001>
module attributes {stable_mosaic.version = 11 : i64} {
  func.func @fused_decoder_kernel(%arg0: i32, %arg1: memref<2x8x32xf32, #tpu.memory_space<vmem>>, %arg2: memref<1x32x96xbf16, #tpu.memory_space<vmem>>, %arg3: memref<1x32x32xbf16, #tpu.memory_space<vmem>>, %arg4: memref<1x32x32xbf16, #tpu.memory_space<vmem>>, %arg5: memref<1x32x64xbf16, #tpu.memory_space<vmem>>, %arg6: memref<1x32x32xbf16, #tpu.memory_space<vmem>>, %arg7: memref<1x32x2048xbf16, #tpu.memory_space<vmem>>, %arg8: memref<1x2048x32xbf16, #tpu.memory_space<vmem>>, %arg9: memref<1x15x32xf32, #tpu.memory_space<vmem>>, %arg10: memref<1x1x2048xf32, #tpu.memory_space<vmem>>, %arg11: memref<32x128xbf16, #tpu.memory_space<vmem>>, %arg12: memref<1x128xf32, #tpu.memory_space<vmem>>, %arg13: memref<2x128xf32, #tpu.memory_space<vmem>>, %arg14: memref<16x32xf32, #tpu.memory_space<vmem>>, %arg15: memref<16x32xbf16, #tpu.memory_space<vmem>>, %arg16: memref<8x8xf32, #tpu.memory_space<vmem>>) attributes {dimension_semantics = [#tpu.dimension_semantics<arbitrary>], iteration_bounds = array<i64: 2>, scalar_prefetch = 0 : i64, scratch_operands = 3 : i64, tpu.core_type = #tpu.core_type<tc>, window_params = [{pipeline_mode = #tpu.pipeline_mode<synchronous>, transform_indices = @transform_0, window_bounds = array<i64: 2, 8, 32>}, {transform_indices = @transform_1, window_bounds = array<i64: 1, 32, 96>}, {transform_indices = @transform_2, window_bounds = array<i64: 1, 32, 32>}, {transform_indices = @transform_3, window_bounds = array<i64: 1, 32, 32>}, {transform_indices = @transform_4, window_bounds = array<i64: 1, 32, 64>}, {transform_indices = @transform_5, window_bounds = array<i64: 1, 32, 32>}, {transform_indices = @transform_6, window_bounds = array<i64: 1, 32, 2048>}, {transform_indices = @transform_7, window_bounds = array<i64: 1, 2048, 32>}, {transform_indices = @transform_8, window_bounds = array<i64: 1, 15, 32>}, {transform_indices = @transform_9, window_bounds = array<i64: 1, 1, 2048>}, {pipeline_mode = #tpu.pipeline_mode<synchronous>, transform_indices = @transform_10, window_bounds = array<i64: 32, 128>}, {pipeline_mode = #tpu.pipeline_mode<synchronous>, transform_indices = @transform_11, window_bounds = array<i64: 1, 128>}, {pipeline_mode = #tpu.pipeline_mode<synchronous>, transform_indices = @transform_12, window_bounds = array<i64: 2, 128>}]} {
    %c0_i32 = arith.constant 0 : i32
    %0 = arith.cmpi eq, %arg0, %c0_i32 : i32
    %1 = arith.extui %0 : i1 to i32
    %c0_i32_0 = arith.constant 0 : i32
    %2 = arith.cmpi ne, %1, %c0_i32_0 : i32
    scf.if %2 {
      %c0_74 = arith.constant 0 : index
      %c0_75 = arith.constant 0 : index
      %c0_76 = arith.constant 0 : index
      %256 = vector.load %arg1[%c0_74, %c0_75, %c0_76] : memref<2x8x32xf32, #tpu.memory_space<vmem>>, vector<2x8x32xf32>
      %257 = vector.shape_cast %256 : vector<2x8x32xf32> to vector<16x32xf32>
      %c0_77 = arith.constant 0 : index
      %c0_78 = arith.constant 0 : index
      %258 = vector.load %arg14[%c0_77, %c0_78] : memref<16x32xf32, #tpu.memory_space<vmem>>, vector<16x32xf32>
      tpu.vector_store %arg14[%c0_77, %c0_78], %257 {strides = array<i32>} : memref<16x32xf32, #tpu.memory_space<vmem>>, vector<16x32xf32>,
      %259 = arith.truncf %257 : vector<16x32xf32> to vector<16x32xbf16>
      %c0_79 = arith.constant 0 : index
      %c0_80 = arith.constant 0 : index
      %260 = vector.load %arg15[%c0_79, %c0_80] : memref<16x32xbf16, #tpu.memory_space<vmem>>, vector<16x32xbf16>
      tpu.vector_store %arg15[%c0_79, %c0_80], %259 {strides = array<i32>} : memref<16x32xbf16, #tpu.memory_space<vmem>>, vector<16x32xbf16>,
      %261 = tpu.iota {dimensions = array<i32: 0>} : vector<8x8xi32>
      %262 = tpu.iota {dimensions = array<i32: 1>} : vector<8x8xi32>
      %263 = arith.cmpi sle, %262, %261 : vector<8x8xi32>
      %cst_81 = arith.constant 0.000000e+00 : f32
      %cst_82 = arith.constant -1.000000e+30 : f32
      %264 = vector.broadcast %cst_81 : f32 to vector<8x8xf32>
      %265 = vector.broadcast %cst_82 : f32 to vector<8x8xf32>
      %266 = arith.select %263, %264, %265 : vector<8x8xi1>, vector<8x8xf32>
      %c0_83 = arith.constant 0 : index
      %c0_84 = arith.constant 0 : index
      %267 = vector.load %arg16[%c0_83, %c0_84] : memref<8x8xf32, #tpu.memory_space<vmem>>, vector<8x8xf32>
      tpu.vector_store %arg16[%c0_83, %c0_84], %266 {strides = array<i32>} : memref<8x8xf32, #tpu.memory_space<vmem>>, vector<8x8xf32>,
    } else {
    }
    %c0 = arith.constant 0 : index
    %c0_1 = arith.constant 0 : index
    %c0_2 = arith.constant 0 : index
    %3 = vector.load %arg9[%c0, %c0_1, %c0_2] : memref<1x15x32xf32, #tpu.memory_space<vmem>>, vector<1x15x32xf32>
    %4 = vector.shape_cast %3 : vector<1x15x32xf32> to vector<15x32xf32>
    %c0_3 = arith.constant 0 : index
    %c0_4 = arith.constant 0 : index
    %5 = vector.load %arg16[%c0_3, %c0_4] : memref<8x8xf32, #tpu.memory_space<vmem>>, vector<8x8xf32>
    %c0_5 = arith.constant 0 : index
    %c0_6 = arith.constant 0 : index
    %6 = vector.load %arg14[%c0_5, %c0_6] : memref<16x32xf32, #tpu.memory_space<vmem>>, vector<16x32xf32>
    %c0_7 = arith.constant 0 : index
    %c0_8 = arith.constant 0 : index
    %7 = vector.load %arg15[%c0_7, %c0_8] : memref<16x32xbf16, #tpu.memory_space<vmem>>, vector<16x32xbf16>
    %8 = arith.truncf %6 : vector<16x32xf32> to vector<16x32xbf16>
    %c0_9 = arith.constant 0 : index
    %c0_10 = arith.constant 0 : index
    %c0_11 = arith.constant 0 : index
    %9 = vector.load %arg2[%c0_9, %c0_10, %c0_11] : memref<1x32x96xbf16, #tpu.memory_space<vmem>>, vector<1x32x96xbf16>
    %10 = vector.shape_cast %9 : vector<1x32x96xbf16> to vector<32x96xbf16>
    %cst = arith.constant dense<0.000000e+00> : vector<16x96xf32>
    %11 = tpu.matmul %8, %10, %cst {dimension_numbers = #tpu.dot_dimension_numbers<[1], [0], [0], [1], [0, 0, 1, 1], [], []>} : vector<16x32xbf16>, vector<32x96xbf16>, vector<16x96xf32> -> vector<16x96xf32>
    %12 = vector.extract_strided_slice %11 {offsets = [0, 0], sizes = [16, 32], strides = [1, 1]} : vector<16x96xf32> to vector<16x32xf32>
    %13 = vector.extract_strided_slice %4 {offsets = [0, 0], sizes = [1, 32], strides = [1, 1]} : vector<15x32xf32> to vector<1x32xf32>
    %14 = vector.broadcast %13 : vector<1x32xf32> to vector<16x32xf32>
    %15 = arith.addf %12, %14 : vector<16x32xf32>
    %16 = vector.extract_strided_slice %11 {offsets = [0, 32], sizes = [16, 32], strides = [1, 1]} : vector<16x96xf32> to vector<16x32xf32>
    %17 = vector.extract_strided_slice %4 {offsets = [1, 0], sizes = [1, 32], strides = [1, 1]} : vector<15x32xf32> to vector<1x32xf32>
    %18 = vector.broadcast %17 : vector<1x32xf32> to vector<16x32xf32>
    %19 = arith.addf %16, %18 : vector<16x32xf32>
    %20 = vector.extract_strided_slice %11 {offsets = [0, 64], sizes = [16, 32], strides = [1, 1]} : vector<16x96xf32> to vector<16x32xf32>
    %21 = vector.extract_strided_slice %4 {offsets = [2, 0], sizes = [1, 32], strides = [1, 1]} : vector<15x32xf32> to vector<1x32xf32>
    %22 = vector.broadcast %21 : vector<1x32xf32> to vector<16x32xf32>
    %23 = arith.addf %20, %22 : vector<16x32xf32>
    %24 = vector.extract_strided_slice %15 {offsets = [0, 0], sizes = [8, 32], strides = [1, 1]} : vector<16x32xf32> to vector<8x32xf32>
    %25 = vector.shape_cast %24 : vector<8x32xf32> to vector<8x4x8xf32>
    %26 = arith.truncf %25 : vector<8x4x8xf32> to vector<8x4x8xbf16>
    %27 = vector.extract_strided_slice %19 {offsets = [0, 0], sizes = [8, 32], strides = [1, 1]} : vector<16x32xf32> to vector<8x32xf32>
    %28 = vector.shape_cast %27 : vector<8x32xf32> to vector<8x4x8xf32>
    %29 = arith.truncf %28 : vector<8x4x8xf32> to vector<8x4x8xbf16>
    %30 = vector.extract_strided_slice %23 {offsets = [0, 0], sizes = [8, 32], strides = [1, 1]} : vector<16x32xf32> to vector<8x32xf32>
    %31 = vector.shape_cast %30 : vector<8x32xf32> to vector<8x4x8xf32>
    %32 = arith.truncf %31 : vector<8x4x8xf32> to vector<8x4x8xbf16>
    "tpu.trace_start"() <{level = 10 : i32, message = "qhf,khf->hqk"}> : () -> ()
    %cst_12 = arith.constant dense<0.000000e+00> : vector<4x8x8xf32>
    %33 = tpu.matmul %26, %29, %cst_12 {dimension_numbers = #tpu.dot_dimension_numbers<[2], [2], [0], [0], [0, 1, 0, 0, 1, 0], [1], [1]>} : vector<8x4x8xbf16>, vector<8x4x8xbf16>, vector<4x8x8xf32> -> vector<4x8x8xf32>
    "tpu.trace_stop"() : () -> ()
    %34 = vector.shape_cast %5 : vector<8x8xf32> to vector<1x8x8xf32>
    %35 = vector.broadcast %34 : vector<1x8x8xf32> to vector<4x8x8xf32>
    %36 = arith.addf %33, %35 : vector<4x8x8xf32>
    %cst_13 = arith.constant dense<0xFF800000> : vector<4x8xf32>
    %37 = vector.multi_reduction <maximumf>, %36, %cst_13 [2] : vector<4x8x8xf32> to vector<4x8xf32>
    %38 = vector.shape_cast %37 : vector<4x8xf32> to vector<4x8x1xf32>
    %39 = vector.broadcast %38 : vector<4x8x1xf32> to vector<4x8x8xf32>
    %40 = arith.subf %36, %39 : vector<4x8x8xf32>
    %41 = math.exp %40 : vector<4x8x8xf32>
    %cst_14 = arith.constant dense<0.000000e+00> : vector<4x8xf32>
    %42 = vector.multi_reduction <add>, %41, %cst_14 [2] : vector<4x8x8xf32> to vector<4x8xf32>
    %43 = vector.shape_cast %42 : vector<4x8xf32> to vector<4x8x1xf32>
    %44 = tpu.reciprocal %43 {approx = true} : vector<4x8x1xf32> -> vector<4x8x1xf32>
    %45 = vector.broadcast %44 : vector<4x8x1xf32> to vector<4x8x8xf32>
    %46 = arith.mulf %41, %45 : vector<4x8x8xf32>
    %47 = arith.truncf %46 : vector<4x8x8xf32> to vector<4x8x8xbf16>
    "tpu.trace_start"() <{level = 10 : i32, message = "hqk,khf->qhf"}> : () -> ()
    %cst_15 = arith.constant dense<0.000000e+00> : vector<4x8x8xf32>
    %48 = tpu.matmul %32, %47, %cst_15 {dimension_numbers = #tpu.dot_dimension_numbers<[0], [2], [2], [1], [0, 1, 0, 2, 1, 1], [1], [0]>} : vector<8x4x8xbf16>, vector<4x8x8xbf16>, vector<4x8x8xf32> -> vector<4x8x8xf32>
    %49 = tpu.transpose %48, [2, 0, 1] : vector<4x8x8xf32> -> vector<8x4x8xf32>
    "tpu.trace_stop"() : () -> ()
    %50 = vector.shape_cast %49 : vector<8x4x8xf32> to vector<8x32xf32>
    %51 = vector.extract_strided_slice %15 {offsets = [8, 0], sizes = [8, 32], strides = [1, 1]} : vector<16x32xf32> to vector<8x32xf32>
    %52 = vector.shape_cast %51 : vector<8x32xf32> to vector<8x4x8xf32>
    %53 = arith.truncf %52 : vector<8x4x8xf32> to vector<8x4x8xbf16>
    %54 = vector.extract_strided_slice %19 {offsets = [8, 0], sizes = [8, 32], strides = [1, 1]} : vector<16x32xf32> to vector<8x32xf32>
    %55 = vector.shape_cast %54 : vector<8x32xf32> to vector<8x4x8xf32>
    %56 = arith.truncf %55 : vector<8x4x8xf32> to vector<8x4x8xbf16>
    %57 = vector.extract_strided_slice %23 {offsets = [8, 0], sizes = [8, 32], strides = [1, 1]} : vector<16x32xf32> to vector<8x32xf32>
    %58 = vector.shape_cast %57 : vector<8x32xf32> to vector<8x4x8xf32>
    %59 = arith.truncf %58 : vector<8x4x8xf32> to vector<8x4x8xbf16>
    "tpu.trace_start"() <{level = 10 : i32, message = "qhf,khf->hqk"}> : () -> ()
    %cst_16 = arith.constant dense<0.000000e+00> : vector<4x8x8xf32>
    %60 = tpu.matmul %53, %56, %cst_16 {dimension_numbers = #tpu.dot_dimension_numbers<[2], [2], [0], [0], [0, 1, 0, 0, 1, 0], [1], [1]>} : vector<8x4x8xbf16>, vector<8x4x8xbf16>, vector<4x8x8xf32> -> vector<4x8x8xf32>
    "tpu.trace_stop"() : () -> ()
    %61 = vector.shape_cast %5 : vector<8x8xf32> to vector<1x8x8xf32>
    %62 = vector.broadcast %61 : vector<1x8x8xf32> to vector<4x8x8xf32>
    %63 = arith.addf %60, %62 : vector<4x8x8xf32>
    %cst_17 = arith.constant dense<0xFF800000> : vector<4x8xf32>
    %64 = vector.multi_reduction <maximumf>, %63, %cst_17 [2] : vector<4x8x8xf32> to vector<4x8xf32>
    %65 = vector.shape_cast %64 : vector<4x8xf32> to vector<4x8x1xf32>
    %66 = vector.broadcast %65 : vector<4x8x1xf32> to vector<4x8x8xf32>
    %67 = arith.subf %63, %66 : vector<4x8x8xf32>
    %68 = math.exp %67 : vector<4x8x8xf32>
    %cst_18 = arith.constant dense<0.000000e+00> : vector<4x8xf32>
    %69 = vector.multi_reduction <add>, %68, %cst_18 [2] : vector<4x8x8xf32> to vector<4x8xf32>
    %70 = vector.shape_cast %69 : vector<4x8xf32> to vector<4x8x1xf32>
    %71 = tpu.reciprocal %70 {approx = true} : vector<4x8x1xf32> -> vector<4x8x1xf32>
    %72 = vector.broadcast %71 : vector<4x8x1xf32> to vector<4x8x8xf32>
    %73 = arith.mulf %68, %72 : vector<4x8x8xf32>
    %74 = arith.truncf %73 : vector<4x8x8xf32> to vector<4x8x8xbf16>
    "tpu.trace_start"() <{level = 10 : i32, message = "hqk,khf->qhf"}> : () -> ()
    %cst_19 = arith.constant dense<0.000000e+00> : vector<4x8x8xf32>
    %75 = tpu.matmul %59, %74, %cst_19 {dimension_numbers = #tpu.dot_dimension_numbers<[0], [2], [2], [1], [0, 1, 0, 2, 1, 1], [1], [0]>} : vector<8x4x8xbf16>, vector<4x8x8xbf16>, vector<4x8x8xf32> -> vector<4x8x8xf32>
    %76 = tpu.transpose %75, [2, 0, 1] : vector<4x8x8xf32> -> vector<8x4x8xf32>
    "tpu.trace_stop"() : () -> ()
    %77 = vector.shape_cast %76 : vector<8x4x8xf32> to vector<8x32xf32>
    %78 = tpu.concatenate %50, %77 in 0 : vector<8x32xf32>, vector<8x32xf32> -> vector<16x32xf32>
    %79 = arith.truncf %78 : vector<16x32xf32> to vector<16x32xbf16>
    %c0_20 = arith.constant 0 : index
    %c0_21 = arith.constant 0 : index
    %c0_22 = arith.constant 0 : index
    %80 = vector.load %arg3[%c0_20, %c0_21, %c0_22] : memref<1x32x32xbf16, #tpu.memory_space<vmem>>, vector<1x32x32xbf16>
    %81 = vector.shape_cast %80 : vector<1x32x32xbf16> to vector<32x32xbf16>
    %cst_23 = arith.constant dense<0.000000e+00> : vector<16x32xf32>
    %82 = tpu.matmul %79, %81, %cst_23 {dimension_numbers = #tpu.dot_dimension_numbers<[1], [0], [0], [1], [0, 0, 1, 1], [], []>} : vector<16x32xbf16>, vector<32x32xbf16>, vector<16x32xf32> -> vector<16x32xf32>
    %83 = vector.extract_strided_slice %4 {offsets = [3, 0], sizes = [1, 32], strides = [1, 1]} : vector<15x32xf32> to vector<1x32xf32>
    %84 = vector.broadcast %83 : vector<1x32xf32> to vector<16x32xf32>
    %85 = arith.addf %82, %84 : vector<16x32xf32>
    %86 = arith.addf %6, %85 : vector<16x32xf32>
    %87 = vector.extract_strided_slice %4 {offsets = [4, 0], sizes = [1, 32], strides = [1, 1]} : vector<15x32xf32> to vector<1x32xf32>
    %88 = vector.extract_strided_slice %4 {offsets = [5, 0], sizes = [1, 32], strides = [1, 1]} : vector<15x32xf32> to vector<1x32xf32>
    %cst_24 = arith.constant dense<0.000000e+00> : vector<16xf32>
    %89 = vector.multi_reduction <add>, %86, %cst_24 [1] : vector<16x32xf32> to vector<16xf32>
    %90 = vector.shape_cast %89 : vector<16xf32> to vector<16x1xf32>
    %cst_25 = arith.constant 3.200000e+01 : f32
    %91 = vector.broadcast %cst_25 : f32 to vector<16x1xf32>
    %92 = arith.divf %90, %91 : vector<16x1xf32>
    %93 = vector.broadcast %92 : vector<16x1xf32> to vector<16x32xf32>
    %94 = arith.subf %86, %93 : vector<16x32xf32>
    %95 = arith.mulf %94, %94 : vector<16x32xf32>
    %cst_26 = arith.constant dense<0.000000e+00> : vector<16xf32>
    %96 = vector.multi_reduction <add>, %95, %cst_26 [1] : vector<16x32xf32> to vector<16xf32>
    %97 = vector.shape_cast %96 : vector<16xf32> to vector<16x1xf32>
    %cst_27 = arith.constant 3.200000e+01 : f32
    %98 = vector.broadcast %cst_27 : f32 to vector<16x1xf32>
    %99 = arith.divf %97, %98 : vector<16x1xf32>
    %cst_28 = arith.constant 9.99999974E-6 : f32
    %100 = vector.broadcast %cst_28 : f32 to vector<16x1xf32>
    %101 = arith.addf %99, %100 : vector<16x1xf32>
    %102 = math.rsqrt %101 : vector<16x1xf32>
    %103 = vector.broadcast %102 : vector<16x1xf32> to vector<16x32xf32>
    %104 = arith.mulf %94, %103 : vector<16x32xf32>
    %105 = vector.broadcast %87 : vector<1x32xf32> to vector<16x32xf32>
    %106 = arith.mulf %104, %105 : vector<16x32xf32>
    %107 = vector.broadcast %88 : vector<1x32xf32> to vector<16x32xf32>
    %108 = arith.addf %106, %107 : vector<16x32xf32>
    %109 = arith.truncf %108 : vector<16x32xf32> to vector<16x32xbf16>
    %c0_29 = arith.constant 0 : index
    %c0_30 = arith.constant 0 : index
    %c0_31 = arith.constant 0 : index
    %110 = vector.load %arg4[%c0_29, %c0_30, %c0_31] : memref<1x32x32xbf16, #tpu.memory_space<vmem>>, vector<1x32x32xbf16>
    %111 = vector.shape_cast %110 : vector<1x32x32xbf16> to vector<32x32xbf16>
    %cst_32 = arith.constant dense<0.000000e+00> : vector<16x32xf32>
    %112 = tpu.matmul %109, %111, %cst_32 {dimension_numbers = #tpu.dot_dimension_numbers<[1], [0], [0], [1], [0, 0, 1, 1], [], []>} : vector<16x32xbf16>, vector<32x32xbf16>, vector<16x32xf32> -> vector<16x32xf32>
    %113 = vector.extract_strided_slice %4 {offsets = [6, 0], sizes = [1, 32], strides = [1, 1]} : vector<15x32xf32> to vector<1x32xf32>
    %114 = vector.broadcast %113 : vector<1x32xf32> to vector<16x32xf32>
    %115 = arith.addf %112, %114 : vector<16x32xf32>
    %c0_33 = arith.constant 0 : index
    %c0_34 = arith.constant 0 : index
    %c0_35 = arith.constant 0 : index
    %116 = vector.load %arg5[%c0_33, %c0_34, %c0_35] : memref<1x32x64xbf16, #tpu.memory_space<vmem>>, vector<1x32x64xbf16>
    %117 = vector.shape_cast %116 : vector<1x32x64xbf16> to vector<32x64xbf16>
    %cst_36 = arith.constant dense<0.000000e+00> : vector<16x64xf32>
    %118 = tpu.matmul %7, %117, %cst_36 {dimension_numbers = #tpu.dot_dimension_numbers<[1], [0], [0], [1], [0, 0, 1, 1], [], []>} : vector<16x32xbf16>, vector<32x64xbf16>, vector<16x64xf32> -> vector<16x64xf32>
    %119 = vector.extract_strided_slice %118 {offsets = [0, 0], sizes = [16, 32], strides = [1, 1]} : vector<16x64xf32> to vector<16x32xf32>
    %120 = vector.extract_strided_slice %4 {offsets = [7, 0], sizes = [1, 32], strides = [1, 1]} : vector<15x32xf32> to vector<1x32xf32>
    %121 = vector.broadcast %120 : vector<1x32xf32> to vector<16x32xf32>
    %122 = arith.addf %119, %121 : vector<16x32xf32>
    %123 = vector.extract_strided_slice %118 {offsets = [0, 32], sizes = [16, 32], strides = [1, 1]} : vector<16x64xf32> to vector<16x32xf32>
    %124 = vector.extract_strided_slice %4 {offsets = [8, 0], sizes = [1, 32], strides = [1, 1]} : vector<15x32xf32> to vector<1x32xf32>
    %125 = vector.broadcast %124 : vector<1x32xf32> to vector<16x32xf32>
    %126 = arith.addf %123, %125 : vector<16x32xf32>
    %127 = vector.extract_strided_slice %115 {offsets = [0, 0], sizes = [8, 32], strides = [1, 1]} : vector<16x32xf32> to vector<8x32xf32>
    %128 = vector.shape_cast %127 : vector<8x32xf32> to vector<8x4x8xf32>
    %129 = arith.truncf %128 : vector<8x4x8xf32> to vector<8x4x8xbf16>
    %130 = vector.extract_strided_slice %122 {offsets = [0, 0], sizes = [8, 32], strides = [1, 1]} : vector<16x32xf32> to vector<8x32xf32>
    %131 = vector.shape_cast %130 : vector<8x32xf32> to vector<8x4x8xf32>
    %132 = arith.truncf %131 : vector<8x4x8xf32> to vector<8x4x8xbf16>
    %133 = vector.extract_strided_slice %126 {offsets = [0, 0], sizes = [8, 32], strides = [1, 1]} : vector<16x32xf32> to vector<8x32xf32>
    %134 = vector.shape_cast %133 : vector<8x32xf32> to vector<8x4x8xf32>
    %135 = arith.truncf %134 : vector<8x4x8xf32> to vector<8x4x8xbf16>
    "tpu.trace_start"() <{level = 10 : i32, message = "qhf,khf->hqk"}> : () -> ()
    %cst_37 = arith.constant dense<0.000000e+00> : vector<4x8x8xf32>
    %136 = tpu.matmul %129, %132, %cst_37 {dimension_numbers = #tpu.dot_dimension_numbers<[2], [2], [0], [0], [0, 1, 0, 0, 1, 0], [1], [1]>} : vector<8x4x8xbf16>, vector<8x4x8xbf16>, vector<4x8x8xf32> -> vector<4x8x8xf32>
    "tpu.trace_stop"() : () -> ()
    %137 = vector.shape_cast %5 : vector<8x8xf32> to vector<1x8x8xf32>
    %138 = vector.broadcast %137 : vector<1x8x8xf32> to vector<4x8x8xf32>
    %139 = arith.addf %136, %138 : vector<4x8x8xf32>
    %cst_38 = arith.constant dense<0xFF800000> : vector<4x8xf32>
    %140 = vector.multi_reduction <maximumf>, %139, %cst_38 [2] : vector<4x8x8xf32> to vector<4x8xf32>
    %141 = vector.shape_cast %140 : vector<4x8xf32> to vector<4x8x1xf32>
    %142 = vector.broadcast %141 : vector<4x8x1xf32> to vector<4x8x8xf32>
    %143 = arith.subf %139, %142 : vector<4x8x8xf32>
    %144 = math.exp %143 : vector<4x8x8xf32>
    %cst_39 = arith.constant dense<0.000000e+00> : vector<4x8xf32>
    %145 = vector.multi_reduction <add>, %144, %cst_39 [2] : vector<4x8x8xf32> to vector<4x8xf32>
    %146 = vector.shape_cast %145 : vector<4x8xf32> to vector<4x8x1xf32>
    %147 = tpu.reciprocal %146 {approx = true} : vector<4x8x1xf32> -> vector<4x8x1xf32>
    %148 = vector.broadcast %147 : vector<4x8x1xf32> to vector<4x8x8xf32>
    %149 = arith.mulf %144, %148 : vector<4x8x8xf32>
    %150 = arith.truncf %149 : vector<4x8x8xf32> to vector<4x8x8xbf16>
    "tpu.trace_start"() <{level = 10 : i32, message = "hqk,khf->qhf"}> : () -> ()
    %cst_40 = arith.constant dense<0.000000e+00> : vector<4x8x8xf32>
    %151 = tpu.matmul %135, %150, %cst_40 {dimension_numbers = #tpu.dot_dimension_numbers<[0], [2], [2], [1], [0, 1, 0, 2, 1, 1], [1], [0]>} : vector<8x4x8xbf16>, vector<4x8x8xbf16>, vector<4x8x8xf32> -> vector<4x8x8xf32>
    %152 = tpu.transpose %151, [2, 0, 1] : vector<4x8x8xf32> -> vector<8x4x8xf32>
    "tpu.trace_stop"() : () -> ()
    %153 = vector.shape_cast %152 : vector<8x4x8xf32> to vector<8x32xf32>
    %154 = vector.extract_strided_slice %115 {offsets = [8, 0], sizes = [8, 32], strides = [1, 1]} : vector<16x32xf32> to vector<8x32xf32>
    %155 = vector.shape_cast %154 : vector<8x32xf32> to vector<8x4x8xf32>
    %156 = arith.truncf %155 : vector<8x4x8xf32> to vector<8x4x8xbf16>
    %157 = vector.extract_strided_slice %122 {offsets = [8, 0], sizes = [8, 32], strides = [1, 1]} : vector<16x32xf32> to vector<8x32xf32>
    %158 = vector.shape_cast %157 : vector<8x32xf32> to vector<8x4x8xf32>
    %159 = arith.truncf %158 : vector<8x4x8xf32> to vector<8x4x8xbf16>
    %160 = vector.extract_strided_slice %126 {offsets = [8, 0], sizes = [8, 32], strides = [1, 1]} : vector<16x32xf32> to vector<8x32xf32>
    %161 = vector.shape_cast %160 : vector<8x32xf32> to vector<8x4x8xf32>
    %162 = arith.truncf %161 : vector<8x4x8xf32> to vector<8x4x8xbf16>
    "tpu.trace_start"() <{level = 10 : i32, message = "qhf,khf->hqk"}> : () -> ()
    %cst_41 = arith.constant dense<0.000000e+00> : vector<4x8x8xf32>
    %163 = tpu.matmul %156, %159, %cst_41 {dimension_numbers = #tpu.dot_dimension_numbers<[2], [2], [0], [0], [0, 1, 0, 0, 1, 0], [1], [1]>} : vector<8x4x8xbf16>, vector<8x4x8xbf16>, vector<4x8x8xf32> -> vector<4x8x8xf32>
    "tpu.trace_stop"() : () -> ()
    %164 = vector.shape_cast %5 : vector<8x8xf32> to vector<1x8x8xf32>
    %165 = vector.broadcast %164 : vector<1x8x8xf32> to vector<4x8x8xf32>
    %166 = arith.addf %163, %165 : vector<4x8x8xf32>
    %cst_42 = arith.constant dense<0xFF800000> : vector<4x8xf32>
    %167 = vector.multi_reduction <maximumf>, %166, %cst_42 [2] : vector<4x8x8xf32> to vector<4x8xf32>
    %168 = vector.shape_cast %167 : vector<4x8xf32> to vector<4x8x1xf32>
    %169 = vector.broadcast %168 : vector<4x8x1xf32> to vector<4x8x8xf32>
    %170 = arith.subf %166, %169 : vector<4x8x8xf32>
    %171 = math.exp %170 : vector<4x8x8xf32>
    %cst_43 = arith.constant dense<0.000000e+00> : vector<4x8xf32>
    %172 = vector.multi_reduction <add>, %171, %cst_43 [2] : vector<4x8x8xf32> to vector<4x8xf32>
    %173 = vector.shape_cast %172 : vector<4x8xf32> to vector<4x8x1xf32>
    %174 = tpu.reciprocal %173 {approx = true} : vector<4x8x1xf32> -> vector<4x8x1xf32>
    %175 = vector.broadcast %174 : vector<4x8x1xf32> to vector<4x8x8xf32>
    %176 = arith.mulf %171, %175 : vector<4x8x8xf32>
    %177 = arith.truncf %176 : vector<4x8x8xf32> to vector<4x8x8xbf16>
    "tpu.trace_start"() <{level = 10 : i32, message = "hqk,khf->qhf"}> : () -> ()
    %cst_44 = arith.constant dense<0.000000e+00> : vector<4x8x8xf32>
    %178 = tpu.matmul %162, %177, %cst_44 {dimension_numbers = #tpu.dot_dimension_numbers<[0], [2], [2], [1], [0, 1, 0, 2, 1, 1], [1], [0]>} : vector<8x4x8xbf16>, vector<4x8x8xbf16>, vector<4x8x8xf32> -> vector<4x8x8xf32>
    %179 = tpu.transpose %178, [2, 0, 1] : vector<4x8x8xf32> -> vector<8x4x8xf32>
    "tpu.trace_stop"() : () -> ()
    %180 = vector.shape_cast %179 : vector<8x4x8xf32> to vector<8x32xf32>
    %181 = tpu.concatenate %153, %180 in 0 : vector<8x32xf32>, vector<8x32xf32> -> vector<16x32xf32>
    %182 = arith.truncf %181 : vector<16x32xf32> to vector<16x32xbf16>
    %c0_45 = arith.constant 0 : index
    %c0_46 = arith.constant 0 : index
    %c0_47 = arith.constant 0 : index
    %183 = vector.load %arg6[%c0_45, %c0_46, %c0_47] : memref<1x32x32xbf16, #tpu.memory_space<vmem>>, vector<1x32x32xbf16>
    %184 = vector.shape_cast %183 : vector<1x32x32xbf16> to vector<32x32xbf16>
    %cst_48 = arith.constant dense<0.000000e+00> : vector<16x32xf32>
    %185 = tpu.matmul %182, %184, %cst_48 {dimension_numbers = #tpu.dot_dimension_numbers<[1], [0], [0], [1], [0, 0, 1, 1], [], []>} : vector<16x32xbf16>, vector<32x32xbf16>, vector<16x32xf32> -> vector<16x32xf32>
    %186 = vector.extract_strided_slice %4 {offsets = [9, 0], sizes = [1, 32], strides = [1, 1]} : vector<15x32xf32> to vector<1x32xf32>
    %187 = vector.broadcast %186 : vector<1x32xf32> to vector<16x32xf32>
    %188 = arith.addf %185, %187 : vector<16x32xf32>
    %189 = arith.addf %108, %188 : vector<16x32xf32>
    %190 = vector.extract_strided_slice %4 {offsets = [10, 0], sizes = [1, 32], strides = [1, 1]} : vector<15x32xf32> to vector<1x32xf32>
    %191 = vector.extract_strided_slice %4 {offsets = [11, 0], sizes = [1, 32], strides = [1, 1]} : vector<15x32xf32> to vector<1x32xf32>
    %cst_49 = arith.constant dense<0.000000e+00> : vector<16xf32>
    %192 = vector.multi_reduction <add>, %189, %cst_49 [1] : vector<16x32xf32> to vector<16xf32>
    %193 = vector.shape_cast %192 : vector<16xf32> to vector<16x1xf32>
    %cst_50 = arith.constant 3.200000e+01 : f32
    %194 = vector.broadcast %cst_50 : f32 to vector<16x1xf32>
    %195 = arith.divf %193, %194 : vector<16x1xf32>
    %196 = vector.broadcast %195 : vector<16x1xf32> to vector<16x32xf32>
    %197 = arith.subf %189, %196 : vector<16x32xf32>
    %198 = arith.mulf %197, %197 : vector<16x32xf32>
    %cst_51 = arith.constant dense<0.000000e+00> : vector<16xf32>
    %199 = vector.multi_reduction <add>, %198, %cst_51 [1] : vector<16x32xf32> to vector<16xf32>
    %200 = vector.shape_cast %199 : vector<16xf32> to vector<16x1xf32>
    %cst_52 = arith.constant 3.200000e+01 : f32
    %201 = vector.broadcast %cst_52 : f32 to vector<16x1xf32>
    %202 = arith.divf %200, %201 : vector<16x1xf32>
    %cst_53 = arith.constant 9.99999974E-6 : f32
    %203 = vector.broadcast %cst_53 : f32 to vector<16x1xf32>
    %204 = arith.addf %202, %203 : vector<16x1xf32>
    %205 = math.rsqrt %204 : vector<16x1xf32>
    %206 = vector.broadcast %205 : vector<16x1xf32> to vector<16x32xf32>
    %207 = arith.mulf %197, %206 : vector<16x32xf32>
    %208 = vector.broadcast %190 : vector<1x32xf32> to vector<16x32xf32>
    %209 = arith.mulf %207, %208 : vector<16x32xf32>
    %210 = vector.broadcast %191 : vector<1x32xf32> to vector<16x32xf32>
    %211 = arith.addf %209, %210 : vector<16x32xf32>
    %212 = arith.truncf %211 : vector<16x32xf32> to vector<16x32xbf16>
    %c0_54 = arith.constant 0 : index
    %c0_55 = arith.constant 0 : index
    %c0_56 = arith.constant 0 : index
    %213 = vector.load %arg7[%c0_54, %c0_55, %c0_56] : memref<1x32x2048xbf16, #tpu.memory_space<vmem>>, vector<1x32x2048xbf16>
    %214 = vector.shape_cast %213 : vector<1x32x2048xbf16> to vector<32x2048xbf16>
    %cst_57 = arith.constant dense<0.000000e+00> : vector<16x2048xf32>
    %215 = tpu.matmul %212, %214, %cst_57 {dimension_numbers = #tpu.dot_dimension_numbers<[1], [0], [0], [1], [0, 0, 1, 1], [], []>} : vector<16x32xbf16>, vector<32x2048xbf16>, vector<16x2048xf32> -> vector<16x2048xf32>
    %c0_58 = arith.constant 0 : index
    %c0_59 = arith.constant 0 : index
    %c0_60 = arith.constant 0 : index
    %216 = vector.load %arg10[%c0_58, %c0_59, %c0_60] : memref<1x1x2048xf32, #tpu.memory_space<vmem>>, vector<1x1x2048xf32>
    %217 = vector.shape_cast %216 : vector<1x1x2048xf32> to vector<1x2048xf32>
    %218 = vector.broadcast %217 : vector<1x2048xf32> to vector<16x2048xf32>
    %219 = arith.addf %215, %218 : vector<16x2048xf32>
    %cst_61 = arith.constant 0.000000e+00 : f32
    %220 = vector.broadcast %cst_61 : f32 to vector<16x2048xf32>
    %221 = arith.maximumf %219, %220 : vector<16x2048xf32>
    %222 = arith.truncf %221 : vector<16x2048xf32> to vector<16x2048xbf16>
    %c0_62 = arith.constant 0 : index
    %c0_63 = arith.constant 0 : index
    %c0_64 = arith.constant 0 : index
    %223 = vector.load %arg8[%c0_62, %c0_63, %c0_64] : memref<1x2048x32xbf16, #tpu.memory_space<vmem>>, vector<1x2048x32xbf16>
    %224 = vector.shape_cast %223 : vector<1x2048x32xbf16> to vector<2048x32xbf16>
    %cst_65 = arith.constant dense<0.000000e+00> : vector<16x32xf32>
    %225 = tpu.matmul %222, %224, %cst_65 {dimension_numbers = #tpu.dot_dimension_numbers<[1], [0], [0], [1], [0, 0, 1, 1], [], []>} : vector<16x2048xbf16>, vector<2048x32xbf16>, vector<16x32xf32> -> vector<16x32xf32>
    %226 = vector.extract_strided_slice %4 {offsets = [12, 0], sizes = [1, 32], strides = [1, 1]} : vector<15x32xf32> to vector<1x32xf32>
    %227 = vector.broadcast %226 : vector<1x32xf32> to vector<16x32xf32>
    %228 = arith.addf %225, %227 : vector<16x32xf32>
    %229 = arith.addf %211, %228 : vector<16x32xf32>
    %230 = vector.extract_strided_slice %4 {offsets = [13, 0], sizes = [1, 32], strides = [1, 1]} : vector<15x32xf32> to vector<1x32xf32>
    %231 = vector.extract_strided_slice %4 {offsets = [14, 0], sizes = [1, 32], strides = [1, 1]} : vector<15x32xf32> to vector<1x32xf32>
    %cst_66 = arith.constant dense<0.000000e+00> : vector<16xf32>
    %232 = vector.multi_reduction <add>, %229, %cst_66 [1] : vector<16x32xf32> to vector<16xf32>
    %233 = vector.shape_cast %232 : vector<16xf32> to vector<16x1xf32>
    %cst_67 = arith.constant 3.200000e+01 : f32
    %234 = vector.broadcast %cst_67 : f32 to vector<16x1xf32>
    %235 = arith.divf %233, %234 : vector<16x1xf32>
    %236 = vector.broadcast %235 : vector<16x1xf32> to vector<16x32xf32>
    %237 = arith.subf %229, %236 : vector<16x32xf32>
    %238 = arith.mulf %237, %237 : vector<16x32xf32>
    %cst_68 = arith.constant dense<0.000000e+00> : vector<16xf32>
    %239 = vector.multi_reduction <add>, %238, %cst_68 [1] : vector<16x32xf32> to vector<16xf32>
    %240 = vector.shape_cast %239 : vector<16xf32> to vector<16x1xf32>
    %cst_69 = arith.constant 3.200000e+01 : f32
    %241 = vector.broadcast %cst_69 : f32 to vector<16x1xf32>
    %242 = arith.divf %240, %241 : vector<16x1xf32>
    %cst_70 = arith.constant 9.99999974E-6 : f32
    %243 = vector.broadcast %cst_70 : f32 to vector<16x1xf32>
    %244 = arith.addf %242, %243 : vector<16x1xf32>
    %245 = math.rsqrt %244 : vector<16x1xf32>
    %246 = vector.broadcast %245 : vector<16x1xf32> to vector<16x32xf32>
    %247 = arith.mulf %237, %246 : vector<16x32xf32>
    %248 = vector.broadcast %230 : vector<1x32xf32> to vector<16x32xf32>
    %249 = arith.mulf %247, %248 : vector<16x32xf32>
    %250 = vector.broadcast %231 : vector<1x32xf32> to vector<16x32xf32>
    %251 = arith.addf %249, %250 : vector<16x32xf32>
    %c0_71 = arith.constant 0 : index
    %c0_72 = arith.constant 0 : index
    %252 = vector.load %arg14[%c0_71, %c0_72] : memref<16x32xf32, #tpu.memory_space<vmem>>, vector<16x32xf32>
    tpu.vector_store %arg14[%c0_71, %c0_72], %251 {strides = array<i32>} : memref<16x32xf32, #tpu.memory_space<vmem>>, vector<16x32xf32>,
    %c1_i32 = arith.constant 1 : i32
    %253 = arith.cmpi eq, %arg0, %c1_i32 : i32
    %254 = arith.extui %253 : i1 to i32
    %c0_i32_73 = arith.constant 0 : i32
    %255 = arith.cmpi ne, %254, %c0_i32_73 : i32
    scf.if %255 {
      %256 = vector.shape_cast %251 : vector<16x32xf32> to vector<2x8x32xf32>
      %257 = vector.extract_strided_slice %256 {offsets = [0, 7, 0], sizes = [2, 1, 32], strides = [1, 1, 1]} : vector<2x8x32xf32> to vector<2x1x32xf32>
      %258 = vector.shape_cast %257 : vector<2x1x32xf32> to vector<2x32xf32>
      %259 = arith.truncf %258 : vector<2x32xf32> to vector<2x32xbf16>
      %c0_74 = arith.constant 0 : index
      %c0_75 = arith.constant 0 : index
      %260 = vector.load %arg11[%c0_74, %c0_75] : memref<32x128xbf16, #tpu.memory_space<vmem>>, vector<32x128xbf16>
      %cst_76 = arith.constant dense<0.000000e+00> : vector<2x128xf32>
      %261 = tpu.matmul %259, %260, %cst_76 {dimension_numbers = #tpu.dot_dimension_numbers<[1], [0], [0], [1], [0, 0, 1, 1], [], []>} : vector<2x32xbf16>, vector<32x128xbf16>, vector<2x128xf32> -> vector<2x128xf32>
      %c0_77 = arith.constant 0 : index
      %c0_78 = arith.constant 0 : index
      %262 = vector.load %arg12[%c0_77, %c0_78] : memref<1x128xf32, #tpu.memory_space<vmem>>, vector<1x128xf32>
      %263 = vector.broadcast %262 : vector<1x128xf32> to vector<2x128xf32>
      %264 = arith.addf %261, %263 : vector<2x128xf32>
      %c0_79 = arith.constant 0 : index
      %c0_80 = arith.constant 0 : index
      %265 = vector.load %arg13[%c0_79, %c0_80] : memref<2x128xf32, #tpu.memory_space<vmem>>, vector<2x128xf32>
      tpu.vector_store %arg13[%c0_79, %c0_80], %264 {strides = array<i32>} : memref<2x128xf32, #tpu.memory_space<vmem>>, vector<2x128xf32>,
    } else {
    }
    return
  }
  func.func @transform_0(%arg0: i32) -> (i32, i32, i32) {
    %c0_i32 = arith.constant 0 : i32
    %c0_i32_0 = arith.constant 0 : i32
    %c0_i32_1 = arith.constant 0 : i32
    %c0_i32_2 = arith.constant 0 : i32
    return %c0_i32, %c0_i32_0, %c0_i32_1 : i32, i32, i32
  }
  func.func @transform_1(%arg0: i32) -> (i32, i32, i32) {
    %c0_i32 = arith.constant 0 : i32
    %c0_i32_0 = arith.constant 0 : i32
    %c0_i32_1 = arith.constant 0 : i32
    return %arg0, %c0_i32, %c0_i32_0 : i32, i32, i32
  }
  func.func @transform_2(%arg0: i32) -> (i32, i32, i32) {
    %c0_i32 = arith.constant 0 : i32
    %c0_i32_0 = arith.constant 0 : i32
    %c0_i32_1 = arith.constant 0 : i32
    return %arg0, %c0_i32, %c0_i32_0 : i32, i32, i32
  }
  func.func @transform_3(%arg0: i32) -> (i32, i32, i32) {
    %c0_i32 = arith.constant 0 : i32
    %c0_i32_0 = arith.constant 0 : i32
    %c0_i32_1 = arith.constant 0 : i32
    return %arg0, %c0_i32, %c0_i32_0 : i32, i32, i32
  }
  func.func @transform_4(%arg0: i32) -> (i32, i32, i32) {
    %c0_i32 = arith.constant 0 : i32
    %c0_i32_0 = arith.constant 0 : i32
    %c0_i32_1 = arith.constant 0 : i32
    return %arg0, %c0_i32, %c0_i32_0 : i32, i32, i32
  }
  func.func @transform_5(%arg0: i32) -> (i32, i32, i32) {
    %c0_i32 = arith.constant 0 : i32
    %c0_i32_0 = arith.constant 0 : i32
    %c0_i32_1 = arith.constant 0 : i32
    return %arg0, %c0_i32, %c0_i32_0 : i32, i32, i32
  }
  func.func @transform_6(%arg0: i32) -> (i32, i32, i32) {
    %c0_i32 = arith.constant 0 : i32
    %c0_i32_0 = arith.constant 0 : i32
    %c0_i32_1 = arith.constant 0 : i32
    return %arg0, %c0_i32, %c0_i32_0 : i32, i32, i32
  }
  func.func @transform_7(%arg0: i32) -> (i32, i32, i32) {
    %c0_i32 = arith.constant 0 : i32
    %c0_i32_0 = arith.constant 0 : i32
    %c0_i32_1 = arith.constant 0 : i32
    return %arg0, %c0_i32, %c0_i32_0 : i32, i32, i32
  }
  func.func @transform_8(%arg0: i32) -> (i32, i32, i32) {
    %c0_i32 = arith.constant 0 : i32
    %c0_i32_0 = arith.constant 0 : i32
    %c0_i32_1 = arith.constant 0 : i32
    return %arg0, %c0_i32, %c0_i32_0 : i32, i32, i32
  }
  func.func @transform_9(%arg0: i32) -> (i32, i32, i32) {
    %c0_i32 = arith.constant 0 : i32
    %c0_i32_0 = arith.constant 0 : i32
    %c0_i32_1 = arith.constant 0 : i32
    return %arg0, %c0_i32, %c0_i32_0 : i32, i32, i32
  }
  func.func @transform_10(%arg0: i32) -> (i32, i32) {
    %c0_i32 = arith.constant 0 : i32
    %c0_i32_0 = arith.constant 0 : i32
    %c0_i32_1 = arith.constant 0 : i32
    return %c0_i32, %c0_i32_0 : i32, i32
  }
  func.func @transform_11(%arg0: i32) -> (i32, i32) {
    %c0_i32 = arith.constant 0 : i32
    %c0_i32_0 = arith.constant 0 : i32
    %c0_i32_1 = arith.constant 0 : i32
    return %c0_i32, %c0_i32_0 : i32, i32
  }
  func.func @transform_12(%arg0: i32) -> (i32, i32) {
    %c0_i32 = arith.constant 0 : i32
    %c0_i32_0 = arith.constant 0 : i32
    %c0_i32_1 = arith.constant 0 : i32
    return %c0_i32, %c0_i32_0 : i32, i32
  }
}

</mosaic_0001>

<llo_original>
// kernel: tpu_custom_call.1
$region0: #{tpu_custom_call.1}
  #allocation0 [shape = 'u32[]', space=smem, size = 0x4, offset = 0x4, fixed_abs, tag = 'smem constant byte address 0x4 - core index']
  #allocation1 [shape = 'u32[144,128]{1,0:T(1,128)}', space=vmem, size = 0x12000, scoped, tag = 'internal scratch']
  #allocation2 [shape = 'f32[16,32]{1,0:T(8,128)}', space=vmem, size = 0x2000, scoped, tag = 'scratch operand']
  #allocation3 [shape = 'bf16[16,32]{1,0:T(16,128)(2,1)}', space=vmem, size = 0x1000, scoped, tag = 'scratch operand']
  #allocation4 [shape = 'f32[8,8]{1,0:T(8,128)}', space=vmem, size = 0x1000, scoped, tag = 'scratch operand']
  %s0 = inlined_call_operand.vmem [shape: f32[2,8,32], index: 0, kind: input, shape index: {}]
  %s1 = inlined_call_operand.vmem [shape: bf16[2,32,96], index: 1, kind: input, shape index: {}]
  %s2 = inlined_call_operand.vmem [shape: bf16[2,32,32], index: 2, kind: input, shape index: {}]
  %s3 = inlined_call_operand.vmem [shape: bf16[2,32,32], index: 3, kind: input, shape index: {}]
  %s4 = inlined_call_operand.vmem [shape: bf16[2,32,64], index: 4, kind: input, shape index: {}]
  %s5 = inlined_call_operand.vmem [shape: bf16[2,32,32], index: 5, kind: input, shape index: {}]
  %s6 = inlined_call_operand.vmem [shape: bf16[2,32,2048], index: 6, kind: input, shape index: {}]
  %s7 = inlined_call_operand.vmem [shape: bf16[2,2048,32], index: 7, kind: input, shape index: {}]
  %s8 = inlined_call_operand.vmem [shape: f32[2,15,32], index: 8, kind: input, shape index: {}]
  %s9 = inlined_call_operand.vmem [shape: f32[2,1,2048], index: 9, kind: input, shape index: {}]
  %s10 = inlined_call_operand.vmem [shape: bf16[32,128], index: 10, kind: input, shape index: {}]
  %s11 = inlined_call_operand.vmem [shape: f32[1,128], index: 11, kind: input, shape index: {}]
  %s12 = inlined_call_operand.hbm [shape: f32[2,128], index: 12, kind: output, shape index: {}]
  %s13 = sld [smem:[#allocation0]]
  $region89: #{tpu_custom_call.1} parent=0
    _
  %s15 = ssub.s32 1, %s13
  %s16 = scalar_select 0, %s15, %s13
  $region1: #{tpu_custom_call.1} parent=0
    #allocation5 [shape = 'u8[1024]{0}', space=vmem, size = 0x400, scoped, tag = 'output window, operand 0, single buffered']
    #allocation6 [shape = 's32[2]{0}', space=sflag, size = 0x8, scoped, tag = 'scoped memory for tpu_custom_call.1']
    %17 = vsyncpa [#allocation6], 0
    loop: start=0, step=1, limit=4
    $region2: #{tpu_custom_call.1} parent=1 // loop_pre_header
      _
    $region3: #{tpu_custom_call.1} parent=1 // loop_header
      %s19 = sphi 0, %s23
      %p20 = scmp.ge.s32.totalorder %s19, 4
      %s27 = sphi 0, %s27
      %s29 = sphi 0, %s27
      %s30 = sphi 0, %s29
      %s44 = sphi 0, %s30
      %s50 = sphi 0, %s52
      %s53 = sphi 0, %s50
      %s54 = sphi 0, %s53
      %s70 = sphi 0, %s54
      %s76 = sphi 0, %s78
      %s79 = sphi 0, %s76
      %s80 = sphi 0, %s79
      %s96 = sphi 0, %s80
      %s102 = sphi 0, %s104
      %s105 = sphi 0, %s102
      %s106 = sphi 0, %s105
      %s122 = sphi 0, %s106
      %s128 = sphi 0, %s130
      %s131 = sphi 0, %s128
      %s132 = sphi 0, %s131
      %s148 = sphi 0, %s132
      %s154 = sphi 0, %s156
      %s157 = sphi 0, %s154
      %s158 = sphi 0, %s157
      %s174 = sphi 0, %s158
      %s180 = sphi 0, %s182
      %s183 = sphi 0, %s180
      %s184 = sphi 0, %s183
      %s200 = sphi 0, %s184
      %s206 = sphi 0, %s208
      %s209 = sphi 0, %s206
      %s210 = sphi 0, %s209
      %s226 = sphi 0, %s210
      %s232 = sphi 0, %s234
      %s235 = sphi 0, %s232
      %s236 = sphi 0, %s235
      %s252 = sphi 0, %s236
      %s258 = sphi 0, %s260
      %s261 = sphi 0, %s258
      %s262 = sphi 0, %s261
      %s278 = sphi 0, %s262
      %s282 = sphi 0, %s282
      %s284 = sphi 0, %s282
      %s285 = sphi 0, %s284
      %s299 = sphi 0, %s285
      %s303 = sphi 0, %s303
      %s305 = sphi 0, %s303
      %s306 = sphi 0, %s305
      %s320 = sphi 0, %s306
      %s324 = sphi 0, %s324
      %s326 = sphi 0, %s324
      %s327 = sphi 0, %s326
      %s341 = sphi 0, %s327
    $region4: #{tpu_custom_call.1} parent=1 // loop_header_branch
      %22 = sbr.rel (%p20) target = $region8
    $region5: #{tpu_custom_call.1} parent=1 // loop_body
      %s24 = ssub.s32 %s19, 1
      %s25 = ssub.s32 %s19, 2
      %s26 = sadd.s32 %s19, 1
      %s28 = sadd.s32 %s27, 1
      %p31 = scmp.eq.s32.totalorder %s19, 1
      %p32 = scmp.ne.s32.totalorder %s27, %s29
      %p33 = scmp.eq.s32.totalorder %s19, 0
      %p34 = por %p32, %p33
      %p35 = scmp.ne.s32.totalorder %s27, %s29
      %p36 = scmp.eq.s32.totalorder %s24, 1
      %p37 = por %p35, %p36
      %p38 = scmp.ne.s32.totalorder %s29, %s30
      %p39 = scmp.eq.s32.totalorder %s24, 0
      %p40 = por %p38, %p39
      %p41 = scmp.ne.s32.totalorder %s29, %s30
      %p42 = scmp.eq.s32.totalorder %s25, 1
      %p43 = por %p41, %p42
      %p45 = scmp.ne.s32.totalorder %s30, %s44
      %p46 = scmp.eq.s32.totalorder %s25, 0
      %p47 = por %p45, %p46
      %s48 = ssub.s32 %s19, %s26
      %p49 = scmp.eq.s32.totalorder %s48, 0
      %s51 = sadd.s32 %s50, 1
      %s52 = scalar_select %p49, %s50, %s51
      %p55 = pneg %p49
      %p56 = scmp.eq.s32.totalorder %s19, 1
      %p57 = por %p55, %p56
      %p58 = scmp.ne.s32.totalorder %s50, %s53
      %p59 = scmp.eq.s32.totalorder %s19, 0
      %p60 = por %p58, %p59
      %p61 = scmp.ne.s32.totalorder %s50, %s53
      %p62 = scmp.eq.s32.totalorder %s24, 1
      %p63 = por %p61, %p62
      %p64 = scmp.ne.s32.totalorder %s53, %s54
      %p65 = scmp.eq.s32.totalorder %s24, 0
      %p66 = por %p64, %p65
      %p67 = scmp.ne.s32.totalorder %s53, %s54
      %p68 = scmp.eq.s32.totalorder %s25, 1
      %p69 = por %p67, %p68
      %p71 = scmp.ne.s32.totalorder %s54, %s70
      %p72 = scmp.eq.s32.totalorder %s25, 0
      %p73 = por %p71, %p72
      %s74 = ssub.s32 %s19, %s26
      %p75 = scmp.eq.s32.totalorder %s74, 0
      %s77 = sadd.s32 %s76, 1
      %s78 = scalar_select %p75, %s76, %s77
      %p81 = pneg %p75
      %p82 = scmp.eq.s32.totalorder %s19, 1
      %p83 = por %p81, %p82
      %p84 = scmp.ne.s32.totalorder %s76, %s79
      %p85 = scmp.eq.s32.totalorder %s19, 0
      %p86 = por %p84, %p85
      %p87 = scmp.ne.s32.totalorder %s76, %s79
      %p88 = scmp.eq.s32.totalorder %s24, 1
      %p89 = por %p87, %p88
      %p90 = scmp.ne.s32.totalorder %s79, %s80
      %p91 = scmp.eq.s32.totalorder %s24, 0
      %p92 = por %p90, %p91
      %p93 = scmp.ne.s32.totalorder %s79, %s80
      %p94 = scmp.eq.s32.totalorder %s25, 1
      %p95 = por %p93, %p94
      %p97 = scmp.ne.s32.totalorder %s80, %s96
      %p98 = scmp.eq.s32.totalorder %s25, 0
      %p99 = por %p97, %p98
      %s100 = ssub.s32 %s19, %s26
      %p101 = scmp.eq.s32.totalorder %s100, 0
      %s103 = sadd.s32 %s102, 1
      %s104 = scalar_select %p101, %s102, %s103
      %p107 = pneg %p101
      %p108 = scmp.eq.s32.totalorder %s19, 1
      %p109 = por %p107, %p108
      %p110 = scmp.ne.s32.totalorder %s102, %s105
      %p111 = scmp.eq.s32.totalorder %s19, 0
      %p112 = por %p110, %p111
      %p113 = scmp.ne.s32.totalorder %s102, %s105
      %p114 = scmp.eq.s32.totalorder %s24, 1
      %p115 = por %p113, %p114
      %p116 = scmp.ne.s32.totalorder %s105, %s106
      %p117 = scmp.eq.s32.totalorder %s24, 0
      %p118 = por %p116, %p117
      %p119 = scmp.ne.s32.totalorder %s105, %s106
      %p120 = scmp.eq.s32.totalorder %s25, 1
      %p121 = por %p119, %p120
      %p123 = scmp.ne.s32.totalorder %s106, %s122
      %p124 = scmp.eq.s32.totalorder %s25, 0
      %p125 = por %p123, %p124
      %s126 = ssub.s32 %s19, %s26
      %p127 = scmp.eq.s32.totalorder %s126, 0
      %s129 = sadd.s32 %s128, 1
      %s130 = scalar_select %p127, %s128, %s129
      %p133 = pneg %p127
      %p134 = scmp.eq.s32.totalorder %s19, 1
      %p135 = por %p133, %p134
      %p136 = scmp.ne.s32.totalorder %s128, %s131
      %p137 = scmp.eq.s32.totalorder %s19, 0
      %p138 = por %p136, %p137
      %p139 = scmp.ne.s32.totalorder %s128, %s131
      %p140 = scmp.eq.s32.totalorder %s24, 1
      %p141 = por %p139, %p140
      %p142 = scmp.ne.s32.totalorder %s131, %s132
      %p143 = scmp.eq.s32.totalorder %s24, 0
      %p144 = por %p142, %p143
      %p145 = scmp.ne.s32.totalorder %s131, %s132
      %p146 = scmp.eq.s32.totalorder %s25, 1
      %p147 = por %p145, %p146
      %p149 = scmp.ne.s32.totalorder %s132, %s148
      %p150 = scmp.eq.s32.totalorder %s25, 0
      %p151 = por %p149, %p150
      %s152 = ssub.s32 %s19, %s26
      %p153 = scmp.eq.s32.totalorder %s152, 0
      %s155 = sadd.s32 %s154, 1
      %s156 = scalar_select %p153, %s154, %s155
      %p159 = pneg %p153
      %p160 = scmp.eq.s32.totalorder %s19, 1
      %p161 = por %p159, %p160
      %p162 = scmp.ne.s32.totalorder %s154, %s157
      %p163 = scmp.eq.s32.totalorder %s19, 0
      %p164 = por %p162, %p163
      %p165 = scmp.ne.s32.totalorder %s154, %s157
      %p166 = scmp.eq.s32.totalorder %s24, 1
      %p167 = por %p165, %p166
      %p168 = scmp.ne.s32.totalorder %s157, %s158
      %p169 = scmp.eq.s32.totalorder %s24, 0
      %p170 = por %p168, %p169
      %p171 = scmp.ne.s32.totalorder %s157, %s158
      %p172 = scmp.eq.s32.totalorder %s25, 1
      %p173 = por %p171, %p172
      %p175 = scmp.ne.s32.totalorder %s158, %s174
      %p176 = scmp.eq.s32.totalorder %s25, 0
      %p177 = por %p175, %p176
      %s178 = ssub.s32 %s19, %s26
      %p179 = scmp.eq.s32.totalorder %s178, 0
      %s181 = sadd.s32 %s180, 1
      %s182 = scalar_select %p179, %s180, %s181
      %p185 = pneg %p179
      %p186 = scmp.eq.s32.totalorder %s19, 1
      %p187 = por %p185, %p186
      %p188 = scmp.ne.s32.totalorder %s180, %s183
      %p189 = scmp.eq.s32.totalorder %s19, 0
      %p190 = por %p188, %p189
      %p191 = scmp.ne.s32.totalorder %s180, %s183
      %p192 = scmp.eq.s32.totalorder %s24, 1
      %p193 = por %p191, %p192
      %p194 = scmp.ne.s32.totalorder %s183, %s184
      %p195 = scmp.eq.s32.totalorder %s24, 0
      %p196 = por %p194, %p195
      %p197 = scmp.ne.s32.totalorder %s183, %s184
      %p198 = scmp.eq.s32.totalorder %s25, 1
      %p199 = por %p197, %p198
      %p201 = scmp.ne.s32.totalorder %s184, %s200
      %p202 = scmp.eq.s32.totalorder %s25, 0
      %p203 = por %p201, %p202
      %s204 = ssub.s32 %s19, %s26
      %p205 = scmp.eq.s32.totalorder %s204, 0
      %s207 = sadd.s32 %s206, 1
      %s208 = scalar_select %p205, %s206, %s207
      %p211 = pneg %p205
      %p212 = scmp.eq.s32.totalorder %s19, 1
      %p213 = por %p211, %p212
      %p214 = scmp.ne.s32.totalorder %s206, %s209
      %p215 = scmp.eq.s32.totalorder %s19, 0
      %p216 = por %p214, %p215
      %p217 = scmp.ne.s32.totalorder %s206, %s209
      %p218 = scmp.eq.s32.totalorder %s24, 1
      %p219 = por %p217, %p218
      %p220 = scmp.ne.s32.totalorder %s209, %s210
      %p221 = scmp.eq.s32.totalorder %s24, 0
      %p222 = por %p220, %p221
      %p223 = scmp.ne.s32.totalorder %s209, %s210
      %p224 = scmp.eq.s32.totalorder %s25, 1
      %p225 = por %p223, %p224
      %p227 = scmp.ne.s32.totalorder %s210, %s226
      %p228 = scmp.eq.s32.totalorder %s25, 0
      %p229 = por %p227, %p228
      %s230 = ssub.s32 %s19, %s26
      %p231 = scmp.eq.s32.totalorder %s230, 0
      %s233 = sadd.s32 %s232, 1
      %s234 = scalar_select %p231, %s232, %s233
      %p237 = pneg %p231
      %p238 = scmp.eq.s32.totalorder %s19, 1
      %p239 = por %p237, %p238
      %p240 = scmp.ne.s32.totalorder %s232, %s235
      %p241 = scmp.eq.s32.totalorder %s19, 0
      %p242 = por %p240, %p241
      %p243 = scmp.ne.s32.totalorder %s232, %s235
      %p244 = scmp.eq.s32.totalorder %s24, 1
      %p245 = por %p243, %p244
      %p246 = scmp.ne.s32.totalorder %s235, %s236
      %p247 = scmp.eq.s32.totalorder %s24, 0
      %p248 = por %p246, %p247
      %p249 = scmp.ne.s32.totalorder %s235, %s236
      %p250 = scmp.eq.s32.totalorder %s25, 1
      %p251 = por %p249, %p250
      %p253 = scmp.ne.s32.totalorder %s236, %s252
      %p254 = scmp.eq.s32.totalorder %s25, 0
      %p255 = por %p253, %p254
      %s256 = ssub.s32 %s19, %s26
      %p257 = scmp.eq.s32.totalorder %s256, 0
      %s259 = sadd.s32 %s258, 1
      %s260 = scalar_select %p257, %s258, %s259
      %p263 = pneg %p257
      %p264 = scmp.eq.s32.totalorder %s19, 1
      %p265 = por %p263, %p264
      %p266 = scmp.ne.s32.totalorder %s258, %s261
      %p267 = scmp.eq.s32.totalorder %s19, 0
      %p268 = por %p266, %p267
      %p269 = scmp.ne.s32.totalorder %s258, %s261
      %p270 = scmp.eq.s32.totalorder %s24, 1
      %p271 = por %p269, %p270
      %p272 = scmp.ne.s32.totalorder %s261, %s262
      %p273 = scmp.eq.s32.totalorder %s24, 0
      %p274 = por %p272, %p273
      %p275 = scmp.ne.s32.totalorder %s261, %s262
      %p276 = scmp.eq.s32.totalorder %s25, 1
      %p277 = por %p275, %p276
      %p279 = scmp.ne.s32.totalorder %s262, %s278
      %p280 = scmp.eq.s32.totalorder %s25, 0
      %p281 = por %p279, %p280
      %s283 = sadd.s32 %s282, 1
      %p286 = scmp.eq.s32.totalorder %s19, 1
      %p287 = scmp.ne.s32.totalorder %s282, %s284
      %p288 = scmp.eq.s32.totalorder %s19, 0
      %p289 = por %p287, %p288
      %p290 = scmp.ne.s32.totalorder %s282, %s284
      %p291 = scmp.eq.s32.totalorder %s24, 1
      %p292 = por %p290, %p291
      %p293 = scmp.ne.s32.totalorder %s284, %s285
      %p294 = scmp.eq.s32.totalorder %s24, 0
      %p295 = por %p293, %p294
      %p296 = scmp.ne.s32.totalorder %s284, %s285
      %p297 = scmp.eq.s32.totalorder %s25, 1
      %p298 = por %p296, %p297
      %p300 = scmp.ne.s32.totalorder %s285, %s299
      %p301 = scmp.eq.s32.totalorder %s25, 0
      %p302 = por %p300, %p301
      %s304 = sadd.s32 %s303, 1
      %p307 = scmp.eq.s32.totalorder %s19, 1
      %p308 = scmp.ne.s32.totalorder %s303, %s305
      %p309 = scmp.eq.s32.totalorder %s19, 0
      %p310 = por %p308, %p309
      %p311 = scmp.ne.s32.totalorder %s303, %s305
      %p312 = scmp.eq.s32.totalorder %s24, 1
      %p313 = por %p311, %p312
      %p314 = scmp.ne.s32.totalorder %s305, %s306
      %p315 = scmp.eq.s32.totalorder %s24, 0
      %p316 = por %p314, %p315
      %p317 = scmp.ne.s32.totalorder %s305, %s306
      %p318 = scmp.eq.s32.totalorder %s25, 1
      %p319 = por %p317, %p318
      %p321 = scmp.ne.s32.totalorder %s306, %s320
      %p322 = scmp.eq.s32.totalorder %s25, 0
      %p323 = por %p321, %p322
      %s325 = sadd.s32 %s324, 1
      %p328 = scmp.eq.s32.totalorder %s19, 1
      %p329 = scmp.ne.s32.totalorder %s324, %s326
      %p330 = scmp.eq.s32.totalorder %s19, 0
      %p331 = por %p329, %p330
      %p332 = scmp.ne.s32.totalorder %s324, %s326
      %p333 = scmp.eq.s32.totalorder %s24, 1
      %p334 = por %p332, %p333
      %p335 = scmp.ne.s32.totalorder %s326, %s327
      %p336 = scmp.eq.s32.totalorder %s24, 0
      %p337 = por %p335, %p336
      %p338 = scmp.ne.s32.totalorder %s326, %s327
      %p339 = scmp.eq.s32.totalorder %s25, 1
      %p340 = por %p338, %p339
      %p342 = scmp.ne.s32.totalorder %s327, %s341
      %p343 = scmp.eq.s32.totalorder %s25, 0
      %p344 = por %p342, %p343
      %p345 = scmp.le.s32.totalorder 1, %s19
      %p346 = scmp.lt.s32.totalorder %s19, 3
      %p347 = pnand %p345, %p346
      %p348 = pneg %p347
      // Predicated region
      $region9: #{tpu_custom_call.1} parent=5 // pred_check
        _
      $region10: #{tpu_custom_call.1} parent=5 // pred_check_branch
        %350 = sbr.rel (%p347) target = $region12
      $region11: #{tpu_custom_call.1} parent=5 // pred_region
        %s351 = ssub.s32 %s19, 1
        // Predicated region
        $region13: #{tpu_custom_call.1} parent=11 // pred_check
          %p352 = pneg %p40
        $region14: #{tpu_custom_call.1} parent=11 // pred_check_branch
          %354 = sbr.rel (%p352) target = $region16
        $region15: #{tpu_custom_call.1} parent=11 // pred_region
          _
        $region16: #{tpu_custom_call.1} parent=11 // pred_fallthru
          _
        // Predicated region
        $region17: #{tpu_custom_call.1} parent=11 // pred_check
          %p355 = pneg %p295
        $region18: #{tpu_custom_call.1} parent=11 // pred_check_branch
          %357 = sbr.rel (%p355) target = $region20
        $region19: #{tpu_custom_call.1} parent=11 // pred_region
          _
        $region20: #{tpu_custom_call.1} parent=11 // pred_fallthru
          _
        // Predicated region
        $region21: #{tpu_custom_call.1} parent=11 // pred_check
          %p358 = pneg %p316
        $region22: #{tpu_custom_call.1} parent=11 // pred_check_branch
          %360 = sbr.rel (%p358) target = $region24
        $region23: #{tpu_custom_call.1} parent=11 // pred_region
          _
        $region24: #{tpu_custom_call.1} parent=11 // pred_fallthru
          _
      $region12: #{tpu_custom_call.1} parent=5 // pred_fallthru
        _
      %p361 = scmp.lt.s32.totalorder %s19, 2
      // Predicated region
      $region25: #{tpu_custom_call.1} parent=5 // pred_check
        %p362 = pneg %p361
      $region26: #{tpu_custom_call.1} parent=5 // pred_check_branch
        %364 = sbr.rel (%p362) target = $region28
      $region27: #{tpu_custom_call.1} parent=5 // pred_region
        // Predicated region
        $region29: #{tpu_custom_call.1} parent=27 // pred_check
          %p365 = pneg %p60
        $region30: #{tpu_custom_call.1} parent=27 // pred_check_branch
          %367 = sbr.rel (%p365) target = $region32
        $region31: #{tpu_custom_call.1} parent=27 // pred_region
          %p368 = scmp.lt.s32.totalorder %s19, 1
          %s369 = scalar_select %p368, %s19, 1
          %s370 = smul.addr %s369, 4
          %s371 = smul.addr %s370, 4
          %s372 = scalar_lea.vmem %s1, %s371
        $region32: #{tpu_custom_call.1} parent=27 // pred_fallthru
          _
        // Predicated region
        $region33: #{tpu_custom_call.1} parent=27 // pred_check
          %p373 = pneg %p86
        $region34: #{tpu_custom_call.1} parent=27 // pred_check_branch
          %375 = sbr.rel (%p373) target = $region36
        $region35: #{tpu_custom_call.1} parent=27 // pred_region
          %p376 = scmp.lt.s32.totalorder %s19, 1
          %s377 = scalar_select %p376, %s19, 1
          %s378 = smul.addr %s377, 4
          %s379 = smul.addr %s378, 4
          %s380 = scalar_lea.vmem %s2, %s379
        $region36: #{tpu_custom_call.1} parent=27 // pred_fallthru
          _
        // Predicated region
        $region37: #{tpu_custom_call.1} parent=27 // pred_check
          %p381 = pneg %p112
        $region38: #{tpu_custom_call.1} parent=27 // pred_check_branch
          %383 = sbr.rel (%p381) target = $region40
        $region39: #{tpu_custom_call.1} parent=27 // pred_region
          %p384 = scmp.lt.s32.totalorder %s19, 1
          %s385 = scalar_select %p384, %s19, 1
          %s386 = smul.addr %s385, 4
          %s387 = smul.addr %s386, 4
          %s388 = scalar_lea.vmem %s3, %s387
        $region40: #{tpu_custom_call.1} parent=27 // pred_fallthru
          _
        // Predicated region
        $region41: #{tpu_custom_call.1} parent=27 // pred_check
          %p389 = pneg %p138
        $region42: #{tpu_custom_call.1} parent=27 // pred_check_branch
          %391 = sbr.rel (%p389) target = $region44
        $region43: #{tpu_custom_call.1} parent=27 // pred_region
          %p392 = scmp.lt.s32.totalorder %s19, 1
          %s393 = scalar_select %p392, %s19, 1
          %s394 = smul.addr %s393, 4
          %s395 = smul.addr %s394, 4
          %s396 = scalar_lea.vmem %s4, %s395
        $region44: #{tpu_custom_call.1} parent=27 // pred_fallthru
          _
        // Predicated region
        $region45: #{tpu_custom_call.1} parent=27 // pred_check
          %p397 = pneg %p164
        $region46: #{tpu_custom_call.1} parent=27 // pred_check_branch
          %399 = sbr.rel (%p397) target = $region48
        $region47: #{tpu_custom_call.1} parent=27 // pred_region
          %p400 = scmp.lt.s32.totalorder %s19, 1
          %s401 = scalar_select %p400, %s19, 1
          %s402 = smul.addr %s401, 4
          %s403 = smul.addr %s402, 4
          %s404 = scalar_lea.vmem %s5, %s403
        $region48: #{tpu_custom_call.1} parent=27 // pred_fallthru
          _
        // Predicated region
        $region49: #{tpu_custom_call.1} parent=27 // pred_check
          %p405 = pneg %p190
        $region50: #{tpu_custom_call.1} parent=27 // pred_check_branch
          %407 = sbr.rel (%p405) target = $region52
        $region51: #{tpu_custom_call.1} parent=27 // pred_region
          %p408 = scmp.lt.s32.totalorder %s19, 1
          %s409 = scalar_select %p408, %s19, 1
          %s410 = smul.addr %s409, 64
          %s411 = smul.addr %s410, 4
          %s412 = scalar_lea.vmem %s6, %s411
        $region52: #{tpu_custom_call.1} parent=27 // pred_fallthru
          _
        // Predicated region
        $region53: #{tpu_custom_call.1} parent=27 // pred_check
          %p413 = pneg %p216
        $region54: #{tpu_custom_call.1} parent=27 // pred_check_branch
          %415 = sbr.rel (%p413) target = $region56
        $region55: #{tpu_custom_call.1} parent=27 // pred_region
          %p416 = scmp.lt.s32.totalorder %s19, 1
          %s417 = scalar_select %p416, %s19, 1
          %s418 = smul.addr %s417, 256
          %s419 = smul.addr %s418, 4
          %s420 = scalar_lea.vmem %s7, %s419
        $region56: #{tpu_custom_call.1} parent=27 // pred_fallthru
          _
        // Predicated region
        $region57: #{tpu_custom_call.1} parent=27 // pred_check
          %p421 = pneg %p242
        $region58: #{tpu_custom_call.1} parent=27 // pred_check_branch
          %423 = sbr.rel (%p421) target = $region60
        $region59: #{tpu_custom_call.1} parent=27 // pred_region
          %p424 = scmp.lt.s32.totalorder %s19, 1
          %s425 = scalar_select %p424, %s19, 1
          %s426 = smul.addr %s425, 2
          %s427 = smul.addr %s426, 8
          %s428 = scalar_lea.vmem %s8, %s427
        $region60: #{tpu_custom_call.1} parent=27 // pred_fallthru
          _
        // Predicated region
        $region61: #{tpu_custom_call.1} parent=27 // pred_check
          %p429 = pneg %p268
        $region62: #{tpu_custom_call.1} parent=27 // pred_check_branch
          %431 = sbr.rel (%p429) target = $region64
        $region63: #{tpu_custom_call.1} parent=27 // pred_region
          %p432 = scmp.lt.s32.totalorder %s19, 1
          %s433 = scalar_select %p432, %s19, 1
          %s434 = smul.addr %s433, 16
          %s435 = scalar_lea.vmem %s9, %s434
        $region64: #{tpu_custom_call.1} parent=27 // pred_fallthru
          _
      $region28: #{tpu_custom_call.1} parent=5 // pred_fallthru
        _
      %p436 = scmp.le.s32.totalorder 1, %s19
      %p437 = scmp.lt.s32.totalorder %s19, 3
      %p438 = pnand %p436, %p437
      %p439 = pneg %p438
      // Predicated region
      $region65: #{tpu_custom_call.1} parent=5 // pred_check
        _
      $region66: #{tpu_custom_call.1} parent=5 // pred_check_branch
        %441 = sbr.rel (%p438) target = $region68
      $region67: #{tpu_custom_call.1} parent=5 // pred_region
        %s442 = ssub.s32 %s19, 1
        %p443 = pneg %p40
        %p444 = pneg %p37
        %p445 = scmp.lt.s32.totalorder %s24, 1
        %s446 = scalar_select %p445, %s24, 1
        %s447 = smul.addr %s446, 4
        %s448 = smul.addr %s447, 4
        %s449 = scalar_lea.vmem %s1, %s448
        %p450 = pneg %p66
        %p451 = pneg %p63
        %p452 = scmp.lt.s32.totalorder %s24, 1
        %s453 = scalar_select %p452, %s24, 1
        %s454 = smul.addr %s453, 4
        %s455 = smul.addr %s454, 4
        %s456 = scalar_lea.vmem %s2, %s455
        %p457 = pneg %p92
        %p458 = pneg %p89
        %p459 = scmp.lt.s32.totalorder %s24, 1
        %s460 = scalar_select %p459, %s24, 1
        %s461 = smul.addr %s460, 4
        %s462 = smul.addr %s461, 4
        %s463 = scalar_lea.vmem %s3, %s462
        %p464 = pneg %p118
        %p465 = pneg %p115
        %p466 = scmp.lt.s32.totalorder %s24, 1
        %s467 = scalar_select %p466, %s24, 1
        %s468 = smul.addr %s467, 4
        %s469 = smul.addr %s468, 4
        %s470 = scalar_lea.vmem %s4, %s469
        %p471 = pneg %p144
        %p472 = pneg %p141
        %p473 = scmp.lt.s32.totalorder %s24, 1
        %s474 = scalar_select %p473, %s24, 1
        %s475 = smul.addr %s474, 4
        %s476 = smul.addr %s475, 4
        %s477 = scalar_lea.vmem %s5, %s476
        %p478 = pneg %p170
        %p479 = pneg %p167
        %p480 = scmp.lt.s32.totalorder %s24, 1
        %s481 = scalar_select %p480, %s24, 1
        %s482 = smul.addr %s481, 64
        %s483 = smul.addr %s482, 4
        %s484 = scalar_lea.vmem %s6, %s483
        %p485 = pneg %p196
        %p486 = pneg %p193
        %p487 = scmp.lt.s32.totalorder %s24, 1
        %s488 = scalar_select %p487, %s24, 1
        %s489 = smul.addr %s488, 256
        %s490 = smul.addr %s489, 4
        %s491 = scalar_lea.vmem %s7, %s490
        %p492 = pneg %p222
        %p493 = pneg %p219
        %p494 = scmp.lt.s32.totalorder %s24, 1
        %s495 = scalar_select %p494, %s24, 1
        %s496 = smul.addr %s495, 2
        %s497 = smul.addr %s496, 8
        %s498 = scalar_lea.vmem %s8, %s497
        %p499 = pneg %p248
        %p500 = pneg %p245
        %p501 = scmp.lt.s32.totalorder %s24, 1
        %s502 = scalar_select %p501, %s24, 1
        %s503 = smul.addr %s502, 16
        %s504 = scalar_lea.vmem %s9, %s503
        %p505 = pneg %p274
        %p506 = pneg %p271
        %p507 = pneg %p295
        %p508 = pneg %p292
        %p509 = pneg %p316
        %p510 = pneg %p313
        %p511 = pneg %p337
        %p512 = pneg %p334
        %p513 = scmp.lt.s32.totalorder %s24, 1
        %s514 = scalar_select %p513, %s24, 1
        %s515 = smul.addr %s514, 4
        %s516 = smul.addr %s515, 4
        %s517 = scalar_lea.vmem %s1, %s516
        %p518 = scmp.lt.s32.totalorder %s24, 1
        %s519 = scalar_select %p518, %s24, 1
        %s520 = smul.addr %s519, 4
        %s521 = smul.addr %s520, 4
        %s522 = scalar_lea.vmem %s2, %s521
        %p523 = scmp.lt.s32.totalorder %s24, 1
        %s524 = scalar_select %p523, %s24, 1
        %s525 = smul.addr %s524, 4
        %s526 = smul.addr %s525, 4
        %s527 = scalar_lea.vmem %s3, %s526
        %p528 = scmp.lt.s32.totalorder %s24, 1
        %s529 = scalar_select %p528, %s24, 1
        %s530 = smul.addr %s529, 4
        %s531 = smul.addr %s530, 4
        %s532 = scalar_lea.vmem %s4, %s531
        %p533 = scmp.lt.s32.totalorder %s24, 1
        %s534 = scalar_select %p533, %s24, 1
        %s535 = smul.addr %s534, 4
        %s536 = smul.addr %s535, 4
        %s537 = scalar_lea.vmem %s5, %s536
        %p538 = scmp.lt.s32.totalorder %s24, 1
        %s539 = scalar_select %p538, %s24, 1
        %s540 = smul.addr %s539, 64
        %s541 = smul.addr %s540, 4
        %s542 = scalar_lea.vmem %s6, %s541
        %p543 = scmp.lt.s32.totalorder %s24, 1
        %s544 = scalar_select %p543, %s24, 1
        %s545 = smul.addr %s544, 256
        %s546 = smul.addr %s545, 4
        %s547 = scalar_lea.vmem %s7, %s546
        %p548 = scmp.lt.s32.totalorder %s24, 1
        %s549 = scalar_select %p548, %s24, 1
        %s550 = smul.addr %s549, 2
        %s551 = smul.addr %s550, 8
        %s552 = scalar_lea.vmem %s8, %s551
        %p553 = scmp.lt.s32.totalorder %s24, 1
        %s554 = scalar_select %p553, %s24, 1
        %s555 = smul.addr %s554, 16
        %s556 = scalar_lea.vmem %s9, %s555
        %p558 = scmp.eq.s32.totalorder %s24, 0
        // Predicated region
        $region69: #{tpu_custom_call.1} parent=67 // pred_check
          %p559 = pneg %p558
        $region70: #{tpu_custom_call.1} parent=67 // pred_check_branch
          %561 = sbr.rel (%p559) target = $region72
        $region71: #{tpu_custom_call.1} parent=67 // pred_region
          %v562 = vld [vmem:[%s0] sm:$0xff]
          %v563 = vld [vmem:[%s0 + $0x8] sm:$0xff]
          %vm564 = vcmask 261120
          %565 = vst.msk [vmem:[#allocation2] sm:$0xff] %vm564, %v562
          %566 = vst.msk [vmem:[#allocation2 + $0x8] sm:$0xff] %vm564, %v563
          %v567 = vpack.c.bf16 %v563, %v562
          %568 = vst.msk [vmem:[#allocation3] sm:$0xff] %vm564, %v567
          %v569 = vlaneseq
          %v570 = vshrl.u32 %v569, 7
          %v571 = vlaneseq
          %v572 = vand.u32 %v571, 127
          %vm573 = vcmp.le.s32.totalorder %v572, %v570
          %v574 = vsel %vm573, 0.0, -1e+30
          %vm575 = vcmask 64512
          %576 = vst.msk [vmem:[#allocation4] sm:$0xff] %vm575, %v574
        $region72: #{tpu_custom_call.1} parent=67 // pred_fallthru
          _
        %v577 = vld [vmem:[%s552] sm:$0xff]
        %v578 = vld [vmem:[%s552 + $0x8] sm:$0x7f]
        %v579 = vld [vmem:[#allocation4] sm:$0xff]
        %v580 = vld [vmem:[#allocation2] sm:$0xff]
        %v581 = vld [vmem:[#allocation2 + $0x8] sm:$0xff]
        %v582 = vld [vmem:[#allocation3] sm:$0xff]
        %v583 = vpack.c.bf16 %v581, %v580
        %v584 = vld [vmem:[%s517] sm:$0xf]
        %v585 = vld [vmem:[%s517 + $0x4] sm:$0xf]
        %v586 = vld [vmem:[%s517 + $0x8] sm:$0xf]
        %v587 = vld [vmem:[%s517 + $0xc] sm:$0xf]
        %v592 = vunpack.c.l.b16 %v584
        %v593 = vunpack.c.l.b16 %v585
        %v594 = vunpack.c.l.b16 %v586
        %v595 = vunpack.c.l.b16 %v587
        %v596 = vpack.c.b16 %v593, %v592
        %v597 = vpack.c.b16 %v595, %v594
        %vm600 = vcmask 261120
        %v602 = vsel %vm600, %v583, 0
        %604 = vmatprep.subr.bf16.mxu0 0
        %605 = vmatpush1.bf16.msra.mxu0 %v596
        %606 = vmatprep.subr.bf16.mxu0 0
        %607 = vmatpush1.bf16.msra.mxu0 %v597
        %608 = vmatprep.subr.bf16.mxu0 0
        %609 = vmatpush1.bf16.msra.mxu0 0
        %610 = vmatprep.subr.bf16.mxu0 0
        %611 = vmatpush1.bf16.msra.mxu0 0
        %612 = vmatprep.subr.bf16.mxu0 0
        %613 = vmatpush1.bf16.msra.mxu0 0
        %614 = vmatprep.subr.bf16.mxu0 0
        %615 = vmatpush1.bf16.msra.mxu0 0
        %616 = vmatprep.subr.bf16.mxu0 0
        %617 = vmatpush1.bf16.msra.mxu0 0
        %618 = vmatprep.subr.bf16.mxu0 0
        %619 = vmatpush1.bf16.msra.mxu0 0
        %620 = vmatprep.subr.bf16.mxu0 0
        %621 = vmatpush1.bf16.msra.mxu0 0
        %622 = vmatprep.subr.bf16.mxu0 0
        %623 = vmatpush1.bf16.msra.mxu0 0
        %624 = vmatprep.subr.bf16.mxu0 0
        %625 = vmatpush1.bf16.msra.mxu0 0
        %626 = vmatprep.subr.bf16.mxu0 0
        %627 = vmatpush1.bf16.msra.mxu0 0
        %628 = vmatprep.subr.bf16.mxu0 0
        %629 = vmatpush1.bf16.msra.mxu0 0
        %630 = vmatprep.subr.bf16.mxu0 0
        %631 = vmatpush1.bf16.msra.mxu0 0
        %632 = vmatprep.subr.bf16.mxu0 0
        %633 = vmatpush1.bf16.msra.mxu0 0
        %634 = vmatprep.subr.bf16.mxu0 0
        %635 = vmatpush1.bf16.msra.mxu0 0
        %636 = vmatprep.mubr.bf16.mxu0 0
        %637 = vmatmul.mubr.bf16.gmra.mrb[0].mxu0 %v602
        %v638 = vpop.f32.mrb[0].mxu0
        %v639 = vadd.f32 0.0, %v638
        %v640 = vpop.f32.mrb[0].mxu0
        %v641 = vpop.f32.mrb[0].mxu0
        %v642 = vadd.f32 0.0, %v641
        %v643 = vpop.f32.mrb[0].mxu0
        %644 = vdwg.mxu0
        %v645 = vlaneseq
        %v646 = vshrl.u32 %v645, 7
        %v647 = vsub.s32 0, %v646
        %v648 = vrot.slane %v577, %v647
        %v649 = vadd.f32 %v639, %v648
        %v650 = vadd.f32 %v642, %v648
        %v651 = vlaneseq
        %v652 = vshrl.u32 %v651, 7
        %v653 = vsub.s32 1, %v652
        %v654 = vrot.slane %v577, %v653
        %656 = vrot.lane.b32.xlu0 %v654, 32
        %v657 = vpop.permute.xlu0 %656
        %v659 = vadd.f32 %v639, %v657
        %v660 = vadd.f32 %v642, %v657
        %v661 = vlaneseq
        %v662 = vshrl.u32 %v661, 7
        %v663 = vsub.s32 2, %v662
        %v664 = vrot.slane %v577, %v663
        %666 = vrot.lane.b32.xlu0 %v664, 64
        %v667 = vpop.permute.xlu0 %666
        %v669 = vadd.f32 %v639, %v667
        %v670 = vadd.f32 %v642, %v667
        %672 = vrot.lane.b32.xlu0 %v649, 120
        %v673 = vpop.permute.xlu0 %672
        %675 = vrot.lane.b32.xlu0 %v649, 112
        %v676 = vpop.permute.xlu0 %675
        %678 = vrot.lane.b32.xlu0 %v649, 104
        %v679 = vpop.permute.xlu0 %678
        %v681 = vcombine.low %v649, %v676
        %v682 = vcombine.high %v649, %v676
        %v684 = vunpack.c.l.s4 1983009808
        %v685 = vunpack.c.0.s8 %v684
        %v686 = vlaneseq
        %v687 = vshrl.u32 %v686, 7
        %v688 = vsub.s32 %v685, %v687
        %v689 = vrot.slane %v681, %v688
        %v691 = vunpack.c.l.s4 1983009808
        %v692 = vunpack.c.0.s8 %v691
        %v693 = vlaneseq
        %v694 = vshrl.u32 %v693, 7
        %v695 = vsub.s32 %v692, %v694
        %v696 = vrot.slane %v682, %v695
        %v697 = vcombine.low %v673, %v679
        %v698 = vcombine.high %v673, %v679
        %v700 = vunpack.c.l.s4 1983009808
        %v701 = vunpack.c.0.s8 %v700
        %v702 = vlaneseq
        %v703 = vshrl.u32 %v702, 7
        %v704 = vsub.s32 %v701, %v703
        %v705 = vrot.slane %v697, %v704
        %v707 = vunpack.c.l.s4 1983009808
        %v708 = vunpack.c.0.s8 %v707
        %v709 = vlaneseq
        %v710 = vshrl.u32 %v709, 7
        %v711 = vsub.s32 %v708, %v710
        %v712 = vrot.slane %v698, %v711
        %v713 = vcombine.low %v689, %v705
        %v714 = vcombine.high %v689, %v705
        %v716 = vunpack.c.l.s4 1934713408
        %v717 = vunpack.c.0.s8 %v716
        %v718 = vlaneseq
        %v719 = vshrl.u32 %v718, 7
        %v720 = vsub.s32 %v717, %v719
        %v721 = vrot.slane %v713, %v720
        %v723 = vunpack.c.l.s4 1934713408
        %v724 = vunpack.c.0.s8 %v723
        %v725 = vlaneseq
        %v726 = vshrl.u32 %v725, 7
        %v727 = vsub.s32 %v724, %v726
        %v728 = vrot.slane %v714, %v727
        %v729 = vcombine.low %v696, %v712
        %v730 = vcombine.high %v696, %v712
        %v732 = vunpack.c.l.s4 1934713408
        %v733 = vunpack.c.0.s8 %v732
        %v734 = vlaneseq
        %v735 = vshrl.u32 %v734, 7
        %v736 = vsub.s32 %v733, %v735
        %v737 = vrot.slane %v729, %v736
        %v739 = vunpack.c.l.s4 1934713408
        %v740 = vunpack.c.0.s8 %v739
        %v741 = vlaneseq
        %v742 = vshrl.u32 %v741, 7
        %v743 = vsub.s32 %v740, %v742
        %v744 = vrot.slane %v730, %v743
        %v745 = vcombine.high %v721, 0.0
        %v746 = vcombine.high %v728, 0.0
        %v747 = vcombine.high %v737, 0.0
        %v748 = vcombine.high %v744, 0.0
        %v749 = vpack.c.bf16 %v721, %v721
        %v750 = vpack.c.bf16 %v745, %v745
        %v751 = vpack.c.bf16 %v728, %v728
        %v752 = vpack.c.bf16 %v746, %v746
        %v753 = vpack.c.bf16 %v737, %v737
        %v754 = vpack.c.bf16 %v747, %v747
        %v755 = vpack.c.bf16 %v744, %v744
        %v756 = vpack.c.bf16 %v748, %v748
        %758 = vrot.lane.b32.xlu0 %v659, 120
        %v759 = vpop.permute.xlu0 %758
        %760 = vrot.lane.b32.xlu0 %v659, 112
        %v761 = vpop.permute.xlu0 %760
        %762 = vrot.lane.b32.xlu0 %v659, 104
        %v763 = vpop.permute.xlu0 %762
        %764 = vrot.lane.b32.xlu0 %v659, 96
        %v765 = vpop.permute.xlu0 %764
        %766 = vrot.lane.b32.xlu0 %v759, 96
        %v767 = vpop.permute.xlu0 %766
        %768 = vrot.lane.b32.xlu0 %v761, 96
        %v769 = vpop.permute.xlu0 %768
        %770 = vrot.lane.b32.xlu0 %v763, 96
        %v771 = vpop.permute.xlu0 %770
        %v776 = vcombine.low %v765, %v769
        %v777 = vcombine.high %v765, %v769
        %v779 = vunpack.c.l.s4 1983009808
        %v780 = vunpack.c.0.s8 %v779
        %v781 = vlaneseq
        %v782 = vshrl.u32 %v781, 7
        %v783 = vsub.s32 %v780, %v782
        %v784 = vrot.slane %v776, %v783
        %v786 = vunpack.c.l.s4 1983009808
        %v787 = vunpack.c.0.s8 %v786
        %v788 = vlaneseq
        %v789 = vshrl.u32 %v788, 7
        %v790 = vsub.s32 %v787, %v789
        %v791 = vrot.slane %v777, %v790
        %v792 = vcombine.low %v767, %v771
        %v793 = vcombine.high %v767, %v771
        %v795 = vunpack.c.l.s4 1983009808
        %v796 = vunpack.c.0.s8 %v795
        %v797 = vlaneseq
        %v798 = vshrl.u32 %v797, 7
        %v799 = vsub.s32 %v796, %v798
        %v800 = vrot.slane %v792, %v799
        %v802 = vunpack.c.l.s4 1983009808
        %v803 = vunpack.c.0.s8 %v802
        %v804 = vlaneseq
        %v805 = vshrl.u32 %v804, 7
        %v806 = vsub.s32 %v803, %v805
        %v807 = vrot.slane %v793, %v806
        %v808 = vcombine.low %v784, %v800
        %v809 = vcombine.high %v784, %v800
        %v811 = vunpack.c.l.s4 1934713408
        %v812 = vunpack.c.0.s8 %v811
        %v813 = vlaneseq
        %v814 = vshrl.u32 %v813, 7
        %v815 = vsub.s32 %v812, %v814
        %v816 = vrot.slane %v808, %v815
        %v818 = vunpack.c.l.s4 1934713408
        %v819 = vunpack.c.0.s8 %v818
        %v820 = vlaneseq
        %v821 = vshrl.u32 %v820, 7
        %v822 = vsub.s32 %v819, %v821
        %v823 = vrot.slane %v809, %v822
        %v824 = vcombine.low %v791, %v807
        %v825 = vcombine.high %v791, %v807
        %v827 = vunpack.c.l.s4 1934713408
        %v828 = vunpack.c.0.s8 %v827
        %v829 = vlaneseq
        %v830 = vshrl.u32 %v829, 7
        %v831 = vsub.s32 %v828, %v830
        %v832 = vrot.slane %v824, %v831
        %v834 = vunpack.c.l.s4 1934713408
        %v835 = vunpack.c.0.s8 %v834
        %v836 = vlaneseq
        %v837 = vshrl.u32 %v836, 7
        %v838 = vsub.s32 %v835, %v837
        %v839 = vrot.slane %v825, %v838
        %v840 = vcombine.high %v816, 0.0
        %v841 = vcombine.high %v823, 0.0
        %v842 = vcombine.high %v832, 0.0
        %v843 = vcombine.high %v839, 0.0
        %v844 = vpack.c.bf16 %v816, %v816
        %v845 = vpack.c.bf16 %v840, %v840
        %v846 = vpack.c.bf16 %v823, %v823
        %v847 = vpack.c.bf16 %v841, %v841
        %v848 = vpack.c.bf16 %v832, %v832
        %v849 = vpack.c.bf16 %v842, %v842
        %v850 = vpack.c.bf16 %v839, %v839
        %v851 = vpack.c.bf16 %v843, %v843
        %853 = vrot.lane.b32.xlu0 %v669, 120
        %v854 = vpop.permute.xlu0 %853
        %855 = vrot.lane.b32.xlu0 %v669, 112
        %v856 = vpop.permute.xlu0 %855
        %857 = vrot.lane.b32.xlu0 %v669, 104
        %v858 = vpop.permute.xlu0 %857
        %859 = vrot.lane.b32.xlu0 %v669, 64
        %v860 = vpop.permute.xlu0 %859
        %861 = vrot.lane.b32.xlu0 %v854, 64
        %v862 = vpop.permute.xlu0 %861
        %863 = vrot.lane.b32.xlu0 %v856, 64
        %v864 = vpop.permute.xlu0 %863
        %865 = vrot.lane.b32.xlu0 %v858, 64
        %v866 = vpop.permute.xlu0 %865
        %v871 = vcombine.low %v860, %v864
        %v872 = vcombine.high %v860, %v864
        %v874 = vunpack.c.l.s4 1983009808
        %v875 = vunpack.c.0.s8 %v874
        %v876 = vlaneseq
        %v877 = vshrl.u32 %v876, 7
        %v878 = vsub.s32 %v875, %v877
        %v879 = vrot.slane %v871, %v878
        %v881 = vunpack.c.l.s4 1983009808
        %v882 = vunpack.c.0.s8 %v881
        %v883 = vlaneseq
        %v884 = vshrl.u32 %v883, 7
        %v885 = vsub.s32 %v882, %v884
        %v886 = vrot.slane %v872, %v885
        %v887 = vcombine.low %v862, %v866
        %v888 = vcombine.high %v862, %v866
        %v890 = vunpack.c.l.s4 1983009808
        %v891 = vunpack.c.0.s8 %v890
        %v892 = vlaneseq
        %v893 = vshrl.u32 %v892, 7
        %v894 = vsub.s32 %v891, %v893
        %v895 = vrot.slane %v887, %v894
        %v897 = vunpack.c.l.s4 1983009808
        %v898 = vunpack.c.0.s8 %v897
        %v899 = vlaneseq
        %v900 = vshrl.u32 %v899, 7
        %v901 = vsub.s32 %v898, %v900
        %v902 = vrot.slane %v888, %v901
        %v903 = vcombine.low %v879, %v895
        %v904 = vcombine.high %v879, %v895
        %v906 = vunpack.c.l.s4 1934713408
        %v907 = vunpack.c.0.s8 %v906
        %v908 = vlaneseq
        %v909 = vshrl.u32 %v908, 7
        %v910 = vsub.s32 %v907, %v909
        %v911 = vrot.slane %v903, %v910
        %v913 = vunpack.c.l.s4 1934713408
        %v914 = vunpack.c.0.s8 %v913
        %v915 = vlaneseq
        %v916 = vshrl.u32 %v915, 7
        %v917 = vsub.s32 %v914, %v916
        %v918 = vrot.slane %v904, %v917
        %v919 = vcombine.low %v886, %v902
        %v920 = vcombine.high %v886, %v902
        %v922 = vunpack.c.l.s4 1934713408
        %v923 = vunpack.c.0.s8 %v922
        %v924 = vlaneseq
        %v925 = vshrl.u32 %v924, 7
        %v926 = vsub.s32 %v923, %v925
        %v927 = vrot.slane %v919, %v926
        %v929 = vunpack.c.l.s4 1934713408
        %v930 = vunpack.c.0.s8 %v929
        %v931 = vlaneseq
        %v932 = vshrl.u32 %v931, 7
        %v933 = vsub.s32 %v930, %v932
        %v934 = vrot.slane %v920, %v933
        %v935 = vcombine.high %v911, 0.0
        %v936 = vcombine.high %v918, 0.0
        %v937 = vcombine.high %v927, 0.0
        %v938 = vcombine.high %v934, 0.0
        %v939 = vpack.c.bf16 %v911, %v911
        %v940 = vpack.c.bf16 %v935, %v935
        %v941 = vpack.c.bf16 %v918, %v918
        %v942 = vpack.c.bf16 %v936, %v936
        %v943 = vpack.c.bf16 %v927, %v927
        %v944 = vpack.c.bf16 %v937, %v937
        %v945 = vpack.c.bf16 %v934, %v934
        %v946 = vpack.c.bf16 %v938, %v938
        %v947 = vcombine.low %v749, %v753
        %v949 = vunpack.c.l.s4 1983009808
        %v950 = vunpack.c.0.s8 %v949
        %v951 = vlaneseq
        %v952 = vshrl.u32 %v951, 7
        %v953 = vsub.s32 %v950, %v952
        %v954 = vrot.slane %v947, %v953
        %v955 = vcombine.low %v751, %v755
        %v957 = vunpack.c.l.s4 1983009808
        %v958 = vunpack.c.0.s8 %v957
        %v959 = vlaneseq
        %v960 = vshrl.u32 %v959, 7
        %v961 = vsub.s32 %v958, %v960
        %v962 = vrot.slane %v955, %v961
        %v963 = vcombine.low %v954, %v962
        %v965 = vunpack.c.l.s4 1934713408
        %v966 = vunpack.c.0.s8 %v965
        %v967 = vlaneseq
        %v968 = vshrl.u32 %v967, 7
        %v969 = vsub.s32 %v966, %v968
        %v970 = vrot.slane %v963, %v969
        %v971 = vcombine.high %v970, 0
        %v972 = vcombine.low %v750, %v754
        %v974 = vunpack.c.l.s4 1983009808
        %v975 = vunpack.c.0.s8 %v974
        %v976 = vlaneseq
        %v977 = vshrl.u32 %v976, 7
        %v978 = vsub.s32 %v975, %v977
        %v979 = vrot.slane %v972, %v978
        %v980 = vcombine.low %v752, %v756
        %v982 = vunpack.c.l.s4 1983009808
        %v983 = vunpack.c.0.s8 %v982
        %v984 = vlaneseq
        %v985 = vshrl.u32 %v984, 7
        %v986 = vsub.s32 %v983, %v985
        %v987 = vrot.slane %v980, %v986
        %v988 = vcombine.low %v979, %v987
        %v990 = vunpack.c.l.s4 1934713408
        %v991 = vunpack.c.0.s8 %v990
        %v992 = vlaneseq
        %v993 = vshrl.u32 %v992, 7
        %v994 = vsub.s32 %v991, %v993
        %v995 = vrot.slane %v988, %v994
        %v996 = vcombine.high %v995, 0
        %v999 = vpack.i.b16 %v995, %v970
        %v1000 = vshrl.u32 %v970, 16
        %v1001 = vshrl.u32 %v995, 16
        %v1002 = vpack.i.b16 %v1001, %v1000
        %v1005 = vpack.i.b16 %v996, %v971
        %v1006 = vshrl.u32 %v971, 16
        %v1007 = vshrl.u32 %v996, 16
        %v1008 = vpack.i.b16 %v1007, %v1006
        %1009 = vxpose.xlu0.c.b16.start [1/8] %v844, 128
        %1010 = vxpose.xlu0.c.b16.cont [2/8] 0, 128
        %1011 = vxpose.xlu0.c.b16.cont [3/8] 0, 128
        %1012 = vxpose.xlu0.c.b16.cont [4/8] 0, 128
        %1013 = vxpose.xlu0.c.b16.cont [5/8] 0, 128
        %1014 = vxpose.xlu0.c.b16.cont [6/8] 0, 128
        %1015 = vxpose.xlu0.c.b16.cont [7/8] 0, 128
        %1016 = vxpose.xlu0.c.b16.end [8/8] 0, 128
        %v1017 = vpop.trf.xlu0
        %v1018 = vpop.trf.xlu0
        %v1019 = vpop.trf.xlu0
        %v1020 = vpop.trf.xlu0
        %v1021 = vpop.trf.xlu0
        %v1022 = vpop.trf.xlu0
        %v1023 = vpop.trf.xlu0
        %v1024 = vpop.trf.xlu0
        %1025 = vxpose.xlu0.c.b16.start [1/8] %v845, 128
        %1026 = vxpose.xlu0.c.b16.cont [2/8] 0, 128
        %1027 = vxpose.xlu0.c.b16.cont [3/8] 0, 128
        %1028 = vxpose.xlu0.c.b16.cont [4/8] 0, 128
        %1029 = vxpose.xlu0.c.b16.cont [5/8] 0, 128
        %1030 = vxpose.xlu0.c.b16.cont [6/8] 0, 128
        %1031 = vxpose.xlu0.c.b16.cont [7/8] 0, 128
        %1032 = vxpose.xlu0.c.b16.end [8/8] 0, 128
        %v1033 = vpop.trf.xlu0
        %v1034 = vpop.trf.xlu0
        %v1035 = vpop.trf.xlu0
        %v1036 = vpop.trf.xlu0
        %v1037 = vpop.trf.xlu0
        %v1038 = vpop.trf.xlu0
        %v1039 = vpop.trf.xlu0
        %v1040 = vpop.trf.xlu0
        %1041 = vxpose.xlu0.c.b16.start [1/8] %v846, 128
        %1042 = vxpose.xlu0.c.b16.cont [2/8] 0, 128
        %1043 = vxpose.xlu0.c.b16.cont [3/8] 0, 128
        %1044 = vxpose.xlu0.c.b16.cont [4/8] 0, 128
        %1045 = vxpose.xlu0.c.b16.cont [5/8] 0, 128
        %1046 = vxpose.xlu0.c.b16.cont [6/8] 0, 128
        %1047 = vxpose.xlu0.c.b16.cont [7/8] 0, 128
        %1048 = vxpose.xlu0.c.b16.end [8/8] 0, 128
        %v1049 = vpop.trf.xlu0
        %v1050 = vpop.trf.xlu0
        %v1051 = vpop.trf.xlu0
        %v1052 = vpop.trf.xlu0
        %v1053 = vpop.trf.xlu0
        %v1054 = vpop.trf.xlu0
        %v1055 = vpop.trf.xlu0
        %v1056 = vpop.trf.xlu0
        %1057 = vxpose.xlu0.c.b16.start [1/8] %v847, 128
        %1058 = vxpose.xlu0.c.b16.cont [2/8] 0, 128
        %1059 = vxpose.xlu0.c.b16.cont [3/8] 0, 128
        %1060 = vxpose.xlu0.c.b16.cont [4/8] 0, 128
        %1061 = vxpose.xlu0.c.b16.cont [5/8] 0, 128
        %1062 = vxpose.xlu0.c.b16.cont [6/8] 0, 128
        %1063 = vxpose.xlu0.c.b16.cont [7/8] 0, 128
        %1064 = vxpose.xlu0.c.b16.end [8/8] 0, 128
        %v1065 = vpop.trf.xlu0
        %v1066 = vpop.trf.xlu0
        %v1067 = vpop.trf.xlu0
        %v1068 = vpop.trf.xlu0
        %v1069 = vpop.trf.xlu0
        %v1070 = vpop.trf.xlu0
        %v1071 = vpop.trf.xlu0
        %v1072 = vpop.trf.xlu0
        %1073 = vxpose.xlu0.c.b16.start [1/8] %v848, 128
        %1074 = vxpose.xlu0.c.b16.cont [2/8] 0, 128
        %1075 = vxpose.xlu0.c.b16.cont [3/8] 0, 128
        %1076 = vxpose.xlu0.c.b16.cont [4/8] 0, 128
        %1077 = vxpose.xlu0.c.b16.cont [5/8] 0, 128
        %1078 = vxpose.xlu0.c.b16.cont [6/8] 0, 128
        %1079 = vxpose.xlu0.c.b16.cont [7/8] 0, 128
        %1080 = vxpose.xlu0.c.b16.end [8/8] 0, 128
        %v1081 = vpop.trf.xlu0
        %v1082 = vpop.trf.xlu0
        %v1083 = vpop.trf.xlu0
        %v1084 = vpop.trf.xlu0
        %v1085 = vpop.trf.xlu0
        %v1086 = vpop.trf.xlu0
        %v1087 = vpop.trf.xlu0
        %v1088 = vpop.trf.xlu0
        %1089 = vxpose.xlu0.c.b16.start [1/8] %v849, 128
        %1090 = vxpose.xlu0.c.b16.cont [2/8] 0, 128
        %1091 = vxpose.xlu0.c.b16.cont [3/8] 0, 128
        %1092 = vxpose.xlu0.c.b16.cont [4/8] 0, 128
        %1093 = vxpose.xlu0.c.b16.cont [5/8] 0, 128
        %1094 = vxpose.xlu0.c.b16.cont [6/8] 0, 128
        %1095 = vxpose.xlu0.c.b16.cont [7/8] 0, 128
        %1096 = vxpose.xlu0.c.b16.end [8/8] 0, 128
        %v1097 = vpop.trf.xlu0
        %v1098 = vpop.trf.xlu0
        %v1099 = vpop.trf.xlu0
        %v1100 = vpop.trf.xlu0
        %v1101 = vpop.trf.xlu0
        %v1102 = vpop.trf.xlu0
        %v1103 = vpop.trf.xlu0
        %v1104 = vpop.trf.xlu0
        %1105 = vxpose.xlu0.c.b16.start [1/8] %v850, 128
        %1106 = vxpose.xlu0.c.b16.cont [2/8] 0, 128
        %1107 = vxpose.xlu0.c.b16.cont [3/8] 0, 128
        %1108 = vxpose.xlu0.c.b16.cont [4/8] 0, 128
        %1109 = vxpose.xlu0.c.b16.cont [5/8] 0, 128
        %1110 = vxpose.xlu0.c.b16.cont [6/8] 0, 128
        %1111 = vxpose.xlu0.c.b16.cont [7/8] 0, 128
        %1112 = vxpose.xlu0.c.b16.end [8/8] 0, 128
        %v1113 = vpop.trf.xlu0
        %v1114 = vpop.trf.xlu0
        %v1115 = vpop.trf.xlu0
        %v1116 = vpop.trf.xlu0
        %v1117 = vpop.trf.xlu0
        %v1118 = vpop.trf.xlu0
        %v1119 = vpop.trf.xlu0
        %v1120 = vpop.trf.xlu0
        %1121 = vxpose.xlu0.c.b16.start [1/8] %v851, 128
        %1122 = vxpose.xlu0.c.b16.cont [2/8] 0, 128
        %1123 = vxpose.xlu0.c.b16.cont [3/8] 0, 128
        %1124 = vxpose.xlu0.c.b16.cont [4/8] 0, 128
        %1125 = vxpose.xlu0.c.b16.cont [5/8] 0, 128
        %1126 = vxpose.xlu0.c.b16.cont [6/8] 0, 128
        %1127 = vxpose.xlu0.c.b16.cont [7/8] 0, 128
        %1128 = vxpose.xlu0.c.b16.end [8/8] 0, 128
        %v1129 = vpop.trf.xlu0
        %v1130 = vpop.trf.xlu0
        %v1131 = vpop.trf.xlu0
        %v1132 = vpop.trf.xlu0
        %v1133 = vpop.trf.xlu0
        %v1134 = vpop.trf.xlu0
        %v1135 = vpop.trf.xlu0
        %v1136 = vpop.trf.xlu0
        %v1137 = vcombine.low %v1017, %v1081
        %v1139 = vunpack.c.l.s4 1983009808
        %v1140 = vunpack.c.0.s8 %v1139
        %v1141 = vlaneseq
        %v1142 = vshrl.u32 %v1141, 7
        %v1143 = vsub.s32 %v1140, %v1142
        %v1144 = vrot.slane %v1137, %v1143
        %v1145 = vcombine.low %v1049, %v1113
        %v1147 = vunpack.c.l.s4 1983009808
        %v1148 = vunpack.c.0.s8 %v1147
        %v1149 = vlaneseq
        %v1150 = vshrl.u32 %v1149, 7
        %v1151 = vsub.s32 %v1148, %v1150
        %v1152 = vrot.slane %v1145, %v1151
        %v1153 = vcombine.low %v1144, %v1152
        %v1154 = vcombine.high %v1144, %v1152
        %v1156 = vunpack.c.l.s4 1934713408
        %v1157 = vunpack.c.0.s8 %v1156
        %v1158 = vlaneseq
        %v1159 = vshrl.u32 %v1158, 7
        %v1160 = vsub.s32 %v1157, %v1159
        %v1161 = vrot.slane %v1153, %v1160
        %v1163 = vunpack.c.l.s4 1934713408
        %v1164 = vunpack.c.0.s8 %v1163
        %v1165 = vlaneseq
        %v1166 = vshrl.u32 %v1165, 7
        %v1167 = vsub.s32 %v1164, %v1166
        %v1168 = vrot.slane %v1154, %v1167
        %v1169 = vcombine.high %v1161, 0
        %v1170 = vcombine.high %v1168, 0
        %v1171 = vcombine.low %v1033, %v1097
        %v1173 = vunpack.c.l.s4 1983009808
        %v1174 = vunpack.c.0.s8 %v1173
        %v1175 = vlaneseq
        %v1176 = vshrl.u32 %v1175, 7
        %v1177 = vsub.s32 %v1174, %v1176
        %v1178 = vrot.slane %v1171, %v1177
        %v1179 = vcombine.low %v1065, %v1129
        %v1181 = vunpack.c.l.s4 1983009808
        %v1182 = vunpack.c.0.s8 %v1181
        %v1183 = vlaneseq
        %v1184 = vshrl.u32 %v1183, 7
        %v1185 = vsub.s32 %v1182, %v1184
        %v1186 = vrot.slane %v1179, %v1185
        %v1187 = vcombine.low %v1178, %v1186
        %v1188 = vcombine.high %v1178, %v1186
        %v1190 = vunpack.c.l.s4 1934713408
        %v1191 = vunpack.c.0.s8 %v1190
        %v1192 = vlaneseq
        %v1193 = vshrl.u32 %v1192, 7
        %v1194 = vsub.s32 %v1191, %v1193
        %v1195 = vrot.slane %v1187, %v1194
        %v1197 = vunpack.c.l.s4 1934713408
        %v1198 = vunpack.c.0.s8 %v1197
        %v1199 = vlaneseq
        %v1200 = vshrl.u32 %v1199, 7
        %v1201 = vsub.s32 %v1198, %v1200
        %v1202 = vrot.slane %v1188, %v1201
        %v1203 = vcombine.high %v1195, 0
        %v1204 = vcombine.high %v1202, 0
        %v1207 = vpack.i.b16 %v1195, %v1161
        %v1209 = vshrl.u32 %v1161, 16
        %v1210 = vshrl.u32 %v1195, 16
        %v1211 = vpack.i.b16 %v1210, %v1209
        %v1215 = vpack.i.b16 %v1203, %v1169
        %v1217 = vshrl.u32 %v1169, 16
        %v1218 = vshrl.u32 %v1203, 16
        %v1219 = vpack.i.b16 %v1218, %v1217
        %v1223 = vpack.i.b16 %v1202, %v1168
        %v1225 = vshrl.u32 %v1168, 16
        %v1226 = vshrl.u32 %v1202, 16
        %v1227 = vpack.i.b16 %v1226, %v1225
        %v1231 = vpack.i.b16 %v1204, %v1170
        %v1233 = vshrl.u32 %v1170, 16
        %v1234 = vshrl.u32 %v1204, 16
        %v1235 = vpack.i.b16 %v1234, %v1233
        %1237 = vxpose.xlu0.c.b16.start [1/8] %v1207, 128
        %1238 = vxpose.xlu0.c.b16.cont [2/8] 0, 128
        %1239 = vxpose.xlu0.c.b16.cont [3/8] 0, 128
        %1240 = vxpose.xlu0.c.b16.cont [4/8] 0, 128
        %1241 = vxpose.xlu0.c.b16.cont [5/8] 0, 128
        %1242 = vxpose.xlu0.c.b16.cont [6/8] 0, 128
        %1243 = vxpose.xlu0.c.b16.cont [7/8] 0, 128
        %1244 = vxpose.xlu0.c.b16.end [8/8] 0, 128
        %v1245 = vpop.trf.xlu0
        %v1246 = vpop.trf.xlu0
        %v1247 = vpop.trf.xlu0
        %v1248 = vpop.trf.xlu0
        %v1249 = vpop.trf.xlu0
        %v1250 = vpop.trf.xlu0
        %v1251 = vpop.trf.xlu0
        %v1252 = vpop.trf.xlu0
        %1253 = vxpose.xlu0.c.b16.start [1/8] %v1211, 128
        %1254 = vxpose.xlu0.c.b16.cont [2/8] 0, 128
        %1255 = vxpose.xlu0.c.b16.cont [3/8] 0, 128
        %1256 = vxpose.xlu0.c.b16.cont [4/8] 0, 128
        %1257 = vxpose.xlu0.c.b16.cont [5/8] 0, 128
        %1258 = vxpose.xlu0.c.b16.cont [6/8] 0, 128
        %1259 = vxpose.xlu0.c.b16.cont [7/8] 0, 128
        %1260 = vxpose.xlu0.c.b16.end [8/8] 0, 128
        %v1261 = vpop.trf.xlu0
        %v1262 = vpop.trf.xlu0
        %v1263 = vpop.trf.xlu0
        %v1264 = vpop.trf.xlu0
        %v1265 = vpop.trf.xlu0
        %v1266 = vpop.trf.xlu0
        %v1267 = vpop.trf.xlu0
        %v1268 = vpop.trf.xlu0
        %1269 = vxpose.xlu0.c.b16.start [1/8] %v1215, 128
        %1270 = vxpose.xlu0.c.b16.cont [2/8] 0, 128
        %1271 = vxpose.xlu0.c.b16.cont [3/8] 0, 128
        %1272 = vxpose.xlu0.c.b16.cont [4/8] 0, 128
        %1273 = vxpose.xlu0.c.b16.cont [5/8] 0, 128
        %1274 = vxpose.xlu0.c.b16.cont [6/8] 0, 128
        %1275 = vxpose.xlu0.c.b16.cont [7/8] 0, 128
        %1276 = vxpose.xlu0.c.b16.end [8/8] 0, 128
        %v1277 = vpop.trf.xlu0
        %v1278 = vpop.trf.xlu0
        %v1279 = vpop.trf.xlu0
        %v1280 = vpop.trf.xlu0
        %v1281 = vpop.trf.xlu0
        %v1282 = vpop.trf.xlu0
        %v1283 = vpop.trf.xlu0
        %v1284 = vpop.trf.xlu0
        %1285 = vxpose.xlu0.c.b16.start [1/8] %v1219, 128
        %1286 = vxpose.xlu0.c.b16.cont [2/8] 0, 128
        %1287 = vxpose.xlu0.c.b16.cont [3/8] 0, 128
        %1288 = vxpose.xlu0.c.b16.cont [4/8] 0, 128
        %1289 = vxpose.xlu0.c.b16.cont [5/8] 0, 128
        %1290 = vxpose.xlu0.c.b16.cont [6/8] 0, 128
        %1291 = vxpose.xlu0.c.b16.cont [7/8] 0, 128
        %1292 = vxpose.xlu0.c.b16.end [8/8] 0, 128
        %v1293 = vpop.trf.xlu0
        %v1294 = vpop.trf.xlu0
        %v1295 = vpop.trf.xlu0
        %v1296 = vpop.trf.xlu0
        %v1297 = vpop.trf.xlu0
        %v1298 = vpop.trf.xlu0
        %v1299 = vpop.trf.xlu0
        %v1300 = vpop.trf.xlu0
        %1301 = vxpose.xlu0.c.b16.start [1/8] %v1223, 128
        %1302 = vxpose.xlu0.c.b16.cont [2/8] 0, 128
        %1303 = vxpose.xlu0.c.b16.cont [3/8] 0, 128
        %1304 = vxpose.xlu0.c.b16.cont [4/8] 0, 128
        %1305 = vxpose.xlu0.c.b16.cont [5/8] 0, 128
        %1306 = vxpose.xlu0.c.b16.cont [6/8] 0, 128
        %1307 = vxpose.xlu0.c.b16.cont [7/8] 0, 128
        %1308 = vxpose.xlu0.c.b16.end [8/8] 0, 128
        %v1309 = vpop.trf.xlu0
        %v1310 = vpop.trf.xlu0
        %v1311 = vpop.trf.xlu0
        %v1312 = vpop.trf.xlu0
        %v1313 = vpop.trf.xlu0
        %v1314 = vpop.trf.xlu0
        %v1315 = vpop.trf.xlu0
        %v1316 = vpop.trf.xlu0
        %1317 = vxpose.xlu0.c.b16.start [1/8] %v1227, 128
        %1318 = vxpose.xlu0.c.b16.cont [2/8] 0, 128
        %1319 = vxpose.xlu0.c.b16.cont [3/8] 0, 128
        %1320 = vxpose.xlu0.c.b16.cont [4/8] 0, 128
        %1321 = vxpose.xlu0.c.b16.cont [5/8] 0, 128
        %1322 = vxpose.xlu0.c.b16.cont [6/8] 0, 128
        %1323 = vxpose.xlu0.c.b16.cont [7/8] 0, 128
        %1324 = vxpose.xlu0.c.b16.end [8/8] 0, 128
        %v1325 = vpop.trf.xlu0
        %v1326 = vpop.trf.xlu0
        %v1327 = vpop.trf.xlu0
        %v1328 = vpop.trf.xlu0
        %v1329 = vpop.trf.xlu0
        %v1330 = vpop.trf.xlu0
        %v1331 = vpop.trf.xlu0
        %v1332 = vpop.trf.xlu0
        %1333 = vxpose.xlu0.c.b16.start [1/8] %v1231, 128
        %1334 = vxpose.xlu0.c.b16.cont [2/8] 0, 128
        %1335 = vxpose.xlu0.c.b16.cont [3/8] 0, 128
        %1336 = vxpose.xlu0.c.b16.cont [4/8] 0, 128
        %1337 = vxpose.xlu0.c.b16.cont [5/8] 0, 128
        %1338 = vxpose.xlu0.c.b16.cont [6/8] 0, 128
        %1339 = vxpose.xlu0.c.b16.cont [7/8] 0, 128
        %1340 = vxpose.xlu0.c.b16.end [8/8] 0, 128
        %v1341 = vpop.trf.xlu0
        %v1342 = vpop.trf.xlu0
        %v1343 = vpop.trf.xlu0
        %v1344 = vpop.trf.xlu0
        %v1345 = vpop.trf.xlu0
        %v1346 = vpop.trf.xlu0
        %v1347 = vpop.trf.xlu0
        %v1348 = vpop.trf.xlu0
        %1349 = vxpose.xlu0.c.b16.start [1/8] %v1235, 128
        %1350 = vxpose.xlu0.c.b16.cont [2/8] 0, 128
        %1351 = vxpose.xlu0.c.b16.cont [3/8] 0, 128
        %1352 = vxpose.xlu0.c.b16.cont [4/8] 0, 128
        %1353 = vxpose.xlu0.c.b16.cont [5/8] 0, 128
        %1354 = vxpose.xlu0.c.b16.cont [6/8] 0, 128
        %1355 = vxpose.xlu0.c.b16.cont [7/8] 0, 128
        %1356 = vxpose.xlu0.c.b16.end [8/8] 0, 128
        %v1357 = vpop.trf.xlu0
        %v1358 = vpop.trf.xlu0
        %v1359 = vpop.trf.xlu0
        %v1360 = vpop.trf.xlu0
        %v1361 = vpop.trf.xlu0
        %v1362 = vpop.trf.xlu0
        %v1363 = vpop.trf.xlu0
        %v1364 = vpop.trf.xlu0
        %v1365 = vcombine.low %v1245, %v1309
        %v1367 = vunpack.c.l.s4 1983009808
        %v1368 = vunpack.c.0.s8 %v1367
        %v1369 = vlaneseq
        %v1370 = vshrl.u32 %v1369, 7
        %v1371 = vsub.s32 %v1368, %v1370
        %v1372 = vrot.slane %v1365, %v1371
        %v1373 = vcombine.low %v1277, %v1341
        %v1375 = vunpack.c.l.s4 1983009808
        %v1376 = vunpack.c.0.s8 %v1375
        %v1377 = vlaneseq
        %v1378 = vshrl.u32 %v1377, 7
        %v1379 = vsub.s32 %v1376, %v1378
        %v1380 = vrot.slane %v1373, %v1379
        %v1381 = vcombine.low %v1372, %v1380
        %v1383 = vunpack.c.l.s4 1934713408
        %v1384 = vunpack.c.0.s8 %v1383
        %v1385 = vlaneseq
        %v1386 = vshrl.u32 %v1385, 7
        %v1387 = vsub.s32 %v1384, %v1386
        %v1388 = vrot.slane %v1381, %v1387
        %v1389 = vcombine.high %v1388, 0
        %v1390 = vcombine.low %v1261, %v1325
        %v1392 = vunpack.c.l.s4 1983009808
        %v1393 = vunpack.c.0.s8 %v1392
        %v1394 = vlaneseq
        %v1395 = vshrl.u32 %v1394, 7
        %v1396 = vsub.s32 %v1393, %v1395
        %v1397 = vrot.slane %v1390, %v1396
        %v1398 = vcombine.low %v1293, %v1357
        %v1400 = vunpack.c.l.s4 1983009808
        %v1401 = vunpack.c.0.s8 %v1400
        %v1402 = vlaneseq
        %v1403 = vshrl.u32 %v1402, 7
        %v1404 = vsub.s32 %v1401, %v1403
        %v1405 = vrot.slane %v1398, %v1404
        %v1406 = vcombine.low %v1397, %v1405
        %v1408 = vunpack.c.l.s4 1934713408
        %v1409 = vunpack.c.0.s8 %v1408
        %v1410 = vlaneseq
        %v1411 = vshrl.u32 %v1410, 7
        %v1412 = vsub.s32 %v1409, %v1411
        %v1413 = vrot.slane %v1406, %v1412
        %v1414 = vcombine.high %v1413, 0
        %v1417 = vpack.i.b16 %v1413, %v1388
        %v1418 = vshrl.u32 %v1388, 16
        %v1419 = vshrl.u32 %v1413, 16
        %v1420 = vpack.i.b16 %v1419, %v1418
        %v1423 = vpack.i.b16 %v1414, %v1389
        %v1424 = vshrl.u32 %v1389, 16
        %v1425 = vshrl.u32 %v1414, 16
        %v1426 = vpack.i.b16 %v1425, %v1424
        %vm1427 = vcmask 64512
        %v1429 = vsel %vm1427, %v999, 0
        %vm1431 = vcmask 1043456
        %v1433 = vsel %vm1431, %v1417, 0
        %1435 = vmatprep.subr.bf16.mxu0 0
        %1436 = vmatpush1.bf16.msra.mxu0 %v1433
        %1437 = vmatprep.subr.bf16.mxu0 0
        %1438 = vmatpush1.bf16.msra.mxu0 0
        %1439 = vmatprep.subr.bf16.mxu0 0
        %1440 = vmatpush1.bf16.msra.mxu0 0
        %1441 = vmatprep.subr.bf16.mxu0 0
        %1442 = vmatpush1.bf16.msra.mxu0 0
        %1443 = vmatprep.subr.bf16.mxu0 0
        %1444 = vmatpush1.bf16.msra.mxu0 0
        %1445 = vmatprep.subr.bf16.mxu0 0
        %1446 = vmatpush1.bf16.msra.mxu0 0
        %1447 = vmatprep.subr.bf16.mxu0 0
        %1448 = vmatpush1.bf16.msra.mxu0 0
        %1449 = vmatprep.subr.bf16.mxu0 0
        %1450 = vmatpush1.bf16.msra.mxu0 0
        %1451 = vmatprep.subr.bf16.mxu0 0
        %1452 = vmatpush1.bf16.msra.mxu0 0
        %1453 = vmatprep.subr.bf16.mxu0 0
        %1454 = vmatpush1.bf16.msra.mxu0 0
        %1455 = vmatprep.subr.bf16.mxu0 0
        %1456 = vmatpush1.bf16.msra.mxu0 0
        %1457 = vmatprep.subr.bf16.mxu0 0
        %1458 = vmatpush1.bf16.msra.mxu0 0
        %1459 = vmatprep.subr.bf16.mxu0 0
        %1460 = vmatpush1.bf16.msra.mxu0 0
        %1461 = vmatprep.subr.bf16.mxu0 0
        %1462 = vmatpush1.bf16.msra.mxu0 0
        %1463 = vmatprep.subr.bf16.mxu0 0
        %1464 = vmatpush1.bf16.msra.mxu0 0
        %1465 = vmatprep.subr.bf16.mxu0 0
        %1466 = vmatpush1.bf16.msra.mxu0 0
        %1467 = vmatprep.mubr.bf16.mxu0 0
        %1468 = vmatmul.mubr.bf16.gmra.mrb[0].mxu0 %v1429
        %v1469 = vpop.f32.mrb[0].mxu0
        %v1470 = vadd.f32 %v579, %v1469
        %v1471 = vpop.f32.mrb[0].mxu0
        %v1472 = vpop.f32.mrb[0].mxu0
        %v1473 = vpop.f32.mrb[0].mxu0
        %1474 = vdwg.mxu0
        %v1476 = vsel %vm1427, %v1002, 0
        %v1479 = vsel %vm1431, %v1420, 0
        %1481 = vmatprep.subr.bf16.mxu0 0
        %1482 = vmatpush1.bf16.msra.mxu0 %v1479
        %1483 = vmatprep.subr.bf16.mxu0 0
        %1484 = vmatpush1.bf16.msra.mxu0 0
        %1485 = vmatprep.subr.bf16.mxu0 0
        %1486 = vmatpush1.bf16.msra.mxu0 0
        %1487 = vmatprep.subr.bf16.mxu0 0
        %1488 = vmatpush1.bf16.msra.mxu0 0
        %1489 = vmatprep.subr.bf16.mxu0 0
        %1490 = vmatpush1.bf16.msra.mxu0 0
        %1491 = vmatprep.subr.bf16.mxu0 0
        %1492 = vmatpush1.bf16.msra.mxu0 0
        %1493 = vmatprep.subr.bf16.mxu0 0
        %1494 = vmatpush1.bf16.msra.mxu0 0
        %1495 = vmatprep.subr.bf16.mxu0 0
        %1496 = vmatpush1.bf16.msra.mxu0 0
        %1497 = vmatprep.subr.bf16.mxu0 0
        %1498 = vmatpush1.bf16.msra.mxu0 0
        %1499 = vmatprep.subr.bf16.mxu0 0
        %1500 = vmatpush1.bf16.msra.mxu0 0
        %1501 = vmatprep.subr.bf16.mxu0 0
        %1502 = vmatpush1.bf16.msra.mxu0 0
        %1503 = vmatprep.subr.bf16.mxu0 0
        %1504 = vmatpush1.bf16.msra.mxu0 0
        %1505 = vmatprep.subr.bf16.mxu0 0
        %1506 = vmatpush1.bf16.msra.mxu0 0
        %1507 = vmatprep.subr.bf16.mxu0 0
        %1508 = vmatpush1.bf16.msra.mxu0 0
        %1509 = vmatprep.subr.bf16.mxu0 0
        %1510 = vmatpush1.bf16.msra.mxu0 0
        %1511 = vmatprep.subr.bf16.mxu0 0
        %1512 = vmatpush1.bf16.msra.mxu0 0
        %1513 = vmatprep.mubr.bf16.mxu0 0
        %1514 = vmatmul.mubr.bf16.gmra.mrb[0].mxu0 %v1476
        %v1515 = vpop.f32.mrb[0].mxu0
        %v1516 = vadd.f32 %v579, %v1515
        %v1517 = vpop.f32.mrb[0].mxu0
        %v1518 = vpop.f32.mrb[0].mxu0
        %v1519 = vpop.f32.mrb[0].mxu0
        %1520 = vdwg.mxu0
        %v1522 = vsel %vm1427, %v1005, 0
        %v1525 = vsel %vm1431, %v1423, 0
        %1527 = vmatprep.subr.bf16.mxu0 0
        %1528 = vmatpush1.bf16.msra.mxu0 %v1525
        %1529 = vmatprep.subr.bf16.mxu0 0
        %1530 = vmatpush1.bf16.msra.mxu0 0
        %1531 = vmatprep.subr.bf16.mxu0 0
        %1532 = vmatpush1.bf16.msra.mxu0 0
        %1533 = vmatprep.subr.bf16.mxu0 0
        %1534 = vmatpush1.bf16.msra.mxu0 0
        %1535 = vmatprep.subr.bf16.mxu0 0
        %1536 = vmatpush1.bf16.msra.mxu0 0
        %1537 = vmatprep.subr.bf16.mxu0 0
        %1538 = vmatpush1.bf16.msra.mxu0 0
        %1539 = vmatprep.subr.bf16.mxu0 0
        %1540 = vmatpush1.bf16.msra.mxu0 0
        %1541 = vmatprep.subr.bf16.mxu0 0
        %1542 = vmatpush1.bf16.msra.mxu0 0
        %1543 = vmatprep.subr.bf16.mxu0 0
        %1544 = vmatpush1.bf16.msra.mxu0 0
        %1545 = vmatprep.subr.bf16.mxu0 0
        %1546 = vmatpush1.bf16.msra.mxu0 0
        %1547 = vmatprep.subr.bf16.mxu0 0
        %1548 = vmatpush1.bf16.msra.mxu0 0
        %1549 = vmatprep.subr.bf16.mxu0 0
        %1550 = vmatpush1.bf16.msra.mxu0 0
        %1551 = vmatprep.subr.bf16.mxu0 0
        %1552 = vmatpush1.bf16.msra.mxu0 0
        %1553 = vmatprep.subr.bf16.mxu0 0
        %1554 = vmatpush1.bf16.msra.mxu0 0
        %1555 = vmatprep.subr.bf16.mxu0 0
        %1556 = vmatpush1.bf16.msra.mxu0 0
        %1557 = vmatprep.subr.bf16.mxu0 0
        %1558 = vmatpush1.bf16.msra.mxu0 0
        %1559 = vmatprep.mubr.bf16.mxu0 0
        %1560 = vmatmul.mubr.bf16.gmra.mrb[0].mxu0 %v1522
        %v1561 = vpop.f32.mrb[0].mxu0
        %v1562 = vadd.f32 %v579, %v1561
        %v1563 = vpop.f32.mrb[0].mxu0
        %v1564 = vpop.f32.mrb[0].mxu0
        %v1565 = vpop.f32.mrb[0].mxu0
        %1566 = vdwg.mxu0
        %v1568 = vsel %vm1427, %v1008, 0
        %v1571 = vsel %vm1431, %v1426, 0
        %1573 = vmatprep.subr.bf16.mxu0 0
        %1574 = vmatpush1.bf16.msra.mxu0 %v1571
        %1575 = vmatprep.subr.bf16.mxu0 0
        %1576 = vmatpush1.bf16.msra.mxu0 0
        %1577 = vmatprep.subr.bf16.mxu0 0
        %1578 = vmatpush1.bf16.msra.mxu0 0
        %1579 = vmatprep.subr.bf16.mxu0 0
        %1580 = vmatpush1.bf16.msra.mxu0 0
        %1581 = vmatprep.subr.bf16.mxu0 0
        %1582 = vmatpush1.bf16.msra.mxu0 0
        %1583 = vmatprep.subr.bf16.mxu0 0
        %1584 = vmatpush1.bf16.msra.mxu0 0
        %1585 = vmatprep.subr.bf16.mxu0 0
        %1586 = vmatpush1.bf16.msra.mxu0 0
        %1587 = vmatprep.subr.bf16.mxu0 0
        %1588 = vmatpush1.bf16.msra.mxu0 0
        %1589 = vmatprep.subr.bf16.mxu0 0
        %1590 = vmatpush1.bf16.msra.mxu0 0
        %1591 = vmatprep.subr.bf16.mxu0 0
        %1592 = vmatpush1.bf16.msra.mxu0 0
        %1593 = vmatprep.subr.bf16.mxu0 0
        %1594 = vmatpush1.bf16.msra.mxu0 0
        %1595 = vmatprep.subr.bf16.mxu0 0
        %1596 = vmatpush1.bf16.msra.mxu0 0
        %1597 = vmatprep.subr.bf16.mxu0 0
        %1598 = vmatpush1.bf16.msra.mxu0 0
        %1599 = vmatprep.subr.bf16.mxu0 0
        %1600 = vmatpush1.bf16.msra.mxu0 0
        %1601 = vmatprep.subr.bf16.mxu0 0
        %1602 = vmatpush1.bf16.msra.mxu0 0
        %1603 = vmatprep.subr.bf16.mxu0 0
        %1604 = vmatpush1.bf16.msra.mxu0 0
        %1605 = vmatprep.mubr.bf16.mxu0 0
        %1606 = vmatmul.mubr.bf16.gmra.mrb[0].mxu0 %v1568
        %v1607 = vpop.f32.mrb[0].mxu0
        %v1608 = vadd.f32 %v579, %v1607
        %v1609 = vpop.f32.mrb[0].mxu0
        %v1610 = vpop.f32.mrb[0].mxu0
        %v1611 = vpop.f32.mrb[0].mxu0
        %1612 = vdwg.mxu0
        %v1613 = vsel %vm1427, %v1470, -inf
        %1614 = vmax.xlane.f32.xlu0 %v1613
        %v1615 = vpop.xlane.xlu0 %1614
        %v1616 = vsel %vm1427, %v1516, -inf
        %1617 = vmax.xlane.f32.xlu0 %v1616
        %v1618 = vpop.xlane.xlu0 %1617
        %v1619 = vsel %vm1427, %v1562, -inf
        %1620 = vmax.xlane.f32.xlu0 %v1619
        %v1621 = vpop.xlane.xlu0 %1620
        %v1622 = vsel %vm1427, %v1608, -inf
        %1623 = vmax.xlane.f32.xlu0 %v1622
        %v1624 = vpop.xlane.xlu0 %1623
        %v1625 = vsub.f32 %v1470, %v1615
        %v1626 = vsub.f32 %v1516, %v1618
        %v1627 = vsub.f32 %v1562, %v1621
        %v1628 = vsub.f32 %v1608, %v1624
        %v1629 = vmul.f32 %v1625, 1.442695
        %v1630 = vpow.pop %v1629
        %v1631 = vmul.f32 %v1626, 1.442695
        %v1632 = vpow.pop %v1631
        %v1633 = vmul.f32 %v1627, 1.442695
        %v1634 = vpow.pop %v1633
        %v1635 = vmul.f32 %v1628, 1.442695
        %v1636 = vpow.pop %v1635
        %v1637 = vsel %vm1427, %v1630, 0.0
        %1638 = vadd.xlane.f32.xlu0 %v1637
        %v1639 = vpop.xlane.xlu0 %1638
        %v1640 = vsel %vm1427, %v1632, 0.0
        %1641 = vadd.xlane.f32.xlu0 %v1640
        %v1642 = vpop.xlane.xlu0 %1641
        %v1643 = vsel %vm1427, %v1634, 0.0
        %1644 = vadd.xlane.f32.xlu0 %v1643
        %v1645 = vpop.xlane.xlu0 %1644
        %v1646 = vsel %vm1427, %v1636, 0.0
        %1647 = vadd.xlane.f32.xlu0 %v1646
        %v1648 = vpop.xlane.xlu0 %1647
        %v1649 = vrcp.pop %v1639
        %v1650 = vrcp.pop %v1642
        %v1651 = vrcp.pop %v1645
        %v1652 = vrcp.pop %v1648
        %v1653 = vmul.f32 %v1630, %v1649
        %v1654 = vmul.f32 %v1632, %v1650
        %v1655 = vmul.f32 %v1634, %v1651
        %v1656 = vmul.f32 %v1636, %v1652
        %v1657 = vpack.c.bf16 %v1653, %v1653
        %v1658 = vpack.c.bf16 %v1654, %v1654
        %v1659 = vpack.c.bf16 %v1655, %v1655
        %v1660 = vpack.c.bf16 %v1656, %v1656
        %1661 = vxpose.xlu0.c.b16.start [1/8] %v939, 128
        %1662 = vxpose.xlu0.c.b16.cont [2/8] 0, 128
        %1663 = vxpose.xlu0.c.b16.cont [3/8] 0, 128
        %1664 = vxpose.xlu0.c.b16.cont [4/8] 0, 128
        %1665 = vxpose.xlu0.c.b16.cont [5/8] 0, 128
        %1666 = vxpose.xlu0.c.b16.cont [6/8] 0, 128
        %1667 = vxpose.xlu0.c.b16.cont [7/8] 0, 128
        %1668 = vxpose.xlu0.c.b16.end [8/8] 0, 128
        %v1669 = vpop.trf.xlu0
        %v1670 = vpop.trf.xlu0
        %v1671 = vpop.trf.xlu0
        %v1672 = vpop.trf.xlu0
        %v1673 = vpop.trf.xlu0
        %v1674 = vpop.trf.xlu0
        %v1675 = vpop.trf.xlu0
        %v1676 = vpop.trf.xlu0
        %1677 = vxpose.xlu0.c.b16.start [1/8] %v940, 128
        %1678 = vxpose.xlu0.c.b16.cont [2/8] 0, 128
        %1679 = vxpose.xlu0.c.b16.cont [3/8] 0, 128
        %1680 = vxpose.xlu0.c.b16.cont [4/8] 0, 128
        %1681 = vxpose.xlu0.c.b16.cont [5/8] 0, 128
        %1682 = vxpose.xlu0.c.b16.cont [6/8] 0, 128
        %1683 = vxpose.xlu0.c.b16.cont [7/8] 0, 128
        %1684 = vxpose.xlu0.c.b16.end [8/8] 0, 128
        %v1685 = vpop.trf.xlu0
        %v1686 = vpop.trf.xlu0
        %v1687 = vpop.trf.xlu0
        %v1688 = vpop.trf.xlu0
        %v1689 = vpop.trf.xlu0
        %v1690 = vpop.trf.xlu0
        %v1691 = vpop.trf.xlu0
        %v1692 = vpop.trf.xlu0
        %1693 = vxpose.xlu0.c.b16.start [1/8] %v941, 128
        %1694 = vxpose.xlu0.c.b16.cont [2/8] 0, 128
        %1695 = vxpose.xlu0.c.b16.cont [3/8] 0, 128
        %1696 = vxpose.xlu0.c.b16.cont [4/8] 0, 128
        %1697 = vxpose.xlu0.c.b16.cont [5/8] 0, 128
        %1698 = vxpose.xlu0.c.b16.cont [6/8] 0, 128
        %1699 = vxpose.xlu0.c.b16.cont [7/8] 0, 128
        %1700 = vxpose.xlu0.c.b16.end [8/8] 0, 128
        %v1701 = vpop.trf.xlu0
        %v1702 = vpop.trf.xlu0
        %v1703 = vpop.trf.xlu0
        %v1704 = vpop.trf.xlu0
        %v1705 = vpop.trf.xlu0
        %v1706 = vpop.trf.xlu0
        %v1707 = vpop.trf.xlu0
        %v1708 = vpop.trf.xlu0
        %1709 = vxpose.xlu0.c.b16.start [1/8] %v942, 128
        %1710 = vxpose.xlu0.c.b16.cont [2/8] 0, 128
        %1711 = vxpose.xlu0.c.b16.cont [3/8] 0, 128
        %1712 = vxpose.xlu0.c.b16.cont [4/8] 0, 128
        %1713 = vxpose.xlu0.c.b16.cont [5/8] 0, 128
        %1714 = vxpose.xlu0.c.b16.cont [6/8] 0, 128
        %1715 = vxpose.xlu0.c.b16.cont [7/8] 0, 128
        %1716 = vxpose.xlu0.c.b16.end [8/8] 0, 128
        %v1717 = vpop.trf.xlu0
        %v1718 = vpop.trf.xlu0
        %v1719 = vpop.trf.xlu0
        %v1720 = vpop.trf.xlu0
        %v1721 = vpop.trf.xlu0
        %v1722 = vpop.trf.xlu0
        %v1723 = vpop.trf.xlu0
        %v1724 = vpop.trf.xlu0
        %1725 = vxpose.xlu0.c.b16.start [1/8] %v943, 128
        %1726 = vxpose.xlu0.c.b16.cont [2/8] 0, 128
        %1727 = vxpose.xlu0.c.b16.cont [3/8] 0, 128
        %1728 = vxpose.xlu0.c.b16.cont [4/8] 0, 128
        %1729 = vxpose.xlu0.c.b16.cont [5/8] 0, 128
        %1730 = vxpose.xlu0.c.b16.cont [6/8] 0, 128
        %1731 = vxpose.xlu0.c.b16.cont [7/8] 0, 128
        %1732 = vxpose.xlu0.c.b16.end [8/8] 0, 128
        %v1733 = vpop.trf.xlu0
        %v1734 = vpop.trf.xlu0
        %v1735 = vpop.trf.xlu0
        %v1736 = vpop.trf.xlu0
        %v1737 = vpop.trf.xlu0
        %v1738 = vpop.trf.xlu0
        %v1739 = vpop.trf.xlu0
        %v1740 = vpop.trf.xlu0
        %1741 = vxpose.xlu0.c.b16.start [1/8] %v944, 128
        %1742 = vxpose.xlu0.c.b16.cont [2/8] 0, 128
        %1743 = vxpose.xlu0.c.b16.cont [3/8] 0, 128
        %1744 = vxpose.xlu0.c.b16.cont [4/8] 0, 128
        %1745 = vxpose.xlu0.c.b16.cont [5/8] 0, 128
        %1746 = vxpose.xlu0.c.b16.cont [6/8] 0, 128
        %1747 = vxpose.xlu0.c.b16.cont [7/8] 0, 128
        %1748 = vxpose.xlu0.c.b16.end [8/8] 0, 128
        %v1749 = vpop.trf.xlu0
        %v1750 = vpop.trf.xlu0
        %v1751 = vpop.trf.xlu0
        %v1752 = vpop.trf.xlu0
        %v1753 = vpop.trf.xlu0
        %v1754 = vpop.trf.xlu0
        %v1755 = vpop.trf.xlu0
        %v1756 = vpop.trf.xlu0
        %1757 = vxpose.xlu0.c.b16.start [1/8] %v945, 128
        %1758 = vxpose.xlu0.c.b16.cont [2/8] 0, 128
        %1759 = vxpose.xlu0.c.b16.cont [3/8] 0, 128
        %1760 = vxpose.xlu0.c.b16.cont [4/8] 0, 128
        %1761 = vxpose.xlu0.c.b16.cont [5/8] 0, 128
        %1762 = vxpose.xlu0.c.b16.cont [6/8] 0, 128
        %1763 = vxpose.xlu0.c.b16.cont [7/8] 0, 128
        %1764 = vxpose.xlu0.c.b16.end [8/8] 0, 128
        %v1765 = vpop.trf.xlu0
        %v1766 = vpop.trf.xlu0
        %v1767 = vpop.trf.xlu0
        %v1768 = vpop.trf.xlu0
        %v1769 = vpop.trf.xlu0
        %v1770 = vpop.trf.xlu0
        %v1771 = vpop.trf.xlu0
        %v1772 = vpop.trf.xlu0
        %1773 = vxpose.xlu0.c.b16.start [1/8] %v946, 128
        %1774 = vxpose.xlu0.c.b16.cont [2/8] 0, 128
        %1775 = vxpose.xlu0.c.b16.cont [3/8] 0, 128
        %1776 = vxpose.xlu0.c.b16.cont [4/8] 0, 128
        %1777 = vxpose.xlu0.c.b16.cont [5/8] 0, 128
        %1778 = vxpose.xlu0.c.b16.cont [6/8] 0, 128
        %1779 = vxpose.xlu0.c.b16.cont [7/8] 0, 128
        %1780 = vxpose.xlu0.c.b16.end [8/8] 0, 128
        %v1781 = vpop.trf.xlu0
        %v1782 = vpop.trf.xlu0
        %v1783 = vpop.trf.xlu0
        %v1784 = vpop.trf.xlu0
        %v1785 = vpop.trf.xlu0
        %v1786 = vpop.trf.xlu0
        %v1787 = vpop.trf.xlu0
        %v1788 = vpop.trf.xlu0
        %v1789 = vcombine.low %v1669, %v1733
        %v1791 = vunpack.c.l.s4 1983009808
        %v1792 = vunpack.c.0.s8 %v1791
        %v1793 = vlaneseq
        %v1794 = vshrl.u32 %v1793, 7
        %v1795 = vsub.s32 %v1792, %v1794
        %v1796 = vrot.slane %v1789, %v1795
        %v1797 = vcombine.low %v1701, %v1765
        %v1799 = vunpack.c.l.s4 1983009808
        %v1800 = vunpack.c.0.s8 %v1799
        %v1801 = vlaneseq
        %v1802 = vshrl.u32 %v1801, 7
        %v1803 = vsub.s32 %v1800, %v1802
        %v1804 = vrot.slane %v1797, %v1803
        %v1805 = vcombine.low %v1796, %v1804
        %v1806 = vcombine.high %v1796, %v1804
        %v1808 = vunpack.c.l.s4 1934713408
        %v1809 = vunpack.c.0.s8 %v1808
        %v1810 = vlaneseq
        %v1811 = vshrl.u32 %v1810, 7
        %v1812 = vsub.s32 %v1809, %v1811
        %v1813 = vrot.slane %v1805, %v1812
        %v1815 = vunpack.c.l.s4 1934713408
        %v1816 = vunpack.c.0.s8 %v1815
        %v1817 = vlaneseq
        %v1818 = vshrl.u32 %v1817, 7
        %v1819 = vsub.s32 %v1816, %v1818
        %v1820 = vrot.slane %v1806, %v1819
        %v1821 = vcombine.high %v1813, 0
        %v1822 = vcombine.high %v1820, 0
        %v1823 = vcombine.low %v1685, %v1749
        %v1825 = vunpack.c.l.s4 1983009808
        %v1826 = vunpack.c.0.s8 %v1825
        %v1827 = vlaneseq
        %v1828 = vshrl.u32 %v1827, 7
        %v1829 = vsub.s32 %v1826, %v1828
        %v1830 = vrot.slane %v1823, %v1829
        %v1831 = vcombine.low %v1717, %v1781
        %v1833 = vunpack.c.l.s4 1983009808
        %v1834 = vunpack.c.0.s8 %v1833
        %v1835 = vlaneseq
        %v1836 = vshrl.u32 %v1835, 7
        %v1837 = vsub.s32 %v1834, %v1836
        %v1838 = vrot.slane %v1831, %v1837
        %v1839 = vcombine.low %v1830, %v1838
        %v1840 = vcombine.high %v1830, %v1838
        %v1842 = vunpack.c.l.s4 1934713408
        %v1843 = vunpack.c.0.s8 %v1842
        %v1844 = vlaneseq
        %v1845 = vshrl.u32 %v1844, 7
        %v1846 = vsub.s32 %v1843, %v1845
        %v1847 = vrot.slane %v1839, %v1846
        %v1849 = vunpack.c.l.s4 1934713408
        %v1850 = vunpack.c.0.s8 %v1849
        %v1851 = vlaneseq
        %v1852 = vshrl.u32 %v1851, 7
        %v1853 = vsub.s32 %v1850, %v1852
        %v1854 = vrot.slane %v1840, %v1853
        %v1855 = vcombine.high %v1847, 0
        %v1856 = vcombine.high %v1854, 0
        %v1859 = vpack.i.b16 %v1847, %v1813
        %v1861 = vshrl.u32 %v1813, 16
        %v1862 = vshrl.u32 %v1847, 16
        %v1863 = vpack.i.b16 %v1862, %v1861
        %v1867 = vpack.i.b16 %v1855, %v1821
        %v1869 = vshrl.u32 %v1821, 16
        %v1870 = vshrl.u32 %v1855, 16
        %v1871 = vpack.i.b16 %v1870, %v1869
        %v1875 = vpack.i.b16 %v1854, %v1820
        %v1877 = vshrl.u32 %v1820, 16
        %v1878 = vshrl.u32 %v1854, 16
        %v1879 = vpack.i.b16 %v1878, %v1877
        %v1883 = vpack.i.b16 %v1856, %v1822
        %v1885 = vshrl.u32 %v1822, 16
        %v1886 = vshrl.u32 %v1856, 16
        %v1887 = vpack.i.b16 %v1886, %v1885
        %1889 = vxpose.xlu0.c.b16.start [1/8] %v1859, 128
        %1890 = vxpose.xlu0.c.b16.cont [2/8] 0, 128
        %1891 = vxpose.xlu0.c.b16.cont [3/8] 0, 128
        %1892 = vxpose.xlu0.c.b16.cont [4/8] 0, 128
        %1893 = vxpose.xlu0.c.b16.cont [5/8] 0, 128
        %1894 = vxpose.xlu0.c.b16.cont [6/8] 0, 128
        %1895 = vxpose.xlu0.c.b16.cont [7/8] 0, 128
        %1896 = vxpose.xlu0.c.b16.end [8/8] 0, 128
        %v1897 = vpop.trf.xlu0
        %v1898 = vpop.trf.xlu0
        %v1899 = vpop.trf.xlu0
        %v1900 = vpop.trf.xlu0
        %v1901 = vpop.trf.xlu0
        %v1902 = vpop.trf.xlu0
        %v1903 = vpop.trf.xlu0
        %v1904 = vpop.trf.xlu0
        %1905 = vxpose.xlu0.c.b16.start [1/8] %v1863, 128
        %1906 = vxpose.xlu0.c.b16.cont [2/8] 0, 128
        %1907 = vxpose.xlu0.c.b16.cont [3/8] 0, 128
        %1908 = vxpose.xlu0.c.b16.cont [4/8] 0, 128
        %1909 = vxpose.xlu0.c.b16.cont [5/8] 0, 128
        %1910 = vxpose.xlu0.c.b16.cont [6/8] 0, 128
        %1911 = vxpose.xlu0.c.b16.cont [7/8] 0, 128
        %1912 = vxpose.xlu0.c.b16.end [8/8] 0, 128
        %v1913 = vpop.trf.xlu0
        %v1914 = vpop.trf.xlu0
        %v1915 = vpop.trf.xlu0
        %v1916 = vpop.trf.xlu0
        %v1917 = vpop.trf.xlu0
        %v1918 = vpop.trf.xlu0
        %v1919 = vpop.trf.xlu0
        %v1920 = vpop.trf.xlu0
        %1921 = vxpose.xlu0.c.b16.start [1/8] %v1867, 128
        %1922 = vxpose.xlu0.c.b16.cont [2/8] 0, 128
        %1923 = vxpose.xlu0.c.b16.cont [3/8] 0, 128
        %1924 = vxpose.xlu0.c.b16.cont [4/8] 0, 128
        %1925 = vxpose.xlu0.c.b16.cont [5/8] 0, 128
        %1926 = vxpose.xlu0.c.b16.cont [6/8] 0, 128
        %1927 = vxpose.xlu0.c.b16.cont [7/8] 0, 128
        %1928 = vxpose.xlu0.c.b16.end [8/8] 0, 128
        %v1929 = vpop.trf.xlu0
        %v1930 = vpop.trf.xlu0
        %v1931 = vpop.trf.xlu0
        %v1932 = vpop.trf.xlu0
        %v1933 = vpop.trf.xlu0
        %v1934 = vpop.trf.xlu0
        %v1935 = vpop.trf.xlu0
        %v1936 = vpop.trf.xlu0
        %1937 = vxpose.xlu0.c.b16.start [1/8] %v1871, 128
        %1938 = vxpose.xlu0.c.b16.cont [2/8] 0, 128
        %1939 = vxpose.xlu0.c.b16.cont [3/8] 0, 128
        %1940 = vxpose.xlu0.c.b16.cont [4/8] 0, 128
        %1941 = vxpose.xlu0.c.b16.cont [5/8] 0, 128
        %1942 = vxpose.xlu0.c.b16.cont [6/8] 0, 128
        %1943 = vxpose.xlu0.c.b16.cont [7/8] 0, 128
        %1944 = vxpose.xlu0.c.b16.end [8/8] 0, 128
        %v1945 = vpop.trf.xlu0
        %v1946 = vpop.trf.xlu0
        %v1947 = vpop.trf.xlu0
        %v1948 = vpop.trf.xlu0
        %v1949 = vpop.trf.xlu0
        %v1950 = vpop.trf.xlu0
        %v1951 = vpop.trf.xlu0
        %v1952 = vpop.trf.xlu0
        %1953 = vxpose.xlu0.c.b16.start [1/8] %v1875, 128
        %1954 = vxpose.xlu0.c.b16.cont [2/8] 0, 128
        %1955 = vxpose.xlu0.c.b16.cont [3/8] 0, 128
        %1956 = vxpose.xlu0.c.b16.cont [4/8] 0, 128
        %1957 = vxpose.xlu0.c.b16.cont [5/8] 0, 128
        %1958 = vxpose.xlu0.c.b16.cont [6/8] 0, 128
        %1959 = vxpose.xlu0.c.b16.cont [7/8] 0, 128
        %1960 = vxpose.xlu0.c.b16.end [8/8] 0, 128
        %v1961 = vpop.trf.xlu0
        %v1962 = vpop.trf.xlu0
        %v1963 = vpop.trf.xlu0
        %v1964 = vpop.trf.xlu0
        %v1965 = vpop.trf.xlu0
        %v1966 = vpop.trf.xlu0
        %v1967 = vpop.trf.xlu0
        %v1968 = vpop.trf.xlu0
        %1969 = vxpose.xlu0.c.b16.start [1/8] %v1879, 128
        %1970 = vxpose.xlu0.c.b16.cont [2/8] 0, 128
        %1971 = vxpose.xlu0.c.b16.cont [3/8] 0, 128
        %1972 = vxpose.xlu0.c.b16.cont [4/8] 0, 128
        %1973 = vxpose.xlu0.c.b16.cont [5/8] 0, 128
        %1974 = vxpose.xlu0.c.b16.cont [6/8] 0, 128
        %1975 = vxpose.xlu0.c.b16.cont [7/8] 0, 128
        %1976 = vxpose.xlu0.c.b16.end [8/8] 0, 128
        %v1977 = vpop.trf.xlu0
        %v1978 = vpop.trf.xlu0
        %v1979 = vpop.trf.xlu0
        %v1980 = vpop.trf.xlu0
        %v1981 = vpop.trf.xlu0
        %v1982 = vpop.trf.xlu0
        %v1983 = vpop.trf.xlu0
        %v1984 = vpop.trf.xlu0
        %1985 = vxpose.xlu0.c.b16.start [1/8] %v1883, 128
        %1986 = vxpose.xlu0.c.b16.cont [2/8] 0, 128
        %1987 = vxpose.xlu0.c.b16.cont [3/8] 0, 128
        %1988 = vxpose.xlu0.c.b16.cont [4/8] 0, 128
        %1989 = vxpose.xlu0.c.b16.cont [5/8] 0, 128
        %1990 = vxpose.xlu0.c.b16.cont [6/8] 0, 128
        %1991 = vxpose.xlu0.c.b16.cont [7/8] 0, 128
        %1992 = vxpose.xlu0.c.b16.end [8/8] 0, 128
        %v1993 = vpop.trf.xlu0
        %v1994 = vpop.trf.xlu0
        %v1995 = vpop.trf.xlu0
        %v1996 = vpop.trf.xlu0
        %v1997 = vpop.trf.xlu0
        %v1998 = vpop.trf.xlu0
        %v1999 = vpop.trf.xlu0
        %v2000 = vpop.trf.xlu0
        %2001 = vxpose.xlu0.c.b16.start [1/8] %v1887, 128
        %2002 = vxpose.xlu0.c.b16.cont [2/8] 0, 128
        %2003 = vxpose.xlu0.c.b16.cont [3/8] 0, 128
        %2004 = vxpose.xlu0.c.b16.cont [4/8] 0, 128
        %2005 = vxpose.xlu0.c.b16.cont [5/8] 0, 128
        %2006 = vxpose.xlu0.c.b16.cont [6/8] 0, 128
        %2007 = vxpose.xlu0.c.b16.cont [7/8] 0, 128
        %2008 = vxpose.xlu0.c.b16.end [8/8] 0, 128
        %v2009 = vpop.trf.xlu0
        %v2010 = vpop.trf.xlu0
        %v2011 = vpop.trf.xlu0
        %v2012 = vpop.trf.xlu0
        %v2013 = vpop.trf.xlu0
        %v2014 = vpop.trf.xlu0
        %v2015 = vpop.trf.xlu0
        %v2016 = vpop.trf.xlu0
        %v2017 = vcombine.low %v1897, %v1961
        %v2019 = vunpack.c.l.s4 1983009808
        %v2020 = vunpack.c.0.s8 %v2019
        %v2021 = vlaneseq
        %v2022 = vshrl.u32 %v2021, 7
        %v2023 = vsub.s32 %v2020, %v2022
        %v2024 = vrot.slane %v2017, %v2023
        %v2025 = vcombine.low %v1929, %v1993
        %v2027 = vunpack.c.l.s4 1983009808
        %v2028 = vunpack.c.0.s8 %v2027
        %v2029 = vlaneseq
        %v2030 = vshrl.u32 %v2029, 7
        %v2031 = vsub.s32 %v2028, %v2030
        %v2032 = vrot.slane %v2025, %v2031
        %v2033 = vcombine.low %v2024, %v2032
        %v2035 = vunpack.c.l.s4 1934713408
        %v2036 = vunpack.c.0.s8 %v2035
        %v2037 = vlaneseq
        %v2038 = vshrl.u32 %v2037, 7
        %v2039 = vsub.s32 %v2036, %v2038
        %v2040 = vrot.slane %v2033, %v2039
        %v2041 = vcombine.high %v2040, 0
        %v2042 = vcombine.low %v1913, %v1977
        %v2044 = vunpack.c.l.s4 1983009808
        %v2045 = vunpack.c.0.s8 %v2044
        %v2046 = vlaneseq
        %v2047 = vshrl.u32 %v2046, 7
        %v2048 = vsub.s32 %v2045, %v2047
        %v2049 = vrot.slane %v2042, %v2048
        %v2050 = vcombine.low %v1945, %v2009
        %v2052 = vunpack.c.l.s4 1983009808
        %v2053 = vunpack.c.0.s8 %v2052
        %v2054 = vlaneseq
        %v2055 = vshrl.u32 %v2054, 7
        %v2056 = vsub.s32 %v2053, %v2055
        %v2057 = vrot.slane %v2050, %v2056
        %v2058 = vcombine.low %v2049, %v2057
        %v2060 = vunpack.c.l.s4 1934713408
        %v2061 = vunpack.c.0.s8 %v2060
        %v2062 = vlaneseq
        %v2063 = vshrl.u32 %v2062, 7
        %v2064 = vsub.s32 %v2061, %v2063
        %v2065 = vrot.slane %v2058, %v2064
        %v2066 = vcombine.high %v2065, 0
        %v2069 = vpack.i.b16 %v2065, %v2040
        %v2070 = vshrl.u32 %v2040, 16
        %v2071 = vshrl.u32 %v2065, 16
        %v2072 = vpack.i.b16 %v2071, %v2070
        %v2075 = vpack.i.b16 %v2066, %v2041
        %v2076 = vshrl.u32 %v2041, 16
        %v2077 = vshrl.u32 %v2066, 16
        %v2078 = vpack.i.b16 %v2077, %v2076
        %v2080 = vsel %vm1427, %v2069, 0
        %v2083 = vsel %vm1427, %v1657, 0
        %2085 = vmatprep.subr.bf16.mxu0 0
        %2086 = vmatpush1.bf16.xpose.msra.mxu0 %v2083
        %2087 = vmatprep.subr.bf16.mxu0 0
        %2088 = vmatpush1.bf16.xpose.msra.mxu0 0
        %2089 = vmatprep.subr.bf16.mxu0 0
        %2090 = vmatpush1.bf16.xpose.msra.mxu0 0
        %2091 = vmatprep.subr.bf16.mxu0 0
        %2092 = vmatpush1.bf16.xpose.msra.mxu0 0
        %2093 = vmatprep.subr.bf16.mxu0 0
        %2094 = vmatpush1.bf16.xpose.msra.mxu0 0
        %2095 = vmatprep.subr.bf16.mxu0 0
        %2096 = vmatpush1.bf16.xpose.msra.mxu0 0
        %2097 = vmatprep.subr.bf16.mxu0 0
        %2098 = vmatpush1.bf16.xpose.msra.mxu0 0
        %2099 = vmatprep.subr.bf16.mxu0 0
        %2100 = vmatpush1.bf16.xpose.msra.mxu0 0
        %2101 = vmatprep.subr.bf16.mxu0 0
        %2102 = vmatpush1.bf16.xpose.msra.mxu0 0
        %2103 = vmatprep.subr.bf16.mxu0 0
        %2104 = vmatpush1.bf16.xpose.msra.mxu0 0
        %2105 = vmatprep.subr.bf16.mxu0 0
        %2106 = vmatpush1.bf16.xpose.msra.mxu0 0
        %2107 = vmatprep.subr.bf16.mxu0 0
        %2108 = vmatpush1.bf16.xpose.msra.mxu0 0
        %2109 = vmatprep.subr.bf16.mxu0 0
        %2110 = vmatpush1.bf16.xpose.msra.mxu0 0
        %2111 = vmatprep.subr.bf16.mxu0 0
        %2112 = vmatpush1.bf16.xpose.msra.mxu0 0
        %2113 = vmatprep.subr.bf16.mxu0 0
        %2114 = vmatpush1.bf16.xpose.msra.mxu0 0
        %2115 = vmatprep.subr.bf16.mxu0 0
        %2116 = vmatpush1.bf16.xpose.msra.mxu0 0
        %2117 = vmatprep.mubr.bf16.mxu0 0
        %2118 = vmatmul.mubr.bf16.gmra.mrb[0].mxu0 %v2080
        %v2119 = vpop.f32.mrb[0].mxu0
        %v2120 = vadd.f32 0.0, %v2119
        %v2121 = vpop.f32.mrb[0].mxu0
        %v2122 = vpop.f32.mrb[0].mxu0
        %v2123 = vpop.f32.mrb[0].mxu0
        %2124 = vdwg.mxu0
        %v2126 = vsel %vm1427, %v2072, 0
        %v2129 = vsel %vm1427, %v1658, 0
        %2131 = vmatprep.subr.bf16.mxu0 0
        %2132 = vmatpush1.bf16.xpose.msra.mxu0 %v2129
        %2133 = vmatprep.subr.bf16.mxu0 0
        %2134 = vmatpush1.bf16.xpose.msra.mxu0 0
        %2135 = vmatprep.subr.bf16.mxu0 0
        %2136 = vmatpush1.bf16.xpose.msra.mxu0 0
        %2137 = vmatprep.subr.bf16.mxu0 0
        %2138 = vmatpush1.bf16.xpose.msra.mxu0 0
        %2139 = vmatprep.subr.bf16.mxu0 0
        %2140 = vmatpush1.bf16.xpose.msra.mxu0 0
        %2141 = vmatprep.subr.bf16.mxu0 0
        %2142 = vmatpush1.bf16.xpose.msra.mxu0 0
        %2143 = vmatprep.subr.bf16.mxu0 0
        %2144 = vmatpush1.bf16.xpose.msra.mxu0 0
        %2145 = vmatprep.subr.bf16.mxu0 0
        %2146 = vmatpush1.bf16.xpose.msra.mxu0 0
        %2147 = vmatprep.subr.bf16.mxu0 0
        %2148 = vmatpush1.bf16.xpose.msra.mxu0 0
        %2149 = vmatprep.subr.bf16.mxu0 0
        %2150 = vmatpush1.bf16.xpose.msra.mxu0 0
        %2151 = vmatprep.subr.bf16.mxu0 0
        %2152 = vmatpush1.bf16.xpose.msra.mxu0 0
        %2153 = vmatprep.subr.bf16.mxu0 0
        %2154 = vmatpush1.bf16.xpose.msra.mxu0 0
        %2155 = vmatprep.subr.bf16.mxu0 0
        %2156 = vmatpush1.bf16.xpose.msra.mxu0 0
        %2157 = vmatprep.subr.bf16.mxu0 0
        %2158 = vmatpush1.bf16.xpose.msra.mxu0 0
        %2159 = vmatprep.subr.bf16.mxu0 0
        %2160 = vmatpush1.bf16.xpose.msra.mxu0 0
        %2161 = vmatprep.subr.bf16.mxu0 0
        %2162 = vmatpush1.bf16.xpose.msra.mxu0 0
        %2163 = vmatprep.mubr.bf16.mxu0 0
        %2164 = vmatmul.mubr.bf16.gmra.mrb[0].mxu0 %v2126
        %v2165 = vpop.f32.mrb[0].mxu0
        %v2166 = vadd.f32 0.0, %v2165
        %v2167 = vpop.f32.mrb[0].mxu0
        %v2168 = vpop.f32.mrb[0].mxu0
        %v2169 = vpop.f32.mrb[0].mxu0
        %2170 = vdwg.mxu0
        %v2172 = vsel %vm1427, %v2075, 0
        %v2175 = vsel %vm1427, %v1659, 0
        %2177 = vmatprep.subr.bf16.mxu0 0
        %2178 = vmatpush1.bf16.xpose.msra.mxu0 %v2175
        %2179 = vmatprep.subr.bf16.mxu0 0
        %2180 = vmatpush1.bf16.xpose.msra.mxu0 0
        %2181 = vmatprep.subr.bf16.mxu0 0
        %2182 = vmatpush1.bf16.xpose.msra.mxu0 0
        %2183 = vmatprep.subr.bf16.mxu0 0
        %2184 = vmatpush1.bf16.xpose.msra.mxu0 0
        %2185 = vmatprep.subr.bf16.mxu0 0
        %2186 = vmatpush1.bf16.xpose.msra.mxu0 0
        %2187 = vmatprep.subr.bf16.mxu0 0
        %2188 = vmatpush1.bf16.xpose.msra.mxu0 0
        %2189 = vmatprep.subr.bf16.mxu0 0
        %2190 = vmatpush1.bf16.xpose.msra.mxu0 0
        %2191 = vmatprep.subr.bf16.mxu0 0
        %2192 = vmatpush1.bf16.xpose.msra.mxu0 0
        %2193 = vmatprep.subr.bf16.mxu0 0
        %2194 = vmatpush1.bf16.xpose.msra.mxu0 0
        %2195 = vmatprep.subr.bf16.mxu0 0
        %2196 = vmatpush1.bf16.xpose.msra.mxu0 0
        %2197 = vmatprep.subr.bf16.mxu0 0
        %2198 = vmatpush1.bf16.xpose.msra.mxu0 0
        %2199 = vmatprep.subr.bf16.mxu0 0
        %2200 = vmatpush1.bf16.xpose.msra.mxu0 0
        %2201 = vmatprep.subr.bf16.mxu0 0
        %2202 = vmatpush1.bf16.xpose.msra.mxu0 0
        %2203 = vmatprep.subr.bf16.mxu0 0
        %2204 = vmatpush1.bf16.xpose.msra.mxu0 0
        %2205 = vmatprep.subr.bf16.mxu0 0
        %2206 = vmatpush1.bf16.xpose.msra.mxu0 0
        %2207 = vmatprep.subr.bf16.mxu0 0
        %2208 = vmatpush1.bf16.xpose.msra.mxu0 0
        %2209 = vmatprep.mubr.bf16.mxu0 0
        %2210 = vmatmul.mubr.bf16.gmra.mrb[0].mxu0 %v2172
        %v2211 = vpop.f32.mrb[0].mxu0
        %v2212 = vadd.f32 0.0, %v2211
        %v2213 = vpop.f32.mrb[0].mxu0
        %v2214 = vpop.f32.mrb[0].mxu0
        %v2215 = vpop.f32.mrb[0].mxu0
        %2216 = vdwg.mxu0
        %v2218 = vsel %vm1427, %v2078, 0
        %v2221 = vsel %vm1427, %v1660, 0
        %2223 = vmatprep.subr.bf16.mxu0 0
        %2224 = vmatpush1.bf16.xpose.msra.mxu0 %v2221
        %2225 = vmatprep.subr.bf16.mxu0 0
        %2226 = vmatpush1.bf16.xpose.msra.mxu0 0
        %2227 = vmatprep.subr.bf16.mxu0 0
        %2228 = vmatpush1.bf16.xpose.msra.mxu0 0
        %2229 = vmatprep.subr.bf16.mxu0 0
        %2230 = vmatpush1.bf16.xpose.msra.mxu0 0
        %2231 = vmatprep.subr.bf16.mxu0 0
        %2232 = vmatpush1.bf16.xpose.msra.mxu0 0
        %2233 = vmatprep.subr.bf16.mxu0 0
        %2234 = vmatpush1.bf16.xpose.msra.mxu0 0
        %2235 = vmatprep.subr.bf16.mxu0 0
        %2236 = vmatpush1.bf16.xpose.msra.mxu0 0
        %2237 = vmatprep.subr.bf16.mxu0 0
        %2238 = vmatpush1.bf16.xpose.msra.mxu0 0
        %2239 = vmatprep.subr.bf16.mxu0 0
        %2240 = vmatpush1.bf16.xpose.msra.mxu0 0
        %2241 = vmatprep.subr.bf16.mxu0 0
        %2242 = vmatpush1.bf16.xpose.msra.mxu0 0
        %2243 = vmatprep.subr.bf16.mxu0 0
        %2244 = vmatpush1.bf16.xpose.msra.mxu0 0
        %2245 = vmatprep.subr.bf16.mxu0 0
        %2246 = vmatpush1.bf16.xpose.msra.mxu0 0
        %2247 = vmatprep.subr.bf16.mxu0 0
        %2248 = vmatpush1.bf16.xpose.msra.mxu0 0
        %2249 = vmatprep.subr.bf16.mxu0 0
        %2250 = vmatpush1.bf16.xpose.msra.mxu0 0
        %2251 = vmatprep.subr.bf16.mxu0 0
        %2252 = vmatpush1.bf16.xpose.msra.mxu0 0
        %2253 = vmatprep.subr.bf16.mxu0 0
        %2254 = vmatpush1.bf16.xpose.msra.mxu0 0
        %2255 = vmatprep.mubr.bf16.mxu0 0
        %2256 = vmatmul.mubr.bf16.gmra.mrb[0].mxu0 %v2218
        %v2257 = vpop.f32.mrb[0].mxu0
        %v2258 = vadd.f32 0.0, %v2257
        %v2259 = vpop.f32.mrb[0].mxu0
        %v2260 = vpop.f32.mrb[0].mxu0
        %v2261 = vpop.f32.mrb[0].mxu0
        %2262 = vdwg.mxu0
        %2263 = vxpose.xlu0.b32.start [1/16] %v2120, 128
        %2264 = vxpose.xlu0.b32.cont [2/16] 0.0, 128
        %2265 = vxpose.xlu0.b32.cont [3/16] 0.0, 128
        %2266 = vxpose.xlu0.b32.cont [4/16] 0.0, 128
        %2267 = vxpose.xlu0.b32.cont [5/16] 0.0, 128
        %2268 = vxpose.xlu0.b32.cont [6/16] 0.0, 128
        %2269 = vxpose.xlu0.b32.cont [7/16] 0.0, 128
        %2270 = vxpose.xlu0.b32.cont [8/16] 0.0, 128
        %2271 = vxpose.xlu0.b32.cont [9/16] 0.0, 128
        %2272 = vxpose.xlu0.b32.cont [10/16] 0.0, 128
        %2273 = vxpose.xlu0.b32.cont [11/16] 0.0, 128
        %2274 = vxpose.xlu0.b32.cont [12/16] 0.0, 128
        %2275 = vxpose.xlu0.b32.cont [13/16] 0.0, 128
        %2276 = vxpose.xlu0.b32.cont [14/16] 0.0, 128
        %2277 = vxpose.xlu0.b32.cont [15/16] 0.0, 128
        %2278 = vxpose.xlu0.b32.end [16/16] 0.0, 128
        %v2279 = vpop.trf.xlu0
        %v2280 = vpop.trf.xlu0
        %v2281 = vpop.trf.xlu0
        %v2282 = vpop.trf.xlu0
        %v2283 = vpop.trf.xlu0
        %v2284 = vpop.trf.xlu0
        %v2285 = vpop.trf.xlu0
        %v2286 = vpop.trf.xlu0
        %v2287 = vpop.trf.xlu0
        %v2288 = vpop.trf.xlu0
        %v2289 = vpop.trf.xlu0
        %v2290 = vpop.trf.xlu0
        %v2291 = vpop.trf.xlu0
        %v2292 = vpop.trf.xlu0
        %v2293 = vpop.trf.xlu0
        %v2294 = vpop.trf.xlu0
        %2295 = vxpose.xlu0.b32.start [1/16] %v2166, 128
        %2296 = vxpose.xlu0.b32.cont [2/16] 0.0, 128
        %2297 = vxpose.xlu0.b32.cont [3/16] 0.0, 128
        %2298 = vxpose.xlu0.b32.cont [4/16] 0.0, 128
        %2299 = vxpose.xlu0.b32.cont [5/16] 0.0, 128
        %2300 = vxpose.xlu0.b32.cont [6/16] 0.0, 128
        %2301 = vxpose.xlu0.b32.cont [7/16] 0.0, 128
        %2302 = vxpose.xlu0.b32.cont [8/16] 0.0, 128
        %2303 = vxpose.xlu0.b32.cont [9/16] 0.0, 128
        %2304 = vxpose.xlu0.b32.cont [10/16] 0.0, 128
        %2305 = vxpose.xlu0.b32.cont [11/16] 0.0, 128
        %2306 = vxpose.xlu0.b32.cont [12/16] 0.0, 128
        %2307 = vxpose.xlu0.b32.cont [13/16] 0.0, 128
        %2308 = vxpose.xlu0.b32.cont [14/16] 0.0, 128
        %2309 = vxpose.xlu0.b32.cont [15/16] 0.0, 128
        %2310 = vxpose.xlu0.b32.end [16/16] 0.0, 128
        %v2311 = vpop.trf.xlu0
        %v2312 = vpop.trf.xlu0
        %v2313 = vpop.trf.xlu0
        %v2314 = vpop.trf.xlu0
        %v2315 = vpop.trf.xlu0
        %v2316 = vpop.trf.xlu0
        %v2317 = vpop.trf.xlu0
        %v2318 = vpop.trf.xlu0
        %v2319 = vpop.trf.xlu0
        %v2320 = vpop.trf.xlu0
        %v2321 = vpop.trf.xlu0
        %v2322 = vpop.trf.xlu0
        %v2323 = vpop.trf.xlu0
        %v2324 = vpop.trf.xlu0
        %v2325 = vpop.trf.xlu0
        %v2326 = vpop.trf.xlu0
        %2327 = vxpose.xlu0.b32.start [1/16] %v2212, 128
        %2328 = vxpose.xlu0.b32.cont [2/16] 0.0, 128
        %2329 = vxpose.xlu0.b32.cont [3/16] 0.0, 128
        %2330 = vxpose.xlu0.b32.cont [4/16] 0.0, 128
        %2331 = vxpose.xlu0.b32.cont [5/16] 0.0, 128
        %2332 = vxpose.xlu0.b32.cont [6/16] 0.0, 128
        %2333 = vxpose.xlu0.b32.cont [7/16] 0.0, 128
        %2334 = vxpose.xlu0.b32.cont [8/16] 0.0, 128
        %2335 = vxpose.xlu0.b32.cont [9/16] 0.0, 128
        %2336 = vxpose.xlu0.b32.cont [10/16] 0.0, 128
        %2337 = vxpose.xlu0.b32.cont [11/16] 0.0, 128
        %2338 = vxpose.xlu0.b32.cont [12/16] 0.0, 128
        %2339 = vxpose.xlu0.b32.cont [13/16] 0.0, 128
        %2340 = vxpose.xlu0.b32.cont [14/16] 0.0, 128
        %2341 = vxpose.xlu0.b32.cont [15/16] 0.0, 128
        %2342 = vxpose.xlu0.b32.end [16/16] 0.0, 128
        %v2343 = vpop.trf.xlu0
        %v2344 = vpop.trf.xlu0
        %v2345 = vpop.trf.xlu0
        %v2346 = vpop.trf.xlu0
        %v2347 = vpop.trf.xlu0
        %v2348 = vpop.trf.xlu0
        %v2349 = vpop.trf.xlu0
        %v2350 = vpop.trf.xlu0
        %v2351 = vpop.trf.xlu0
        %v2352 = vpop.trf.xlu0
        %v2353 = vpop.trf.xlu0
        %v2354 = vpop.trf.xlu0
        %v2355 = vpop.trf.xlu0
        %v2356 = vpop.trf.xlu0
        %v2357 = vpop.trf.xlu0
        %v2358 = vpop.trf.xlu0
        %2359 = vxpose.xlu0.b32.start [1/16] %v2258, 128
        %2360 = vxpose.xlu0.b32.cont [2/16] 0.0, 128
        %2361 = vxpose.xlu0.b32.cont [3/16] 0.0, 128
        %2362 = vxpose.xlu0.b32.cont [4/16] 0.0, 128
        %2363 = vxpose.xlu0.b32.cont [5/16] 0.0, 128
        %2364 = vxpose.xlu0.b32.cont [6/16] 0.0, 128
        %2365 = vxpose.xlu0.b32.cont [7/16] 0.0, 128
        %2366 = vxpose.xlu0.b32.cont [8/16] 0.0, 128
        %2367 = vxpose.xlu0.b32.cont [9/16] 0.0, 128
        %2368 = vxpose.xlu0.b32.cont [10/16] 0.0, 128
        %2369 = vxpose.xlu0.b32.cont [11/16] 0.0, 128
        %2370 = vxpose.xlu0.b32.cont [12/16] 0.0, 128
        %2371 = vxpose.xlu0.b32.cont [13/16] 0.0, 128
        %2372 = vxpose.xlu0.b32.cont [14/16] 0.0, 128
        %2373 = vxpose.xlu0.b32.cont [15/16] 0.0, 128
        %2374 = vxpose.xlu0.b32.end [16/16] 0.0, 128
        %v2375 = vpop.trf.xlu0
        %v2376 = vpop.trf.xlu0
        %v2377 = vpop.trf.xlu0
        %v2378 = vpop.trf.xlu0
        %v2379 = vpop.trf.xlu0
        %v2380 = vpop.trf.xlu0
        %v2381 = vpop.trf.xlu0
        %v2382 = vpop.trf.xlu0
        %v2383 = vpop.trf.xlu0
        %v2384 = vpop.trf.xlu0
        %v2385 = vpop.trf.xlu0
        %v2386 = vpop.trf.xlu0
        %v2387 = vpop.trf.xlu0
        %v2388 = vpop.trf.xlu0
        %v2389 = vpop.trf.xlu0
        %v2390 = vpop.trf.xlu0
        %v2391 = vcombine.low %v2279, %v2343
        %v2392 = vcombine.high %v2279, %v2343
        %v2394 = vunpack.c.l.s4 1983009808
        %v2395 = vunpack.c.0.s8 %v2394
        %v2396 = vlaneseq
        %v2397 = vshrl.u32 %v2396, 7
        %v2398 = vsub.s32 %v2395, %v2397
        %v2399 = vrot.slane %v2391, %v2398
        %v2401 = vunpack.c.l.s4 1983009808
        %v2402 = vunpack.c.0.s8 %v2401
        %v2403 = vlaneseq
        %v2404 = vshrl.u32 %v2403, 7
        %v2405 = vsub.s32 %v2402, %v2404
        %v2406 = vrot.slane %v2392, %v2405
        %v2407 = vcombine.low %v2311, %v2375
        %v2408 = vcombine.high %v2311, %v2375
        %v2410 = vunpack.c.l.s4 1983009808
        %v2411 = vunpack.c.0.s8 %v2410
        %v2412 = vlaneseq
        %v2413 = vshrl.u32 %v2412, 7
        %v2414 = vsub.s32 %v2411, %v2413
        %v2415 = vrot.slane %v2407, %v2414
        %v2417 = vunpack.c.l.s4 1983009808
        %v2418 = vunpack.c.0.s8 %v2417
        %v2419 = vlaneseq
        %v2420 = vshrl.u32 %v2419, 7
        %v2421 = vsub.s32 %v2418, %v2420
        %v2422 = vrot.slane %v2408, %v2421
        %v2423 = vcombine.low %v2399, %v2415
        %v2424 = vcombine.high %v2399, %v2415
        %v2426 = vunpack.c.l.s4 1934713408
        %v2427 = vunpack.c.0.s8 %v2426
        %v2428 = vlaneseq
        %v2429 = vshrl.u32 %v2428, 7
        %v2430 = vsub.s32 %v2427, %v2429
        %v2431 = vrot.slane %v2423, %v2430
        %v2433 = vunpack.c.l.s4 1934713408
        %v2434 = vunpack.c.0.s8 %v2433
        %v2435 = vlaneseq
        %v2436 = vshrl.u32 %v2435, 7
        %v2437 = vsub.s32 %v2434, %v2436
        %v2438 = vrot.slane %v2424, %v2437
        %v2439 = vcombine.low %v2406, %v2422
        %v2440 = vcombine.high %v2406, %v2422
        %v2442 = vunpack.c.l.s4 1934713408
        %v2443 = vunpack.c.0.s8 %v2442
        %v2444 = vlaneseq
        %v2445 = vshrl.u32 %v2444, 7
        %v2446 = vsub.s32 %v2443, %v2445
        %v2447 = vrot.slane %v2439, %v2446
        %v2449 = vunpack.c.l.s4 1934713408
        %v2450 = vunpack.c.0.s8 %v2449
        %v2451 = vlaneseq
        %v2452 = vshrl.u32 %v2451, 7
        %v2453 = vsub.s32 %v2450, %v2452
        %v2454 = vrot.slane %v2440, %v2453
        %v2455 = vcombine.high %v2431, 0.0
        %v2456 = vcombine.high %v2438, 0.0
        %v2457 = vcombine.high %v2447, 0.0
        %v2458 = vcombine.high %v2454, 0.0
        %v2459 = vcombine.low %v2431, %v2438
        %v2461 = vunpack.c.l.s4 1983009808
        %v2462 = vunpack.c.0.s8 %v2461
        %v2463 = vlaneseq
        %v2464 = vshrl.u32 %v2463, 7
        %v2465 = vsub.s32 %v2462, %v2464
        %v2466 = vrot.slane %v2459, %v2465
        %v2467 = vcombine.low %v2455, %v2456
        %v2469 = vunpack.c.l.s4 1983009808
        %v2470 = vunpack.c.0.s8 %v2469
        %v2471 = vlaneseq
        %v2472 = vshrl.u32 %v2471, 7
        %v2473 = vsub.s32 %v2470, %v2472
        %v2474 = vrot.slane %v2467, %v2473
        %v2475 = vcombine.low %v2447, %v2454
        %v2477 = vunpack.c.l.s4 1983009808
        %v2478 = vunpack.c.0.s8 %v2477
        %v2479 = vlaneseq
        %v2480 = vshrl.u32 %v2479, 7
        %v2481 = vsub.s32 %v2478, %v2480
        %v2482 = vrot.slane %v2475, %v2481
        %v2483 = vcombine.low %v2457, %v2458
        %v2485 = vunpack.c.l.s4 1983009808
        %v2486 = vunpack.c.0.s8 %v2485
        %v2487 = vlaneseq
        %v2488 = vshrl.u32 %v2487, 7
        %v2489 = vsub.s32 %v2486, %v2488
        %v2490 = vrot.slane %v2483, %v2489
        %v2491 = vcombine.low %v2466, %v2474
        %v2492 = vcombine.high %v2466, %v2474
        %v2494 = vunpack.c.l.s4 1934713408
        %v2495 = vunpack.c.0.s8 %v2494
        %v2496 = vlaneseq
        %v2497 = vshrl.u32 %v2496, 7
        %v2498 = vsub.s32 %v2495, %v2497
        %v2499 = vrot.slane %v2491, %v2498
        %v2501 = vunpack.c.l.s4 1934713408
        %v2502 = vunpack.c.0.s8 %v2501
        %v2503 = vlaneseq
        %v2504 = vshrl.u32 %v2503, 7
        %v2505 = vsub.s32 %v2502, %v2504
        %v2506 = vrot.slane %v2492, %v2505
        %v2507 = vcombine.low %v2482, %v2490
        %v2508 = vcombine.high %v2482, %v2490
        %v2510 = vunpack.c.l.s4 1934713408
        %v2511 = vunpack.c.0.s8 %v2510
        %v2512 = vlaneseq
        %v2513 = vshrl.u32 %v2512, 7
        %v2514 = vsub.s32 %v2511, %v2513
        %v2515 = vrot.slane %v2507, %v2514
        %v2517 = vunpack.c.l.s4 1934713408
        %v2518 = vunpack.c.0.s8 %v2517
        %v2519 = vlaneseq
        %v2520 = vshrl.u32 %v2519, 7
        %v2521 = vsub.s32 %v2518, %v2520
        %v2522 = vrot.slane %v2508, %v2521
        %v2523 = vcombine.low %v2499, %v2515
        %v2524 = vcombine.high %v2499, %v2515
        %v2525 = vcombine.low %v2506, %v2522
        %v2526 = vcombine.high %v2506, %v2522
        %2528 = vrot.lane.b32.xlu0 %v2524, 8
        %v2529 = vpop.permute.xlu0 %2528
        %2532 = vrot.lane.b32.xlu0 %v2525, 16
        %v2533 = vpop.permute.xlu0 %2532
        %2536 = vrot.lane.b32.xlu0 %v2526, 24
        %v2537 = vpop.permute.xlu0 %2536
        %v2539 = vsel %vm1427, %v2523, %v2529
        %vm2540 = vcmask 130048
        %v2541 = vsel %vm2540, %v2539, %v2533
        %vm2542 = vcmask 195584
        %v2543 = vsel %vm2542, %v2541, %v2537
        %2545 = vrot.lane.b32.xlu0 %v650, 120
        %v2546 = vpop.permute.xlu0 %2545
        %2548 = vrot.lane.b32.xlu0 %v650, 112
        %v2549 = vpop.permute.xlu0 %2548
        %2551 = vrot.lane.b32.xlu0 %v650, 104
        %v2552 = vpop.permute.xlu0 %2551
        %v2554 = vcombine.low %v650, %v2549
        %v2555 = vcombine.high %v650, %v2549
        %v2557 = vunpack.c.l.s4 1983009808
        %v2558 = vunpack.c.0.s8 %v2557
        %v2559 = vlaneseq
        %v2560 = vshrl.u32 %v2559, 7
        %v2561 = vsub.s32 %v2558, %v2560
        %v2562 = vrot.slane %v2554, %v2561
        %v2564 = vunpack.c.l.s4 1983009808
        %v2565 = vunpack.c.0.s8 %v2564
        %v2566 = vlaneseq
        %v2567 = vshrl.u32 %v2566, 7
        %v2568 = vsub.s32 %v2565, %v2567
        %v2569 = vrot.slane %v2555, %v2568
        %v2570 = vcombine.low %v2546, %v2552
        %v2571 = vcombine.high %v2546, %v2552
        %v2573 = vunpack.c.l.s4 1983009808
        %v2574 = vunpack.c.0.s8 %v2573
        %v2575 = vlaneseq
        %v2576 = vshrl.u32 %v2575, 7
        %v2577 = vsub.s32 %v2574, %v2576
        %v2578 = vrot.slane %v2570, %v2577
        %v2580 = vunpack.c.l.s4 1983009808
        %v2581 = vunpack.c.0.s8 %v2580
        %v2582 = vlaneseq
        %v2583 = vshrl.u32 %v2582, 7
        %v2584 = vsub.s32 %v2581, %v2583
        %v2585 = vrot.slane %v2571, %v2584
        %v2586 = vcombine.low %v2562, %v2578
        %v2587 = vcombine.high %v2562, %v2578
        %v2589 = vunpack.c.l.s4 1934713408
        %v2590 = vunpack.c.0.s8 %v2589
        %v2591 = vlaneseq
        %v2592 = vshrl.u32 %v2591, 7
        %v2593 = vsub.s32 %v2590, %v2592
        %v2594 = vrot.slane %v2586, %v2593
        %v2596 = vunpack.c.l.s4 1934713408
        %v2597 = vunpack.c.0.s8 %v2596
        %v2598 = vlaneseq
        %v2599 = vshrl.u32 %v2598, 7
        %v2600 = vsub.s32 %v2597, %v2599
        %v2601 = vrot.slane %v2587, %v2600
        %v2602 = vcombine.low %v2569, %v2585
        %v2603 = vcombine.high %v2569, %v2585
        %v2605 = vunpack.c.l.s4 1934713408
        %v2606 = vunpack.c.0.s8 %v2605
        %v2607 = vlaneseq
        %v2608 = vshrl.u32 %v2607, 7
        %v2609 = vsub.s32 %v2606, %v2608
        %v2610 = vrot.slane %v2602, %v2609
        %v2612 = vunpack.c.l.s4 1934713408
        %v2613 = vunpack.c.0.s8 %v2612
        %v2614 = vlaneseq
        %v2615 = vshrl.u32 %v2614, 7
        %v2616 = vsub.s32 %v2613, %v2615
        %v2617 = vrot.slane %v2603, %v2616
        %v2618 = vcombine.high %v2594, 0.0
        %v2619 = vcombine.high %v2601, 0.0
        %v2620 = vcombine.high %v2610, 0.0
        %v2621 = vcombine.high %v2617, 0.0
        %v2622 = vpack.c.bf16 %v2594, %v2594
        %v2623 = vpack.c.bf16 %v2618, %v2618
        %v2624 = vpack.c.bf16 %v2601, %v2601
        %v2625 = vpack.c.bf16 %v2619, %v2619
        %v2626 = vpack.c.bf16 %v2610, %v2610
        %v2627 = vpack.c.bf16 %v2620, %v2620
        %v2628 = vpack.c.bf16 %v2617, %v2617
        %v2629 = vpack.c.bf16 %v2621, %v2621
        %2631 = vrot.lane.b32.xlu0 %v660, 120
        %v2632 = vpop.permute.xlu0 %2631
        %2633 = vrot.lane.b32.xlu0 %v660, 112
        %v2634 = vpop.permute.xlu0 %2633
        %2635 = vrot.lane.b32.xlu0 %v660, 104
        %v2636 = vpop.permute.xlu0 %2635
        %2637 = vrot.lane.b32.xlu0 %v660, 96
        %v2638 = vpop.permute.xlu0 %2637
        %2639 = vrot.lane.b32.xlu0 %v2632, 96
        %v2640 = vpop.permute.xlu0 %2639
        %2641 = vrot.lane.b32.xlu0 %v2634, 96
        %v2642 = vpop.permute.xlu0 %2641
        %2643 = vrot.lane.b32.xlu0 %v2636, 96
        %v2644 = vpop.permute.xlu0 %2643
        %v2649 = vcombine.low %v2638, %v2642
        %v2650 = vcombine.high %v2638, %v2642
        %v2652 = vunpack.c.l.s4 1983009808
        %v2653 = vunpack.c.0.s8 %v2652
        %v2654 = vlaneseq
        %v2655 = vshrl.u32 %v2654, 7
        %v2656 = vsub.s32 %v2653, %v2655
        %v2657 = vrot.slane %v2649, %v2656
        %v2659 = vunpack.c.l.s4 1983009808
        %v2660 = vunpack.c.0.s8 %v2659
        %v2661 = vlaneseq
        %v2662 = vshrl.u32 %v2661, 7
        %v2663 = vsub.s32 %v2660, %v2662
        %v2664 = vrot.slane %v2650, %v2663
        %v2665 = vcombine.low %v2640, %v2644
        %v2666 = vcombine.high %v2640, %v2644
        %v2668 = vunpack.c.l.s4 1983009808
        %v2669 = vunpack.c.0.s8 %v2668
        %v2670 = vlaneseq
        %v2671 = vshrl.u32 %v2670, 7
        %v2672 = vsub.s32 %v2669, %v2671
        %v2673 = vrot.slane %v2665, %v2672
        %v2675 = vunpack.c.l.s4 1983009808
        %v2676 = vunpack.c.0.s8 %v2675
        %v2677 = vlaneseq
        %v2678 = vshrl.u32 %v2677, 7
        %v2679 = vsub.s32 %v2676, %v2678
        %v2680 = vrot.slane %v2666, %v2679
        %v2681 = vcombine.low %v2657, %v2673
        %v2682 = vcombine.high %v2657, %v2673
        %v2684 = vunpack.c.l.s4 1934713408
        %v2685 = vunpack.c.0.s8 %v2684
        %v2686 = vlaneseq
        %v2687 = vshrl.u32 %v2686, 7
        %v2688 = vsub.s32 %v2685, %v2687
        %v2689 = vrot.slane %v2681, %v2688
        %v2691 = vunpack.c.l.s4 1934713408
        %v2692 = vunpack.c.0.s8 %v2691
        %v2693 = vlaneseq
        %v2694 = vshrl.u32 %v2693, 7
        %v2695 = vsub.s32 %v2692, %v2694
        %v2696 = vrot.slane %v2682, %v2695
        %v2697 = vcombine.low %v2664, %v2680
        %v2698 = vcombine.high %v2664, %v2680
        %v2700 = vunpack.c.l.s4 1934713408
        %v2701 = vunpack.c.0.s8 %v2700
        %v2702 = vlaneseq
        %v2703 = vshrl.u32 %v2702, 7
        %v2704 = vsub.s32 %v2701, %v2703
        %v2705 = vrot.slane %v2697, %v2704
        %v2707 = vunpack.c.l.s4 1934713408
        %v2708 = vunpack.c.0.s8 %v2707
        %v2709 = vlaneseq
        %v2710 = vshrl.u32 %v2709, 7
        %v2711 = vsub.s32 %v2708, %v2710
        %v2712 = vrot.slane %v2698, %v2711
        %v2713 = vcombine.high %v2689, 0.0
        %v2714 = vcombine.high %v2696, 0.0
        %v2715 = vcombine.high %v2705, 0.0
        %v2716 = vcombine.high %v2712, 0.0
        %v2717 = vpack.c.bf16 %v2689, %v2689
        %v2718 = vpack.c.bf16 %v2713, %v2713
        %v2719 = vpack.c.bf16 %v2696, %v2696
        %v2720 = vpack.c.bf16 %v2714, %v2714
        %v2721 = vpack.c.bf16 %v2705, %v2705
        %v2722 = vpack.c.bf16 %v2715, %v2715
        %v2723 = vpack.c.bf16 %v2712, %v2712
        %v2724 = vpack.c.bf16 %v2716, %v2716
        %2726 = vrot.lane.b32.xlu0 %v670, 120
        %v2727 = vpop.permute.xlu0 %2726
        %2728 = vrot.lane.b32.xlu0 %v670, 112
        %v2729 = vpop.permute.xlu0 %2728
        %2730 = vrot.lane.b32.xlu0 %v670, 104
        %v2731 = vpop.permute.xlu0 %2730
        %2732 = vrot.lane.b32.xlu0 %v670, 64
        %v2733 = vpop.permute.xlu0 %2732
        %2734 = vrot.lane.b32.xlu0 %v2727, 64
        %v2735 = vpop.permute.xlu0 %2734
        %2736 = vrot.lane.b32.xlu0 %v2729, 64
        %v2737 = vpop.permute.xlu0 %2736
        %2738 = vrot.lane.b32.xlu0 %v2731, 64
        %v2739 = vpop.permute.xlu0 %2738
        %v2744 = vcombine.low %v2733, %v2737
        %v2745 = vcombine.high %v2733, %v2737
        %v2747 = vunpack.c.l.s4 1983009808
        %v2748 = vunpack.c.0.s8 %v2747
        %v2749 = vlaneseq
        %v2750 = vshrl.u32 %v2749, 7
        %v2751 = vsub.s32 %v2748, %v2750
        %v2752 = vrot.slane %v2744, %v2751
        %v2754 = vunpack.c.l.s4 1983009808
        %v2755 = vunpack.c.0.s8 %v2754
        %v2756 = vlaneseq
        %v2757 = vshrl.u32 %v2756, 7
        %v2758 = vsub.s32 %v2755, %v2757
        %v2759 = vrot.slane %v2745, %v2758
        %v2760 = vcombine.low %v2735, %v2739
        %v2761 = vcombine.high %v2735, %v2739
        %v2763 = vunpack.c.l.s4 1983009808
        %v2764 = vunpack.c.0.s8 %v2763
        %v2765 = vlaneseq
        %v2766 = vshrl.u32 %v2765, 7
        %v2767 = vsub.s32 %v2764, %v2766
        %v2768 = vrot.slane %v2760, %v2767
        %v2770 = vunpack.c.l.s4 1983009808
        %v2771 = vunpack.c.0.s8 %v2770
        %v2772 = vlaneseq
        %v2773 = vshrl.u32 %v2772, 7
        %v2774 = vsub.s32 %v2771, %v2773
        %v2775 = vrot.slane %v2761, %v2774
        %v2776 = vcombine.low %v2752, %v2768
        %v2777 = vcombine.high %v2752, %v2768
        %v2779 = vunpack.c.l.s4 1934713408
        %v2780 = vunpack.c.0.s8 %v2779
        %v2781 = vlaneseq
        %v2782 = vshrl.u32 %v2781, 7
        %v2783 = vsub.s32 %v2780, %v2782
        %v2784 = vrot.slane %v2776, %v2783
        %v2786 = vunpack.c.l.s4 1934713408
        %v2787 = vunpack.c.0.s8 %v2786
        %v2788 = vlaneseq
        %v2789 = vshrl.u32 %v2788, 7
        %v2790 = vsub.s32 %v2787, %v2789
        %v2791 = vrot.slane %v2777, %v2790
        %v2792 = vcombine.low %v2759, %v2775
        %v2793 = vcombine.high %v2759, %v2775
        %v2795 = vunpack.c.l.s4 1934713408
        %v2796 = vunpack.c.0.s8 %v2795
        %v2797 = vlaneseq
        %v2798 = vshrl.u32 %v2797, 7
        %v2799 = vsub.s32 %v2796, %v2798
        %v2800 = vrot.slane %v2792, %v2799
        %v2802 = vunpack.c.l.s4 1934713408
        %v2803 = vunpack.c.0.s8 %v2802
        %v2804 = vlaneseq
        %v2805 = vshrl.u32 %v2804, 7
        %v2806 = vsub.s32 %v2803, %v2805
        %v2807 = vrot.slane %v2793, %v2806
        %v2808 = vcombine.high %v2784, 0.0
        %v2809 = vcombine.high %v2791, 0.0
        %v2810 = vcombine.high %v2800, 0.0
        %v2811 = vcombine.high %v2807, 0.0
        %v2812 = vpack.c.bf16 %v2784, %v2784
        %v2813 = vpack.c.bf16 %v2808, %v2808
        %v2814 = vpack.c.bf16 %v2791, %v2791
        %v2815 = vpack.c.bf16 %v2809, %v2809
        %v2816 = vpack.c.bf16 %v2800, %v2800
        %v2817 = vpack.c.bf16 %v2810, %v2810
        %v2818 = vpack.c.bf16 %v2807, %v2807
        %v2819 = vpack.c.bf16 %v2811, %v2811
        %v2820 = vcombine.low %v2622, %v2626
        %v2822 = vunpack.c.l.s4 1983009808
        %v2823 = vunpack.c.0.s8 %v2822
        %v2824 = vlaneseq
        %v2825 = vshrl.u32 %v2824, 7
        %v2826 = vsub.s32 %v2823, %v2825
        %v2827 = vrot.slane %v2820, %v2826
        %v2828 = vcombine.low %v2624, %v2628
        %v2830 = vunpack.c.l.s4 1983009808
        %v2831 = vunpack.c.0.s8 %v2830
        %v2832 = vlaneseq
        %v2833 = vshrl.u32 %v2832, 7
        %v2834 = vsub.s32 %v2831, %v2833
        %v2835 = vrot.slane %v2828, %v2834
        %v2836 = vcombine.low %v2827, %v2835
        %v2838 = vunpack.c.l.s4 1934713408
        %v2839 = vunpack.c.0.s8 %v2838
        %v2840 = vlaneseq
        %v2841 = vshrl.u32 %v2840, 7
        %v2842 = vsub.s32 %v2839, %v2841
        %v2843 = vrot.slane %v2836, %v2842
        %v2844 = vcombine.high %v2843, 0
        %v2845 = vcombine.low %v2623, %v2627
        %v2847 = vunpack.c.l.s4 1983009808
        %v2848 = vunpack.c.0.s8 %v2847
        %v2849 = vlaneseq
        %v2850 = vshrl.u32 %v2849, 7
        %v2851 = vsub.s32 %v2848, %v2850
        %v2852 = vrot.slane %v2845, %v2851
        %v2853 = vcombine.low %v2625, %v2629
        %v2855 = vunpack.c.l.s4 1983009808
        %v2856 = vunpack.c.0.s8 %v2855
        %v2857 = vlaneseq
        %v2858 = vshrl.u32 %v2857, 7
        %v2859 = vsub.s32 %v2856, %v2858
        %v2860 = vrot.slane %v2853, %v2859
        %v2861 = vcombine.low %v2852, %v2860
        %v2863 = vunpack.c.l.s4 1934713408
        %v2864 = vunpack.c.0.s8 %v2863
        %v2865 = vlaneseq
        %v2866 = vshrl.u32 %v2865, 7
        %v2867 = vsub.s32 %v2864, %v2866
        %v2868 = vrot.slane %v2861, %v2867
        %v2869 = vcombine.high %v2868, 0
        %v2872 = vpack.i.b16 %v2868, %v2843
        %v2873 = vshrl.u32 %v2843, 16
        %v2874 = vshrl.u32 %v2868, 16
        %v2875 = vpack.i.b16 %v2874, %v2873
        %v2878 = vpack.i.b16 %v2869, %v2844
        %v2879 = vshrl.u32 %v2844, 16
        %v2880 = vshrl.u32 %v2869, 16
        %v2881 = vpack.i.b16 %v2880, %v2879
        %2882 = vxpose.xlu0.c.b16.start [1/8] %v2717, 128
        %2883 = vxpose.xlu0.c.b16.cont [2/8] 0, 128
        %2884 = vxpose.xlu0.c.b16.cont [3/8] 0, 128
        %2885 = vxpose.xlu0.c.b16.cont [4/8] 0, 128
        %2886 = vxpose.xlu0.c.b16.cont [5/8] 0, 128
        %2887 = vxpose.xlu0.c.b16.cont [6/8] 0, 128
        %2888 = vxpose.xlu0.c.b16.cont [7/8] 0, 128
        %2889 = vxpose.xlu0.c.b16.end [8/8] 0, 128
        %v2890 = vpop.trf.xlu0
        %v2891 = vpop.trf.xlu0
        %v2892 = vpop.trf.xlu0
        %v2893 = vpop.trf.xlu0
        %v2894 = vpop.trf.xlu0
        %v2895 = vpop.trf.xlu0
        %v2896 = vpop.trf.xlu0
        %v2897 = vpop.trf.xlu0
        %2898 = vxpose.xlu0.c.b16.start [1/8] %v2718, 128
        %2899 = vxpose.xlu0.c.b16.cont [2/8] 0, 128
        %2900 = vxpose.xlu0.c.b16.cont [3/8] 0, 128
        %2901 = vxpose.xlu0.c.b16.cont [4/8] 0, 128
        %2902 = vxpose.xlu0.c.b16.cont [5/8] 0, 128
        %2903 = vxpose.xlu0.c.b16.cont [6/8] 0, 128
        %2904 = vxpose.xlu0.c.b16.cont [7/8] 0, 128
        %2905 = vxpose.xlu0.c.b16.end [8/8] 0, 128
        %v2906 = vpop.trf.xlu0
        %v2907 = vpop.trf.xlu0
        %v2908 = vpop.trf.xlu0
        %v2909 = vpop.trf.xlu0
        %v2910 = vpop.trf.xlu0
        %v2911 = vpop.trf.xlu0
        %v2912 = vpop.trf.xlu0
        %v2913 = vpop.trf.xlu0
        %2914 = vxpose.xlu0.c.b16.start [1/8] %v2719, 128
        %2915 = vxpose.xlu0.c.b16.cont [2/8] 0, 128
        %2916 = vxpose.xlu0.c.b16.cont [3/8] 0, 128
        %2917 = vxpose.xlu0.c.b16.cont [4/8] 0, 128
        %2918 = vxpose.xlu0.c.b16.cont [5/8] 0, 128
        %2919 = vxpose.xlu0.c.b16.cont [6/8] 0, 128
        %2920 = vxpose.xlu0.c.b16.cont [7/8] 0, 128
        %2921 = vxpose.xlu0.c.b16.end [8/8] 0, 128
        %v2922 = vpop.trf.xlu0
        %v2923 = vpop.trf.xlu0
        %v2924 = vpop.trf.xlu0
        %v2925 = vpop.trf.xlu0
        %v2926 = vpop.trf.xlu0
        %v2927 = vpop.trf.xlu0
        %v2928 = vpop.trf.xlu0
        %v2929 = vpop.trf.xlu0
        %2930 = vxpose.xlu0.c.b16.start [1/8] %v2720, 128
        %2931 = vxpose.xlu0.c.b16.cont [2/8] 0, 128
        %2932 = vxpose.xlu0.c.b16.cont [3/8] 0, 128
        %2933 = vxpose.xlu0.c.b16.cont [4/8] 0, 128
        %2934 = vxpose.xlu0.c.b16.cont [5/8] 0, 128
        %2935 = vxpose.xlu0.c.b16.cont [6/8] 0, 128
        %2936 = vxpose.xlu0.c.b16.cont [7/8] 0, 128
        %2937 = vxpose.xlu0.c.b16.end [8/8] 0, 128
        %v2938 = vpop.trf.xlu0
        %v2939 = vpop.trf.xlu0
        %v2940 = vpop.trf.xlu0
        %v2941 = vpop.trf.xlu0
        %v2942 = vpop.trf.xlu0
        %v2943 = vpop.trf.xlu0
        %v2944 = vpop.trf.xlu0
        %v2945 = vpop.trf.xlu0
        %2946 = vxpose.xlu0.c.b16.start [1/8] %v2721, 128
        %2947 = vxpose.xlu0.c.b16.cont [2/8] 0, 128
        %2948 = vxpose.xlu0.c.b16.cont [3/8] 0, 128
        %2949 = vxpose.xlu0.c.b16.cont [4/8] 0, 128
        %2950 = vxpose.xlu0.c.b16.cont [5/8] 0, 128
        %2951 = vxpose.xlu0.c.b16.cont [6/8] 0, 128
        %2952 = vxpose.xlu0.c.b16.cont [7/8] 0, 128
        %2953 = vxpose.xlu0.c.b16.end [8/8] 0, 128
        %v2954 = vpop.trf.xlu0
        %v2955 = vpop.trf.xlu0
        %v2956 = vpop.trf.xlu0
        %v2957 = vpop.trf.xlu0
        %v2958 = vpop.trf.xlu0
        %v2959 = vpop.trf.xlu0
        %v2960 = vpop.trf.xlu0
        %v2961 = vpop.trf.xlu0
        %2962 = vxpose.xlu0.c.b16.start [1/8] %v2722, 128
        %2963 = vxpose.xlu0.c.b16.cont [2/8] 0, 128
        %2964 = vxpose.xlu0.c.b16.cont [3/8] 0, 128
        %2965 = vxpose.xlu0.c.b16.cont [4/8] 0, 128
        %2966 = vxpose.xlu0.c.b16.cont [5/8] 0, 128
        %2967 = vxpose.xlu0.c.b16.cont [6/8] 0, 128
        %2968 = vxpose.xlu0.c.b16.cont [7/8] 0, 128
        %2969 = vxpose.xlu0.c.b16.end [8/8] 0, 128
        %v2970 = vpop.trf.xlu0
        %v2971 = vpop.trf.xlu0
        %v2972 = vpop.trf.xlu0
        %v2973 = vpop.trf.xlu0
        %v2974 = vpop.trf.xlu0
        %v2975 = vpop.trf.xlu0
        %v2976 = vpop.trf.xlu0
        %v2977 = vpop.trf.xlu0
        %2978 = vxpose.xlu0.c.b16.start [1/8] %v2723, 128
        %2979 = vxpose.xlu0.c.b16.cont [2/8] 0, 128
        %2980 = vxpose.xlu0.c.b16.cont [3/8] 0, 128
        %2981 = vxpose.xlu0.c.b16.cont [4/8] 0, 128
        %2982 = vxpose.xlu0.c.b16.cont [5/8] 0, 128
        %2983 = vxpose.xlu0.c.b16.cont [6/8] 0, 128
        %2984 = vxpose.xlu0.c.b16.cont [7/8] 0, 128
        %2985 = vxpose.xlu0.c.b16.end [8/8] 0, 128
        %v2986 = vpop.trf.xlu0
        %v2987 = vpop.trf.xlu0
        %v2988 = vpop.trf.xlu0
        %v2989 = vpop.trf.xlu0
        %v2990 = vpop.trf.xlu0
        %v2991 = vpop.trf.xlu0
        %v2992 = vpop.trf.xlu0
        %v2993 = vpop.trf.xlu0
        %2994 = vxpose.xlu0.c.b16.start [1/8] %v2724, 128
        %2995 = vxpose.xlu0.c.b16.cont [2/8] 0, 128
        %2996 = vxpose.xlu0.c.b16.cont [3/8] 0, 128
        %2997 = vxpose.xlu0.c.b16.cont [4/8] 0, 128
        %2998 = vxpose.xlu0.c.b16.cont [5/8] 0, 128
        %2999 = vxpose.xlu0.c.b16.cont [6/8] 0, 128
        %3000 = vxpose.xlu0.c.b16.cont [7/8] 0, 128
        %3001 = vxpose.xlu0.c.b16.end [8/8] 0, 128
        %v3002 = vpop.trf.xlu0
        %v3003 = vpop.trf.xlu0
        %v3004 = vpop.trf.xlu0
        %v3005 = vpop.trf.xlu0
        %v3006 = vpop.trf.xlu0
        %v3007 = vpop.trf.xlu0
        %v3008 = vpop.trf.xlu0
        %v3009 = vpop.trf.xlu0
        %v3010 = vcombine.low %v2890, %v2954
        %v3012 = vunpack.c.l.s4 1983009808
        %v3013 = vunpack.c.0.s8 %v3012
        %v3014 = vlaneseq
        %v3015 = vshrl.u32 %v3014, 7
        %v3016 = vsub.s32 %v3013, %v3015
        %v3017 = vrot.slane %v3010, %v3016
        %v3018 = vcombine.low %v2922, %v2986
        %v3020 = vunpack.c.l.s4 1983009808
        %v3021 = vunpack.c.0.s8 %v3020
        %v3022 = vlaneseq
        %v3023 = vshrl.u32 %v3022, 7
        %v3024 = vsub.s32 %v3021, %v3023
        %v3025 = vrot.slane %v3018, %v3024
        %v3026 = vcombine.low %v3017, %v3025
        %v3027 = vcombine.high %v3017, %v3025
        %v3029 = vunpack.c.l.s4 1934713408
        %v3030 = vunpack.c.0.s8 %v3029
        %v3031 = vlaneseq
        %v3032 = vshrl.u32 %v3031, 7
        %v3033 = vsub.s32 %v3030, %v3032
        %v3034 = vrot.slane %v3026, %v3033
        %v3036 = vunpack.c.l.s4 1934713408
        %v3037 = vunpack.c.0.s8 %v3036
        %v3038 = vlaneseq
        %v3039 = vshrl.u32 %v3038, 7
        %v3040 = vsub.s32 %v3037, %v3039
        %v3041 = vrot.slane %v3027, %v3040
        %v3042 = vcombine.high %v3034, 0
        %v3043 = vcombine.high %v3041, 0
        %v3044 = vcombine.low %v2906, %v2970
        %v3046 = vunpack.c.l.s4 1983009808
        %v3047 = vunpack.c.0.s8 %v3046
        %v3048 = vlaneseq
        %v3049 = vshrl.u32 %v3048, 7
        %v3050 = vsub.s32 %v3047, %v3049
        %v3051 = vrot.slane %v3044, %v3050
        %v3052 = vcombine.low %v2938, %v3002
        %v3054 = vunpack.c.l.s4 1983009808
        %v3055 = vunpack.c.0.s8 %v3054
        %v3056 = vlaneseq
        %v3057 = vshrl.u32 %v3056, 7
        %v3058 = vsub.s32 %v3055, %v3057
        %v3059 = vrot.slane %v3052, %v3058
        %v3060 = vcombine.low %v3051, %v3059
        %v3061 = vcombine.high %v3051, %v3059
        %v3063 = vunpack.c.l.s4 1934713408
        %v3064 = vunpack.c.0.s8 %v3063
        %v3065 = vlaneseq
        %v3066 = vshrl.u32 %v3065, 7
        %v3067 = vsub.s32 %v3064, %v3066
        %v3068 = vrot.slane %v3060, %v3067
        %v3070 = vunpack.c.l.s4 1934713408
        %v3071 = vunpack.c.0.s8 %v3070
        %v3072 = vlaneseq
        %v3073 = vshrl.u32 %v3072, 7
        %v3074 = vsub.s32 %v3071, %v3073
        %v3075 = vrot.slane %v3061, %v3074
        %v3076 = vcombine.high %v3068, 0
        %v3077 = vcombine.high %v3075, 0
        %v3080 = vpack.i.b16 %v3068, %v3034
        %v3082 = vshrl.u32 %v3034, 16
        %v3083 = vshrl.u32 %v3068, 16
        %v3084 = vpack.i.b16 %v3083, %v3082
        %v3088 = vpack.i.b16 %v3076, %v3042
        %v3090 = vshrl.u32 %v3042, 16
        %v3091 = vshrl.u32 %v3076, 16
        %v3092 = vpack.i.b16 %v3091, %v3090
        %v3096 = vpack.i.b16 %v3075, %v3041
        %v3098 = vshrl.u32 %v3041, 16
        %v3099 = vshrl.u32 %v3075, 16
        %v3100 = vpack.i.b16 %v3099, %v3098
        %v3104 = vpack.i.b16 %v3077, %v3043
        %v3106 = vshrl.u32 %v3043, 16
        %v3107 = vshrl.u32 %v3077, 16
        %v3108 = vpack.i.b16 %v3107, %v3106
        %3110 = vxpose.xlu0.c.b16.start [1/8] %v3080, 128
        %3111 = vxpose.xlu0.c.b16.cont [2/8] 0, 128
        %3112 = vxpose.xlu0.c.b16.cont [3/8] 0, 128
        %3113 = vxpose.xlu0.c.b16.cont [4/8] 0, 128
        %3114 = vxpose.xlu0.c.b16.cont [5/8] 0, 128
        %3115 = vxpose.xlu0.c.b16.cont [6/8] 0, 128
        %3116 = vxpose.xlu0.c.b16.cont [7/8] 0, 128
        %3117 = vxpose.xlu0.c.b16.end [8/8] 0, 128
        %v3118 = vpop.trf.xlu0
        %v3119 = vpop.trf.xlu0
        %v3120 = vpop.trf.xlu0
        %v3121 = vpop.trf.xlu0
        %v3122 = vpop.trf.xlu0
        %v3123 = vpop.trf.xlu0
        %v3124 = vpop.trf.xlu0
        %v3125 = vpop.trf.xlu0
        %3126 = vxpose.xlu0.c.b16.start [1/8] %v3084, 128
        %3127 = vxpose.xlu0.c.b16.cont [2/8] 0, 128
        %3128 = vxpose.xlu0.c.b16.cont [3/8] 0, 128
        %3129 = vxpose.xlu0.c.b16.cont [4/8] 0, 128
        %3130 = vxpose.xlu0.c.b16.cont [5/8] 0, 128
        %3131 = vxpose.xlu0.c.b16.cont [6/8] 0, 128
        %3132 = vxpose.xlu0.c.b16.cont [7/8] 0, 128
        %3133 = vxpose.xlu0.c.b16.end [8/8] 0, 128
        %v3134 = vpop.trf.xlu0
        %v3135 = vpop.trf.xlu0
        %v3136 = vpop.trf.xlu0
        %v3137 = vpop.trf.xlu0
        %v3138 = vpop.trf.xlu0
        %v3139 = vpop.trf.xlu0
        %v3140 = vpop.trf.xlu0
        %v3141 = vpop.trf.xlu0
        %3142 = vxpose.xlu0.c.b16.start [1/8] %v3088, 128
        %3143 = vxpose.xlu0.c.b16.cont [2/8] 0, 128
        %3144 = vxpose.xlu0.c.b16.cont [3/8] 0, 128
        %3145 = vxpose.xlu0.c.b16.cont [4/8] 0, 128
        %3146 = vxpose.xlu0.c.b16.cont [5/8] 0, 128
        %3147 = vxpose.xlu0.c.b16.cont [6/8] 0, 128
        %3148 = vxpose.xlu0.c.b16.cont [7/8] 0, 128
        %3149 = vxpose.xlu0.c.b16.end [8/8] 0, 128
        %v3150 = vpop.trf.xlu0
        %v3151 = vpop.trf.xlu0
        %v3152 = vpop.trf.xlu0
        %v3153 = vpop.trf.xlu0
        %v3154 = vpop.trf.xlu0
        %v3155 = vpop.trf.xlu0
        %v3156 = vpop.trf.xlu0
        %v3157 = vpop.trf.xlu0
        %3158 = vxpose.xlu0.c.b16.start [1/8] %v3092, 128
        %3159 = vxpose.xlu0.c.b16.cont [2/8] 0, 128
        %3160 = vxpose.xlu0.c.b16.cont [3/8] 0, 128
        %3161 = vxpose.xlu0.c.b16.cont [4/8] 0, 128
        %3162 = vxpose.xlu0.c.b16.cont [5/8] 0, 128
        %3163 = vxpose.xlu0.c.b16.cont [6/8] 0, 128
        %3164 = vxpose.xlu0.c.b16.cont [7/8] 0, 128
        %3165 = vxpose.xlu0.c.b16.end [8/8] 0, 128
        %v3166 = vpop.trf.xlu0
        %v3167 = vpop.trf.xlu0
        %v3168 = vpop.trf.xlu0
        %v3169 = vpop.trf.xlu0
        %v3170 = vpop.trf.xlu0
        %v3171 = vpop.trf.xlu0
        %v3172 = vpop.trf.xlu0
        %v3173 = vpop.trf.xlu0
        %3174 = vxpose.xlu0.c.b16.start [1/8] %v3096, 128
        %3175 = vxpose.xlu0.c.b16.cont [2/8] 0, 128
        %3176 = vxpose.xlu0.c.b16.cont [3/8] 0, 128
        %3177 = vxpose.xlu0.c.b16.cont [4/8] 0, 128
        %3178 = vxpose.xlu0.c.b16.cont [5/8] 0, 128
        %3179 = vxpose.xlu0.c.b16.cont [6/8] 0, 128
        %3180 = vxpose.xlu0.c.b16.cont [7/8] 0, 128
        %3181 = vxpose.xlu0.c.b16.end [8/8] 0, 128
        %v3182 = vpop.trf.xlu0
        %v3183 = vpop.trf.xlu0
        %v3184 = vpop.trf.xlu0
        %v3185 = vpop.trf.xlu0
        %v3186 = vpop.trf.xlu0
        %v3187 = vpop.trf.xlu0
        %v3188 = vpop.trf.xlu0
        %v3189 = vpop.trf.xlu0
        %3190 = vxpose.xlu0.c.b16.start [1/8] %v3100, 128
        %3191 = vxpose.xlu0.c.b16.cont [2/8] 0, 128
        %3192 = vxpose.xlu0.c.b16.cont [3/8] 0, 128
        %3193 = vxpose.xlu0.c.b16.cont [4/8] 0, 128
        %3194 = vxpose.xlu0.c.b16.cont [5/8] 0, 128
        %3195 = vxpose.xlu0.c.b16.cont [6/8] 0, 128
        %3196 = vxpose.xlu0.c.b16.cont [7/8] 0, 128
        %3197 = vxpose.xlu0.c.b16.end [8/8] 0, 128
        %v3198 = vpop.trf.xlu0
        %v3199 = vpop.trf.xlu0
        %v3200 = vpop.trf.xlu0
        %v3201 = vpop.trf.xlu0
        %v3202 = vpop.trf.xlu0
        %v3203 = vpop.trf.xlu0
        %v3204 = vpop.trf.xlu0
        %v3205 = vpop.trf.xlu0
        %3206 = vxpose.xlu0.c.b16.start [1/8] %v3104, 128
        %3207 = vxpose.xlu0.c.b16.cont [2/8] 0, 128
        %3208 = vxpose.xlu0.c.b16.cont [3/8] 0, 128
        %3209 = vxpose.xlu0.c.b16.cont [4/8] 0, 128
        %3210 = vxpose.xlu0.c.b16.cont [5/8] 0, 128
        %3211 = vxpose.xlu0.c.b16.cont [6/8] 0, 128
        %3212 = vxpose.xlu0.c.b16.cont [7/8] 0, 128
        %3213 = vxpose.xlu0.c.b16.end [8/8] 0, 128
        %v3214 = vpop.trf.xlu0
        %v3215 = vpop.trf.xlu0
        %v3216 = vpop.trf.xlu0
        %v3217 = vpop.trf.xlu0
        %v3218 = vpop.trf.xlu0
        %v3219 = vpop.trf.xlu0
        %v3220 = vpop.trf.xlu0
        %v3221 = vpop.trf.xlu0
        %3222 = vxpose.xlu0.c.b16.start [1/8] %v3108, 128
        %3223 = vxpose.xlu0.c.b16.cont [2/8] 0, 128
        %3224 = vxpose.xlu0.c.b16.cont [3/8] 0, 128
        %3225 = vxpose.xlu0.c.b16.cont [4/8] 0, 128
        %3226 = vxpose.xlu0.c.b16.cont [5/8] 0, 128
        %3227 = vxpose.xlu0.c.b16.cont [6/8] 0, 128
        %3228 = vxpose.xlu0.c.b16.cont [7/8] 0, 128
        %3229 = vxpose.xlu0.c.b16.end [8/8] 0, 128
        %v3230 = vpop.trf.xlu0
        %v3231 = vpop.trf.xlu0
        %v3232 = vpop.trf.xlu0
        %v3233 = vpop.trf.xlu0
        %v3234 = vpop.trf.xlu0
        %v3235 = vpop.trf.xlu0
        %v3236 = vpop.trf.xlu0
        %v3237 = vpop.trf.xlu0
        %v3238 = vcombine.low %v3118, %v3182
        %v3240 = vunpack.c.l.s4 1983009808
        %v3241 = vunpack.c.0.s8 %v3240
        %v3242 = vlaneseq
        %v3243 = vshrl.u32 %v3242, 7
        %v3244 = vsub.s32 %v3241, %v3243
        %v3245 = vrot.slane %v3238, %v3244
        %v3246 = vcombine.low %v3150, %v3214
        %v3248 = vunpack.c.l.s4 1983009808
        %v3249 = vunpack.c.0.s8 %v3248
        %v3250 = vlaneseq
        %v3251 = vshrl.u32 %v3250, 7
        %v3252 = vsub.s32 %v3249, %v3251
        %v3253 = vrot.slane %v3246, %v3252
        %v3254 = vcombine.low %v3245, %v3253
        %v3256 = vunpack.c.l.s4 1934713408
        %v3257 = vunpack.c.0.s8 %v3256
        %v3258 = vlaneseq
        %v3259 = vshrl.u32 %v3258, 7
        %v3260 = vsub.s32 %v3257, %v3259
        %v3261 = vrot.slane %v3254, %v3260
        %v3262 = vcombine.high %v3261, 0
        %v3263 = vcombine.low %v3134, %v3198
        %v3265 = vunpack.c.l.s4 1983009808
        %v3266 = vunpack.c.0.s8 %v3265
        %v3267 = vlaneseq
        %v3268 = vshrl.u32 %v3267, 7
        %v3269 = vsub.s32 %v3266, %v3268
        %v3270 = vrot.slane %v3263, %v3269
        %v3271 = vcombine.low %v3166, %v3230
        %v3273 = vunpack.c.l.s4 1983009808
        %v3274 = vunpack.c.0.s8 %v3273
        %v3275 = vlaneseq
        %v3276 = vshrl.u32 %v3275, 7
        %v3277 = vsub.s32 %v3274, %v3276
        %v3278 = vrot.slane %v3271, %v3277
        %v3279 = vcombine.low %v3270, %v3278
        %v3281 = vunpack.c.l.s4 1934713408
        %v3282 = vunpack.c.0.s8 %v3281
        %v3283 = vlaneseq
        %v3284 = vshrl.u32 %v3283, 7
        %v3285 = vsub.s32 %v3282, %v3284
        %v3286 = vrot.slane %v3279, %v3285
        %v3287 = vcombine.high %v3286, 0
        %v3290 = vpack.i.b16 %v3286, %v3261
        %v3291 = vshrl.u32 %v3261, 16
        %v3292 = vshrl.u32 %v3286, 16
        %v3293 = vpack.i.b16 %v3292, %v3291
        %v3296 = vpack.i.b16 %v3287, %v3262
        %v3297 = vshrl.u32 %v3262, 16
        %v3298 = vshrl.u32 %v3287, 16
        %v3299 = vpack.i.b16 %v3298, %v3297
        %v3301 = vsel %vm1427, %v2872, 0
        %v3304 = vsel %vm1431, %v3290, 0
        %3306 = vmatprep.subr.bf16.mxu0 0
        %3307 = vmatpush1.bf16.msra.mxu0 %v3304
        %3308 = vmatprep.subr.bf16.mxu0 0
        %3309 = vmatpush1.bf16.msra.mxu0 0
        %3310 = vmatprep.subr.bf16.mxu0 0
        %3311 = vmatpush1.bf16.msra.mxu0 0
        %3312 = vmatprep.subr.bf16.mxu0 0
        %3313 = vmatpush1.bf16.msra.mxu0 0
        %3314 = vmatprep.subr.bf16.mxu0 0
        %3315 = vmatpush1.bf16.msra.mxu0 0
        %3316 = vmatprep.subr.bf16.mxu0 0
        %3317 = vmatpush1.bf16.msra.mxu0 0
        %3318 = vmatprep.subr.bf16.mxu0 0
        %3319 = vmatpush1.bf16.msra.mxu0 0
        %3320 = vmatprep.subr.bf16.mxu0 0
        %3321 = vmatpush1.bf16.msra.mxu0 0
        %3322 = vmatprep.subr.bf16.mxu0 0
        %3323 = vmatpush1.bf16.msra.mxu0 0
        %3324 = vmatprep.subr.bf16.mxu0 0
        %3325 = vmatpush1.bf16.msra.mxu0 0
        %3326 = vmatprep.subr.bf16.mxu0 0
        %3327 = vmatpush1.bf16.msra.mxu0 0
        %3328 = vmatprep.subr.bf16.mxu0 0
        %3329 = vmatpush1.bf16.msra.mxu0 0
        %3330 = vmatprep.subr.bf16.mxu0 0
        %3331 = vmatpush1.bf16.msra.mxu0 0
        %3332 = vmatprep.subr.bf16.mxu0 0
        %3333 = vmatpush1.bf16.msra.mxu0 0
        %3334 = vmatprep.subr.bf16.mxu0 0
        %3335 = vmatpush1.bf16.msra.mxu0 0
        %3336 = vmatprep.subr.bf16.mxu0 0
        %3337 = vmatpush1.bf16.msra.mxu0 0
        %3338 = vmatprep.mubr.bf16.mxu0 0
        %3339 = vmatmul.mubr.bf16.gmra.mrb[0].mxu0 %v3301
        %v3340 = vpop.f32.mrb[0].mxu0
        %v3341 = vadd.f32 %v579, %v3340
        %v3342 = vpop.f32.mrb[0].mxu0
        %v3343 = vpop.f32.mrb[0].mxu0
        %v3344 = vpop.f32.mrb[0].mxu0
        %3345 = vdwg.mxu0
        %v3347 = vsel %vm1427, %v2875, 0
        %v3350 = vsel %vm1431, %v3293, 0
        %3352 = vmatprep.subr.bf16.mxu0 0
        %3353 = vmatpush1.bf16.msra.mxu0 %v3350
        %3354 = vmatprep.subr.bf16.mxu0 0
        %3355 = vmatpush1.bf16.msra.mxu0 0
        %3356 = vmatprep.subr.bf16.mxu0 0
        %3357 = vmatpush1.bf16.msra.mxu0 0
        %3358 = vmatprep.subr.bf16.mxu0 0
        %3359 = vmatpush1.bf16.msra.mxu0 0
        %3360 = vmatprep.subr.bf16.mxu0 0
        %3361 = vmatpush1.bf16.msra.mxu0 0
        %3362 = vmatprep.subr.bf16.mxu0 0
        %3363 = vmatpush1.bf16.msra.mxu0 0
        %3364 = vmatprep.subr.bf16.mxu0 0
        %3365 = vmatpush1.bf16.msra.mxu0 0
        %3366 = vmatprep.subr.bf16.mxu0 0
        %3367 = vmatpush1.bf16.msra.mxu0 0
        %3368 = vmatprep.subr.bf16.mxu0 0
        %3369 = vmatpush1.bf16.msra.mxu0 0
        %3370 = vmatprep.subr.bf16.mxu0 0
        %3371 = vmatpush1.bf16.msra.mxu0 0
        %3372 = vmatprep.subr.bf16.mxu0 0
        %3373 = vmatpush1.bf16.msra.mxu0 0
        %3374 = vmatprep.subr.bf16.mxu0 0
        %3375 = vmatpush1.bf16.msra.mxu0 0
        %3376 = vmatprep.subr.bf16.mxu0 0
        %3377 = vmatpush1.bf16.msra.mxu0 0
        %3378 = vmatprep.subr.bf16.mxu0 0
        %3379 = vmatpush1.bf16.msra.mxu0 0
        %3380 = vmatprep.subr.bf16.mxu0 0
        %3381 = vmatpush1.bf16.msra.mxu0 0
        %3382 = vmatprep.subr.bf16.mxu0 0
        %3383 = vmatpush1.bf16.msra.mxu0 0
        %3384 = vmatprep.mubr.bf16.mxu0 0
        %3385 = vmatmul.mubr.bf16.gmra.mrb[0].mxu0 %v3347
        %v3386 = vpop.f32.mrb[0].mxu0
        %v3387 = vadd.f32 %v579, %v3386
        %v3388 = vpop.f32.mrb[0].mxu0
        %v3389 = vpop.f32.mrb[0].mxu0
        %v3390 = vpop.f32.mrb[0].mxu0
        %3391 = vdwg.mxu0
        %v3393 = vsel %vm1427, %v2878, 0
        %v3396 = vsel %vm1431, %v3296, 0
        %3398 = vmatprep.subr.bf16.mxu0 0
        %3399 = vmatpush1.bf16.msra.mxu0 %v3396
        %3400 = vmatprep.subr.bf16.mxu0 0
        %3401 = vmatpush1.bf16.msra.mxu0 0
        %3402 = vmatprep.subr.bf16.mxu0 0
        %3403 = vmatpush1.bf16.msra.mxu0 0
        %3404 = vmatprep.subr.bf16.mxu0 0
        %3405 = vmatpush1.bf16.msra.mxu0 0
        %3406 = vmatprep.subr.bf16.mxu0 0
        %3407 = vmatpush1.bf16.msra.mxu0 0
        %3408 = vmatprep.subr.bf16.mxu0 0
        %3409 = vmatpush1.bf16.msra.mxu0 0
        %3410 = vmatprep.subr.bf16.mxu0 0
        %3411 = vmatpush1.bf16.msra.mxu0 0
        %3412 = vmatprep.subr.bf16.mxu0 0
        %3413 = vmatpush1.bf16.msra.mxu0 0
        %3414 = vmatprep.subr.bf16.mxu0 0
        %3415 = vmatpush1.bf16.msra.mxu0 0
        %3416 = vmatprep.subr.bf16.mxu0 0
        %3417 = vmatpush1.bf16.msra.mxu0 0
        %3418 = vmatprep.subr.bf16.mxu0 0
        %3419 = vmatpush1.bf16.msra.mxu0 0
        %3420 = vmatprep.subr.bf16.mxu0 0
        %3421 = vmatpush1.bf16.msra.mxu0 0
        %3422 = vmatprep.subr.bf16.mxu0 0
        %3423 = vmatpush1.bf16.msra.mxu0 0
        %3424 = vmatprep.subr.bf16.mxu0 0
        %3425 = vmatpush1.bf16.msra.mxu0 0
        %3426 = vmatprep.subr.bf16.mxu0 0
        %3427 = vmatpush1.bf16.msra.mxu0 0
        %3428 = vmatprep.subr.bf16.mxu0 0
        %3429 = vmatpush1.bf16.msra.mxu0 0
        %3430 = vmatprep.mubr.bf16.mxu0 0
        %3431 = vmatmul.mubr.bf16.gmra.mrb[0].mxu0 %v3393
        %v3432 = vpop.f32.mrb[0].mxu0
        %v3433 = vadd.f32 %v579, %v3432
        %v3434 = vpop.f32.mrb[0].mxu0
        %v3435 = vpop.f32.mrb[0].mxu0
        %v3436 = vpop.f32.mrb[0].mxu0
        %3437 = vdwg.mxu0
        %v3439 = vsel %vm1427, %v2881, 0
        %v3442 = vsel %vm1431, %v3299, 0
        %3444 = vmatprep.subr.bf16.mxu0 0
        %3445 = vmatpush1.bf16.msra.mxu0 %v3442
        %3446 = vmatprep.subr.bf16.mxu0 0
        %3447 = vmatpush1.bf16.msra.mxu0 0
        %3448 = vmatprep.subr.bf16.mxu0 0
        %3449 = vmatpush1.bf16.msra.mxu0 0
        %3450 = vmatprep.subr.bf16.mxu0 0
        %3451 = vmatpush1.bf16.msra.mxu0 0
        %3452 = vmatprep.subr.bf16.mxu0 0
        %3453 = vmatpush1.bf16.msra.mxu0 0
        %3454 = vmatprep.subr.bf16.mxu0 0
        %3455 = vmatpush1.bf16.msra.mxu0 0
        %3456 = vmatprep.subr.bf16.mxu0 0
        %3457 = vmatpush1.bf16.msra.mxu0 0
        %3458 = vmatprep.subr.bf16.mxu0 0
        %3459 = vmatpush1.bf16.msra.mxu0 0
        %3460 = vmatprep.subr.bf16.mxu0 0
        %3461 = vmatpush1.bf16.msra.mxu0 0
        %3462 = vmatprep.subr.bf16.mxu0 0
        %3463 = vmatpush1.bf16.msra.mxu0 0
        %3464 = vmatprep.subr.bf16.mxu0 0
        %3465 = vmatpush1.bf16.msra.mxu0 0
        %3466 = vmatprep.subr.bf16.mxu0 0
        %3467 = vmatpush1.bf16.msra.mxu0 0
        %3468 = vmatprep.subr.bf16.mxu0 0
        %3469 = vmatpush1.bf16.msra.mxu0 0
        %3470 = vmatprep.subr.bf16.mxu0 0
        %3471 = vmatpush1.bf16.msra.mxu0 0
        %3472 = vmatprep.subr.bf16.mxu0 0
        %3473 = vmatpush1.bf16.msra.mxu0 0
        %3474 = vmatprep.subr.bf16.mxu0 0
        %3475 = vmatpush1.bf16.msra.mxu0 0
        %3476 = vmatprep.mubr.bf16.mxu0 0
        %3477 = vmatmul.mubr.bf16.gmra.mrb[0].mxu0 %v3439
        %v3478 = vpop.f32.mrb[0].mxu0
        %v3479 = vadd.f32 %v579, %v3478
        %v3480 = vpop.f32.mrb[0].mxu0
        %v3481 = vpop.f32.mrb[0].mxu0
        %v3482 = vpop.f32.mrb[0].mxu0
        %3483 = vdwg.mxu0
        %v3484 = vsel %vm1427, %v3341, -inf
        %3485 = vmax.xlane.f32.xlu0 %v3484
        %v3486 = vpop.xlane.xlu0 %3485
        %v3487 = vsel %vm1427, %v3387, -inf
        %3488 = vmax.xlane.f32.xlu0 %v3487
        %v3489 = vpop.xlane.xlu0 %3488
        %v3490 = vsel %vm1427, %v3433, -inf
        %3491 = vmax.xlane.f32.xlu0 %v3490
        %v3492 = vpop.xlane.xlu0 %3491
        %v3493 = vsel %vm1427, %v3479, -inf
        %3494 = vmax.xlane.f32.xlu0 %v3493
        %v3495 = vpop.xlane.xlu0 %3494
        %v3496 = vsub.f32 %v3341, %v3486
        %v3497 = vsub.f32 %v3387, %v3489
        %v3498 = vsub.f32 %v3433, %v3492
        %v3499 = vsub.f32 %v3479, %v3495
        %v3500 = vmul.f32 %v3496, 1.442695
        %v3501 = vpow.pop %v3500
        %v3502 = vmul.f32 %v3497, 1.442695
        %v3503 = vpow.pop %v3502
        %v3504 = vmul.f32 %v3498, 1.442695
        %v3505 = vpow.pop %v3504
        %v3506 = vmul.f32 %v3499, 1.442695
        %v3507 = vpow.pop %v3506
        %v3508 = vsel %vm1427, %v3501, 0.0
        %3509 = vadd.xlane.f32.xlu0 %v3508
        %v3510 = vpop.xlane.xlu0 %3509
        %v3511 = vsel %vm1427, %v3503, 0.0
        %3512 = vadd.xlane.f32.xlu0 %v3511
        %v3513 = vpop.xlane.xlu0 %3512
        %v3514 = vsel %vm1427, %v3505, 0.0
        %3515 = vadd.xlane.f32.xlu0 %v3514
        %v3516 = vpop.xlane.xlu0 %3515
        %v3517 = vsel %vm1427, %v3507, 0.0
        %3518 = vadd.xlane.f32.xlu0 %v3517
        %v3519 = vpop.xlane.xlu0 %3518
        %v3520 = vrcp.pop %v3510
        %v3521 = vrcp.pop %v3513
        %v3522 = vrcp.pop %v3516
        %v3523 = vrcp.pop %v3519
        %v3524 = vmul.f32 %v3501, %v3520
        %v3525 = vmul.f32 %v3503, %v3521
        %v3526 = vmul.f32 %v3505, %v3522
        %v3527 = vmul.f32 %v3507, %v3523
        %v3528 = vpack.c.bf16 %v3524, %v3524
        %v3529 = vpack.c.bf16 %v3525, %v3525
        %v3530 = vpack.c.bf16 %v3526, %v3526
        %v3531 = vpack.c.bf16 %v3527, %v3527
        %3532 = vxpose.xlu0.c.b16.start [1/8] %v2812, 128
        %3533 = vxpose.xlu0.c.b16.cont [2/8] 0, 128
        %3534 = vxpose.xlu0.c.b16.cont [3/8] 0, 128
        %3535 = vxpose.xlu0.c.b16.cont [4/8] 0, 128
        %3536 = vxpose.xlu0.c.b16.cont [5/8] 0, 128
        %3537 = vxpose.xlu0.c.b16.cont [6/8] 0, 128
        %3538 = vxpose.xlu0.c.b16.cont [7/8] 0, 128
        %3539 = vxpose.xlu0.c.b16.end [8/8] 0, 128
        %v3540 = vpop.trf.xlu0
        %v3541 = vpop.trf.xlu0
        %v3542 = vpop.trf.xlu0
        %v3543 = vpop.trf.xlu0
        %v3544 = vpop.trf.xlu0
        %v3545 = vpop.trf.xlu0
        %v3546 = vpop.trf.xlu0
        %v3547 = vpop.trf.xlu0
        %3548 = vxpose.xlu0.c.b16.start [1/8] %v2813, 128
        %3549 = vxpose.xlu0.c.b16.cont [2/8] 0, 128
        %3550 = vxpose.xlu0.c.b16.cont [3/8] 0, 128
        %3551 = vxpose.xlu0.c.b16.cont [4/8] 0, 128
        %3552 = vxpose.xlu0.c.b16.cont [5/8] 0, 128
        %3553 = vxpose.xlu0.c.b16.cont [6/8] 0, 128
        %3554 = vxpose.xlu0.c.b16.cont [7/8] 0, 128
        %3555 = vxpose.xlu0.c.b16.end [8/8] 0, 128
        %v3556 = vpop.trf.xlu0
        %v3557 = vpop.trf.xlu0
        %v3558 = vpop.trf.xlu0
        %v3559 = vpop.trf.xlu0
        %v3560 = vpop.trf.xlu0
        %v3561 = vpop.trf.xlu0
        %v3562 = vpop.trf.xlu0
        %v3563 = vpop.trf.xlu0
        %3564 = vxpose.xlu0.c.b16.start [1/8] %v2814, 128
        %3565 = vxpose.xlu0.c.b16.cont [2/8] 0, 128
        %3566 = vxpose.xlu0.c.b16.cont [3/8] 0, 128
        %3567 = vxpose.xlu0.c.b16.cont [4/8] 0, 128
        %3568 = vxpose.xlu0.c.b16.cont [5/8] 0, 128
        %3569 = vxpose.xlu0.c.b16.cont [6/8] 0, 128
        %3570 = vxpose.xlu0.c.b16.cont [7/8] 0, 128
        %3571 = vxpose.xlu0.c.b16.end [8/8] 0, 128
        %v3572 = vpop.trf.xlu0
        %v3573 = vpop.trf.xlu0
        %v3574 = vpop.trf.xlu0
        %v3575 = vpop.trf.xlu0
        %v3576 = vpop.trf.xlu0
        %v3577 = vpop.trf.xlu0
        %v3578 = vpop.trf.xlu0
        %v3579 = vpop.trf.xlu0
        %3580 = vxpose.xlu0.c.b16.start [1/8] %v2815, 128
        %3581 = vxpose.xlu0.c.b16.cont [2/8] 0, 128
        %3582 = vxpose.xlu0.c.b16.cont [3/8] 0, 128
        %3583 = vxpose.xlu0.c.b16.cont [4/8] 0, 128
        %3584 = vxpose.xlu0.c.b16.cont [5/8] 0, 128
        %3585 = vxpose.xlu0.c.b16.cont [6/8] 0, 128
        %3586 = vxpose.xlu0.c.b16.cont [7/8] 0, 128
        %3587 = vxpose.xlu0.c.b16.end [8/8] 0, 128
        %v3588 = vpop.trf.xlu0
        %v3589 = vpop.trf.xlu0
        %v3590 = vpop.trf.xlu0
        %v3591 = vpop.trf.xlu0
        %v3592 = vpop.trf.xlu0
        %v3593 = vpop.trf.xlu0
        %v3594 = vpop.trf.xlu0
        %v3595 = vpop.trf.xlu0
        %3596 = vxpose.xlu0.c.b16.start [1/8] %v2816, 128
        %3597 = vxpose.xlu0.c.b16.cont [2/8] 0, 128
        %3598 = vxpose.xlu0.c.b16.cont [3/8] 0, 128
        %3599 = vxpose.xlu0.c.b16.cont [4/8] 0, 128
        %3600 = vxpose.xlu0.c.b16.cont [5/8] 0, 128
        %3601 = vxpose.xlu0.c.b16.cont [6/8] 0, 128
        %3602 = vxpose.xlu0.c.b16.cont [7/8] 0, 128
        %3603 = vxpose.xlu0.c.b16.end [8/8] 0, 128
        %v3604 = vpop.trf.xlu0
        %v3605 = vpop.trf.xlu0
        %v3606 = vpop.trf.xlu0
        %v3607 = vpop.trf.xlu0
        %v3608 = vpop.trf.xlu0
        %v3609 = vpop.trf.xlu0
        %v3610 = vpop.trf.xlu0
        %v3611 = vpop.trf.xlu0
        %3612 = vxpose.xlu0.c.b16.start [1/8] %v2817, 128
        %3613 = vxpose.xlu0.c.b16.cont [2/8] 0, 128
        %3614 = vxpose.xlu0.c.b16.cont [3/8] 0, 128
        %3615 = vxpose.xlu0.c.b16.cont [4/8] 0, 128
        %3616 = vxpose.xlu0.c.b16.cont [5/8] 0, 128
        %3617 = vxpose.xlu0.c.b16.cont [6/8] 0, 128
        %3618 = vxpose.xlu0.c.b16.cont [7/8] 0, 128
        %3619 = vxpose.xlu0.c.b16.end [8/8] 0, 128
        %v3620 = vpop.trf.xlu0
        %v3621 = vpop.trf.xlu0
        %v3622 = vpop.trf.xlu0
        %v3623 = vpop.trf.xlu0
        %v3624 = vpop.trf.xlu0
        %v3625 = vpop.trf.xlu0
        %v3626 = vpop.trf.xlu0
        %v3627 = vpop.trf.xlu0
        %3628 = vxpose.xlu0.c.b16.start [1/8] %v2818, 128
        %3629 = vxpose.xlu0.c.b16.cont [2/8] 0, 128
        %3630 = vxpose.xlu0.c.b16.cont [3/8] 0, 128
        %3631 = vxpose.xlu0.c.b16.cont [4/8] 0, 128
        %3632 = vxpose.xlu0.c.b16.cont [5/8] 0, 128
        %3633 = vxpose.xlu0.c.b16.cont [6/8] 0, 128
        %3634 = vxpose.xlu0.c.b16.cont [7/8] 0, 128
        %3635 = vxpose.xlu0.c.b16.end [8/8] 0, 128
        %v3636 = vpop.trf.xlu0
        %v3637 = vpop.trf.xlu0
        %v3638 = vpop.trf.xlu0
        %v3639 = vpop.trf.xlu0
        %v3640 = vpop.trf.xlu0
        %v3641 = vpop.trf.xlu0
        %v3642 = vpop.trf.xlu0
        %v3643 = vpop.trf.xlu0
        %3644 = vxpose.xlu0.c.b16.start [1/8] %v2819, 128
        %3645 = vxpose.xlu0.c.b16.cont [2/8] 0, 128
        %3646 = vxpose.xlu0.c.b16.cont [3/8] 0, 128
        %3647 = vxpose.xlu0.c.b16.cont [4/8] 0, 128
        %3648 = vxpose.xlu0.c.b16.cont [5/8] 0, 128
        %3649 = vxpose.xlu0.c.b16.cont [6/8] 0, 128
        %3650 = vxpose.xlu0.c.b16.cont [7/8] 0, 128
        %3651 = vxpose.xlu0.c.b16.end [8/8] 0, 128
        %v3652 = vpop.trf.xlu0
        %v3653 = vpop.trf.xlu0
        %v3654 = vpop.trf.xlu0
        %v3655 = vpop.trf.xlu0
        %v3656 = vpop.trf.xlu0
        %v3657 = vpop.trf.xlu0
        %v3658 = vpop.trf.xlu0
        %v3659 = vpop.trf.xlu0
        %v3660 = vcombine.low %v3540, %v3604
        %v3662 = vunpack.c.l.s4 1983009808
        %v3663 = vunpack.c.0.s8 %v3662
        %v3664 = vlaneseq
        %v3665 = vshrl.u32 %v3664, 7
        %v3666 = vsub.s32 %v3663, %v3665
        %v3667 = vrot.slane %v3660, %v3666
        %v3668 = vcombine.low %v3572, %v3636
        %v3670 = vunpack.c.l.s4 1983009808
        %v3671 = vunpack.c.0.s8 %v3670
        %v3672 = vlaneseq
        %v3673 = vshrl.u32 %v3672, 7
        %v3674 = vsub.s32 %v3671, %v3673
        %v3675 = vrot.slane %v3668, %v3674
        %v3676 = vcombine.low %v3667, %v3675
        %v3677 = vcombine.high %v3667, %v3675
        %v3679 = vunpack.c.l.s4 1934713408
        %v3680 = vunpack.c.0.s8 %v3679
        %v3681 = vlaneseq
        %v3682 = vshrl.u32 %v3681, 7
        %v3683 = vsub.s32 %v3680, %v3682
        %v3684 = vrot.slane %v3676, %v3683
        %v3686 = vunpack.c.l.s4 1934713408
        %v3687 = vunpack.c.0.s8 %v3686
        %v3688 = vlaneseq
        %v3689 = vshrl.u32 %v3688, 7
        %v3690 = vsub.s32 %v3687, %v3689
        %v3691 = vrot.slane %v3677, %v3690
        %v3692 = vcombine.high %v3684, 0
        %v3693 = vcombine.high %v3691, 0
        %v3694 = vcombine.low %v3556, %v3620
        %v3696 = vunpack.c.l.s4 1983009808
        %v3697 = vunpack.c.0.s8 %v3696
        %v3698 = vlaneseq
        %v3699 = vshrl.u32 %v3698, 7
        %v3700 = vsub.s32 %v3697, %v3699
        %v3701 = vrot.slane %v3694, %v3700
        %v3702 = vcombine.low %v3588, %v3652
        %v3704 = vunpack.c.l.s4 1983009808
        %v3705 = vunpack.c.0.s8 %v3704
        %v3706 = vlaneseq
        %v3707 = vshrl.u32 %v3706, 7
        %v3708 = vsub.s32 %v3705, %v3707
        %v3709 = vrot.slane %v3702, %v3708
        %v3710 = vcombine.low %v3701, %v3709
        %v3711 = vcombine.high %v3701, %v3709
        %v3713 = vunpack.c.l.s4 1934713408
        %v3714 = vunpack.c.0.s8 %v3713
        %v3715 = vlaneseq
        %v3716 = vshrl.u32 %v3715, 7
        %v3717 = vsub.s32 %v3714, %v3716
        %v3718 = vrot.slane %v3710, %v3717
        %v3720 = vunpack.c.l.s4 1934713408
        %v3721 = vunpack.c.0.s8 %v3720
        %v3722 = vlaneseq
        %v3723 = vshrl.u32 %v3722, 7
        %v3724 = vsub.s32 %v3721, %v3723
        %v3725 = vrot.slane %v3711, %v3724
        %v3726 = vcombine.high %v3718, 0
        %v3727 = vcombine.high %v3725, 0
        %v3730 = vpack.i.b16 %v3718, %v3684
        %v3732 = vshrl.u32 %v3684, 16
        %v3733 = vshrl.u32 %v3718, 16
        %v3734 = vpack.i.b16 %v3733, %v3732
        %v3738 = vpack.i.b16 %v3726, %v3692
        %v3740 = vshrl.u32 %v3692, 16
        %v3741 = vshrl.u32 %v3726, 16
        %v3742 = vpack.i.b16 %v3741, %v3740
        %v3746 = vpack.i.b16 %v3725, %v3691
        %v3748 = vshrl.u32 %v3691, 16
        %v3749 = vshrl.u32 %v3725, 16
        %v3750 = vpack.i.b16 %v3749, %v3748
        %v3754 = vpack.i.b16 %v3727, %v3693
        %v3756 = vshrl.u32 %v3693, 16
        %v3757 = vshrl.u32 %v3727, 16
        %v3758 = vpack.i.b16 %v3757, %v3756
        %3760 = vxpose.xlu0.c.b16.start [1/8] %v3730, 128
        %3761 = vxpose.xlu0.c.b16.cont [2/8] 0, 128
        %3762 = vxpose.xlu0.c.b16.cont [3/8] 0, 128
        %3763 = vxpose.xlu0.c.b16.cont [4/8] 0, 128
        %3764 = vxpose.xlu0.c.b16.cont [5/8] 0, 128
        %3765 = vxpose.xlu0.c.b16.cont [6/8] 0, 128
        %3766 = vxpose.xlu0.c.b16.cont [7/8] 0, 128
        %3767 = vxpose.xlu0.c.b16.end [8/8] 0, 128
        %v3768 = vpop.trf.xlu0
        %v3769 = vpop.trf.xlu0
        %v3770 = vpop.trf.xlu0
        %v3771 = vpop.trf.xlu0
        %v3772 = vpop.trf.xlu0
        %v3773 = vpop.trf.xlu0
        %v3774 = vpop.trf.xlu0
        %v3775 = vpop.trf.xlu0
        %3776 = vxpose.xlu0.c.b16.start [1/8] %v3734, 128
        %3777 = vxpose.xlu0.c.b16.cont [2/8] 0, 128
        %3778 = vxpose.xlu0.c.b16.cont [3/8] 0, 128
        %3779 = vxpose.xlu0.c.b16.cont [4/8] 0, 128
        %3780 = vxpose.xlu0.c.b16.cont [5/8] 0, 128
        %3781 = vxpose.xlu0.c.b16.cont [6/8] 0, 128
        %3782 = vxpose.xlu0.c.b16.cont [7/8] 0, 128
        %3783 = vxpose.xlu0.c.b16.end [8/8] 0, 128
        %v3784 = vpop.trf.xlu0
        %v3785 = vpop.trf.xlu0
        %v3786 = vpop.trf.xlu0
        %v3787 = vpop.trf.xlu0
        %v3788 = vpop.trf.xlu0
        %v3789 = vpop.trf.xlu0
        %v3790 = vpop.trf.xlu0
        %v3791 = vpop.trf.xlu0
        %3792 = vxpose.xlu0.c.b16.start [1/8] %v3738, 128
        %3793 = vxpose.xlu0.c.b16.cont [2/8] 0, 128
        %3794 = vxpose.xlu0.c.b16.cont [3/8] 0, 128
        %3795 = vxpose.xlu0.c.b16.cont [4/8] 0, 128
        %3796 = vxpose.xlu0.c.b16.cont [5/8] 0, 128
        %3797 = vxpose.xlu0.c.b16.cont [6/8] 0, 128
        %3798 = vxpose.xlu0.c.b16.cont [7/8] 0, 128
        %3799 = vxpose.xlu0.c.b16.end [8/8] 0, 128
        %v3800 = vpop.trf.xlu0
        %v3801 = vpop.trf.xlu0
        %v3802 = vpop.trf.xlu0
        %v3803 = vpop.trf.xlu0
        %v3804 = vpop.trf.xlu0
        %v3805 = vpop.trf.xlu0
        %v3806 = vpop.trf.xlu0
        %v3807 = vpop.trf.xlu0
        %3808 = vxpose.xlu0.c.b16.start [1/8] %v3742, 128
        %3809 = vxpose.xlu0.c.b16.cont [2/8] 0, 128
        %3810 = vxpose.xlu0.c.b16.cont [3/8] 0, 128
        %3811 = vxpose.xlu0.c.b16.cont [4/8] 0, 128
        %3812 = vxpose.xlu0.c.b16.cont [5/8] 0, 128
        %3813 = vxpose.xlu0.c.b16.cont [6/8] 0, 128
        %3814 = vxpose.xlu0.c.b16.cont [7/8] 0, 128
        %3815 = vxpose.xlu0.c.b16.end [8/8] 0, 128
        %v3816 = vpop.trf.xlu0
        %v3817 = vpop.trf.xlu0
        %v3818 = vpop.trf.xlu0
        %v3819 = vpop.trf.xlu0
        %v3820 = vpop.trf.xlu0
        %v3821 = vpop.trf.xlu0
        %v3822 = vpop.trf.xlu0
        %v3823 = vpop.trf.xlu0
        %3824 = vxpose.xlu0.c.b16.start [1/8] %v3746, 128
        %3825 = vxpose.xlu0.c.b16.cont [2/8] 0, 128
        %3826 = vxpose.xlu0.c.b16.cont [3/8] 0, 128
        %3827 = vxpose.xlu0.c.b16.cont [4/8] 0, 128
        %3828 = vxpose.xlu0.c.b16.cont [5/8] 0, 128
        %3829 = vxpose.xlu0.c.b16.cont [6/8] 0, 128
        %3830 = vxpose.xlu0.c.b16.cont [7/8] 0, 128
        %3831 = vxpose.xlu0.c.b16.end [8/8] 0, 128
        %v3832 = vpop.trf.xlu0
        %v3833 = vpop.trf.xlu0
        %v3834 = vpop.trf.xlu0
        %v3835 = vpop.trf.xlu0
        %v3836 = vpop.trf.xlu0
        %v3837 = vpop.trf.xlu0
        %v3838 = vpop.trf.xlu0
        %v3839 = vpop.trf.xlu0
        %3840 = vxpose.xlu0.c.b16.start [1/8] %v3750, 128
        %3841 = vxpose.xlu0.c.b16.cont [2/8] 0, 128
        %3842 = vxpose.xlu0.c.b16.cont [3/8] 0, 128
        %3843 = vxpose.xlu0.c.b16.cont [4/8] 0, 128
        %3844 = vxpose.xlu0.c.b16.cont [5/8] 0, 128
        %3845 = vxpose.xlu0.c.b16.cont [6/8] 0, 128
        %3846 = vxpose.xlu0.c.b16.cont [7/8] 0, 128
        %3847 = vxpose.xlu0.c.b16.end [8/8] 0, 128
        %v3848 = vpop.trf.xlu0
        %v3849 = vpop.trf.xlu0
        %v3850 = vpop.trf.xlu0
        %v3851 = vpop.trf.xlu0
        %v3852 = vpop.trf.xlu0
        %v3853 = vpop.trf.xlu0
        %v3854 = vpop.trf.xlu0
        %v3855 = vpop.trf.xlu0
        %3856 = vxpose.xlu0.c.b16.start [1/8] %v3754, 128
        %3857 = vxpose.xlu0.c.b16.cont [2/8] 0, 128
        %3858 = vxpose.xlu0.c.b16.cont [3/8] 0, 128
        %3859 = vxpose.xlu0.c.b16.cont [4/8] 0, 128
        %3860 = vxpose.xlu0.c.b16.cont [5/8] 0, 128
        %3861 = vxpose.xlu0.c.b16.cont [6/8] 0, 128
        %3862 = vxpose.xlu0.c.b16.cont [7/8] 0, 128
        %3863 = vxpose.xlu0.c.b16.end [8/8] 0, 128
        %v3864 = vpop.trf.xlu0
        %v3865 = vpop.trf.xlu0
        %v3866 = vpop.trf.xlu0
        %v3867 = vpop.trf.xlu0
        %v3868 = vpop.trf.xlu0
        %v3869 = vpop.trf.xlu0
        %v3870 = vpop.trf.xlu0
        %v3871 = vpop.trf.xlu0
        %3872 = vxpose.xlu0.c.b16.start [1/8] %v3758, 128
        %3873 = vxpose.xlu0.c.b16.cont [2/8] 0, 128
        %3874 = vxpose.xlu0.c.b16.cont [3/8] 0, 128
        %3875 = vxpose.xlu0.c.b16.cont [4/8] 0, 128
        %3876 = vxpose.xlu0.c.b16.cont [5/8] 0, 128
        %3877 = vxpose.xlu0.c.b16.cont [6/8] 0, 128
        %3878 = vxpose.xlu0.c.b16.cont [7/8] 0, 128
        %3879 = vxpose.xlu0.c.b16.end [8/8] 0, 128
        %v3880 = vpop.trf.xlu0
        %v3881 = vpop.trf.xlu0
        %v3882 = vpop.trf.xlu0
        %v3883 = vpop.trf.xlu0
        %v3884 = vpop.trf.xlu0
        %v3885 = vpop.trf.xlu0
        %v3886 = vpop.trf.xlu0
        %v3887 = vpop.trf.xlu0
        %v3888 = vcombine.low %v3768, %v3832
        %v3890 = vunpack.c.l.s4 1983009808
        %v3891 = vunpack.c.0.s8 %v3890
        %v3892 = vlaneseq
        %v3893 = vshrl.u32 %v3892, 7
        %v3894 = vsub.s32 %v3891, %v3893
        %v3895 = vrot.slane %v3888, %v3894
        %v3896 = vcombine.low %v3800, %v3864
        %v3898 = vunpack.c.l.s4 1983009808
        %v3899 = vunpack.c.0.s8 %v3898
        %v3900 = vlaneseq
        %v3901 = vshrl.u32 %v3900, 7
        %v3902 = vsub.s32 %v3899, %v3901
        %v3903 = vrot.slane %v3896, %v3902
        %v3904 = vcombine.low %v3895, %v3903
        %v3906 = vunpack.c.l.s4 1934713408
        %v3907 = vunpack.c.0.s8 %v3906
        %v3908 = vlaneseq
        %v3909 = vshrl.u32 %v3908, 7
        %v3910 = vsub.s32 %v3907, %v3909
        %v3911 = vrot.slane %v3904, %v3910
        %v3912 = vcombine.high %v3911, 0
        %v3913 = vcombine.low %v3784, %v3848
        %v3915 = vunpack.c.l.s4 1983009808
        %v3916 = vunpack.c.0.s8 %v3915
        %v3917 = vlaneseq
        %v3918 = vshrl.u32 %v3917, 7
        %v3919 = vsub.s32 %v3916, %v3918
        %v3920 = vrot.slane %v3913, %v3919
        %v3921 = vcombine.low %v3816, %v3880
        %v3923 = vunpack.c.l.s4 1983009808
        %v3924 = vunpack.c.0.s8 %v3923
        %v3925 = vlaneseq
        %v3926 = vshrl.u32 %v3925, 7
        %v3927 = vsub.s32 %v3924, %v3926
        %v3928 = vrot.slane %v3921, %v3927
        %v3929 = vcombine.low %v3920, %v3928
        %v3931 = vunpack.c.l.s4 1934713408
        %v3932 = vunpack.c.0.s8 %v3931
        %v3933 = vlaneseq
        %v3934 = vshrl.u32 %v3933, 7
        %v3935 = vsub.s32 %v3932, %v3934
        %v3936 = vrot.slane %v3929, %v3935
        %v3937 = vcombine.high %v3936, 0
        %v3940 = vpack.i.b16 %v3936, %v3911
        %v3941 = vshrl.u32 %v3911, 16
        %v3942 = vshrl.u32 %v3936, 16
        %v3943 = vpack.i.b16 %v3942, %v3941
        %v3946 = vpack.i.b16 %v3937, %v3912
        %v3947 = vshrl.u32 %v3912, 16
        %v3948 = vshrl.u32 %v3937, 16
        %v3949 = vpack.i.b16 %v3948, %v3947
        %v3951 = vsel %vm1427, %v3940, 0
        %v3954 = vsel %vm1427, %v3528, 0
        %3956 = vmatprep.subr.bf16.mxu0 0
        %3957 = vmatpush1.bf16.xpose.msra.mxu0 %v3954
        %3958 = vmatprep.subr.bf16.mxu0 0
        %3959 = vmatpush1.bf16.xpose.msra.mxu0 0
        %3960 = vmatprep.subr.bf16.mxu0 0
        %3961 = vmatpush1.bf16.xpose.msra.mxu0 0
        %3962 = vmatprep.subr.bf16.mxu0 0
        %3963 = vmatpush1.bf16.xpose.msra.mxu0 0
        %3964 = vmatprep.subr.bf16.mxu0 0
        %3965 = vmatpush1.bf16.xpose.msra.mxu0 0
        %3966 = vmatprep.subr.bf16.mxu0 0
        %3967 = vmatpush1.bf16.xpose.msra.mxu0 0
        %3968 = vmatprep.subr.bf16.mxu0 0
        %3969 = vmatpush1.bf16.xpose.msra.mxu0 0
        %3970 = vmatprep.subr.bf16.mxu0 0
        %3971 = vmatpush1.bf16.xpose.msra.mxu0 0
        %3972 = vmatprep.subr.bf16.mxu0 0
        %3973 = vmatpush1.bf16.xpose.msra.mxu0 0
        %3974 = vmatprep.subr.bf16.mxu0 0
        %3975 = vmatpush1.bf16.xpose.msra.mxu0 0
        %3976 = vmatprep.subr.bf16.mxu0 0
        %3977 = vmatpush1.bf16.xpose.msra.mxu0 0
        %3978 = vmatprep.subr.bf16.mxu0 0
        %3979 = vmatpush1.bf16.xpose.msra.mxu0 0
        %3980 = vmatprep.subr.bf16.mxu0 0
        %3981 = vmatpush1.bf16.xpose.msra.mxu0 0
        %3982 = vmatprep.subr.bf16.mxu0 0
        %3983 = vmatpush1.bf16.xpose.msra.mxu0 0
        %3984 = vmatprep.subr.bf16.mxu0 0
        %3985 = vmatpush1.bf16.xpose.msra.mxu0 0
        %3986 = vmatprep.subr.bf16.mxu0 0
        %3987 = vmatpush1.bf16.xpose.msra.mxu0 0
        %3988 = vmatprep.mubr.bf16.mxu0 0
        %3989 = vmatmul.mubr.bf16.gmra.mrb[0].mxu0 %v3951
        %v3990 = vpop.f32.mrb[0].mxu0
        %v3991 = vadd.f32 0.0, %v3990
        %v3992 = vpop.f32.mrb[0].mxu0
        %v3993 = vpop.f32.mrb[0].mxu0
        %v3994 = vpop.f32.mrb[0].mxu0
        %3995 = vdwg.mxu0
        %v3997 = vsel %vm1427, %v3943, 0
        %v4000 = vsel %vm1427, %v3529, 0
        %4002 = vmatprep.subr.bf16.mxu0 0
        %4003 = vmatpush1.bf16.xpose.msra.mxu0 %v4000
        %4004 = vmatprep.subr.bf16.mxu0 0
        %4005 = vmatpush1.bf16.xpose.msra.mxu0 0
        %4006 = vmatprep.subr.bf16.mxu0 0
        %4007 = vmatpush1.bf16.xpose.msra.mxu0 0
        %4008 = vmatprep.subr.bf16.mxu0 0
        %4009 = vmatpush1.bf16.xpose.msra.mxu0 0
        %4010 = vmatprep.subr.bf16.mxu0 0
        %4011 = vmatpush1.bf16.xpose.msra.mxu0 0
        %4012 = vmatprep.subr.bf16.mxu0 0
        %4013 = vmatpush1.bf16.xpose.msra.mxu0 0
        %4014 = vmatprep.subr.bf16.mxu0 0
        %4015 = vmatpush1.bf16.xpose.msra.mxu0 0
        %4016 = vmatprep.subr.bf16.mxu0 0
        %4017 = vmatpush1.bf16.xpose.msra.mxu0 0
        %4018 = vmatprep.subr.bf16.mxu0 0
        %4019 = vmatpush1.bf16.xpose.msra.mxu0 0
        %4020 = vmatprep.subr.bf16.mxu0 0
        %4021 = vmatpush1.bf16.xpose.msra.mxu0 0
        %4022 = vmatprep.subr.bf16.mxu0 0
        %4023 = vmatpush1.bf16.xpose.msra.mxu0 0
        %4024 = vmatprep.subr.bf16.mxu0 0
        %4025 = vmatpush1.bf16.xpose.msra.mxu0 0
        %4026 = vmatprep.subr.bf16.mxu0 0
        %4027 = vmatpush1.bf16.xpose.msra.mxu0 0
        %4028 = vmatprep.subr.bf16.mxu0 0
        %4029 = vmatpush1.bf16.xpose.msra.mxu0 0
        %4030 = vmatprep.subr.bf16.mxu0 0
        %4031 = vmatpush1.bf16.xpose.msra.mxu0 0
        %4032 = vmatprep.subr.bf16.mxu0 0
        %4033 = vmatpush1.bf16.xpose.msra.mxu0 0
        %4034 = vmatprep.mubr.bf16.mxu0 0
        %4035 = vmatmul.mubr.bf16.gmra.mrb[0].mxu0 %v3997
        %v4036 = vpop.f32.mrb[0].mxu0
        %v4037 = vadd.f32 0.0, %v4036
        %v4038 = vpop.f32.mrb[0].mxu0
        %v4039 = vpop.f32.mrb[0].mxu0
        %v4040 = vpop.f32.mrb[0].mxu0
        %4041 = vdwg.mxu0
        %v4043 = vsel %vm1427, %v3946, 0
        %v4046 = vsel %vm1427, %v3530, 0
        %4048 = vmatprep.subr.bf16.mxu0 0
        %4049 = vmatpush1.bf16.xpose.msra.mxu0 %v4046
        %4050 = vmatprep.subr.bf16.mxu0 0
        %4051 = vmatpush1.bf16.xpose.msra.mxu0 0
        %4052 = vmatprep.subr.bf16.mxu0 0
        %4053 = vmatpush1.bf16.xpose.msra.mxu0 0
        %4054 = vmatprep.subr.bf16.mxu0 0
        %4055 = vmatpush1.bf16.xpose.msra.mxu0 0
        %4056 = vmatprep.subr.bf16.mxu0 0
        %4057 = vmatpush1.bf16.xpose.msra.mxu0 0
        %4058 = vmatprep.subr.bf16.mxu0 0
        %4059 = vmatpush1.bf16.xpose.msra.mxu0 0
        %4060 = vmatprep.subr.bf16.mxu0 0
        %4061 = vmatpush1.bf16.xpose.msra.mxu0 0
        %4062 = vmatprep.subr.bf16.mxu0 0
        %4063 = vmatpush1.bf16.xpose.msra.mxu0 0
        %4064 = vmatprep.subr.bf16.mxu0 0
        %4065 = vmatpush1.bf16.xpose.msra.mxu0 0
        %4066 = vmatprep.subr.bf16.mxu0 0
        %4067 = vmatpush1.bf16.xpose.msra.mxu0 0
        %4068 = vmatprep.subr.bf16.mxu0 0
        %4069 = vmatpush1.bf16.xpose.msra.mxu0 0
        %4070 = vmatprep.subr.bf16.mxu0 0
        %4071 = vmatpush1.bf16.xpose.msra.mxu0 0
        %4072 = vmatprep.subr.bf16.mxu0 0
        %4073 = vmatpush1.bf16.xpose.msra.mxu0 0
        %4074 = vmatprep.subr.bf16.mxu0 0
        %4075 = vmatpush1.bf16.xpose.msra.mxu0 0
        %4076 = vmatprep.subr.bf16.mxu0 0
        %4077 = vmatpush1.bf16.xpose.msra.mxu0 0
        %4078 = vmatprep.subr.bf16.mxu0 0
        %4079 = vmatpush1.bf16.xpose.msra.mxu0 0
        %4080 = vmatprep.mubr.bf16.mxu0 0
        %4081 = vmatmul.mubr.bf16.gmra.mrb[0].mxu0 %v4043
        %v4082 = vpop.f32.mrb[0].mxu0
        %v4083 = vadd.f32 0.0, %v4082
        %v4084 = vpop.f32.mrb[0].mxu0
        %v4085 = vpop.f32.mrb[0].mxu0
        %v4086 = vpop.f32.mrb[0].mxu0
        %4087 = vdwg.mxu0
        %v4089 = vsel %vm1427, %v3949, 0
        %v4092 = vsel %vm1427, %v3531, 0
        %4094 = vmatprep.subr.bf16.mxu0 0
        %4095 = vmatpush1.bf16.xpose.msra.mxu0 %v4092
        %4096 = vmatprep.subr.bf16.mxu0 0
        %4097 = vmatpush1.bf16.xpose.msra.mxu0 0
        %4098 = vmatprep.subr.bf16.mxu0 0
        %4099 = vmatpush1.bf16.xpose.msra.mxu0 0
        %4100 = vmatprep.subr.bf16.mxu0 0
        %4101 = vmatpush1.bf16.xpose.msra.mxu0 0
        %4102 = vmatprep.subr.bf16.mxu0 0
        %4103 = vmatpush1.bf16.xpose.msra.mxu0 0
        %4104 = vmatprep.subr.bf16.mxu0 0
        %4105 = vmatpush1.bf16.xpose.msra.mxu0 0
        %4106 = vmatprep.subr.bf16.mxu0 0
        %4107 = vmatpush1.bf16.xpose.msra.mxu0 0
        %4108 = vmatprep.subr.bf16.mxu0 0
        %4109 = vmatpush1.bf16.xpose.msra.mxu0 0
        %4110 = vmatprep.subr.bf16.mxu0 0
        %4111 = vmatpush1.bf16.xpose.msra.mxu0 0
        %4112 = vmatprep.subr.bf16.mxu0 0
        %4113 = vmatpush1.bf16.xpose.msra.mxu0 0
        %4114 = vmatprep.subr.bf16.mxu0 0
        %4115 = vmatpush1.bf16.xpose.msra.mxu0 0
        %4116 = vmatprep.subr.bf16.mxu0 0
        %4117 = vmatpush1.bf16.xpose.msra.mxu0 0
        %4118 = vmatprep.subr.bf16.mxu0 0
        %4119 = vmatpush1.bf16.xpose.msra.mxu0 0
        %4120 = vmatprep.subr.bf16.mxu0 0
        %4121 = vmatpush1.bf16.xpose.msra.mxu0 0
        %4122 = vmatprep.subr.bf16.mxu0 0
        %4123 = vmatpush1.bf16.xpose.msra.mxu0 0
        %4124 = vmatprep.subr.bf16.mxu0 0
        %4125 = vmatpush1.bf16.xpose.msra.mxu0 0
        %4126 = vmatprep.mubr.bf16.mxu0 0
        %4127 = vmatmul.mubr.bf16.gmra.mrb[0].mxu0 %v4089
        %v4128 = vpop.f32.mrb[0].mxu0
        %v4129 = vadd.f32 0.0, %v4128
        %v4130 = vpop.f32.mrb[0].mxu0
        %v4131 = vpop.f32.mrb[0].mxu0
        %v4132 = vpop.f32.mrb[0].mxu0
        %4133 = vdwg.mxu0
        %4134 = vxpose.xlu0.b32.start [1/16] %v3991, 128
        %4135 = vxpose.xlu0.b32.cont [2/16] 0.0, 128
        %4136 = vxpose.xlu0.b32.cont [3/16] 0.0, 128
        %4137 = vxpose.xlu0.b32.cont [4/16] 0.0, 128
        %4138 = vxpose.xlu0.b32.cont [5/16] 0.0, 128
        %4139 = vxpose.xlu0.b32.cont [6/16] 0.0, 128
        %4140 = vxpose.xlu0.b32.cont [7/16] 0.0, 128
        %4141 = vxpose.xlu0.b32.cont [8/16] 0.0, 128
        %4142 = vxpose.xlu0.b32.cont [9/16] 0.0, 128
        %4143 = vxpose.xlu0.b32.cont [10/16] 0.0, 128
        %4144 = vxpose.xlu0.b32.cont [11/16] 0.0, 128
        %4145 = vxpose.xlu0.b32.cont [12/16] 0.0, 128
        %4146 = vxpose.xlu0.b32.cont [13/16] 0.0, 128
        %4147 = vxpose.xlu0.b32.cont [14/16] 0.0, 128
        %4148 = vxpose.xlu0.b32.cont [15/16] 0.0, 128
        %4149 = vxpose.xlu0.b32.end [16/16] 0.0, 128
        %v4150 = vpop.trf.xlu0
        %v4151 = vpop.trf.xlu0
        %v4152 = vpop.trf.xlu0
        %v4153 = vpop.trf.xlu0
        %v4154 = vpop.trf.xlu0
        %v4155 = vpop.trf.xlu0
        %v4156 = vpop.trf.xlu0
        %v4157 = vpop.trf.xlu0
        %v4158 = vpop.trf.xlu0
        %v4159 = vpop.trf.xlu0
        %v4160 = vpop.trf.xlu0
        %v4161 = vpop.trf.xlu0
        %v4162 = vpop.trf.xlu0
        %v4163 = vpop.trf.xlu0
        %v4164 = vpop.trf.xlu0
        %v4165 = vpop.trf.xlu0
        %4166 = vxpose.xlu0.b32.start [1/16] %v4037, 128
        %4167 = vxpose.xlu0.b32.cont [2/16] 0.0, 128
        %4168 = vxpose.xlu0.b32.cont [3/16] 0.0, 128
        %4169 = vxpose.xlu0.b32.cont [4/16] 0.0, 128
        %4170 = vxpose.xlu0.b32.cont [5/16] 0.0, 128
        %4171 = vxpose.xlu0.b32.cont [6/16] 0.0, 128
        %4172 = vxpose.xlu0.b32.cont [7/16] 0.0, 128
        %4173 = vxpose.xlu0.b32.cont [8/16] 0.0, 128
        %4174 = vxpose.xlu0.b32.cont [9/16] 0.0, 128
        %4175 = vxpose.xlu0.b32.cont [10/16] 0.0, 128
        %4176 = vxpose.xlu0.b32.cont [11/16] 0.0, 128
        %4177 = vxpose.xlu0.b32.cont [12/16] 0.0, 128
        %4178 = vxpose.xlu0.b32.cont [13/16] 0.0, 128
        %4179 = vxpose.xlu0.b32.cont [14/16] 0.0, 128
        %4180 = vxpose.xlu0.b32.cont [15/16] 0.0, 128
        %4181 = vxpose.xlu0.b32.end [16/16] 0.0, 128
        %v4182 = vpop.trf.xlu0
        %v4183 = vpop.trf.xlu0
        %v4184 = vpop.trf.xlu0
        %v4185 = vpop.trf.xlu0
        %v4186 = vpop.trf.xlu0
        %v4187 = vpop.trf.xlu0
        %v4188 = vpop.trf.xlu0
        %v4189 = vpop.trf.xlu0
        %v4190 = vpop.trf.xlu0
        %v4191 = vpop.trf.xlu0
        %v4192 = vpop.trf.xlu0
        %v4193 = vpop.trf.xlu0
        %v4194 = vpop.trf.xlu0
        %v4195 = vpop.trf.xlu0
        %v4196 = vpop.trf.xlu0
        %v4197 = vpop.trf.xlu0
        %4198 = vxpose.xlu0.b32.start [1/16] %v4083, 128
        %4199 = vxpose.xlu0.b32.cont [2/16] 0.0, 128
        %4200 = vxpose.xlu0.b32.cont [3/16] 0.0, 128
        %4201 = vxpose.xlu0.b32.cont [4/16] 0.0, 128
        %4202 = vxpose.xlu0.b32.cont [5/16] 0.0, 128
        %4203 = vxpose.xlu0.b32.cont [6/16] 0.0, 128
        %4204 = vxpose.xlu0.b32.cont [7/16] 0.0, 128
        %4205 = vxpose.xlu0.b32.cont [8/16] 0.0, 128
        %4206 = vxpose.xlu0.b32.cont [9/16] 0.0, 128
        %4207 = vxpose.xlu0.b32.cont [10/16] 0.0, 128
        %4208 = vxpose.xlu0.b32.cont [11/16] 0.0, 128
        %4209 = vxpose.xlu0.b32.cont [12/16] 0.0, 128
        %4210 = vxpose.xlu0.b32.cont [13/16] 0.0, 128
        %4211 = vxpose.xlu0.b32.cont [14/16] 0.0, 128
        %4212 = vxpose.xlu0.b32.cont [15/16] 0.0, 128
        %4213 = vxpose.xlu0.b32.end [16/16] 0.0, 128
        %v4214 = vpop.trf.xlu0
        %v4215 = vpop.trf.xlu0
        %v4216 = vpop.trf.xlu0
        %v4217 = vpop.trf.xlu0
        %v4218 = vpop.trf.xlu0
        %v4219 = vpop.trf.xlu0
        %v4220 = vpop.trf.xlu0
        %v4221 = vpop.trf.xlu0
        %v4222 = vpop.trf.xlu0
        %v4223 = vpop.trf.xlu0
        %v4224 = vpop.trf.xlu0
        %v4225 = vpop.trf.xlu0
        %v4226 = vpop.trf.xlu0
        %v4227 = vpop.trf.xlu0
        %v4228 = vpop.trf.xlu0
        %v4229 = vpop.trf.xlu0
        %4230 = vxpose.xlu0.b32.start [1/16] %v4129, 128
        %4231 = vxpose.xlu0.b32.cont [2/16] 0.0, 128
        %4232 = vxpose.xlu0.b32.cont [3/16] 0.0, 128
        %4233 = vxpose.xlu0.b32.cont [4/16] 0.0, 128
        %4234 = vxpose.xlu0.b32.cont [5/16] 0.0, 128
        %4235 = vxpose.xlu0.b32.cont [6/16] 0.0, 128
        %4236 = vxpose.xlu0.b32.cont [7/16] 0.0, 128
        %4237 = vxpose.xlu0.b32.cont [8/16] 0.0, 128
        %4238 = vxpose.xlu0.b32.cont [9/16] 0.0, 128
        %4239 = vxpose.xlu0.b32.cont [10/16] 0.0, 128
        %4240 = vxpose.xlu0.b32.cont [11/16] 0.0, 128
        %4241 = vxpose.xlu0.b32.cont [12/16] 0.0, 128
        %4242 = vxpose.xlu0.b32.cont [13/16] 0.0, 128
        %4243 = vxpose.xlu0.b32.cont [14/16] 0.0, 128
        %4244 = vxpose.xlu0.b32.cont [15/16] 0.0, 128
        %4245 = vxpose.xlu0.b32.end [16/16] 0.0, 128
        %v4246 = vpop.trf.xlu0
        %v4247 = vpop.trf.xlu0
        %v4248 = vpop.trf.xlu0
        %v4249 = vpop.trf.xlu0
        %v4250 = vpop.trf.xlu0
        %v4251 = vpop.trf.xlu0
        %v4252 = vpop.trf.xlu0
        %v4253 = vpop.trf.xlu0
        %v4254 = vpop.trf.xlu0
        %v4255 = vpop.trf.xlu0
        %v4256 = vpop.trf.xlu0
        %v4257 = vpop.trf.xlu0
        %v4258 = vpop.trf.xlu0
        %v4259 = vpop.trf.xlu0
        %v4260 = vpop.trf.xlu0
        %v4261 = vpop.trf.xlu0
        %v4262 = vcombine.low %v4150, %v4214
        %v4263 = vcombine.high %v4150, %v4214
        %v4265 = vunpack.c.l.s4 1983009808
        %v4266 = vunpack.c.0.s8 %v4265
        %v4267 = vlaneseq
        %v4268 = vshrl.u32 %v4267, 7
        %v4269 = vsub.s32 %v4266, %v4268
        %v4270 = vrot.slane %v4262, %v4269
        %v4272 = vunpack.c.l.s4 1983009808
        %v4273 = vunpack.c.0.s8 %v4272
        %v4274 = vlaneseq
        %v4275 = vshrl.u32 %v4274, 7
        %v4276 = vsub.s32 %v4273, %v4275
        %v4277 = vrot.slane %v4263, %v4276
        %v4278 = vcombine.low %v4182, %v4246
        %v4279 = vcombine.high %v4182, %v4246
        %v4281 = vunpack.c.l.s4 1983009808
        %v4282 = vunpack.c.0.s8 %v4281
        %v4283 = vlaneseq
        %v4284 = vshrl.u32 %v4283, 7
        %v4285 = vsub.s32 %v4282, %v4284
        %v4286 = vrot.slane %v4278, %v4285
        %v4288 = vunpack.c.l.s4 1983009808
        %v4289 = vunpack.c.0.s8 %v4288
        %v4290 = vlaneseq
        %v4291 = vshrl.u32 %v4290, 7
        %v4292 = vsub.s32 %v4289, %v4291
        %v4293 = vrot.slane %v4279, %v4292
        %v4294 = vcombine.low %v4270, %v4286
        %v4295 = vcombine.high %v4270, %v4286
        %v4297 = vunpack.c.l.s4 1934713408
        %v4298 = vunpack.c.0.s8 %v4297
        %v4299 = vlaneseq
        %v4300 = vshrl.u32 %v4299, 7
        %v4301 = vsub.s32 %v4298, %v4300
        %v4302 = vrot.slane %v4294, %v4301
        %v4304 = vunpack.c.l.s4 1934713408
        %v4305 = vunpack.c.0.s8 %v4304
        %v4306 = vlaneseq
        %v4307 = vshrl.u32 %v4306, 7
        %v4308 = vsub.s32 %v4305, %v4307
        %v4309 = vrot.slane %v4295, %v4308
        %v4310 = vcombine.low %v4277, %v4293
        %v4311 = vcombine.high %v4277, %v4293
        %v4313 = vunpack.c.l.s4 1934713408
        %v4314 = vunpack.c.0.s8 %v4313
        %v4315 = vlaneseq
        %v4316 = vshrl.u32 %v4315, 7
        %v4317 = vsub.s32 %v4314, %v4316
        %v4318 = vrot.slane %v4310, %v4317
        %v4320 = vunpack.c.l.s4 1934713408
        %v4321 = vunpack.c.0.s8 %v4320
        %v4322 = vlaneseq
        %v4323 = vshrl.u32 %v4322, 7
        %v4324 = vsub.s32 %v4321, %v4323
        %v4325 = vrot.slane %v4311, %v4324
        %v4326 = vcombine.high %v4302, 0.0
        %v4327 = vcombine.high %v4309, 0.0
        %v4328 = vcombine.high %v4318, 0.0
        %v4329 = vcombine.high %v4325, 0.0
        %v4330 = vcombine.low %v4302, %v4309
        %v4332 = vunpack.c.l.s4 1983009808
        %v4333 = vunpack.c.0.s8 %v4332
        %v4334 = vlaneseq
        %v4335 = vshrl.u32 %v4334, 7
        %v4336 = vsub.s32 %v4333, %v4335
        %v4337 = vrot.slane %v4330, %v4336
        %v4338 = vcombine.low %v4326, %v4327
        %v4340 = vunpack.c.l.s4 1983009808
        %v4341 = vunpack.c.0.s8 %v4340
        %v4342 = vlaneseq
        %v4343 = vshrl.u32 %v4342, 7
        %v4344 = vsub.s32 %v4341, %v4343
        %v4345 = vrot.slane %v4338, %v4344
        %v4346 = vcombine.low %v4318, %v4325
        %v4348 = vunpack.c.l.s4 1983009808
        %v4349 = vunpack.c.0.s8 %v4348
        %v4350 = vlaneseq
        %v4351 = vshrl.u32 %v4350, 7
        %v4352 = vsub.s32 %v4349, %v4351
        %v4353 = vrot.slane %v4346, %v4352
        %v4354 = vcombine.low %v4328, %v4329
        %v4356 = vunpack.c.l.s4 1983009808
        %v4357 = vunpack.c.0.s8 %v4356
        %v4358 = vlaneseq
        %v4359 = vshrl.u32 %v4358, 7
        %v4360 = vsub.s32 %v4357, %v4359
        %v4361 = vrot.slane %v4354, %v4360
        %v4362 = vcombine.low %v4337, %v4345
        %v4363 = vcombine.high %v4337, %v4345
        %v4365 = vunpack.c.l.s4 1934713408
        %v4366 = vunpack.c.0.s8 %v4365
        %v4367 = vlaneseq
        %v4368 = vshrl.u32 %v4367, 7
        %v4369 = vsub.s32 %v4366, %v4368
        %v4370 = vrot.slane %v4362, %v4369
        %v4372 = vunpack.c.l.s4 1934713408
        %v4373 = vunpack.c.0.s8 %v4372
        %v4374 = vlaneseq
        %v4375 = vshrl.u32 %v4374, 7
        %v4376 = vsub.s32 %v4373, %v4375
        %v4377 = vrot.slane %v4363, %v4376
        %v4378 = vcombine.low %v4353, %v4361
        %v4379 = vcombine.high %v4353, %v4361
        %v4381 = vunpack.c.l.s4 1934713408
        %v4382 = vunpack.c.0.s8 %v4381
        %v4383 = vlaneseq
        %v4384 = vshrl.u32 %v4383, 7
        %v4385 = vsub.s32 %v4382, %v4384
        %v4386 = vrot.slane %v4378, %v4385
        %v4388 = vunpack.c.l.s4 1934713408
        %v4389 = vunpack.c.0.s8 %v4388
        %v4390 = vlaneseq
        %v4391 = vshrl.u32 %v4390, 7
        %v4392 = vsub.s32 %v4389, %v4391
        %v4393 = vrot.slane %v4379, %v4392
        %v4394 = vcombine.low %v4370, %v4386
        %v4395 = vcombine.high %v4370, %v4386
        %v4396 = vcombine.low %v4377, %v4393
        %v4397 = vcombine.high %v4377, %v4393
        %4399 = vrot.lane.b32.xlu0 %v4395, 8
        %v4400 = vpop.permute.xlu0 %4399
        %4403 = vrot.lane.b32.xlu0 %v4396, 16
        %v4404 = vpop.permute.xlu0 %4403
        %4407 = vrot.lane.b32.xlu0 %v4397, 24
        %v4408 = vpop.permute.xlu0 %4407
        %v4410 = vsel %vm1427, %v4394, %v4400
        %v4411 = vsel %vm2540, %v4410, %v4404
        %v4412 = vsel %vm2542, %v4411, %v4408
        %v4413 = vpack.c.bf16 %v4412, %v2543
        %v4414 = vld [vmem:[%s522] sm:$0xf]
        %v4415 = vld [vmem:[%s522 + $0x4] sm:$0xf]
        %v4416 = vld [vmem:[%s522 + $0x8] sm:$0xf]
        %v4417 = vld [vmem:[%s522 + $0xc] sm:$0xf]
        %v4418 = vlaneseq
        %v4419 = vshrl.u32 %v4418, 7
        %v4420 = vsub.s32 3, %v4419
        %v4421 = vrot.slane %v577, %v4420
        %v4426 = vunpack.c.l.b16 %v4414
        %v4427 = vunpack.c.l.b16 %v4415
        %v4428 = vunpack.c.l.b16 %v4416
        %v4429 = vunpack.c.l.b16 %v4417
        %v4430 = vpack.c.b16 %v4427, %v4426
        %v4431 = vpack.c.b16 %v4429, %v4428
        %v4435 = vsel %vm600, %v4413, 0
        %4437 = vmatprep.subr.bf16.mxu0 0
        %4438 = vmatpush1.bf16.msra.mxu0 %v4430
        %4439 = vmatprep.subr.bf16.mxu0 0
        %4440 = vmatpush1.bf16.msra.mxu0 %v4431
        %4441 = vmatprep.subr.bf16.mxu0 0
        %4442 = vmatpush1.bf16.msra.mxu0 0
        %4443 = vmatprep.subr.bf16.mxu0 0
        %4444 = vmatpush1.bf16.msra.mxu0 0
        %4445 = vmatprep.subr.bf16.mxu0 0
        %4446 = vmatpush1.bf16.msra.mxu0 0
        %4447 = vmatprep.subr.bf16.mxu0 0
        %4448 = vmatpush1.bf16.msra.mxu0 0
        %4449 = vmatprep.subr.bf16.mxu0 0
        %4450 = vmatpush1.bf16.msra.mxu0 0
        %4451 = vmatprep.subr.bf16.mxu0 0
        %4452 = vmatpush1.bf16.msra.mxu0 0
        %4453 = vmatprep.subr.bf16.mxu0 0
        %4454 = vmatpush1.bf16.msra.mxu0 0
        %4455 = vmatprep.subr.bf16.mxu0 0
        %4456 = vmatpush1.bf16.msra.mxu0 0
        %4457 = vmatprep.subr.bf16.mxu0 0
        %4458 = vmatpush1.bf16.msra.mxu0 0
        %4459 = vmatprep.subr.bf16.mxu0 0
        %4460 = vmatpush1.bf16.msra.mxu0 0
        %4461 = vmatprep.subr.bf16.mxu0 0
        %4462 = vmatpush1.bf16.msra.mxu0 0
        %4463 = vmatprep.subr.bf16.mxu0 0
        %4464 = vmatpush1.bf16.msra.mxu0 0
        %4465 = vmatprep.subr.bf16.mxu0 0
        %4466 = vmatpush1.bf16.msra.mxu0 0
        %4467 = vmatprep.subr.bf16.mxu0 0
        %4468 = vmatpush1.bf16.msra.mxu0 0
        %4469 = vmatprep.mubr.bf16.mxu0 0
        %4470 = vmatmul.mubr.bf16.gmra.mrb[0].mxu0 %v4435
        %v4471 = vpop.f32.mrb[0].mxu0
        %v4472 = vadd.f32 %v4421, %v4471
        %v4473 = vpop.f32.mrb[0].mxu0
        %v4474 = vpop.f32.mrb[0].mxu0
        %v4475 = vadd.f32 %v4421, %v4474
        %v4476 = vpop.f32.mrb[0].mxu0
        %4477 = vdwg.mxu0
        %v4478 = vadd.f32 %v580, %v4472
        %v4479 = vadd.f32 %v581, %v4475
        %v4480 = vsel %vm600, %v4478, 0.0
        %4481 = vadd.xlane.f32.xlu0 %v4480
        %v4482 = vpop.xlane.xlu0 %4481
        %v4483 = vsel %vm600, %v4479, 0.0
        %4484 = vadd.xlane.f32.xlu0 %v4483
        %v4485 = vpop.xlane.xlu0 %4484
        %v4486 = vrcp.pop 32.0
        %v4487 = vmul.f32 %v4482, %v4486
        %v4488 = vmul.f32 %v4485, %v4486
        %v4489 = vsub.f32 %v4478, %v4487
        %v4490 = vsub.f32 %v4479, %v4488
        %v4491 = vmul.f32 %v4489, %v4489
        %v4492 = vmul.f32 %v4490, %v4490
        %v4493 = vsel %vm600, %v4491, 0.0
        %4494 = vadd.xlane.f32.xlu0 %v4493
        %v4495 = vpop.xlane.xlu0 %4494
        %v4496 = vsel %vm600, %v4492, 0.0
        %4497 = vadd.xlane.f32.xlu0 %v4496
        %v4498 = vpop.xlane.xlu0 %4497
        %v4499 = vmul.f32 %v4495, %v4486
        %v4500 = vmul.f32 %v4498, %v4486
        %v4501 = vadd.f32 %v4499, 1e-05
        %v4502 = vadd.f32 %v4500, 1e-05
        %v4503 = vrsqrt.pop %v4501
        %v4504 = vrsqrt.pop %v4502
        %v4505 = vmul.f32 %v4489, %v4503
        %v4506 = vmul.f32 %v4490, %v4504
        %v4507 = vlaneseq
        %v4508 = vshrl.u32 %v4507, 7
        %v4509 = vsub.s32 4, %v4508
        %v4510 = vrot.slane %v577, %v4509
        %v4511 = vmul.f32 %v4505, %v4510
        %v4512 = vmul.f32 %v4506, %v4510
        %v4513 = vlaneseq
        %v4514 = vshrl.u32 %v4513, 7
        %v4515 = vsub.s32 5, %v4514
        %v4516 = vrot.slane %v577, %v4515
        %v4517 = vadd.f32 %v4511, %v4516
        %v4518 = vadd.f32 %v4512, %v4516
        %v4519 = vpack.c.bf16 %v4518, %v4517
        %v4520 = vld [vmem:[%s527] sm:$0xf]
        %v4521 = vld [vmem:[%s527 + $0x4] sm:$0xf]
        %v4522 = vld [vmem:[%s527 + $0x8] sm:$0xf]
        %v4523 = vld [vmem:[%s527 + $0xc] sm:$0xf]
        %v4524 = vlaneseq
        %v4525 = vshrl.u32 %v4524, 7
        %v4526 = vsub.s32 6, %v4525
        %v4527 = vrot.slane %v577, %v4526
        %v4532 = vunpack.c.l.b16 %v4520
        %v4533 = vunpack.c.l.b16 %v4521
        %v4534 = vunpack.c.l.b16 %v4522
        %v4535 = vunpack.c.l.b16 %v4523
        %v4536 = vpack.c.b16 %v4533, %v4532
        %v4537 = vpack.c.b16 %v4535, %v4534
        %v4541 = vsel %vm600, %v4519, 0
        %4543 = vmatprep.subr.bf16.mxu0 0
        %4544 = vmatpush1.bf16.msra.mxu0 %v4536
        %4545 = vmatprep.subr.bf16.mxu0 0
        %4546 = vmatpush1.bf16.msra.mxu0 %v4537
        %4547 = vmatprep.subr.bf16.mxu0 0
        %4548 = vmatpush1.bf16.msra.mxu0 0
        %4549 = vmatprep.subr.bf16.mxu0 0
        %4550 = vmatpush1.bf16.msra.mxu0 0
        %4551 = vmatprep.subr.bf16.mxu0 0
        %4552 = vmatpush1.bf16.msra.mxu0 0
        %4553 = vmatprep.subr.bf16.mxu0 0
        %4554 = vmatpush1.bf16.msra.mxu0 0
        %4555 = vmatprep.subr.bf16.mxu0 0
        %4556 = vmatpush1.bf16.msra.mxu0 0
        %4557 = vmatprep.subr.bf16.mxu0 0
        %4558 = vmatpush1.bf16.msra.mxu0 0
        %4559 = vmatprep.subr.bf16.mxu0 0
        %4560 = vmatpush1.bf16.msra.mxu0 0
        %4561 = vmatprep.subr.bf16.mxu0 0
        %4562 = vmatpush1.bf16.msra.mxu0 0
        %4563 = vmatprep.subr.bf16.mxu0 0
        %4564 = vmatpush1.bf16.msra.mxu0 0
        %4565 = vmatprep.subr.bf16.mxu0 0
        %4566 = vmatpush1.bf16.msra.mxu0 0
        %4567 = vmatprep.subr.bf16.mxu0 0
        %4568 = vmatpush1.bf16.msra.mxu0 0
        %4569 = vmatprep.subr.bf16.mxu0 0
        %4570 = vmatpush1.bf16.msra.mxu0 0
        %4571 = vmatprep.subr.bf16.mxu0 0
        %4572 = vmatpush1.bf16.msra.mxu0 0
        %4573 = vmatprep.subr.bf16.mxu0 0
        %4574 = vmatpush1.bf16.msra.mxu0 0
        %4575 = vmatprep.mubr.bf16.mxu0 0
        %4576 = vmatmul.mubr.bf16.gmra.mrb[0].mxu0 %v4541
        %v4577 = vpop.f32.mrb[0].mxu0
        %v4578 = vadd.f32 %v4527, %v4577
        %v4579 = vpop.f32.mrb[0].mxu0
        %v4580 = vpop.f32.mrb[0].mxu0
        %v4581 = vadd.f32 %v4527, %v4580
        %v4582 = vpop.f32.mrb[0].mxu0
        %4583 = vdwg.mxu0
        %v4584 = vld [vmem:[%s532] sm:$0xf]
        %v4585 = vld [vmem:[%s532 + $0x4] sm:$0xf]
        %v4586 = vld [vmem:[%s532 + $0x8] sm:$0xf]
        %v4587 = vld [vmem:[%s532 + $0xc] sm:$0xf]
        %v4592 = vunpack.c.l.b16 %v4584
        %v4593 = vunpack.c.l.b16 %v4585
        %v4594 = vunpack.c.l.b16 %v4586
        %v4595 = vunpack.c.l.b16 %v4587
        %v4596 = vpack.c.b16 %v4593, %v4592
        %v4597 = vpack.c.b16 %v4595, %v4594
        %v4601 = vsel %vm600, %v582, 0
        %4603 = vmatprep.subr.bf16.mxu0 0
        %4604 = vmatpush1.bf16.msra.mxu0 %v4596
        %4605 = vmatprep.subr.bf16.mxu0 0
        %4606 = vmatpush1.bf16.msra.mxu0 %v4597
        %4607 = vmatprep.subr.bf16.mxu0 0
        %4608 = vmatpush1.bf16.msra.mxu0 0
        %4609 = vmatprep.subr.bf16.mxu0 0
        %4610 = vmatpush1.bf16.msra.mxu0 0
        %4611 = vmatprep.subr.bf16.mxu0 0
        %4612 = vmatpush1.bf16.msra.mxu0 0
        %4613 = vmatprep.subr.bf16.mxu0 0
        %4614 = vmatpush1.bf16.msra.mxu0 0
        %4615 = vmatprep.subr.bf16.mxu0 0
        %4616 = vmatpush1.bf16.msra.mxu0 0
        %4617 = vmatprep.subr.bf16.mxu0 0
        %4618 = vmatpush1.bf16.msra.mxu0 0
        %4619 = vmatprep.subr.bf16.mxu0 0
        %4620 = vmatpush1.bf16.msra.mxu0 0
        %4621 = vmatprep.subr.bf16.mxu0 0
        %4622 = vmatpush1.bf16.msra.mxu0 0
        %4623 = vmatprep.subr.bf16.mxu0 0
        %4624 = vmatpush1.bf16.msra.mxu0 0
        %4625 = vmatprep.subr.bf16.mxu0 0
        %4626 = vmatpush1.bf16.msra.mxu0 0
        %4627 = vmatprep.subr.bf16.mxu0 0
        %4628 = vmatpush1.bf16.msra.mxu0 0
        %4629 = vmatprep.subr.bf16.mxu0 0
        %4630 = vmatpush1.bf16.msra.mxu0 0
        %4631 = vmatprep.subr.bf16.mxu0 0
        %4632 = vmatpush1.bf16.msra.mxu0 0
        %4633 = vmatprep.subr.bf16.mxu0 0
        %4634 = vmatpush1.bf16.msra.mxu0 0
        %4635 = vmatprep.mubr.bf16.mxu0 0
        %4636 = vmatmul.mubr.bf16.gmra.mrb[0].mxu0 %v4601
        %v4637 = vpop.f32.mrb[0].mxu0
        %v4638 = vadd.f32 0.0, %v4637
        %v4639 = vpop.f32.mrb[0].mxu0
        %v4640 = vpop.f32.mrb[0].mxu0
        %v4641 = vadd.f32 0.0, %v4640
        %v4642 = vpop.f32.mrb[0].mxu0
        %4643 = vdwg.mxu0
        %v4644 = vlaneseq
        %v4645 = vshrl.u32 %v4644, 7
        %v4646 = vsub.s32 7, %v4645
        %v4647 = vrot.slane %v577, %v4646
        %v4648 = vadd.f32 %v4638, %v4647
        %v4649 = vadd.f32 %v4641, %v4647
        %v4650 = vlaneseq
        %v4651 = vshrl.u32 %v4650, 7
        %v4652 = vsub.s32 0, %v4651
        %v4653 = vrot.slane %v578, %v4652
        %4655 = vrot.lane.b32.xlu0 %v4653, 32
        %v4656 = vpop.permute.xlu0 %4655
        %v4658 = vadd.f32 %v4638, %v4656
        %v4659 = vadd.f32 %v4641, %v4656
        %4661 = vrot.lane.b32.xlu0 %v4578, 120
        %v4662 = vpop.permute.xlu0 %4661
        %4664 = vrot.lane.b32.xlu0 %v4578, 112
        %v4665 = vpop.permute.xlu0 %4664
        %4667 = vrot.lane.b32.xlu0 %v4578, 104
        %v4668 = vpop.permute.xlu0 %4667
        %v4670 = vcombine.low %v4578, %v4665
        %v4671 = vcombine.high %v4578, %v4665
        %v4673 = vunpack.c.l.s4 1983009808
        %v4674 = vunpack.c.0.s8 %v4673
        %v4675 = vlaneseq
        %v4676 = vshrl.u32 %v4675, 7
        %v4677 = vsub.s32 %v4674, %v4676
        %v4678 = vrot.slane %v4670, %v4677
        %v4680 = vunpack.c.l.s4 1983009808
        %v4681 = vunpack.c.0.s8 %v4680
        %v4682 = vlaneseq
        %v4683 = vshrl.u32 %v4682, 7
        %v4684 = vsub.s32 %v4681, %v4683
        %v4685 = vrot.slane %v4671, %v4684
        %v4686 = vcombine.low %v4662, %v4668
        %v4687 = vcombine.high %v4662, %v4668
        %v4689 = vunpack.c.l.s4 1983009808
        %v4690 = vunpack.c.0.s8 %v4689
        %v4691 = vlaneseq
        %v4692 = vshrl.u32 %v4691, 7
        %v4693 = vsub.s32 %v4690, %v4692
        %v4694 = vrot.slane %v4686, %v4693
        %v4696 = vunpack.c.l.s4 1983009808
        %v4697 = vunpack.c.0.s8 %v4696
        %v4698 = vlaneseq
        %v4699 = vshrl.u32 %v4698, 7
        %v4700 = vsub.s32 %v4697, %v4699
        %v4701 = vrot.slane %v4687, %v4700
        %v4702 = vcombine.low %v4678, %v4694
        %v4703 = vcombine.high %v4678, %v4694
        %v4705 = vunpack.c.l.s4 1934713408
        %v4706 = vunpack.c.0.s8 %v4705
        %v4707 = vlaneseq
        %v4708 = vshrl.u32 %v4707, 7
        %v4709 = vsub.s32 %v4706, %v4708
        %v4710 = vrot.slane %v4702, %v4709
        %v4712 = vunpack.c.l.s4 1934713408
        %v4713 = vunpack.c.0.s8 %v4712
        %v4714 = vlaneseq
        %v4715 = vshrl.u32 %v4714, 7
        %v4716 = vsub.s32 %v4713, %v4715
        %v4717 = vrot.slane %v4703, %v4716
        %v4718 = vcombine.low %v4685, %v4701
        %v4719 = vcombine.high %v4685, %v4701
        %v4721 = vunpack.c.l.s4 1934713408
        %v4722 = vunpack.c.0.s8 %v4721
        %v4723 = vlaneseq
        %v4724 = vshrl.u32 %v4723, 7
        %v4725 = vsub.s32 %v4722, %v4724
        %v4726 = vrot.slane %v4718, %v4725
        %v4728 = vunpack.c.l.s4 1934713408
        %v4729 = vunpack.c.0.s8 %v4728
        %v4730 = vlaneseq
        %v4731 = vshrl.u32 %v4730, 7
        %v4732 = vsub.s32 %v4729, %v4731
        %v4733 = vrot.slane %v4719, %v4732
        %v4734 = vcombine.high %v4710, 0.0
        %v4735 = vcombine.high %v4717, 0.0
        %v4736 = vcombine.high %v4726, 0.0
        %v4737 = vcombine.high %v4733, 0.0
        %v4738 = vpack.c.bf16 %v4710, %v4710
        %v4739 = vpack.c.bf16 %v4734, %v4734
        %v4740 = vpack.c.bf16 %v4717, %v4717
        %v4741 = vpack.c.bf16 %v4735, %v4735
        %v4742 = vpack.c.bf16 %v4726, %v4726
        %v4743 = vpack.c.bf16 %v4736, %v4736
        %v4744 = vpack.c.bf16 %v4733, %v4733
        %v4745 = vpack.c.bf16 %v4737, %v4737
        %4747 = vrot.lane.b32.xlu0 %v4648, 120
        %v4748 = vpop.permute.xlu0 %4747
        %4750 = vrot.lane.b32.xlu0 %v4648, 112
        %v4751 = vpop.permute.xlu0 %4750
        %4753 = vrot.lane.b32.xlu0 %v4648, 104
        %v4754 = vpop.permute.xlu0 %4753
        %v4756 = vcombine.low %v4648, %v4751
        %v4757 = vcombine.high %v4648, %v4751
        %v4759 = vunpack.c.l.s4 1983009808
        %v4760 = vunpack.c.0.s8 %v4759
        %v4761 = vlaneseq
        %v4762 = vshrl.u32 %v4761, 7
        %v4763 = vsub.s32 %v4760, %v4762
        %v4764 = vrot.slane %v4756, %v4763
        %v4766 = vunpack.c.l.s4 1983009808
        %v4767 = vunpack.c.0.s8 %v4766
        %v4768 = vlaneseq
        %v4769 = vshrl.u32 %v4768, 7
        %v4770 = vsub.s32 %v4767, %v4769
        %v4771 = vrot.slane %v4757, %v4770
        %v4772 = vcombine.low %v4748, %v4754
        %v4773 = vcombine.high %v4748, %v4754
        %v4775 = vunpack.c.l.s4 1983009808
        %v4776 = vunpack.c.0.s8 %v4775
        %v4777 = vlaneseq
        %v4778 = vshrl.u32 %v4777, 7
        %v4779 = vsub.s32 %v4776, %v4778
        %v4780 = vrot.slane %v4772, %v4779
        %v4782 = vunpack.c.l.s4 1983009808
        %v4783 = vunpack.c.0.s8 %v4782
        %v4784 = vlaneseq
        %v4785 = vshrl.u32 %v4784, 7
        %v4786 = vsub.s32 %v4783, %v4785
        %v4787 = vrot.slane %v4773, %v4786
        %v4788 = vcombine.low %v4764, %v4780
        %v4789 = vcombine.high %v4764, %v4780
        %v4791 = vunpack.c.l.s4 1934713408
        %v4792 = vunpack.c.0.s8 %v4791
        %v4793 = vlaneseq
        %v4794 = vshrl.u32 %v4793, 7
        %v4795 = vsub.s32 %v4792, %v4794
        %v4796 = vrot.slane %v4788, %v4795
        %v4798 = vunpack.c.l.s4 1934713408
        %v4799 = vunpack.c.0.s8 %v4798
        %v4800 = vlaneseq
        %v4801 = vshrl.u32 %v4800, 7
        %v4802 = vsub.s32 %v4799, %v4801
        %v4803 = vrot.slane %v4789, %v4802
        %v4804 = vcombine.low %v4771, %v4787
        %v4805 = vcombine.high %v4771, %v4787
        %v4807 = vunpack.c.l.s4 1934713408
        %v4808 = vunpack.c.0.s8 %v4807
        %v4809 = vlaneseq
        %v4810 = vshrl.u32 %v4809, 7
        %v4811 = vsub.s32 %v4808, %v4810
        %v4812 = vrot.slane %v4804, %v4811
        %v4814 = vunpack.c.l.s4 1934713408
        %v4815 = vunpack.c.0.s8 %v4814
        %v4816 = vlaneseq
        %v4817 = vshrl.u32 %v4816, 7
        %v4818 = vsub.s32 %v4815, %v4817
        %v4819 = vrot.slane %v4805, %v4818
        %v4820 = vcombine.high %v4796, 0.0
        %v4821 = vcombine.high %v4803, 0.0
        %v4822 = vcombine.high %v4812, 0.0
        %v4823 = vcombine.high %v4819, 0.0
        %v4824 = vpack.c.bf16 %v4796, %v4796
        %v4825 = vpack.c.bf16 %v4820, %v4820
        %v4826 = vpack.c.bf16 %v4803, %v4803
        %v4827 = vpack.c.bf16 %v4821, %v4821
        %v4828 = vpack.c.bf16 %v4812, %v4812
        %v4829 = vpack.c.bf16 %v4822, %v4822
        %v4830 = vpack.c.bf16 %v4819, %v4819
        %v4831 = vpack.c.bf16 %v4823, %v4823
        %4833 = vrot.lane.b32.xlu0 %v4658, 120
        %v4834 = vpop.permute.xlu0 %4833
        %4835 = vrot.lane.b32.xlu0 %v4658, 112
        %v4836 = vpop.permute.xlu0 %4835
        %4837 = vrot.lane.b32.xlu0 %v4658, 104
        %v4838 = vpop.permute.xlu0 %4837
        %4839 = vrot.lane.b32.xlu0 %v4658, 96
        %v4840 = vpop.permute.xlu0 %4839
        %4841 = vrot.lane.b32.xlu0 %v4834, 96
        %v4842 = vpop.permute.xlu0 %4841
        %4843 = vrot.lane.b32.xlu0 %v4836, 96
        %v4844 = vpop.permute.xlu0 %4843
        %4845 = vrot.lane.b32.xlu0 %v4838, 96
        %v4846 = vpop.permute.xlu0 %4845
        %v4851 = vcombine.low %v4840, %v4844
        %v4852 = vcombine.high %v4840, %v4844
        %v4854 = vunpack.c.l.s4 1983009808
        %v4855 = vunpack.c.0.s8 %v4854
        %v4856 = vlaneseq
        %v4857 = vshrl.u32 %v4856, 7
        %v4858 = vsub.s32 %v4855, %v4857
        %v4859 = vrot.slane %v4851, %v4858
        %v4861 = vunpack.c.l.s4 1983009808
        %v4862 = vunpack.c.0.s8 %v4861
        %v4863 = vlaneseq
        %v4864 = vshrl.u32 %v4863, 7
        %v4865 = vsub.s32 %v4862, %v4864
        %v4866 = vrot.slane %v4852, %v4865
        %v4867 = vcombine.low %v4842, %v4846
        %v4868 = vcombine.high %v4842, %v4846
        %v4870 = vunpack.c.l.s4 1983009808
        %v4871 = vunpack.c.0.s8 %v4870
        %v4872 = vlaneseq
        %v4873 = vshrl.u32 %v4872, 7
        %v4874 = vsub.s32 %v4871, %v4873
        %v4875 = vrot.slane %v4867, %v4874
        %v4877 = vunpack.c.l.s4 1983009808
        %v4878 = vunpack.c.0.s8 %v4877
        %v4879 = vlaneseq
        %v4880 = vshrl.u32 %v4879, 7
        %v4881 = vsub.s32 %v4878, %v4880
        %v4882 = vrot.slane %v4868, %v4881
        %v4883 = vcombine.low %v4859, %v4875
        %v4884 = vcombine.high %v4859, %v4875
        %v4886 = vunpack.c.l.s4 1934713408
        %v4887 = vunpack.c.0.s8 %v4886
        %v4888 = vlaneseq
        %v4889 = vshrl.u32 %v4888, 7
        %v4890 = vsub.s32 %v4887, %v4889
        %v4891 = vrot.slane %v4883, %v4890
        %v4893 = vunpack.c.l.s4 1934713408
        %v4894 = vunpack.c.0.s8 %v4893
        %v4895 = vlaneseq
        %v4896 = vshrl.u32 %v4895, 7
        %v4897 = vsub.s32 %v4894, %v4896
        %v4898 = vrot.slane %v4884, %v4897
        %v4899 = vcombine.low %v4866, %v4882
        %v4900 = vcombine.high %v4866, %v4882
        %v4902 = vunpack.c.l.s4 1934713408
        %v4903 = vunpack.c.0.s8 %v4902
        %v4904 = vlaneseq
        %v4905 = vshrl.u32 %v4904, 7
        %v4906 = vsub.s32 %v4903, %v4905
        %v4907 = vrot.slane %v4899, %v4906
        %v4909 = vunpack.c.l.s4 1934713408
        %v4910 = vunpack.c.0.s8 %v4909
        %v4911 = vlaneseq
        %v4912 = vshrl.u32 %v4911, 7
        %v4913 = vsub.s32 %v4910, %v4912
        %v4914 = vrot.slane %v4900, %v4913
        %v4915 = vcombine.high %v4891, 0.0
        %v4916 = vcombine.high %v4898, 0.0
        %v4917 = vcombine.high %v4907, 0.0
        %v4918 = vcombine.high %v4914, 0.0
        %v4919 = vpack.c.bf16 %v4891, %v4891
        %v4920 = vpack.c.bf16 %v4915, %v4915
        %v4921 = vpack.c.bf16 %v4898, %v4898
        %v4922 = vpack.c.bf16 %v4916, %v4916
        %v4923 = vpack.c.bf16 %v4907, %v4907
        %v4924 = vpack.c.bf16 %v4917, %v4917
        %v4925 = vpack.c.bf16 %v4914, %v4914
        %v4926 = vpack.c.bf16 %v4918, %v4918
        %v4927 = vcombine.low %v4738, %v4742
        %v4929 = vunpack.c.l.s4 1983009808
        %v4930 = vunpack.c.0.s8 %v4929
        %v4931 = vlaneseq
        %v4932 = vshrl.u32 %v4931, 7
        %v4933 = vsub.s32 %v4930, %v4932
        %v4934 = vrot.slane %v4927, %v4933
        %v4935 = vcombine.low %v4740, %v4744
        %v4937 = vunpack.c.l.s4 1983009808
        %v4938 = vunpack.c.0.s8 %v4937
        %v4939 = vlaneseq
        %v4940 = vshrl.u32 %v4939, 7
        %v4941 = vsub.s32 %v4938, %v4940
        %v4942 = vrot.slane %v4935, %v4941
        %v4943 = vcombine.low %v4934, %v4942
        %v4945 = vunpack.c.l.s4 1934713408
        %v4946 = vunpack.c.0.s8 %v4945
        %v4947 = vlaneseq
        %v4948 = vshrl.u32 %v4947, 7
        %v4949 = vsub.s32 %v4946, %v4948
        %v4950 = vrot.slane %v4943, %v4949
        %v4951 = vcombine.high %v4950, 0
        %v4952 = vcombine.low %v4739, %v4743
        %v4954 = vunpack.c.l.s4 1983009808
        %v4955 = vunpack.c.0.s8 %v4954
        %v4956 = vlaneseq
        %v4957 = vshrl.u32 %v4956, 7
        %v4958 = vsub.s32 %v4955, %v4957
        %v4959 = vrot.slane %v4952, %v4958
        %v4960 = vcombine.low %v4741, %v4745
        %v4962 = vunpack.c.l.s4 1983009808
        %v4963 = vunpack.c.0.s8 %v4962
        %v4964 = vlaneseq
        %v4965 = vshrl.u32 %v4964, 7
        %v4966 = vsub.s32 %v4963, %v4965
        %v4967 = vrot.slane %v4960, %v4966
        %v4968 = vcombine.low %v4959, %v4967
        %v4970 = vunpack.c.l.s4 1934713408
        %v4971 = vunpack.c.0.s8 %v4970
        %v4972 = vlaneseq
        %v4973 = vshrl.u32 %v4972, 7
        %v4974 = vsub.s32 %v4971, %v4973
        %v4975 = vrot.slane %v4968, %v4974
        %v4976 = vcombine.high %v4975, 0
        %v4979 = vpack.i.b16 %v4975, %v4950
        %v4980 = vshrl.u32 %v4950, 16
        %v4981 = vshrl.u32 %v4975, 16
        %v4982 = vpack.i.b16 %v4981, %v4980
        %v4985 = vpack.i.b16 %v4976, %v4951
        %v4986 = vshrl.u32 %v4951, 16
        %v4987 = vshrl.u32 %v4976, 16
        %v4988 = vpack.i.b16 %v4987, %v4986
        %4989 = vxpose.xlu0.c.b16.start [1/8] %v4824, 128
        %4990 = vxpose.xlu0.c.b16.cont [2/8] 0, 128
        %4991 = vxpose.xlu0.c.b16.cont [3/8] 0, 128
        %4992 = vxpose.xlu0.c.b16.cont [4/8] 0, 128
        %4993 = vxpose.xlu0.c.b16.cont [5/8] 0, 128
        %4994 = vxpose.xlu0.c.b16.cont [6/8] 0, 128
        %4995 = vxpose.xlu0.c.b16.cont [7/8] 0, 128
        %4996 = vxpose.xlu0.c.b16.end [8/8] 0, 128
        %v4997 = vpop.trf.xlu0
        %v4998 = vpop.trf.xlu0
        %v4999 = vpop.trf.xlu0
        %v5000 = vpop.trf.xlu0
        %v5001 = vpop.trf.xlu0
        %v5002 = vpop.trf.xlu0
        %v5003 = vpop.trf.xlu0
        %v5004 = vpop.trf.xlu0
        %5005 = vxpose.xlu0.c.b16.start [1/8] %v4825, 128
        %5006 = vxpose.xlu0.c.b16.cont [2/8] 0, 128
        %5007 = vxpose.xlu0.c.b16.cont [3/8] 0, 128
        %5008 = vxpose.xlu0.c.b16.cont [4/8] 0, 128
        %5009 = vxpose.xlu0.c.b16.cont [5/8] 0, 128
        %5010 = vxpose.xlu0.c.b16.cont [6/8] 0, 128
        %5011 = vxpose.xlu0.c.b16.cont [7/8] 0, 128
        %5012 = vxpose.xlu0.c.b16.end [8/8] 0, 128
        %v5013 = vpop.trf.xlu0
        %v5014 = vpop.trf.xlu0
        %v5015 = vpop.trf.xlu0
        %v5016 = vpop.trf.xlu0
        %v5017 = vpop.trf.xlu0
        %v5018 = vpop.trf.xlu0
        %v5019 = vpop.trf.xlu0
        %v5020 = vpop.trf.xlu0
        %5021 = vxpose.xlu0.c.b16.start [1/8] %v4826, 128
        %5022 = vxpose.xlu0.c.b16.cont [2/8] 0, 128
        %5023 = vxpose.xlu0.c.b16.cont [3/8] 0, 128
        %5024 = vxpose.xlu0.c.b16.cont [4/8] 0, 128
        %5025 = vxpose.xlu0.c.b16.cont [5/8] 0, 128
        %5026 = vxpose.xlu0.c.b16.cont [6/8] 0, 128
        %5027 = vxpose.xlu0.c.b16.cont [7/8] 0, 128
        %5028 = vxpose.xlu0.c.b16.end [8/8] 0, 128
        %v5029 = vpop.trf.xlu0
        %v5030 = vpop.trf.xlu0
        %v5031 = vpop.trf.xlu0
        %v5032 = vpop.trf.xlu0
        %v5033 = vpop.trf.xlu0
        %v5034 = vpop.trf.xlu0
        %v5035 = vpop.trf.xlu0
        %v5036 = vpop.trf.xlu0
        %5037 = vxpose.xlu0.c.b16.start [1/8] %v4827, 128
        %5038 = vxpose.xlu0.c.b16.cont [2/8] 0, 128
        %5039 = vxpose.xlu0.c.b16.cont [3/8] 0, 128
        %5040 = vxpose.xlu0.c.b16.cont [4/8] 0, 128
        %5041 = vxpose.xlu0.c.b16.cont [5/8] 0, 128
        %5042 = vxpose.xlu0.c.b16.cont [6/8] 0, 128
        %5043 = vxpose.xlu0.c.b16.cont [7/8] 0, 128
        %5044 = vxpose.xlu0.c.b16.end [8/8] 0, 128
        %v5045 = vpop.trf.xlu0
        %v5046 = vpop.trf.xlu0
        %v5047 = vpop.trf.xlu0
        %v5048 = vpop.trf.xlu0
        %v5049 = vpop.trf.xlu0
        %v5050 = vpop.trf.xlu0
        %v5051 = vpop.trf.xlu0
        %v5052 = vpop.trf.xlu0
        %5053 = vxpose.xlu0.c.b16.start [1/8] %v4828, 128
        %5054 = vxpose.xlu0.c.b16.cont [2/8] 0, 128
        %5055 = vxpose.xlu0.c.b16.cont [3/8] 0, 128
        %5056 = vxpose.xlu0.c.b16.cont [4/8] 0, 128
        %5057 = vxpose.xlu0.c.b16.cont [5/8] 0, 128
        %5058 = vxpose.xlu0.c.b16.cont [6/8] 0, 128
        %5059 = vxpose.xlu0.c.b16.cont [7/8] 0, 128
        %5060 = vxpose.xlu0.c.b16.end [8/8] 0, 128
        %v5061 = vpop.trf.xlu0
        %v5062 = vpop.trf.xlu0
        %v5063 = vpop.trf.xlu0
        %v5064 = vpop.trf.xlu0
        %v5065 = vpop.trf.xlu0
        %v5066 = vpop.trf.xlu0
        %v5067 = vpop.trf.xlu0
        %v5068 = vpop.trf.xlu0
        %5069 = vxpose.xlu0.c.b16.start [1/8] %v4829, 128
        %5070 = vxpose.xlu0.c.b16.cont [2/8] 0, 128
        %5071 = vxpose.xlu0.c.b16.cont [3/8] 0, 128
        %5072 = vxpose.xlu0.c.b16.cont [4/8] 0, 128
        %5073 = vxpose.xlu0.c.b16.cont [5/8] 0, 128
        %5074 = vxpose.xlu0.c.b16.cont [6/8] 0, 128
        %5075 = vxpose.xlu0.c.b16.cont [7/8] 0, 128
        %5076 = vxpose.xlu0.c.b16.end [8/8] 0, 128
        %v5077 = vpop.trf.xlu0
        %v5078 = vpop.trf.xlu0
        %v5079 = vpop.trf.xlu0
        %v5080 = vpop.trf.xlu0
        %v5081 = vpop.trf.xlu0
        %v5082 = vpop.trf.xlu0
        %v5083 = vpop.trf.xlu0
        %v5084 = vpop.trf.xlu0
        %5085 = vxpose.xlu0.c.b16.start [1/8] %v4830, 128
        %5086 = vxpose.xlu0.c.b16.cont [2/8] 0, 128
        %5087 = vxpose.xlu0.c.b16.cont [3/8] 0, 128
        %5088 = vxpose.xlu0.c.b16.cont [4/8] 0, 128
        %5089 = vxpose.xlu0.c.b16.cont [5/8] 0, 128
        %5090 = vxpose.xlu0.c.b16.cont [6/8] 0, 128
        %5091 = vxpose.xlu0.c.b16.cont [7/8] 0, 128
        %5092 = vxpose.xlu0.c.b16.end [8/8] 0, 128
        %v5093 = vpop.trf.xlu0
        %v5094 = vpop.trf.xlu0
        %v5095 = vpop.trf.xlu0
        %v5096 = vpop.trf.xlu0
        %v5097 = vpop.trf.xlu0
        %v5098 = vpop.trf.xlu0
        %v5099 = vpop.trf.xlu0
        %v5100 = vpop.trf.xlu0
        %5101 = vxpose.xlu0.c.b16.start [1/8] %v4831, 128
        %5102 = vxpose.xlu0.c.b16.cont [2/8] 0, 128
        %5103 = vxpose.xlu0.c.b16.cont [3/8] 0, 128
        %5104 = vxpose.xlu0.c.b16.cont [4/8] 0, 128
        %5105 = vxpose.xlu0.c.b16.cont [5/8] 0, 128
        %5106 = vxpose.xlu0.c.b16.cont [6/8] 0, 128
        %5107 = vxpose.xlu0.c.b16.cont [7/8] 0, 128
        %5108 = vxpose.xlu0.c.b16.end [8/8] 0, 128
        %v5109 = vpop.trf.xlu0
        %v5110 = vpop.trf.xlu0
        %v5111 = vpop.trf.xlu0
        %v5112 = vpop.trf.xlu0
        %v5113 = vpop.trf.xlu0
        %v5114 = vpop.trf.xlu0
        %v5115 = vpop.trf.xlu0
        %v5116 = vpop.trf.xlu0
        %v5117 = vcombine.low %v4997, %v5061
        %v5119 = vunpack.c.l.s4 1983009808
        %v5120 = vunpack.c.0.s8 %v5119
        %v5121 = vlaneseq
        %v5122 = vshrl.u32 %v5121, 7
        %v5123 = vsub.s32 %v5120, %v5122
        %v5124 = vrot.slane %v5117, %v5123
        %v5125 = vcombine.low %v5029, %v5093
        %v5127 = vunpack.c.l.s4 1983009808
        %v5128 = vunpack.c.0.s8 %v5127
        %v5129 = vlaneseq
        %v5130 = vshrl.u32 %v5129, 7
        %v5131 = vsub.s32 %v5128, %v5130
        %v5132 = vrot.slane %v5125, %v5131
        %v5133 = vcombine.low %v5124, %v5132
        %v5134 = vcombine.high %v5124, %v5132
        %v5136 = vunpack.c.l.s4 1934713408
        %v5137 = vunpack.c.0.s8 %v5136
        %v5138 = vlaneseq
        %v5139 = vshrl.u32 %v5138, 7
        %v5140 = vsub.s32 %v5137, %v5139
        %v5141 = vrot.slane %v5133, %v5140
        %v5143 = vunpack.c.l.s4 1934713408
        %v5144 = vunpack.c.0.s8 %v5143
        %v5145 = vlaneseq
        %v5146 = vshrl.u32 %v5145, 7
        %v5147 = vsub.s32 %v5144, %v5146
        %v5148 = vrot.slane %v5134, %v5147
        %v5149 = vcombine.high %v5141, 0
        %v5150 = vcombine.high %v5148, 0
        %v5151 = vcombine.low %v5013, %v5077
        %v5153 = vunpack.c.l.s4 1983009808
        %v5154 = vunpack.c.0.s8 %v5153
        %v5155 = vlaneseq
        %v5156 = vshrl.u32 %v5155, 7
        %v5157 = vsub.s32 %v5154, %v5156
        %v5158 = vrot.slane %v5151, %v5157
        %v5159 = vcombine.low %v5045, %v5109
        %v5161 = vunpack.c.l.s4 1983009808
        %v5162 = vunpack.c.0.s8 %v5161
        %v5163 = vlaneseq
        %v5164 = vshrl.u32 %v5163, 7
        %v5165 = vsub.s32 %v5162, %v5164
        %v5166 = vrot.slane %v5159, %v5165
        %v5167 = vcombine.low %v5158, %v5166
        %v5168 = vcombine.high %v5158, %v5166
        %v5170 = vunpack.c.l.s4 1934713408
        %v5171 = vunpack.c.0.s8 %v5170
        %v5172 = vlaneseq
        %v5173 = vshrl.u32 %v5172, 7
        %v5174 = vsub.s32 %v5171, %v5173
        %v5175 = vrot.slane %v5167, %v5174
        %v5177 = vunpack.c.l.s4 1934713408
        %v5178 = vunpack.c.0.s8 %v5177
        %v5179 = vlaneseq
        %v5180 = vshrl.u32 %v5179, 7
        %v5181 = vsub.s32 %v5178, %v5180
        %v5182 = vrot.slane %v5168, %v5181
        %v5183 = vcombine.high %v5175, 0
        %v5184 = vcombine.high %v5182, 0
        %v5187 = vpack.i.b16 %v5175, %v5141
        %v5189 = vshrl.u32 %v5141, 16
        %v5190 = vshrl.u32 %v5175, 16
        %v5191 = vpack.i.b16 %v5190, %v5189
        %v5195 = vpack.i.b16 %v5183, %v5149
        %v5197 = vshrl.u32 %v5149, 16
        %v5198 = vshrl.u32 %v5183, 16
        %v5199 = vpack.i.b16 %v5198, %v5197
        %v5203 = vpack.i.b16 %v5182, %v5148
        %v5205 = vshrl.u32 %v5148, 16
        %v5206 = vshrl.u32 %v5182, 16
        %v5207 = vpack.i.b16 %v5206, %v5205
        %v5211 = vpack.i.b16 %v5184, %v5150
        %v5213 = vshrl.u32 %v5150, 16
        %v5214 = vshrl.u32 %v5184, 16
        %v5215 = vpack.i.b16 %v5214, %v5213
        %5217 = vxpose.xlu0.c.b16.start [1/8] %v5187, 128
        %5218 = vxpose.xlu0.c.b16.cont [2/8] 0, 128
        %5219 = vxpose.xlu0.c.b16.cont [3/8] 0, 128
        %5220 = vxpose.xlu0.c.b16.cont [4/8] 0, 128
        %5221 = vxpose.xlu0.c.b16.cont [5/8] 0, 128
        %5222 = vxpose.xlu0.c.b16.cont [6/8] 0, 128
        %5223 = vxpose.xlu0.c.b16.cont [7/8] 0, 128
        %5224 = vxpose.xlu0.c.b16.end [8/8] 0, 128
        %v5225 = vpop.trf.xlu0
        %v5226 = vpop.trf.xlu0
        %v5227 = vpop.trf.xlu0
        %v5228 = vpop.trf.xlu0
        %v5229 = vpop.trf.xlu0
        %v5230 = vpop.trf.xlu0
        %v5231 = vpop.trf.xlu0
        %v5232 = vpop.trf.xlu0
        %5233 = vxpose.xlu0.c.b16.start [1/8] %v5191, 128
        %5234 = vxpose.xlu0.c.b16.cont [2/8] 0, 128
        %5235 = vxpose.xlu0.c.b16.cont [3/8] 0, 128
        %5236 = vxpose.xlu0.c.b16.cont [4/8] 0, 128
        %5237 = vxpose.xlu0.c.b16.cont [5/8] 0, 128
        %5238 = vxpose.xlu0.c.b16.cont [6/8] 0, 128
        %5239 = vxpose.xlu0.c.b16.cont [7/8] 0, 128
        %5240 = vxpose.xlu0.c.b16.end [8/8] 0, 128
        %v5241 = vpop.trf.xlu0
        %v5242 = vpop.trf.xlu0
        %v5243 = vpop.trf.xlu0
        %v5244 = vpop.trf.xlu0
        %v5245 = vpop.trf.xlu0
        %v5246 = vpop.trf.xlu0
        %v5247 = vpop.trf.xlu0
        %v5248 = vpop.trf.xlu0
        %5249 = vxpose.xlu0.c.b16.start [1/8] %v5195, 128
        %5250 = vxpose.xlu0.c.b16.cont [2/8] 0, 128
        %5251 = vxpose.xlu0.c.b16.cont [3/8] 0, 128
        %5252 = vxpose.xlu0.c.b16.cont [4/8] 0, 128
        %5253 = vxpose.xlu0.c.b16.cont [5/8] 0, 128
        %5254 = vxpose.xlu0.c.b16.cont [6/8] 0, 128
        %5255 = vxpose.xlu0.c.b16.cont [7/8] 0, 128
        %5256 = vxpose.xlu0.c.b16.end [8/8] 0, 128
        %v5257 = vpop.trf.xlu0
        %v5258 = vpop.trf.xlu0
        %v5259 = vpop.trf.xlu0
        %v5260 = vpop.trf.xlu0
        %v5261 = vpop.trf.xlu0
        %v5262 = vpop.trf.xlu0
        %v5263 = vpop.trf.xlu0
        %v5264 = vpop.trf.xlu0
        %5265 = vxpose.xlu0.c.b16.start [1/8] %v5199, 128
        %5266 = vxpose.xlu0.c.b16.cont [2/8] 0, 128
        %5267 = vxpose.xlu0.c.b16.cont [3/8] 0, 128
        %5268 = vxpose.xlu0.c.b16.cont [4/8] 0, 128
        %5269 = vxpose.xlu0.c.b16.cont [5/8] 0, 128
        %5270 = vxpose.xlu0.c.b16.cont [6/8] 0, 128
        %5271 = vxpose.xlu0.c.b16.cont [7/8] 0, 128
        %5272 = vxpose.xlu0.c.b16.end [8/8] 0, 128
        %v5273 = vpop.trf.xlu0
        %v5274 = vpop.trf.xlu0
        %v5275 = vpop.trf.xlu0
        %v5276 = vpop.trf.xlu0
        %v5277 = vpop.trf.xlu0
        %v5278 = vpop.trf.xlu0
        %v5279 = vpop.trf.xlu0
        %v5280 = vpop.trf.xlu0
        %5281 = vxpose.xlu0.c.b16.start [1/8] %v5203, 128
        %5282 = vxpose.xlu0.c.b16.cont [2/8] 0, 128
        %5283 = vxpose.xlu0.c.b16.cont [3/8] 0, 128
        %5284 = vxpose.xlu0.c.b16.cont [4/8] 0, 128
        %5285 = vxpose.xlu0.c.b16.cont [5/8] 0, 128
        %5286 = vxpose.xlu0.c.b16.cont [6/8] 0, 128
        %5287 = vxpose.xlu0.c.b16.cont [7/8] 0, 128
        %5288 = vxpose.xlu0.c.b16.end [8/8] 0, 128
        %v5289 = vpop.trf.xlu0
        %v5290 = vpop.trf.xlu0
        %v5291 = vpop.trf.xlu0
        %v5292 = vpop.trf.xlu0
        %v5293 = vpop.trf.xlu0
        %v5294 = vpop.trf.xlu0
        %v5295 = vpop.trf.xlu0
        %v5296 = vpop.trf.xlu0
        %5297 = vxpose.xlu0.c.b16.start [1/8] %v5207, 128
        %5298 = vxpose.xlu0.c.b16.cont [2/8] 0, 128
        %5299 = vxpose.xlu0.c.b16.cont [3/8] 0, 128
        %5300 = vxpose.xlu0.c.b16.cont [4/8] 0, 128
        %5301 = vxpose.xlu0.c.b16.cont [5/8] 0, 128
        %5302 = vxpose.xlu0.c.b16.cont [6/8] 0, 128
        %5303 = vxpose.xlu0.c.b16.cont [7/8] 0, 128
        %5304 = vxpose.xlu0.c.b16.end [8/8] 0, 128
        %v5305 = vpop.trf.xlu0
        %v5306 = vpop.trf.xlu0
        %v5307 = vpop.trf.xlu0
        %v5308 = vpop.trf.xlu0
        %v5309 = vpop.trf.xlu0
        %v5310 = vpop.trf.xlu0
        %v5311 = vpop.trf.xlu0
        %v5312 = vpop.trf.xlu0
        %5313 = vxpose.xlu0.c.b16.start [1/8] %v5211, 128
        %5314 = vxpose.xlu0.c.b16.cont [2/8] 0, 128
        %5315 = vxpose.xlu0.c.b16.cont [3/8] 0, 128
        %5316 = vxpose.xlu0.c.b16.cont [4/8] 0, 128
        %5317 = vxpose.xlu0.c.b16.cont [5/8] 0, 128
        %5318 = vxpose.xlu0.c.b16.cont [6/8] 0, 128
        %5319 = vxpose.xlu0.c.b16.cont [7/8] 0, 128
        %5320 = vxpose.xlu0.c.b16.end [8/8] 0, 128
        %v5321 = vpop.trf.xlu0
        %v5322 = vpop.trf.xlu0
        %v5323 = vpop.trf.xlu0
        %v5324 = vpop.trf.xlu0
        %v5325 = vpop.trf.xlu0
        %v5326 = vpop.trf.xlu0
        %v5327 = vpop.trf.xlu0
        %v5328 = vpop.trf.xlu0
        %5329 = vxpose.xlu0.c.b16.start [1/8] %v5215, 128
        %5330 = vxpose.xlu0.c.b16.cont [2/8] 0, 128
        %5331 = vxpose.xlu0.c.b16.cont [3/8] 0, 128
        %5332 = vxpose.xlu0.c.b16.cont [4/8] 0, 128
        %5333 = vxpose.xlu0.c.b16.cont [5/8] 0, 128
        %5334 = vxpose.xlu0.c.b16.cont [6/8] 0, 128
        %5335 = vxpose.xlu0.c.b16.cont [7/8] 0, 128
        %5336 = vxpose.xlu0.c.b16.end [8/8] 0, 128
        %v5337 = vpop.trf.xlu0
        %v5338 = vpop.trf.xlu0
        %v5339 = vpop.trf.xlu0
        %v5340 = vpop.trf.xlu0
        %v5341 = vpop.trf.xlu0
        %v5342 = vpop.trf.xlu0
        %v5343 = vpop.trf.xlu0
        %v5344 = vpop.trf.xlu0
        %v5345 = vcombine.low %v5225, %v5289
        %v5347 = vunpack.c.l.s4 1983009808
        %v5348 = vunpack.c.0.s8 %v5347
        %v5349 = vlaneseq
        %v5350 = vshrl.u32 %v5349, 7
        %v5351 = vsub.s32 %v5348, %v5350
        %v5352 = vrot.slane %v5345, %v5351
        %v5353 = vcombine.low %v5257, %v5321
        %v5355 = vunpack.c.l.s4 1983009808
        %v5356 = vunpack.c.0.s8 %v5355
        %v5357 = vlaneseq
        %v5358 = vshrl.u32 %v5357, 7
        %v5359 = vsub.s32 %v5356, %v5358
        %v5360 = vrot.slane %v5353, %v5359
        %v5361 = vcombine.low %v5352, %v5360
        %v5363 = vunpack.c.l.s4 1934713408
        %v5364 = vunpack.c.0.s8 %v5363
        %v5365 = vlaneseq
        %v5366 = vshrl.u32 %v5365, 7
        %v5367 = vsub.s32 %v5364, %v5366
        %v5368 = vrot.slane %v5361, %v5367
        %v5369 = vcombine.high %v5368, 0
        %v5370 = vcombine.low %v5241, %v5305
        %v5372 = vunpack.c.l.s4 1983009808
        %v5373 = vunpack.c.0.s8 %v5372
        %v5374 = vlaneseq
        %v5375 = vshrl.u32 %v5374, 7
        %v5376 = vsub.s32 %v5373, %v5375
        %v5377 = vrot.slane %v5370, %v5376
        %v5378 = vcombine.low %v5273, %v5337
        %v5380 = vunpack.c.l.s4 1983009808
        %v5381 = vunpack.c.0.s8 %v5380
        %v5382 = vlaneseq
        %v5383 = vshrl.u32 %v5382, 7
        %v5384 = vsub.s32 %v5381, %v5383
        %v5385 = vrot.slane %v5378, %v5384
        %v5386 = vcombine.low %v5377, %v5385
        %v5388 = vunpack.c.l.s4 1934713408
        %v5389 = vunpack.c.0.s8 %v5388
        %v5390 = vlaneseq
        %v5391 = vshrl.u32 %v5390, 7
        %v5392 = vsub.s32 %v5389, %v5391
        %v5393 = vrot.slane %v5386, %v5392
        %v5394 = vcombine.high %v5393, 0
        %v5397 = vpack.i.b16 %v5393, %v5368
        %v5398 = vshrl.u32 %v5368, 16
        %v5399 = vshrl.u32 %v5393, 16
        %v5400 = vpack.i.b16 %v5399, %v5398
        %v5403 = vpack.i.b16 %v5394, %v5369
        %v5404 = vshrl.u32 %v5369, 16
        %v5405 = vshrl.u32 %v5394, 16
        %v5406 = vpack.i.b16 %v5405, %v5404
        %v5408 = vsel %vm1427, %v4979, 0
        %v5411 = vsel %vm1431, %v5397, 0
        %5413 = vmatprep.subr.bf16.mxu0 0
        %5414 = vmatpush1.bf16.msra.mxu0 %v5411
        %5415 = vmatprep.subr.bf16.mxu0 0
        %5416 = vmatpush1.bf16.msra.mxu0 0
        %5417 = vmatprep.subr.bf16.mxu0 0
        %5418 = vmatpush1.bf16.msra.mxu0 0
        %5419 = vmatprep.subr.bf16.mxu0 0
        %5420 = vmatpush1.bf16.msra.mxu0 0
        %5421 = vmatprep.subr.bf16.mxu0 0
        %5422 = vmatpush1.bf16.msra.mxu0 0
        %5423 = vmatprep.subr.bf16.mxu0 0
        %5424 = vmatpush1.bf16.msra.mxu0 0
        %5425 = vmatprep.subr.bf16.mxu0 0
        %5426 = vmatpush1.bf16.msra.mxu0 0
        %5427 = vmatprep.subr.bf16.mxu0 0
        %5428 = vmatpush1.bf16.msra.mxu0 0
        %5429 = vmatprep.subr.bf16.mxu0 0
        %5430 = vmatpush1.bf16.msra.mxu0 0
        %5431 = vmatprep.subr.bf16.mxu0 0
        %5432 = vmatpush1.bf16.msra.mxu0 0
        %5433 = vmatprep.subr.bf16.mxu0 0
        %5434 = vmatpush1.bf16.msra.mxu0 0
        %5435 = vmatprep.subr.bf16.mxu0 0
        %5436 = vmatpush1.bf16.msra.mxu0 0
        %5437 = vmatprep.subr.bf16.mxu0 0
        %5438 = vmatpush1.bf16.msra.mxu0 0
        %5439 = vmatprep.subr.bf16.mxu0 0
        %5440 = vmatpush1.bf16.msra.mxu0 0
        %5441 = vmatprep.subr.bf16.mxu0 0
        %5442 = vmatpush1.bf16.msra.mxu0 0
        %5443 = vmatprep.subr.bf16.mxu0 0
        %5444 = vmatpush1.bf16.msra.mxu0 0
        %5445 = vmatprep.mubr.bf16.mxu0 0
        %5446 = vmatmul.mubr.bf16.gmra.mrb[0].mxu0 %v5408
        %v5447 = vpop.f32.mrb[0].mxu0
        %v5448 = vadd.f32 %v579, %v5447
        %v5449 = vpop.f32.mrb[0].mxu0
        %v5450 = vpop.f32.mrb[0].mxu0
        %v5451 = vpop.f32.mrb[0].mxu0
        %5452 = vdwg.mxu0
        %v5454 = vsel %vm1427, %v4982, 0
        %v5457 = vsel %vm1431, %v5400, 0
        %5459 = vmatprep.subr.bf16.mxu0 0
        %5460 = vmatpush1.bf16.msra.mxu0 %v5457
        %5461 = vmatprep.subr.bf16.mxu0 0
        %5462 = vmatpush1.bf16.msra.mxu0 0
        %5463 = vmatprep.subr.bf16.mxu0 0
        %5464 = vmatpush1.bf16.msra.mxu0 0
        %5465 = vmatprep.subr.bf16.mxu0 0
        %5466 = vmatpush1.bf16.msra.mxu0 0
        %5467 = vmatprep.subr.bf16.mxu0 0
        %5468 = vmatpush1.bf16.msra.mxu0 0
        %5469 = vmatprep.subr.bf16.mxu0 0
        %5470 = vmatpush1.bf16.msra.mxu0 0
        %5471 = vmatprep.subr.bf16.mxu0 0
        %5472 = vmatpush1.bf16.msra.mxu0 0
        %5473 = vmatprep.subr.bf16.mxu0 0
        %5474 = vmatpush1.bf16.msra.mxu0 0
        %5475 = vmatprep.subr.bf16.mxu0 0
        %5476 = vmatpush1.bf16.msra.mxu0 0
        %5477 = vmatprep.subr.bf16.mxu0 0
        %5478 = vmatpush1.bf16.msra.mxu0 0
        %5479 = vmatprep.subr.bf16.mxu0 0
        %5480 = vmatpush1.bf16.msra.mxu0 0
        %5481 = vmatprep.subr.bf16.mxu0 0
        %5482 = vmatpush1.bf16.msra.mxu0 0
        %5483 = vmatprep.subr.bf16.mxu0 0
        %5484 = vmatpush1.bf16.msra.mxu0 0
        %5485 = vmatprep.subr.bf16.mxu0 0
        %5486 = vmatpush1.bf16.msra.mxu0 0
        %5487 = vmatprep.subr.bf16.mxu0 0
        %5488 = vmatpush1.bf16.msra.mxu0 0
        %5489 = vmatprep.subr.bf16.mxu0 0
        %5490 = vmatpush1.bf16.msra.mxu0 0
        %5491 = vmatprep.mubr.bf16.mxu0 0
        %5492 = vmatmul.mubr.bf16.gmra.mrb[0].mxu0 %v5454
        %v5493 = vpop.f32.mrb[0].mxu0
        %v5494 = vadd.f32 %v579, %v5493
        %v5495 = vpop.f32.mrb[0].mxu0
        %v5496 = vpop.f32.mrb[0].mxu0
        %v5497 = vpop.f32.mrb[0].mxu0
        %5498 = vdwg.mxu0
        %v5500 = vsel %vm1427, %v4985, 0
        %v5503 = vsel %vm1431, %v5403, 0
        %5505 = vmatprep.subr.bf16.mxu0 0
        %5506 = vmatpush1.bf16.msra.mxu0 %v5503
        %5507 = vmatprep.subr.bf16.mxu0 0
        %5508 = vmatpush1.bf16.msra.mxu0 0
        %5509 = vmatprep.subr.bf16.mxu0 0
        %5510 = vmatpush1.bf16.msra.mxu0 0
        %5511 = vmatprep.subr.bf16.mxu0 0
        %5512 = vmatpush1.bf16.msra.mxu0 0
        %5513 = vmatprep.subr.bf16.mxu0 0
        %5514 = vmatpush1.bf16.msra.mxu0 0
        %5515 = vmatprep.subr.bf16.mxu0 0
        %5516 = vmatpush1.bf16.msra.mxu0 0
        %5517 = vmatprep.subr.bf16.mxu0 0
        %5518 = vmatpush1.bf16.msra.mxu0 0
        %5519 = vmatprep.subr.bf16.mxu0 0
        %5520 = vmatpush1.bf16.msra.mxu0 0
        %5521 = vmatprep.subr.bf16.mxu0 0
        %5522 = vmatpush1.bf16.msra.mxu0 0
        %5523 = vmatprep.subr.bf16.mxu0 0
        %5524 = vmatpush1.bf16.msra.mxu0 0
        %5525 = vmatprep.subr.bf16.mxu0 0
        %5526 = vmatpush1.bf16.msra.mxu0 0
        %5527 = vmatprep.subr.bf16.mxu0 0
        %5528 = vmatpush1.bf16.msra.mxu0 0
        %5529 = vmatprep.subr.bf16.mxu0 0
        %5530 = vmatpush1.bf16.msra.mxu0 0
        %5531 = vmatprep.subr.bf16.mxu0 0
        %5532 = vmatpush1.bf16.msra.mxu0 0
        %5533 = vmatprep.subr.bf16.mxu0 0
        %5534 = vmatpush1.bf16.msra.mxu0 0
        %5535 = vmatprep.subr.bf16.mxu0 0
        %5536 = vmatpush1.bf16.msra.mxu0 0
        %5537 = vmatprep.mubr.bf16.mxu0 0
        %5538 = vmatmul.mubr.bf16.gmra.mrb[0].mxu0 %v5500
        %v5539 = vpop.f32.mrb[0].mxu0
        %v5540 = vadd.f32 %v579, %v5539
        %v5541 = vpop.f32.mrb[0].mxu0
        %v5542 = vpop.f32.mrb[0].mxu0
        %v5543 = vpop.f32.mrb[0].mxu0
        %5544 = vdwg.mxu0
        %v5546 = vsel %vm1427, %v4988, 0
        %v5549 = vsel %vm1431, %v5406, 0
        %5551 = vmatprep.subr.bf16.mxu0 0
        %5552 = vmatpush1.bf16.msra.mxu0 %v5549
        %5553 = vmatprep.subr.bf16.mxu0 0
        %5554 = vmatpush1.bf16.msra.mxu0 0
        %5555 = vmatprep.subr.bf16.mxu0 0
        %5556 = vmatpush1.bf16.msra.mxu0 0
        %5557 = vmatprep.subr.bf16.mxu0 0
        %5558 = vmatpush1.bf16.msra.mxu0 0
        %5559 = vmatprep.subr.bf16.mxu0 0
        %5560 = vmatpush1.bf16.msra.mxu0 0
        %5561 = vmatprep.subr.bf16.mxu0 0
        %5562 = vmatpush1.bf16.msra.mxu0 0
        %5563 = vmatprep.subr.bf16.mxu0 0
        %5564 = vmatpush1.bf16.msra.mxu0 0
        %5565 = vmatprep.subr.bf16.mxu0 0
        %5566 = vmatpush1.bf16.msra.mxu0 0
        %5567 = vmatprep.subr.bf16.mxu0 0
        %5568 = vmatpush1.bf16.msra.mxu0 0
        %5569 = vmatprep.subr.bf16.mxu0 0
        %5570 = vmatpush1.bf16.msra.mxu0 0
        %5571 = vmatprep.subr.bf16.mxu0 0
        %5572 = vmatpush1.bf16.msra.mxu0 0
        %5573 = vmatprep.subr.bf16.mxu0 0
        %5574 = vmatpush1.bf16.msra.mxu0 0
        %5575 = vmatprep.subr.bf16.mxu0 0
        %5576 = vmatpush1.bf16.msra.mxu0 0
        %5577 = vmatprep.subr.bf16.mxu0 0
        %5578 = vmatpush1.bf16.msra.mxu0 0
        %5579 = vmatprep.subr.bf16.mxu0 0
        %5580 = vmatpush1.bf16.msra.mxu0 0
        %5581 = vmatprep.subr.bf16.mxu0 0
        %5582 = vmatpush1.bf16.msra.mxu0 0
        %5583 = vmatprep.mubr.bf16.mxu0 0
        %5584 = vmatmul.mubr.bf16.gmra.mrb[0].mxu0 %v5546
        %v5585 = vpop.f32.mrb[0].mxu0
        %v5586 = vadd.f32 %v579, %v5585
        %v5587 = vpop.f32.mrb[0].mxu0
        %v5588 = vpop.f32.mrb[0].mxu0
        %v5589 = vpop.f32.mrb[0].mxu0
        %5590 = vdwg.mxu0
        %v5591 = vsel %vm1427, %v5448, -inf
        %5592 = vmax.xlane.f32.xlu0 %v5591
        %v5593 = vpop.xlane.xlu0 %5592
        %v5594 = vsel %vm1427, %v5494, -inf
        %5595 = vmax.xlane.f32.xlu0 %v5594
        %v5596 = vpop.xlane.xlu0 %5595
        %v5597 = vsel %vm1427, %v5540, -inf
        %5598 = vmax.xlane.f32.xlu0 %v5597
        %v5599 = vpop.xlane.xlu0 %5598
        %v5600 = vsel %vm1427, %v5586, -inf
        %5601 = vmax.xlane.f32.xlu0 %v5600
        %v5602 = vpop.xlane.xlu0 %5601
        %v5603 = vsub.f32 %v5448, %v5593
        %v5604 = vsub.f32 %v5494, %v5596
        %v5605 = vsub.f32 %v5540, %v5599
        %v5606 = vsub.f32 %v5586, %v5602
        %v5607 = vmul.f32 %v5603, 1.442695
        %v5608 = vpow.pop %v5607
        %v5609 = vmul.f32 %v5604, 1.442695
        %v5610 = vpow.pop %v5609
        %v5611 = vmul.f32 %v5605, 1.442695
        %v5612 = vpow.pop %v5611
        %v5613 = vmul.f32 %v5606, 1.442695
        %v5614 = vpow.pop %v5613
        %v5615 = vsel %vm1427, %v5608, 0.0
        %5616 = vadd.xlane.f32.xlu0 %v5615
        %v5617 = vpop.xlane.xlu0 %5616
        %v5618 = vsel %vm1427, %v5610, 0.0
        %5619 = vadd.xlane.f32.xlu0 %v5618
        %v5620 = vpop.xlane.xlu0 %5619
        %v5621 = vsel %vm1427, %v5612, 0.0
        %5622 = vadd.xlane.f32.xlu0 %v5621
        %v5623 = vpop.xlane.xlu0 %5622
        %v5624 = vsel %vm1427, %v5614, 0.0
        %5625 = vadd.xlane.f32.xlu0 %v5624
        %v5626 = vpop.xlane.xlu0 %5625
        %v5627 = vrcp.pop %v5617
        %v5628 = vrcp.pop %v5620
        %v5629 = vrcp.pop %v5623
        %v5630 = vrcp.pop %v5626
        %v5631 = vmul.f32 %v5608, %v5627
        %v5632 = vmul.f32 %v5610, %v5628
        %v5633 = vmul.f32 %v5612, %v5629
        %v5634 = vmul.f32 %v5614, %v5630
        %v5635 = vpack.c.bf16 %v5631, %v5631
        %v5636 = vpack.c.bf16 %v5632, %v5632
        %v5637 = vpack.c.bf16 %v5633, %v5633
        %v5638 = vpack.c.bf16 %v5634, %v5634
        %5639 = vxpose.xlu0.c.b16.start [1/8] %v4919, 128
        %5640 = vxpose.xlu0.c.b16.cont [2/8] 0, 128
        %5641 = vxpose.xlu0.c.b16.cont [3/8] 0, 128
        %5642 = vxpose.xlu0.c.b16.cont [4/8] 0, 128
        %5643 = vxpose.xlu0.c.b16.cont [5/8] 0, 128
        %5644 = vxpose.xlu0.c.b16.cont [6/8] 0, 128
        %5645 = vxpose.xlu0.c.b16.cont [7/8] 0, 128
        %5646 = vxpose.xlu0.c.b16.end [8/8] 0, 128
        %v5647 = vpop.trf.xlu0
        %v5648 = vpop.trf.xlu0
        %v5649 = vpop.trf.xlu0
        %v5650 = vpop.trf.xlu0
        %v5651 = vpop.trf.xlu0
        %v5652 = vpop.trf.xlu0
        %v5653 = vpop.trf.xlu0
        %v5654 = vpop.trf.xlu0
        %5655 = vxpose.xlu0.c.b16.start [1/8] %v4920, 128
        %5656 = vxpose.xlu0.c.b16.cont [2/8] 0, 128
        %5657 = vxpose.xlu0.c.b16.cont [3/8] 0, 128
        %5658 = vxpose.xlu0.c.b16.cont [4/8] 0, 128
        %5659 = vxpose.xlu0.c.b16.cont [5/8] 0, 128
        %5660 = vxpose.xlu0.c.b16.cont [6/8] 0, 128
        %5661 = vxpose.xlu0.c.b16.cont [7/8] 0, 128
        %5662 = vxpose.xlu0.c.b16.end [8/8] 0, 128
        %v5663 = vpop.trf.xlu0
        %v5664 = vpop.trf.xlu0
        %v5665 = vpop.trf.xlu0
        %v5666 = vpop.trf.xlu0
        %v5667 = vpop.trf.xlu0
        %v5668 = vpop.trf.xlu0
        %v5669 = vpop.trf.xlu0
        %v5670 = vpop.trf.xlu0
        %5671 = vxpose.xlu0.c.b16.start [1/8] %v4921, 128
        %5672 = vxpose.xlu0.c.b16.cont [2/8] 0, 128
        %5673 = vxpose.xlu0.c.b16.cont [3/8] 0, 128
        %5674 = vxpose.xlu0.c.b16.cont [4/8] 0, 128
        %5675 = vxpose.xlu0.c.b16.cont [5/8] 0, 128
        %5676 = vxpose.xlu0.c.b16.cont [6/8] 0, 128
        %5677 = vxpose.xlu0.c.b16.cont [7/8] 0, 128
        %5678 = vxpose.xlu0.c.b16.end [8/8] 0, 128
        %v5679 = vpop.trf.xlu0
        %v5680 = vpop.trf.xlu0
        %v5681 = vpop.trf.xlu0
        %v5682 = vpop.trf.xlu0
        %v5683 = vpop.trf.xlu0
        %v5684 = vpop.trf.xlu0
        %v5685 = vpop.trf.xlu0
        %v5686 = vpop.trf.xlu0
        %5687 = vxpose.xlu0.c.b16.start [1/8] %v4922, 128
        %5688 = vxpose.xlu0.c.b16.cont [2/8] 0, 128
        %5689 = vxpose.xlu0.c.b16.cont [3/8] 0, 128
        %5690 = vxpose.xlu0.c.b16.cont [4/8] 0, 128
        %5691 = vxpose.xlu0.c.b16.cont [5/8] 0, 128
        %5692 = vxpose.xlu0.c.b16.cont [6/8] 0, 128
        %5693 = vxpose.xlu0.c.b16.cont [7/8] 0, 128
        %5694 = vxpose.xlu0.c.b16.end [8/8] 0, 128
        %v5695 = vpop.trf.xlu0
        %v5696 = vpop.trf.xlu0
        %v5697 = vpop.trf.xlu0
        %v5698 = vpop.trf.xlu0
        %v5699 = vpop.trf.xlu0
        %v5700 = vpop.trf.xlu0
        %v5701 = vpop.trf.xlu0
        %v5702 = vpop.trf.xlu0
        %5703 = vxpose.xlu0.c.b16.start [1/8] %v4923, 128
        %5704 = vxpose.xlu0.c.b16.cont [2/8] 0, 128
        %5705 = vxpose.xlu0.c.b16.cont [3/8] 0, 128
        %5706 = vxpose.xlu0.c.b16.cont [4/8] 0, 128
        %5707 = vxpose.xlu0.c.b16.cont [5/8] 0, 128
        %5708 = vxpose.xlu0.c.b16.cont [6/8] 0, 128
        %5709 = vxpose.xlu0.c.b16.cont [7/8] 0, 128
        %5710 = vxpose.xlu0.c.b16.end [8/8] 0, 128
        %v5711 = vpop.trf.xlu0
        %v5712 = vpop.trf.xlu0
        %v5713 = vpop.trf.xlu0
        %v5714 = vpop.trf.xlu0
        %v5715 = vpop.trf.xlu0
        %v5716 = vpop.trf.xlu0
        %v5717 = vpop.trf.xlu0
        %v5718 = vpop.trf.xlu0
        %5719 = vxpose.xlu0.c.b16.start [1/8] %v4924, 128
        %5720 = vxpose.xlu0.c.b16.cont [2/8] 0, 128
        %5721 = vxpose.xlu0.c.b16.cont [3/8] 0, 128
        %5722 = vxpose.xlu0.c.b16.cont [4/8] 0, 128
        %5723 = vxpose.xlu0.c.b16.cont [5/8] 0, 128
        %5724 = vxpose.xlu0.c.b16.cont [6/8] 0, 128
        %5725 = vxpose.xlu0.c.b16.cont [7/8] 0, 128
        %5726 = vxpose.xlu0.c.b16.end [8/8] 0, 128
        %v5727 = vpop.trf.xlu0
        %v5728 = vpop.trf.xlu0
        %v5729 = vpop.trf.xlu0
        %v5730 = vpop.trf.xlu0
        %v5731 = vpop.trf.xlu0
        %v5732 = vpop.trf.xlu0
        %v5733 = vpop.trf.xlu0
        %v5734 = vpop.trf.xlu0
        %5735 = vxpose.xlu0.c.b16.start [1/8] %v4925, 128
        %5736 = vxpose.xlu0.c.b16.cont [2/8] 0, 128
        %5737 = vxpose.xlu0.c.b16.cont [3/8] 0, 128
        %5738 = vxpose.xlu0.c.b16.cont [4/8] 0, 128
        %5739 = vxpose.xlu0.c.b16.cont [5/8] 0, 128
        %5740 = vxpose.xlu0.c.b16.cont [6/8] 0, 128
        %5741 = vxpose.xlu0.c.b16.cont [7/8] 0, 128
        %5742 = vxpose.xlu0.c.b16.end [8/8] 0, 128
        %v5743 = vpop.trf.xlu0
        %v5744 = vpop.trf.xlu0
        %v5745 = vpop.trf.xlu0
        %v5746 = vpop.trf.xlu0
        %v5747 = vpop.trf.xlu0
        %v5748 = vpop.trf.xlu0
        %v5749 = vpop.trf.xlu0
        %v5750 = vpop.trf.xlu0
        %5751 = vxpose.xlu0.c.b16.start [1/8] %v4926, 128
        %5752 = vxpose.xlu0.c.b16.cont [2/8] 0, 128
        %5753 = vxpose.xlu0.c.b16.cont [3/8] 0, 128
        %5754 = vxpose.xlu0.c.b16.cont [4/8] 0, 128
        %5755 = vxpose.xlu0.c.b16.cont [5/8] 0, 128
        %5756 = vxpose.xlu0.c.b16.cont [6/8] 0, 128
        %5757 = vxpose.xlu0.c.b16.cont [7/8] 0, 128
        %5758 = vxpose.xlu0.c.b16.end [8/8] 0, 128
        %v5759 = vpop.trf.xlu0
        %v5760 = vpop.trf.xlu0
        %v5761 = vpop.trf.xlu0
        %v5762 = vpop.trf.xlu0
        %v5763 = vpop.trf.xlu0
        %v5764 = vpop.trf.xlu0
        %v5765 = vpop.trf.xlu0
        %v5766 = vpop.trf.xlu0
        %v5767 = vcombine.low %v5647, %v5711
        %v5769 = vunpack.c.l.s4 1983009808
        %v5770 = vunpack.c.0.s8 %v5769
        %v5771 = vlaneseq
        %v5772 = vshrl.u32 %v5771, 7
        %v5773 = vsub.s32 %v5770, %v5772
        %v5774 = vrot.slane %v5767, %v5773
        %v5775 = vcombine.low %v5679, %v5743
        %v5777 = vunpack.c.l.s4 1983009808
        %v5778 = vunpack.c.0.s8 %v5777
        %v5779 = vlaneseq
        %v5780 = vshrl.u32 %v5779, 7
        %v5781 = vsub.s32 %v5778, %v5780
        %v5782 = vrot.slane %v5775, %v5781
        %v5783 = vcombine.low %v5774, %v5782
        %v5784 = vcombine.high %v5774, %v5782
        %v5786 = vunpack.c.l.s4 1934713408
        %v5787 = vunpack.c.0.s8 %v5786
        %v5788 = vlaneseq
        %v5789 = vshrl.u32 %v5788, 7
        %v5790 = vsub.s32 %v5787, %v5789
        %v5791 = vrot.slane %v5783, %v5790
        %v5793 = vunpack.c.l.s4 1934713408
        %v5794 = vunpack.c.0.s8 %v5793
        %v5795 = vlaneseq
        %v5796 = vshrl.u32 %v5795, 7
        %v5797 = vsub.s32 %v5794, %v5796
        %v5798 = vrot.slane %v5784, %v5797
        %v5799 = vcombine.high %v5791, 0
        %v5800 = vcombine.high %v5798, 0
        %v5801 = vcombine.low %v5663, %v5727
        %v5803 = vunpack.c.l.s4 1983009808
        %v5804 = vunpack.c.0.s8 %v5803
        %v5805 = vlaneseq
        %v5806 = vshrl.u32 %v5805, 7
        %v5807 = vsub.s32 %v5804, %v5806
        %v5808 = vrot.slane %v5801, %v5807
        %v5809 = vcombine.low %v5695, %v5759
        %v5811 = vunpack.c.l.s4 1983009808
        %v5812 = vunpack.c.0.s8 %v5811
        %v5813 = vlaneseq
        %v5814 = vshrl.u32 %v5813, 7
        %v5815 = vsub.s32 %v5812, %v5814
        %v5816 = vrot.slane %v5809, %v5815
        %v5817 = vcombine.low %v5808, %v5816
        %v5818 = vcombine.high %v5808, %v5816
        %v5820 = vunpack.c.l.s4 1934713408
        %v5821 = vunpack.c.0.s8 %v5820
        %v5822 = vlaneseq
        %v5823 = vshrl.u32 %v5822, 7
        %v5824 = vsub.s32 %v5821, %v5823
        %v5825 = vrot.slane %v5817, %v5824
        %v5827 = vunpack.c.l.s4 1934713408
        %v5828 = vunpack.c.0.s8 %v5827
        %v5829 = vlaneseq
        %v5830 = vshrl.u32 %v5829, 7
        %v5831 = vsub.s32 %v5828, %v5830
        %v5832 = vrot.slane %v5818, %v5831
        %v5833 = vcombine.high %v5825, 0
        %v5834 = vcombine.high %v5832, 0
        %v5837 = vpack.i.b16 %v5825, %v5791
        %v5839 = vshrl.u32 %v5791, 16
        %v5840 = vshrl.u32 %v5825, 16
        %v5841 = vpack.i.b16 %v5840, %v5839
        %v5845 = vpack.i.b16 %v5833, %v5799
        %v5847 = vshrl.u32 %v5799, 16
        %v5848 = vshrl.u32 %v5833, 16
        %v5849 = vpack.i.b16 %v5848, %v5847
        %v5853 = vpack.i.b16 %v5832, %v5798
        %v5855 = vshrl.u32 %v5798, 16
        %v5856 = vshrl.u32 %v5832, 16
        %v5857 = vpack.i.b16 %v5856, %v5855
        %v5861 = vpack.i.b16 %v5834, %v5800
        %v5863 = vshrl.u32 %v5800, 16
        %v5864 = vshrl.u32 %v5834, 16
        %v5865 = vpack.i.b16 %v5864, %v5863
        %5867 = vxpose.xlu0.c.b16.start [1/8] %v5837, 128
        %5868 = vxpose.xlu0.c.b16.cont [2/8] 0, 128
        %5869 = vxpose.xlu0.c.b16.cont [3/8] 0, 128
        %5870 = vxpose.xlu0.c.b16.cont [4/8] 0, 128
        %5871 = vxpose.xlu0.c.b16.cont [5/8] 0, 128
        %5872 = vxpose.xlu0.c.b16.cont [6/8] 0, 128
        %5873 = vxpose.xlu0.c.b16.cont [7/8] 0, 128
        %5874 = vxpose.xlu0.c.b16.end [8/8] 0, 128
        %v5875 = vpop.trf.xlu0
        %v5876 = vpop.trf.xlu0
        %v5877 = vpop.trf.xlu0
        %v5878 = vpop.trf.xlu0
        %v5879 = vpop.trf.xlu0
        %v5880 = vpop.trf.xlu0
        %v5881 = vpop.trf.xlu0
        %v5882 = vpop.trf.xlu0
        %5883 = vxpose.xlu0.c.b16.start [1/8] %v5841, 128
        %5884 = vxpose.xlu0.c.b16.cont [2/8] 0, 128
        %5885 = vxpose.xlu0.c.b16.cont [3/8] 0, 128
        %5886 = vxpose.xlu0.c.b16.cont [4/8] 0, 128
        %5887 = vxpose.xlu0.c.b16.cont [5/8] 0, 128
        %5888 = vxpose.xlu0.c.b16.cont [6/8] 0, 128
        %5889 = vxpose.xlu0.c.b16.cont [7/8] 0, 128
        %5890 = vxpose.xlu0.c.b16.end [8/8] 0, 128
        %v5891 = vpop.trf.xlu0
        %v5892 = vpop.trf.xlu0
        %v5893 = vpop.trf.xlu0
        %v5894 = vpop.trf.xlu0
        %v5895 = vpop.trf.xlu0
        %v5896 = vpop.trf.xlu0
        %v5897 = vpop.trf.xlu0
        %v5898 = vpop.trf.xlu0
        %5899 = vxpose.xlu0.c.b16.start [1/8] %v5845, 128
        %5900 = vxpose.xlu0.c.b16.cont [2/8] 0, 128
        %5901 = vxpose.xlu0.c.b16.cont [3/8] 0, 128
        %5902 = vxpose.xlu0.c.b16.cont [4/8] 0, 128
        %5903 = vxpose.xlu0.c.b16.cont [5/8] 0, 128
        %5904 = vxpose.xlu0.c.b16.cont [6/8] 0, 128
        %5905 = vxpose.xlu0.c.b16.cont [7/8] 0, 128
        %5906 = vxpose.xlu0.c.b16.end [8/8] 0, 128
        %v5907 = vpop.trf.xlu0
        %v5908 = vpop.trf.xlu0
        %v5909 = vpop.trf.xlu0
        %v5910 = vpop.trf.xlu0
        %v5911 = vpop.trf.xlu0
        %v5912 = vpop.trf.xlu0
        %v5913 = vpop.trf.xlu0
        %v5914 = vpop.trf.xlu0
        %5915 = vxpose.xlu0.c.b16.start [1/8] %v5849, 128
        %5916 = vxpose.xlu0.c.b16.cont [2/8] 0, 128
        %5917 = vxpose.xlu0.c.b16.cont [3/8] 0, 128
        %5918 = vxpose.xlu0.c.b16.cont [4/8] 0, 128
        %5919 = vxpose.xlu0.c.b16.cont [5/8] 0, 128
        %5920 = vxpose.xlu0.c.b16.cont [6/8] 0, 128
        %5921 = vxpose.xlu0.c.b16.cont [7/8] 0, 128
        %5922 = vxpose.xlu0.c.b16.end [8/8] 0, 128
        %v5923 = vpop.trf.xlu0
        %v5924 = vpop.trf.xlu0
        %v5925 = vpop.trf.xlu0
        %v5926 = vpop.trf.xlu0
        %v5927 = vpop.trf.xlu0
        %v5928 = vpop.trf.xlu0
        %v5929 = vpop.trf.xlu0
        %v5930 = vpop.trf.xlu0
        %5931 = vxpose.xlu0.c.b16.start [1/8] %v5853, 128
        %5932 = vxpose.xlu0.c.b16.cont [2/8] 0, 128
        %5933 = vxpose.xlu0.c.b16.cont [3/8] 0, 128
        %5934 = vxpose.xlu0.c.b16.cont [4/8] 0, 128
        %5935 = vxpose.xlu0.c.b16.cont [5/8] 0, 128
        %5936 = vxpose.xlu0.c.b16.cont [6/8] 0, 128
        %5937 = vxpose.xlu0.c.b16.cont [7/8] 0, 128
        %5938 = vxpose.xlu0.c.b16.end [8/8] 0, 128
        %v5939 = vpop.trf.xlu0
        %v5940 = vpop.trf.xlu0
        %v5941 = vpop.trf.xlu0
        %v5942 = vpop.trf.xlu0
        %v5943 = vpop.trf.xlu0
        %v5944 = vpop.trf.xlu0
        %v5945 = vpop.trf.xlu0
        %v5946 = vpop.trf.xlu0
        %5947 = vxpose.xlu0.c.b16.start [1/8] %v5857, 128
        %5948 = vxpose.xlu0.c.b16.cont [2/8] 0, 128
        %5949 = vxpose.xlu0.c.b16.cont [3/8] 0, 128
        %5950 = vxpose.xlu0.c.b16.cont [4/8] 0, 128
        %5951 = vxpose.xlu0.c.b16.cont [5/8] 0, 128
        %5952 = vxpose.xlu0.c.b16.cont [6/8] 0, 128
        %5953 = vxpose.xlu0.c.b16.cont [7/8] 0, 128
        %5954 = vxpose.xlu0.c.b16.end [8/8] 0, 128
        %v5955 = vpop.trf.xlu0
        %v5956 = vpop.trf.xlu0
        %v5957 = vpop.trf.xlu0
        %v5958 = vpop.trf.xlu0
        %v5959 = vpop.trf.xlu0
        %v5960 = vpop.trf.xlu0
        %v5961 = vpop.trf.xlu0
        %v5962 = vpop.trf.xlu0
        %5963 = vxpose.xlu0.c.b16.start [1/8] %v5861, 128
        %5964 = vxpose.xlu0.c.b16.cont [2/8] 0, 128
        %5965 = vxpose.xlu0.c.b16.cont [3/8] 0, 128
        %5966 = vxpose.xlu0.c.b16.cont [4/8] 0, 128
        %5967 = vxpose.xlu0.c.b16.cont [5/8] 0, 128
        %5968 = vxpose.xlu0.c.b16.cont [6/8] 0, 128
        %5969 = vxpose.xlu0.c.b16.cont [7/8] 0, 128
        %5970 = vxpose.xlu0.c.b16.end [8/8] 0, 128
        %v5971 = vpop.trf.xlu0
        %v5972 = vpop.trf.xlu0
        %v5973 = vpop.trf.xlu0
        %v5974 = vpop.trf.xlu0
        %v5975 = vpop.trf.xlu0
        %v5976 = vpop.trf.xlu0
        %v5977 = vpop.trf.xlu0
        %v5978 = vpop.trf.xlu0
        %5979 = vxpose.xlu0.c.b16.start [1/8] %v5865, 128
        %5980 = vxpose.xlu0.c.b16.cont [2/8] 0, 128
        %5981 = vxpose.xlu0.c.b16.cont [3/8] 0, 128
        %5982 = vxpose.xlu0.c.b16.cont [4/8] 0, 128
        %5983 = vxpose.xlu0.c.b16.cont [5/8] 0, 128
        %5984 = vxpose.xlu0.c.b16.cont [6/8] 0, 128
        %5985 = vxpose.xlu0.c.b16.cont [7/8] 0, 128
        %5986 = vxpose.xlu0.c.b16.end [8/8] 0, 128
        %v5987 = vpop.trf.xlu0
        %v5988 = vpop.trf.xlu0
        %v5989 = vpop.trf.xlu0
        %v5990 = vpop.trf.xlu0
        %v5991 = vpop.trf.xlu0
        %v5992 = vpop.trf.xlu0
        %v5993 = vpop.trf.xlu0
        %v5994 = vpop.trf.xlu0
        %v5995 = vcombine.low %v5875, %v5939
        %v5997 = vunpack.c.l.s4 1983009808
        %v5998 = vunpack.c.0.s8 %v5997
        %v5999 = vlaneseq
        %v6000 = vshrl.u32 %v5999, 7
        %v6001 = vsub.s32 %v5998, %v6000
        %v6002 = vrot.slane %v5995, %v6001
        %v6003 = vcombine.low %v5907, %v5971
        %v6005 = vunpack.c.l.s4 1983009808
        %v6006 = vunpack.c.0.s8 %v6005
        %v6007 = vlaneseq
        %v6008 = vshrl.u32 %v6007, 7
        %v6009 = vsub.s32 %v6006, %v6008
        %v6010 = vrot.slane %v6003, %v6009
        %v6011 = vcombine.low %v6002, %v6010
        %v6013 = vunpack.c.l.s4 1934713408
        %v6014 = vunpack.c.0.s8 %v6013
        %v6015 = vlaneseq
        %v6016 = vshrl.u32 %v6015, 7
        %v6017 = vsub.s32 %v6014, %v6016
        %v6018 = vrot.slane %v6011, %v6017
        %v6019 = vcombine.high %v6018, 0
        %v6020 = vcombine.low %v5891, %v5955
        %v6022 = vunpack.c.l.s4 1983009808
        %v6023 = vunpack.c.0.s8 %v6022
        %v6024 = vlaneseq
        %v6025 = vshrl.u32 %v6024, 7
        %v6026 = vsub.s32 %v6023, %v6025
        %v6027 = vrot.slane %v6020, %v6026
        %v6028 = vcombine.low %v5923, %v5987
        %v6030 = vunpack.c.l.s4 1983009808
        %v6031 = vunpack.c.0.s8 %v6030
        %v6032 = vlaneseq
        %v6033 = vshrl.u32 %v6032, 7
        %v6034 = vsub.s32 %v6031, %v6033
        %v6035 = vrot.slane %v6028, %v6034
        %v6036 = vcombine.low %v6027, %v6035
        %v6038 = vunpack.c.l.s4 1934713408
        %v6039 = vunpack.c.0.s8 %v6038
        %v6040 = vlaneseq
        %v6041 = vshrl.u32 %v6040, 7
        %v6042 = vsub.s32 %v6039, %v6041
        %v6043 = vrot.slane %v6036, %v6042
        %v6044 = vcombine.high %v6043, 0
        %v6047 = vpack.i.b16 %v6043, %v6018
        %v6048 = vshrl.u32 %v6018, 16
        %v6049 = vshrl.u32 %v6043, 16
        %v6050 = vpack.i.b16 %v6049, %v6048
        %v6053 = vpack.i.b16 %v6044, %v6019
        %v6054 = vshrl.u32 %v6019, 16
        %v6055 = vshrl.u32 %v6044, 16
        %v6056 = vpack.i.b16 %v6055, %v6054
        %v6058 = vsel %vm1427, %v6047, 0
        %v6061 = vsel %vm1427, %v5635, 0
        %6063 = vmatprep.subr.bf16.mxu0 0
        %6064 = vmatpush1.bf16.xpose.msra.mxu0 %v6061
        %6065 = vmatprep.subr.bf16.mxu0 0
        %6066 = vmatpush1.bf16.xpose.msra.mxu0 0
        %6067 = vmatprep.subr.bf16.mxu0 0
        %6068 = vmatpush1.bf16.xpose.msra.mxu0 0
        %6069 = vmatprep.subr.bf16.mxu0 0
        %6070 = vmatpush1.bf16.xpose.msra.mxu0 0
        %6071 = vmatprep.subr.bf16.mxu0 0
        %6072 = vmatpush1.bf16.xpose.msra.mxu0 0
        %6073 = vmatprep.subr.bf16.mxu0 0
        %6074 = vmatpush1.bf16.xpose.msra.mxu0 0
        %6075 = vmatprep.subr.bf16.mxu0 0
        %6076 = vmatpush1.bf16.xpose.msra.mxu0 0
        %6077 = vmatprep.subr.bf16.mxu0 0
        %6078 = vmatpush1.bf16.xpose.msra.mxu0 0
        %6079 = vmatprep.subr.bf16.mxu0 0
        %6080 = vmatpush1.bf16.xpose.msra.mxu0 0
        %6081 = vmatprep.subr.bf16.mxu0 0
        %6082 = vmatpush1.bf16.xpose.msra.mxu0 0
        %6083 = vmatprep.subr.bf16.mxu0 0
        %6084 = vmatpush1.bf16.xpose.msra.mxu0 0
        %6085 = vmatprep.subr.bf16.mxu0 0
        %6086 = vmatpush1.bf16.xpose.msra.mxu0 0
        %6087 = vmatprep.subr.bf16.mxu0 0
        %6088 = vmatpush1.bf16.xpose.msra.mxu0 0
        %6089 = vmatprep.subr.bf16.mxu0 0
        %6090 = vmatpush1.bf16.xpose.msra.mxu0 0
        %6091 = vmatprep.subr.bf16.mxu0 0
        %6092 = vmatpush1.bf16.xpose.msra.mxu0 0
        %6093 = vmatprep.subr.bf16.mxu0 0
        %6094 = vmatpush1.bf16.xpose.msra.mxu0 0
        %6095 = vmatprep.mubr.bf16.mxu0 0
        %6096 = vmatmul.mubr.bf16.gmra.mrb[0].mxu0 %v6058
        %v6097 = vpop.f32.mrb[0].mxu0
        %v6098 = vadd.f32 0.0, %v6097
        %v6099 = vpop.f32.mrb[0].mxu0
        %v6100 = vpop.f32.mrb[0].mxu0
        %v6101 = vpop.f32.mrb[0].mxu0
        %6102 = vdwg.mxu0
        %v6104 = vsel %vm1427, %v6050, 0
        %v6107 = vsel %vm1427, %v5636, 0
        %6109 = vmatprep.subr.bf16.mxu0 0
        %6110 = vmatpush1.bf16.xpose.msra.mxu0 %v6107
        %6111 = vmatprep.subr.bf16.mxu0 0
        %6112 = vmatpush1.bf16.xpose.msra.mxu0 0
        %6113 = vmatprep.subr.bf16.mxu0 0
        %6114 = vmatpush1.bf16.xpose.msra.mxu0 0
        %6115 = vmatprep.subr.bf16.mxu0 0
        %6116 = vmatpush1.bf16.xpose.msra.mxu0 0
        %6117 = vmatprep.subr.bf16.mxu0 0
        %6118 = vmatpush1.bf16.xpose.msra.mxu0 0
        %6119 = vmatprep.subr.bf16.mxu0 0
        %6120 = vmatpush1.bf16.xpose.msra.mxu0 0
        %6121 = vmatprep.subr.bf16.mxu0 0
        %6122 = vmatpush1.bf16.xpose.msra.mxu0 0
        %6123 = vmatprep.subr.bf16.mxu0 0
        %6124 = vmatpush1.bf16.xpose.msra.mxu0 0
        %6125 = vmatprep.subr.bf16.mxu0 0
        %6126 = vmatpush1.bf16.xpose.msra.mxu0 0
        %6127 = vmatprep.subr.bf16.mxu0 0
        %6128 = vmatpush1.bf16.xpose.msra.mxu0 0
        %6129 = vmatprep.subr.bf16.mxu0 0
        %6130 = vmatpush1.bf16.xpose.msra.mxu0 0
        %6131 = vmatprep.subr.bf16.mxu0 0
        %6132 = vmatpush1.bf16.xpose.msra.mxu0 0
        %6133 = vmatprep.subr.bf16.mxu0 0
        %6134 = vmatpush1.bf16.xpose.msra.mxu0 0
        %6135 = vmatprep.subr.bf16.mxu0 0
        %6136 = vmatpush1.bf16.xpose.msra.mxu0 0
        %6137 = vmatprep.subr.bf16.mxu0 0
        %6138 = vmatpush1.bf16.xpose.msra.mxu0 0
        %6139 = vmatprep.subr.bf16.mxu0 0
        %6140 = vmatpush1.bf16.xpose.msra.mxu0 0
        %6141 = vmatprep.mubr.bf16.mxu0 0
        %6142 = vmatmul.mubr.bf16.gmra.mrb[0].mxu0 %v6104
        %v6143 = vpop.f32.mrb[0].mxu0
        %v6144 = vadd.f32 0.0, %v6143
        %v6145 = vpop.f32.mrb[0].mxu0
        %v6146 = vpop.f32.mrb[0].mxu0
        %v6147 = vpop.f32.mrb[0].mxu0
        %6148 = vdwg.mxu0
        %v6150 = vsel %vm1427, %v6053, 0
        %v6153 = vsel %vm1427, %v5637, 0
        %6155 = vmatprep.subr.bf16.mxu0 0
        %6156 = vmatpush1.bf16.xpose.msra.mxu0 %v6153
        %6157 = vmatprep.subr.bf16.mxu0 0
        %6158 = vmatpush1.bf16.xpose.msra.mxu0 0
        %6159 = vmatprep.subr.bf16.mxu0 0
        %6160 = vmatpush1.bf16.xpose.msra.mxu0 0
        %6161 = vmatprep.subr.bf16.mxu0 0
        %6162 = vmatpush1.bf16.xpose.msra.mxu0 0
        %6163 = vmatprep.subr.bf16.mxu0 0
        %6164 = vmatpush1.bf16.xpose.msra.mxu0 0
        %6165 = vmatprep.subr.bf16.mxu0 0
        %6166 = vmatpush1.bf16.xpose.msra.mxu0 0
        %6167 = vmatprep.subr.bf16.mxu0 0
        %6168 = vmatpush1.bf16.xpose.msra.mxu0 0
        %6169 = vmatprep.subr.bf16.mxu0 0
        %6170 = vmatpush1.bf16.xpose.msra.mxu0 0
        %6171 = vmatprep.subr.bf16.mxu0 0
        %6172 = vmatpush1.bf16.xpose.msra.mxu0 0
        %6173 = vmatprep.subr.bf16.mxu0 0
        %6174 = vmatpush1.bf16.xpose.msra.mxu0 0
        %6175 = vmatprep.subr.bf16.mxu0 0
        %6176 = vmatpush1.bf16.xpose.msra.mxu0 0
        %6177 = vmatprep.subr.bf16.mxu0 0
        %6178 = vmatpush1.bf16.xpose.msra.mxu0 0
        %6179 = vmatprep.subr.bf16.mxu0 0
        %6180 = vmatpush1.bf16.xpose.msra.mxu0 0
        %6181 = vmatprep.subr.bf16.mxu0 0
        %6182 = vmatpush1.bf16.xpose.msra.mxu0 0
        %6183 = vmatprep.subr.bf16.mxu0 0
        %6184 = vmatpush1.bf16.xpose.msra.mxu0 0
        %6185 = vmatprep.subr.bf16.mxu0 0
        %6186 = vmatpush1.bf16.xpose.msra.mxu0 0
        %6187 = vmatprep.mubr.bf16.mxu0 0
        %6188 = vmatmul.mubr.bf16.gmra.mrb[0].mxu0 %v6150
        %v6189 = vpop.f32.mrb[0].mxu0
        %v6190 = vadd.f32 0.0, %v6189
        %v6191 = vpop.f32.mrb[0].mxu0
        %v6192 = vpop.f32.mrb[0].mxu0
        %v6193 = vpop.f32.mrb[0].mxu0
        %6194 = vdwg.mxu0
        %v6196 = vsel %vm1427, %v6056, 0
        %v6199 = vsel %vm1427, %v5638, 0
        %6201 = vmatprep.subr.bf16.mxu0 0
        %6202 = vmatpush1.bf16.xpose.msra.mxu0 %v6199
        %6203 = vmatprep.subr.bf16.mxu0 0
        %6204 = vmatpush1.bf16.xpose.msra.mxu0 0
        %6205 = vmatprep.subr.bf16.mxu0 0
        %6206 = vmatpush1.bf16.xpose.msra.mxu0 0
        %6207 = vmatprep.subr.bf16.mxu0 0
        %6208 = vmatpush1.bf16.xpose.msra.mxu0 0
        %6209 = vmatprep.subr.bf16.mxu0 0
        %6210 = vmatpush1.bf16.xpose.msra.mxu0 0
        %6211 = vmatprep.subr.bf16.mxu0 0
        %6212 = vmatpush1.bf16.xpose.msra.mxu0 0
        %6213 = vmatprep.subr.bf16.mxu0 0
        %6214 = vmatpush1.bf16.xpose.msra.mxu0 0
        %6215 = vmatprep.subr.bf16.mxu0 0
        %6216 = vmatpush1.bf16.xpose.msra.mxu0 0
        %6217 = vmatprep.subr.bf16.mxu0 0
        %6218 = vmatpush1.bf16.xpose.msra.mxu0 0
        %6219 = vmatprep.subr.bf16.mxu0 0
        %6220 = vmatpush1.bf16.xpose.msra.mxu0 0
        %6221 = vmatprep.subr.bf16.mxu0 0
        %6222 = vmatpush1.bf16.xpose.msra.mxu0 0
        %6223 = vmatprep.subr.bf16.mxu0 0
        %6224 = vmatpush1.bf16.xpose.msra.mxu0 0
        %6225 = vmatprep.subr.bf16.mxu0 0
        %6226 = vmatpush1.bf16.xpose.msra.mxu0 0
        %6227 = vmatprep.subr.bf16.mxu0 0
        %6228 = vmatpush1.bf16.xpose.msra.mxu0 0
        %6229 = vmatprep.subr.bf16.mxu0 0
        %6230 = vmatpush1.bf16.xpose.msra.mxu0 0
        %6231 = vmatprep.subr.bf16.mxu0 0
        %6232 = vmatpush1.bf16.xpose.msra.mxu0 0
        %6233 = vmatprep.mubr.bf16.mxu0 0
        %6234 = vmatmul.mubr.bf16.gmra.mrb[0].mxu0 %v6196
        %v6235 = vpop.f32.mrb[0].mxu0
        %v6236 = vadd.f32 0.0, %v6235
        %v6237 = vpop.f32.mrb[0].mxu0
        %v6238 = vpop.f32.mrb[0].mxu0
        %v6239 = vpop.f32.mrb[0].mxu0
        %6240 = vdwg.mxu0
        %6241 = vxpose.xlu0.b32.start [1/16] %v6098, 128
        %6242 = vxpose.xlu0.b32.cont [2/16] 0.0, 128
        %6243 = vxpose.xlu0.b32.cont [3/16] 0.0, 128
        %6244 = vxpose.xlu0.b32.cont [4/16] 0.0, 128
        %6245 = vxpose.xlu0.b32.cont [5/16] 0.0, 128
        %6246 = vxpose.xlu0.b32.cont [6/16] 0.0, 128
        %6247 = vxpose.xlu0.b32.cont [7/16] 0.0, 128
        %6248 = vxpose.xlu0.b32.cont [8/16] 0.0, 128
        %6249 = vxpose.xlu0.b32.cont [9/16] 0.0, 128
        %6250 = vxpose.xlu0.b32.cont [10/16] 0.0, 128
        %6251 = vxpose.xlu0.b32.cont [11/16] 0.0, 128
        %6252 = vxpose.xlu0.b32.cont [12/16] 0.0, 128
        %6253 = vxpose.xlu0.b32.cont [13/16] 0.0, 128
        %6254 = vxpose.xlu0.b32.cont [14/16] 0.0, 128
        %6255 = vxpose.xlu0.b32.cont [15/16] 0.0, 128
        %6256 = vxpose.xlu0.b32.end [16/16] 0.0, 128
        %v6257 = vpop.trf.xlu0
        %v6258 = vpop.trf.xlu0
        %v6259 = vpop.trf.xlu0
        %v6260 = vpop.trf.xlu0
        %v6261 = vpop.trf.xlu0
        %v6262 = vpop.trf.xlu0
        %v6263 = vpop.trf.xlu0
        %v6264 = vpop.trf.xlu0
        %v6265 = vpop.trf.xlu0
        %v6266 = vpop.trf.xlu0
        %v6267 = vpop.trf.xlu0
        %v6268 = vpop.trf.xlu0
        %v6269 = vpop.trf.xlu0
        %v6270 = vpop.trf.xlu0
        %v6271 = vpop.trf.xlu0
        %v6272 = vpop.trf.xlu0
        %6273 = vxpose.xlu0.b32.start [1/16] %v6144, 128
        %6274 = vxpose.xlu0.b32.cont [2/16] 0.0, 128
        %6275 = vxpose.xlu0.b32.cont [3/16] 0.0, 128
        %6276 = vxpose.xlu0.b32.cont [4/16] 0.0, 128
        %6277 = vxpose.xlu0.b32.cont [5/16] 0.0, 128
        %6278 = vxpose.xlu0.b32.cont [6/16] 0.0, 128
        %6279 = vxpose.xlu0.b32.cont [7/16] 0.0, 128
        %6280 = vxpose.xlu0.b32.cont [8/16] 0.0, 128
        %6281 = vxpose.xlu0.b32.cont [9/16] 0.0, 128
        %6282 = vxpose.xlu0.b32.cont [10/16] 0.0, 128
        %6283 = vxpose.xlu0.b32.cont [11/16] 0.0, 128
        %6284 = vxpose.xlu0.b32.cont [12/16] 0.0, 128
        %6285 = vxpose.xlu0.b32.cont [13/16] 0.0, 128
        %6286 = vxpose.xlu0.b32.cont [14/16] 0.0, 128
        %6287 = vxpose.xlu0.b32.cont [15/16] 0.0, 128
        %6288 = vxpose.xlu0.b32.end [16/16] 0.0, 128
        %v6289 = vpop.trf.xlu0
        %v6290 = vpop.trf.xlu0
        %v6291 = vpop.trf.xlu0
        %v6292 = vpop.trf.xlu0
        %v6293 = vpop.trf.xlu0
        %v6294 = vpop.trf.xlu0
        %v6295 = vpop.trf.xlu0
        %v6296 = vpop.trf.xlu0
        %v6297 = vpop.trf.xlu0
        %v6298 = vpop.trf.xlu0
        %v6299 = vpop.trf.xlu0
        %v6300 = vpop.trf.xlu0
        %v6301 = vpop.trf.xlu0
        %v6302 = vpop.trf.xlu0
        %v6303 = vpop.trf.xlu0
        %v6304 = vpop.trf.xlu0
        %6305 = vxpose.xlu0.b32.start [1/16] %v6190, 128
        %6306 = vxpose.xlu0.b32.cont [2/16] 0.0, 128
        %6307 = vxpose.xlu0.b32.cont [3/16] 0.0, 128
        %6308 = vxpose.xlu0.b32.cont [4/16] 0.0, 128
        %6309 = vxpose.xlu0.b32.cont [5/16] 0.0, 128
        %6310 = vxpose.xlu0.b32.cont [6/16] 0.0, 128
        %6311 = vxpose.xlu0.b32.cont [7/16] 0.0, 128
        %6312 = vxpose.xlu0.b32.cont [8/16] 0.0, 128
        %6313 = vxpose.xlu0.b32.cont [9/16] 0.0, 128
        %6314 = vxpose.xlu0.b32.cont [10/16] 0.0, 128
        %6315 = vxpose.xlu0.b32.cont [11/16] 0.0, 128
        %6316 = vxpose.xlu0.b32.cont [12/16] 0.0, 128
        %6317 = vxpose.xlu0.b32.cont [13/16] 0.0, 128
        %6318 = vxpose.xlu0.b32.cont [14/16] 0.0, 128
        %6319 = vxpose.xlu0.b32.cont [15/16] 0.0, 128
        %6320 = vxpose.xlu0.b32.end [16/16] 0.0, 128
        %v6321 = vpop.trf.xlu0
        %v6322 = vpop.trf.xlu0
        %v6323 = vpop.trf.xlu0
        %v6324 = vpop.trf.xlu0
        %v6325 = vpop.trf.xlu0
        %v6326 = vpop.trf.xlu0
        %v6327 = vpop.trf.xlu0
        %v6328 = vpop.trf.xlu0
        %v6329 = vpop.trf.xlu0
        %v6330 = vpop.trf.xlu0
        %v6331 = vpop.trf.xlu0
        %v6332 = vpop.trf.xlu0
        %v6333 = vpop.trf.xlu0
        %v6334 = vpop.trf.xlu0
        %v6335 = vpop.trf.xlu0
        %v6336 = vpop.trf.xlu0
        %6337 = vxpose.xlu0.b32.start [1/16] %v6236, 128
        %6338 = vxpose.xlu0.b32.cont [2/16] 0.0, 128
        %6339 = vxpose.xlu0.b32.cont [3/16] 0.0, 128
        %6340 = vxpose.xlu0.b32.cont [4/16] 0.0, 128
        %6341 = vxpose.xlu0.b32.cont [5/16] 0.0, 128
        %6342 = vxpose.xlu0.b32.cont [6/16] 0.0, 128
        %6343 = vxpose.xlu0.b32.cont [7/16] 0.0, 128
        %6344 = vxpose.xlu0.b32.cont [8/16] 0.0, 128
        %6345 = vxpose.xlu0.b32.cont [9/16] 0.0, 128
        %6346 = vxpose.xlu0.b32.cont [10/16] 0.0, 128
        %6347 = vxpose.xlu0.b32.cont [11/16] 0.0, 128
        %6348 = vxpose.xlu0.b32.cont [12/16] 0.0, 128
        %6349 = vxpose.xlu0.b32.cont [13/16] 0.0, 128
        %6350 = vxpose.xlu0.b32.cont [14/16] 0.0, 128
        %6351 = vxpose.xlu0.b32.cont [15/16] 0.0, 128
        %6352 = vxpose.xlu0.b32.end [16/16] 0.0, 128
        %v6353 = vpop.trf.xlu0
        %v6354 = vpop.trf.xlu0
        %v6355 = vpop.trf.xlu0
        %v6356 = vpop.trf.xlu0
        %v6357 = vpop.trf.xlu0
        %v6358 = vpop.trf.xlu0
        %v6359 = vpop.trf.xlu0
        %v6360 = vpop.trf.xlu0
        %v6361 = vpop.trf.xlu0
        %v6362 = vpop.trf.xlu0
        %v6363 = vpop.trf.xlu0
        %v6364 = vpop.trf.xlu0
        %v6365 = vpop.trf.xlu0
        %v6366 = vpop.trf.xlu0
        %v6367 = vpop.trf.xlu0
        %v6368 = vpop.trf.xlu0
        %v6369 = vcombine.low %v6257, %v6321
        %v6370 = vcombine.high %v6257, %v6321
        %v6372 = vunpack.c.l.s4 1983009808
        %v6373 = vunpack.c.0.s8 %v6372
        %v6374 = vlaneseq
        %v6375 = vshrl.u32 %v6374, 7
        %v6376 = vsub.s32 %v6373, %v6375
        %v6377 = vrot.slane %v6369, %v6376
        %v6379 = vunpack.c.l.s4 1983009808
        %v6380 = vunpack.c.0.s8 %v6379
        %v6381 = vlaneseq
        %v6382 = vshrl.u32 %v6381, 7
        %v6383 = vsub.s32 %v6380, %v6382
        %v6384 = vrot.slane %v6370, %v6383
        %v6385 = vcombine.low %v6289, %v6353
        %v6386 = vcombine.high %v6289, %v6353
        %v6388 = vunpack.c.l.s4 1983009808
        %v6389 = vunpack.c.0.s8 %v6388
        %v6390 = vlaneseq
        %v6391 = vshrl.u32 %v6390, 7
        %v6392 = vsub.s32 %v6389, %v6391
        %v6393 = vrot.slane %v6385, %v6392
        %v6395 = vunpack.c.l.s4 1983009808
        %v6396 = vunpack.c.0.s8 %v6395
        %v6397 = vlaneseq
        %v6398 = vshrl.u32 %v6397, 7
        %v6399 = vsub.s32 %v6396, %v6398
        %v6400 = vrot.slane %v6386, %v6399
        %v6401 = vcombine.low %v6377, %v6393
        %v6402 = vcombine.high %v6377, %v6393
        %v6404 = vunpack.c.l.s4 1934713408
        %v6405 = vunpack.c.0.s8 %v6404
        %v6406 = vlaneseq
        %v6407 = vshrl.u32 %v6406, 7
        %v6408 = vsub.s32 %v6405, %v6407
        %v6409 = vrot.slane %v6401, %v6408
        %v6411 = vunpack.c.l.s4 1934713408
        %v6412 = vunpack.c.0.s8 %v6411
        %v6413 = vlaneseq
        %v6414 = vshrl.u32 %v6413, 7
        %v6415 = vsub.s32 %v6412, %v6414
        %v6416 = vrot.slane %v6402, %v6415
        %v6417 = vcombine.low %v6384, %v6400
        %v6418 = vcombine.high %v6384, %v6400
        %v6420 = vunpack.c.l.s4 1934713408
        %v6421 = vunpack.c.0.s8 %v6420
        %v6422 = vlaneseq
        %v6423 = vshrl.u32 %v6422, 7
        %v6424 = vsub.s32 %v6421, %v6423
        %v6425 = vrot.slane %v6417, %v6424
        %v6427 = vunpack.c.l.s4 1934713408
        %v6428 = vunpack.c.0.s8 %v6427
        %v6429 = vlaneseq
        %v6430 = vshrl.u32 %v6429, 7
        %v6431 = vsub.s32 %v6428, %v6430
        %v6432 = vrot.slane %v6418, %v6431
        %v6433 = vcombine.high %v6409, 0.0
        %v6434 = vcombine.high %v6416, 0.0
        %v6435 = vcombine.high %v6425, 0.0
        %v6436 = vcombine.high %v6432, 0.0
        %v6437 = vcombine.low %v6409, %v6416
        %v6439 = vunpack.c.l.s4 1983009808
        %v6440 = vunpack.c.0.s8 %v6439
        %v6441 = vlaneseq
        %v6442 = vshrl.u32 %v6441, 7
        %v6443 = vsub.s32 %v6440, %v6442
        %v6444 = vrot.slane %v6437, %v6443
        %v6445 = vcombine.low %v6433, %v6434
        %v6447 = vunpack.c.l.s4 1983009808
        %v6448 = vunpack.c.0.s8 %v6447
        %v6449 = vlaneseq
        %v6450 = vshrl.u32 %v6449, 7
        %v6451 = vsub.s32 %v6448, %v6450
        %v6452 = vrot.slane %v6445, %v6451
        %v6453 = vcombine.low %v6425, %v6432
        %v6455 = vunpack.c.l.s4 1983009808
        %v6456 = vunpack.c.0.s8 %v6455
        %v6457 = vlaneseq
        %v6458 = vshrl.u32 %v6457, 7
        %v6459 = vsub.s32 %v6456, %v6458
        %v6460 = vrot.slane %v6453, %v6459
        %v6461 = vcombine.low %v6435, %v6436
        %v6463 = vunpack.c.l.s4 1983009808
        %v6464 = vunpack.c.0.s8 %v6463
        %v6465 = vlaneseq
        %v6466 = vshrl.u32 %v6465, 7
        %v6467 = vsub.s32 %v6464, %v6466
        %v6468 = vrot.slane %v6461, %v6467
        %v6469 = vcombine.low %v6444, %v6452
        %v6470 = vcombine.high %v6444, %v6452
        %v6472 = vunpack.c.l.s4 1934713408
        %v6473 = vunpack.c.0.s8 %v6472
        %v6474 = vlaneseq
        %v6475 = vshrl.u32 %v6474, 7
        %v6476 = vsub.s32 %v6473, %v6475
        %v6477 = vrot.slane %v6469, %v6476
        %v6479 = vunpack.c.l.s4 1934713408
        %v6480 = vunpack.c.0.s8 %v6479
        %v6481 = vlaneseq
        %v6482 = vshrl.u32 %v6481, 7
        %v6483 = vsub.s32 %v6480, %v6482
        %v6484 = vrot.slane %v6470, %v6483
        %v6485 = vcombine.low %v6460, %v6468
        %v6486 = vcombine.high %v6460, %v6468
        %v6488 = vunpack.c.l.s4 1934713408
        %v6489 = vunpack.c.0.s8 %v6488
        %v6490 = vlaneseq
        %v6491 = vshrl.u32 %v6490, 7
        %v6492 = vsub.s32 %v6489, %v6491
        %v6493 = vrot.slane %v6485, %v6492
        %v6495 = vunpack.c.l.s4 1934713408
        %v6496 = vunpack.c.0.s8 %v6495
        %v6497 = vlaneseq
        %v6498 = vshrl.u32 %v6497, 7
        %v6499 = vsub.s32 %v6496, %v6498
        %v6500 = vrot.slane %v6486, %v6499
        %v6501 = vcombine.low %v6477, %v6493
        %v6502 = vcombine.high %v6477, %v6493
        %v6503 = vcombine.low %v6484, %v6500
        %v6504 = vcombine.high %v6484, %v6500
        %6506 = vrot.lane.b32.xlu0 %v6502, 8
        %v6507 = vpop.permute.xlu0 %6506
        %6510 = vrot.lane.b32.xlu0 %v6503, 16
        %v6511 = vpop.permute.xlu0 %6510
        %6514 = vrot.lane.b32.xlu0 %v6504, 24
        %v6515 = vpop.permute.xlu0 %6514
        %v6517 = vsel %vm1427, %v6501, %v6507
        %v6518 = vsel %vm2540, %v6517, %v6511
        %v6519 = vsel %vm2542, %v6518, %v6515
        %6521 = vrot.lane.b32.xlu0 %v4581, 120
        %v6522 = vpop.permute.xlu0 %6521
        %6524 = vrot.lane.b32.xlu0 %v4581, 112
        %v6525 = vpop.permute.xlu0 %6524
        %6527 = vrot.lane.b32.xlu0 %v4581, 104
        %v6528 = vpop.permute.xlu0 %6527
        %v6530 = vcombine.low %v4581, %v6525
        %v6531 = vcombine.high %v4581, %v6525
        %v6533 = vunpack.c.l.s4 1983009808
        %v6534 = vunpack.c.0.s8 %v6533
        %v6535 = vlaneseq
        %v6536 = vshrl.u32 %v6535, 7
        %v6537 = vsub.s32 %v6534, %v6536
        %v6538 = vrot.slane %v6530, %v6537
        %v6540 = vunpack.c.l.s4 1983009808
        %v6541 = vunpack.c.0.s8 %v6540
        %v6542 = vlaneseq
        %v6543 = vshrl.u32 %v6542, 7
        %v6544 = vsub.s32 %v6541, %v6543
        %v6545 = vrot.slane %v6531, %v6544
        %v6546 = vcombine.low %v6522, %v6528
        %v6547 = vcombine.high %v6522, %v6528
        %v6549 = vunpack.c.l.s4 1983009808
        %v6550 = vunpack.c.0.s8 %v6549
        %v6551 = vlaneseq
        %v6552 = vshrl.u32 %v6551, 7
        %v6553 = vsub.s32 %v6550, %v6552
        %v6554 = vrot.slane %v6546, %v6553
        %v6556 = vunpack.c.l.s4 1983009808
        %v6557 = vunpack.c.0.s8 %v6556
        %v6558 = vlaneseq
        %v6559 = vshrl.u32 %v6558, 7
        %v6560 = vsub.s32 %v6557, %v6559
        %v6561 = vrot.slane %v6547, %v6560
        %v6562 = vcombine.low %v6538, %v6554
        %v6563 = vcombine.high %v6538, %v6554
        %v6565 = vunpack.c.l.s4 1934713408
        %v6566 = vunpack.c.0.s8 %v6565
        %v6567 = vlaneseq
        %v6568 = vshrl.u32 %v6567, 7
        %v6569 = vsub.s32 %v6566, %v6568
        %v6570 = vrot.slane %v6562, %v6569
        %v6572 = vunpack.c.l.s4 1934713408
        %v6573 = vunpack.c.0.s8 %v6572
        %v6574 = vlaneseq
        %v6575 = vshrl.u32 %v6574, 7
        %v6576 = vsub.s32 %v6573, %v6575
        %v6577 = vrot.slane %v6563, %v6576
        %v6578 = vcombine.low %v6545, %v6561
        %v6579 = vcombine.high %v6545, %v6561
        %v6581 = vunpack.c.l.s4 1934713408
        %v6582 = vunpack.c.0.s8 %v6581
        %v6583 = vlaneseq
        %v6584 = vshrl.u32 %v6583, 7
        %v6585 = vsub.s32 %v6582, %v6584
        %v6586 = vrot.slane %v6578, %v6585
        %v6588 = vunpack.c.l.s4 1934713408
        %v6589 = vunpack.c.0.s8 %v6588
        %v6590 = vlaneseq
        %v6591 = vshrl.u32 %v6590, 7
        %v6592 = vsub.s32 %v6589, %v6591
        %v6593 = vrot.slane %v6579, %v6592
        %v6594 = vcombine.high %v6570, 0.0
        %v6595 = vcombine.high %v6577, 0.0
        %v6596 = vcombine.high %v6586, 0.0
        %v6597 = vcombine.high %v6593, 0.0
        %v6598 = vpack.c.bf16 %v6570, %v6570
        %v6599 = vpack.c.bf16 %v6594, %v6594
        %v6600 = vpack.c.bf16 %v6577, %v6577
        %v6601 = vpack.c.bf16 %v6595, %v6595
        %v6602 = vpack.c.bf16 %v6586, %v6586
        %v6603 = vpack.c.bf16 %v6596, %v6596
        %v6604 = vpack.c.bf16 %v6593, %v6593
        %v6605 = vpack.c.bf16 %v6597, %v6597
        %6607 = vrot.lane.b32.xlu0 %v4649, 120
        %v6608 = vpop.permute.xlu0 %6607
        %6610 = vrot.lane.b32.xlu0 %v4649, 112
        %v6611 = vpop.permute.xlu0 %6610
        %6613 = vrot.lane.b32.xlu0 %v4649, 104
        %v6614 = vpop.permute.xlu0 %6613
        %v6616 = vcombine.low %v4649, %v6611
        %v6617 = vcombine.high %v4649, %v6611
        %v6619 = vunpack.c.l.s4 1983009808
        %v6620 = vunpack.c.0.s8 %v6619
        %v6621 = vlaneseq
        %v6622 = vshrl.u32 %v6621, 7
        %v6623 = vsub.s32 %v6620, %v6622
        %v6624 = vrot.slane %v6616, %v6623
        %v6626 = vunpack.c.l.s4 1983009808
        %v6627 = vunpack.c.0.s8 %v6626
        %v6628 = vlaneseq
        %v6629 = vshrl.u32 %v6628, 7
        %v6630 = vsub.s32 %v6627, %v6629
        %v6631 = vrot.slane %v6617, %v6630
        %v6632 = vcombine.low %v6608, %v6614
        %v6633 = vcombine.high %v6608, %v6614
        %v6635 = vunpack.c.l.s4 1983009808
        %v6636 = vunpack.c.0.s8 %v6635
        %v6637 = vlaneseq
        %v6638 = vshrl.u32 %v6637, 7
        %v6639 = vsub.s32 %v6636, %v6638
        %v6640 = vrot.slane %v6632, %v6639
        %v6642 = vunpack.c.l.s4 1983009808
        %v6643 = vunpack.c.0.s8 %v6642
        %v6644 = vlaneseq
        %v6645 = vshrl.u32 %v6644, 7
        %v6646 = vsub.s32 %v6643, %v6645
        %v6647 = vrot.slane %v6633, %v6646
        %v6648 = vcombine.low %v6624, %v6640
        %v6649 = vcombine.high %v6624, %v6640
        %v6651 = vunpack.c.l.s4 1934713408
        %v6652 = vunpack.c.0.s8 %v6651
        %v6653 = vlaneseq
        %v6654 = vshrl.u32 %v6653, 7
        %v6655 = vsub.s32 %v6652, %v6654
        %v6656 = vrot.slane %v6648, %v6655
        %v6658 = vunpack.c.l.s4 1934713408
        %v6659 = vunpack.c.0.s8 %v6658
        %v6660 = vlaneseq
        %v6661 = vshrl.u32 %v6660, 7
        %v6662 = vsub.s32 %v6659, %v6661
        %v6663 = vrot.slane %v6649, %v6662
        %v6664 = vcombine.low %v6631, %v6647
        %v6665 = vcombine.high %v6631, %v6647
        %v6667 = vunpack.c.l.s4 1934713408
        %v6668 = vunpack.c.0.s8 %v6667
        %v6669 = vlaneseq
        %v6670 = vshrl.u32 %v6669, 7
        %v6671 = vsub.s32 %v6668, %v6670
        %v6672 = vrot.slane %v6664, %v6671
        %v6674 = vunpack.c.l.s4 1934713408
        %v6675 = vunpack.c.0.s8 %v6674
        %v6676 = vlaneseq
        %v6677 = vshrl.u32 %v6676, 7
        %v6678 = vsub.s32 %v6675, %v6677
        %v6679 = vrot.slane %v6665, %v6678
        %v6680 = vcombine.high %v6656, 0.0
        %v6681 = vcombine.high %v6663, 0.0
        %v6682 = vcombine.high %v6672, 0.0
        %v6683 = vcombine.high %v6679, 0.0
        %v6684 = vpack.c.bf16 %v6656, %v6656
        %v6685 = vpack.c.bf16 %v6680, %v6680
        %v6686 = vpack.c.bf16 %v6663, %v6663
        %v6687 = vpack.c.bf16 %v6681, %v6681
        %v6688 = vpack.c.bf16 %v6672, %v6672
        %v6689 = vpack.c.bf16 %v6682, %v6682
        %v6690 = vpack.c.bf16 %v6679, %v6679
        %v6691 = vpack.c.bf16 %v6683, %v6683
        %6693 = vrot.lane.b32.xlu0 %v4659, 120
        %v6694 = vpop.permute.xlu0 %6693
        %6695 = vrot.lane.b32.xlu0 %v4659, 112
        %v6696 = vpop.permute.xlu0 %6695
        %6697 = vrot.lane.b32.xlu0 %v4659, 104
        %v6698 = vpop.permute.xlu0 %6697
        %6699 = vrot.lane.b32.xlu0 %v4659, 96
        %v6700 = vpop.permute.xlu0 %6699
        %6701 = vrot.lane.b32.xlu0 %v6694, 96
        %v6702 = vpop.permute.xlu0 %6701
        %6703 = vrot.lane.b32.xlu0 %v6696, 96
        %v6704 = vpop.permute.xlu0 %6703
        %6705 = vrot.lane.b32.xlu0 %v6698, 96
        %v6706 = vpop.permute.xlu0 %6705
        %v6711 = vcombine.low %v6700, %v6704
        %v6712 = vcombine.high %v6700, %v6704
        %v6714 = vunpack.c.l.s4 1983009808
        %v6715 = vunpack.c.0.s8 %v6714
        %v6716 = vlaneseq
        %v6717 = vshrl.u32 %v6716, 7
        %v6718 = vsub.s32 %v6715, %v6717
        %v6719 = vrot.slane %v6711, %v6718
        %v6721 = vunpack.c.l.s4 1983009808
        %v6722 = vunpack.c.0.s8 %v6721
        %v6723 = vlaneseq
        %v6724 = vshrl.u32 %v6723, 7
        %v6725 = vsub.s32 %v6722, %v6724
        %v6726 = vrot.slane %v6712, %v6725
        %v6727 = vcombine.low %v6702, %v6706
        %v6728 = vcombine.high %v6702, %v6706
        %v6730 = vunpack.c.l.s4 1983009808
        %v6731 = vunpack.c.0.s8 %v6730
        %v6732 = vlaneseq
        %v6733 = vshrl.u32 %v6732, 7
        %v6734 = vsub.s32 %v6731, %v6733
        %v6735 = vrot.slane %v6727, %v6734
        %v6737 = vunpack.c.l.s4 1983009808
        %v6738 = vunpack.c.0.s8 %v6737
        %v6739 = vlaneseq
        %v6740 = vshrl.u32 %v6739, 7
        %v6741 = vsub.s32 %v6738, %v6740
        %v6742 = vrot.slane %v6728, %v6741
        %v6743 = vcombine.low %v6719, %v6735
        %v6744 = vcombine.high %v6719, %v6735
        %v6746 = vunpack.c.l.s4 1934713408
        %v6747 = vunpack.c.0.s8 %v6746
        %v6748 = vlaneseq
        %v6749 = vshrl.u32 %v6748, 7
        %v6750 = vsub.s32 %v6747, %v6749
        %v6751 = vrot.slane %v6743, %v6750
        %v6753 = vunpack.c.l.s4 1934713408
        %v6754 = vunpack.c.0.s8 %v6753
        %v6755 = vlaneseq
        %v6756 = vshrl.u32 %v6755, 7
        %v6757 = vsub.s32 %v6754, %v6756
        %v6758 = vrot.slane %v6744, %v6757
        %v6759 = vcombine.low %v6726, %v6742
        %v6760 = vcombine.high %v6726, %v6742
        %v6762 = vunpack.c.l.s4 1934713408
        %v6763 = vunpack.c.0.s8 %v6762
        %v6764 = vlaneseq
        %v6765 = vshrl.u32 %v6764, 7
        %v6766 = vsub.s32 %v6763, %v6765
        %v6767 = vrot.slane %v6759, %v6766
        %v6769 = vunpack.c.l.s4 1934713408
        %v6770 = vunpack.c.0.s8 %v6769
        %v6771 = vlaneseq
        %v6772 = vshrl.u32 %v6771, 7
        %v6773 = vsub.s32 %v6770, %v6772
        %v6774 = vrot.slane %v6760, %v6773
        %v6775 = vcombine.high %v6751, 0.0
        %v6776 = vcombine.high %v6758, 0.0
        %v6777 = vcombine.high %v6767, 0.0
        %v6778 = vcombine.high %v6774, 0.0
        %v6779 = vpack.c.bf16 %v6751, %v6751
        %v6780 = vpack.c.bf16 %v6775, %v6775
        %v6781 = vpack.c.bf16 %v6758, %v6758
        %v6782 = vpack.c.bf16 %v6776, %v6776
        %v6783 = vpack.c.bf16 %v6767, %v6767
        %v6784 = vpack.c.bf16 %v6777, %v6777
        %v6785 = vpack.c.bf16 %v6774, %v6774
        %v6786 = vpack.c.bf16 %v6778, %v6778
        %v6787 = vcombine.low %v6598, %v6602
        %v6789 = vunpack.c.l.s4 1983009808
        %v6790 = vunpack.c.0.s8 %v6789
        %v6791 = vlaneseq
        %v6792 = vshrl.u32 %v6791, 7
        %v6793 = vsub.s32 %v6790, %v6792
        %v6794 = vrot.slane %v6787, %v6793
        %v6795 = vcombine.low %v6600, %v6604
        %v6797 = vunpack.c.l.s4 1983009808
        %v6798 = vunpack.c.0.s8 %v6797
        %v6799 = vlaneseq
        %v6800 = vshrl.u32 %v6799, 7
        %v6801 = vsub.s32 %v6798, %v6800
        %v6802 = vrot.slane %v6795, %v6801
        %v6803 = vcombine.low %v6794, %v6802
        %v6805 = vunpack.c.l.s4 1934713408
        %v6806 = vunpack.c.0.s8 %v6805
        %v6807 = vlaneseq
        %v6808 = vshrl.u32 %v6807, 7
        %v6809 = vsub.s32 %v6806, %v6808
        %v6810 = vrot.slane %v6803, %v6809
        %v6811 = vcombine.high %v6810, 0
        %v6812 = vcombine.low %v6599, %v6603
        %v6814 = vunpack.c.l.s4 1983009808
        %v6815 = vunpack.c.0.s8 %v6814
        %v6816 = vlaneseq
        %v6817 = vshrl.u32 %v6816, 7
        %v6818 = vsub.s32 %v6815, %v6817
        %v6819 = vrot.slane %v6812, %v6818
        %v6820 = vcombine.low %v6601, %v6605
        %v6822 = vunpack.c.l.s4 1983009808
        %v6823 = vunpack.c.0.s8 %v6822
        %v6824 = vlaneseq
        %v6825 = vshrl.u32 %v6824, 7
        %v6826 = vsub.s32 %v6823, %v6825
        %v6827 = vrot.slane %v6820, %v6826
        %v6828 = vcombine.low %v6819, %v6827
        %v6830 = vunpack.c.l.s4 1934713408
        %v6831 = vunpack.c.0.s8 %v6830
        %v6832 = vlaneseq
        %v6833 = vshrl.u32 %v6832, 7
        %v6834 = vsub.s32 %v6831, %v6833
        %v6835 = vrot.slane %v6828, %v6834
        %v6836 = vcombine.high %v6835, 0
        %v6839 = vpack.i.b16 %v6835, %v6810
        %v6840 = vshrl.u32 %v6810, 16
        %v6841 = vshrl.u32 %v6835, 16
        %v6842 = vpack.i.b16 %v6841, %v6840
        %v6845 = vpack.i.b16 %v6836, %v6811
        %v6846 = vshrl.u32 %v6811, 16
        %v6847 = vshrl.u32 %v6836, 16
        %v6848 = vpack.i.b16 %v6847, %v6846
        %6849 = vxpose.xlu0.c.b16.start [1/8] %v6684, 128
        %6850 = vxpose.xlu0.c.b16.cont [2/8] 0, 128
        %6851 = vxpose.xlu0.c.b16.cont [3/8] 0, 128
        %6852 = vxpose.xlu0.c.b16.cont [4/8] 0, 128
        %6853 = vxpose.xlu0.c.b16.cont [5/8] 0, 128
        %6854 = vxpose.xlu0.c.b16.cont [6/8] 0, 128
        %6855 = vxpose.xlu0.c.b16.cont [7/8] 0, 128
        %6856 = vxpose.xlu0.c.b16.end [8/8] 0, 128
        %v6857 = vpop.trf.xlu0
        %v6858 = vpop.trf.xlu0
        %v6859 = vpop.trf.xlu0
        %v6860 = vpop.trf.xlu0
        %v6861 = vpop.trf.xlu0
        %v6862 = vpop.trf.xlu0
        %v6863 = vpop.trf.xlu0
        %v6864 = vpop.trf.xlu0
        %6865 = vxpose.xlu0.c.b16.start [1/8] %v6685, 128
        %6866 = vxpose.xlu0.c.b16.cont [2/8] 0, 128
        %6867 = vxpose.xlu0.c.b16.cont [3/8] 0, 128
        %6868 = vxpose.xlu0.c.b16.cont [4/8] 0, 128
        %6869 = vxpose.xlu0.c.b16.cont [5/8] 0, 128
        %6870 = vxpose.xlu0.c.b16.cont [6/8] 0, 128
        %6871 = vxpose.xlu0.c.b16.cont [7/8] 0, 128
        %6872 = vxpose.xlu0.c.b16.end [8/8] 0, 128
        %v6873 = vpop.trf.xlu0
        %v6874 = vpop.trf.xlu0
        %v6875 = vpop.trf.xlu0
        %v6876 = vpop.trf.xlu0
        %v6877 = vpop.trf.xlu0
        %v6878 = vpop.trf.xlu0
        %v6879 = vpop.trf.xlu0
        %v6880 = vpop.trf.xlu0
        %6881 = vxpose.xlu0.c.b16.start [1/8] %v6686, 128
        %6882 = vxpose.xlu0.c.b16.cont [2/8] 0, 128
        %6883 = vxpose.xlu0.c.b16.cont [3/8] 0, 128
        %6884 = vxpose.xlu0.c.b16.cont [4/8] 0, 128
        %6885 = vxpose.xlu0.c.b16.cont [5/8] 0, 128
        %6886 = vxpose.xlu0.c.b16.cont [6/8] 0, 128
        %6887 = vxpose.xlu0.c.b16.cont [7/8] 0, 128
        %6888 = vxpose.xlu0.c.b16.end [8/8] 0, 128
        %v6889 = vpop.trf.xlu0
        %v6890 = vpop.trf.xlu0
        %v6891 = vpop.trf.xlu0
        %v6892 = vpop.trf.xlu0
        %v6893 = vpop.trf.xlu0
        %v6894 = vpop.trf.xlu0
        %v6895 = vpop.trf.xlu0
        %v6896 = vpop.trf.xlu0
        %6897 = vxpose.xlu0.c.b16.start [1/8] %v6687, 128
        %6898 = vxpose.xlu0.c.b16.cont [2/8] 0, 128
        %6899 = vxpose.xlu0.c.b16.cont [3/8] 0, 128
        %6900 = vxpose.xlu0.c.b16.cont [4/8] 0, 128
        %6901 = vxpose.xlu0.c.b16.cont [5/8] 0, 128
        %6902 = vxpose.xlu0.c.b16.cont [6/8] 0, 128
        %6903 = vxpose.xlu0.c.b16.cont [7/8] 0, 128
        %6904 = vxpose.xlu0.c.b16.end [8/8] 0, 128
        %v6905 = vpop.trf.xlu0
        %v6906 = vpop.trf.xlu0
        %v6907 = vpop.trf.xlu0
        %v6908 = vpop.trf.xlu0
        %v6909 = vpop.trf.xlu0
        %v6910 = vpop.trf.xlu0
        %v6911 = vpop.trf.xlu0
        %v6912 = vpop.trf.xlu0
        %6913 = vxpose.xlu0.c.b16.start [1/8] %v6688, 128
        %6914 = vxpose.xlu0.c.b16.cont [2/8] 0, 128
        %6915 = vxpose.xlu0.c.b16.cont [3/8] 0, 128
        %6916 = vxpose.xlu0.c.b16.cont [4/8] 0, 128
        %6917 = vxpose.xlu0.c.b16.cont [5/8] 0, 128
        %6918 = vxpose.xlu0.c.b16.cont [6/8] 0, 128
        %6919 = vxpose.xlu0.c.b16.cont [7/8] 0, 128
        %6920 = vxpose.xlu0.c.b16.end [8/8] 0, 128
        %v6921 = vpop.trf.xlu0
        %v6922 = vpop.trf.xlu0
        %v6923 = vpop.trf.xlu0
        %v6924 = vpop.trf.xlu0
        %v6925 = vpop.trf.xlu0
        %v6926 = vpop.trf.xlu0
        %v6927 = vpop.trf.xlu0
        %v6928 = vpop.trf.xlu0
        %6929 = vxpose.xlu0.c.b16.start [1/8] %v6689, 128
        %6930 = vxpose.xlu0.c.b16.cont [2/8] 0, 128
        %6931 = vxpose.xlu0.c.b16.cont [3/8] 0, 128
        %6932 = vxpose.xlu0.c.b16.cont [4/8] 0, 128
        %6933 = vxpose.xlu0.c.b16.cont [5/8] 0, 128
        %6934 = vxpose.xlu0.c.b16.cont [6/8] 0, 128
        %6935 = vxpose.xlu0.c.b16.cont [7/8] 0, 128
        %6936 = vxpose.xlu0.c.b16.end [8/8] 0, 128
        %v6937 = vpop.trf.xlu0
        %v6938 = vpop.trf.xlu0
        %v6939 = vpop.trf.xlu0
        %v6940 = vpop.trf.xlu0
        %v6941 = vpop.trf.xlu0
        %v6942 = vpop.trf.xlu0
        %v6943 = vpop.trf.xlu0
        %v6944 = vpop.trf.xlu0
        %6945 = vxpose.xlu0.c.b16.start [1/8] %v6690, 128
        %6946 = vxpose.xlu0.c.b16.cont [2/8] 0, 128
        %6947 = vxpose.xlu0.c.b16.cont [3/8] 0, 128
        %6948 = vxpose.xlu0.c.b16.cont [4/8] 0, 128
        %6949 = vxpose.xlu0.c.b16.cont [5/8] 0, 128
        %6950 = vxpose.xlu0.c.b16.cont [6/8] 0, 128
        %6951 = vxpose.xlu0.c.b16.cont [7/8] 0, 128
        %6952 = vxpose.xlu0.c.b16.end [8/8] 0, 128
        %v6953 = vpop.trf.xlu0
        %v6954 = vpop.trf.xlu0
        %v6955 = vpop.trf.xlu0
        %v6956 = vpop.trf.xlu0
        %v6957 = vpop.trf.xlu0
        %v6958 = vpop.trf.xlu0
        %v6959 = vpop.trf.xlu0
        %v6960 = vpop.trf.xlu0
        %6961 = vxpose.xlu0.c.b16.start [1/8] %v6691, 128
        %6962 = vxpose.xlu0.c.b16.cont [2/8] 0, 128
        %6963 = vxpose.xlu0.c.b16.cont [3/8] 0, 128
        %6964 = vxpose.xlu0.c.b16.cont [4/8] 0, 128
        %6965 = vxpose.xlu0.c.b16.cont [5/8] 0, 128
        %6966 = vxpose.xlu0.c.b16.cont [6/8] 0, 128
        %6967 = vxpose.xlu0.c.b16.cont [7/8] 0, 128
        %6968 = vxpose.xlu0.c.b16.end [8/8] 0, 128
        %v6969 = vpop.trf.xlu0
        %v6970 = vpop.trf.xlu0
        %v6971 = vpop.trf.xlu0
        %v6972 = vpop.trf.xlu0
        %v6973 = vpop.trf.xlu0
        %v6974 = vpop.trf.xlu0
        %v6975 = vpop.trf.xlu0
        %v6976 = vpop.trf.xlu0
        %v6977 = vcombine.low %v6857, %v6921
        %v6979 = vunpack.c.l.s4 1983009808
        %v6980 = vunpack.c.0.s8 %v6979
        %v6981 = vlaneseq
        %v6982 = vshrl.u32 %v6981, 7
        %v6983 = vsub.s32 %v6980, %v6982
        %v6984 = vrot.slane %v6977, %v6983
        %v6985 = vcombine.low %v6889, %v6953
        %v6987 = vunpack.c.l.s4 1983009808
        %v6988 = vunpack.c.0.s8 %v6987
        %v6989 = vlaneseq
        %v6990 = vshrl.u32 %v6989, 7
        %v6991 = vsub.s32 %v6988, %v6990
        %v6992 = vrot.slane %v6985, %v6991
        %v6993 = vcombine.low %v6984, %v6992
        %v6994 = vcombine.high %v6984, %v6992
        %v6996 = vunpack.c.l.s4 1934713408
        %v6997 = vunpack.c.0.s8 %v6996
        %v6998 = vlaneseq
        %v6999 = vshrl.u32 %v6998, 7
        %v7000 = vsub.s32 %v6997, %v6999
        %v7001 = vrot.slane %v6993, %v7000
        %v7003 = vunpack.c.l.s4 1934713408
        %v7004 = vunpack.c.0.s8 %v7003
        %v7005 = vlaneseq
        %v7006 = vshrl.u32 %v7005, 7
        %v7007 = vsub.s32 %v7004, %v7006
        %v7008 = vrot.slane %v6994, %v7007
        %v7009 = vcombine.high %v7001, 0
        %v7010 = vcombine.high %v7008, 0
        %v7011 = vcombine.low %v6873, %v6937
        %v7013 = vunpack.c.l.s4 1983009808
        %v7014 = vunpack.c.0.s8 %v7013
        %v7015 = vlaneseq
        %v7016 = vshrl.u32 %v7015, 7
        %v7017 = vsub.s32 %v7014, %v7016
        %v7018 = vrot.slane %v7011, %v7017
        %v7019 = vcombine.low %v6905, %v6969
        %v7021 = vunpack.c.l.s4 1983009808
        %v7022 = vunpack.c.0.s8 %v7021
        %v7023 = vlaneseq
        %v7024 = vshrl.u32 %v7023, 7
        %v7025 = vsub.s32 %v7022, %v7024
        %v7026 = vrot.slane %v7019, %v7025
        %v7027 = vcombine.low %v7018, %v7026
        %v7028 = vcombine.high %v7018, %v7026
        %v7030 = vunpack.c.l.s4 1934713408
        %v7031 = vunpack.c.0.s8 %v7030
        %v7032 = vlaneseq
        %v7033 = vshrl.u32 %v7032, 7
        %v7034 = vsub.s32 %v7031, %v7033
        %v7035 = vrot.slane %v7027, %v7034
        %v7037 = vunpack.c.l.s4 1934713408
        %v7038 = vunpack.c.0.s8 %v7037
        %v7039 = vlaneseq
        %v7040 = vshrl.u32 %v7039, 7
        %v7041 = vsub.s32 %v7038, %v7040
        %v7042 = vrot.slane %v7028, %v7041
        %v7043 = vcombine.high %v7035, 0
        %v7044 = vcombine.high %v7042, 0
        %v7047 = vpack.i.b16 %v7035, %v7001
        %v7049 = vshrl.u32 %v7001, 16
        %v7050 = vshrl.u32 %v7035, 16
        %v7051 = vpack.i.b16 %v7050, %v7049
        %v7055 = vpack.i.b16 %v7043, %v7009
        %v7057 = vshrl.u32 %v7009, 16
        %v7058 = vshrl.u32 %v7043, 16
        %v7059 = vpack.i.b16 %v7058, %v7057
        %v7063 = vpack.i.b16 %v7042, %v7008
        %v7065 = vshrl.u32 %v7008, 16
        %v7066 = vshrl.u32 %v7042, 16
        %v7067 = vpack.i.b16 %v7066, %v7065
        %v7071 = vpack.i.b16 %v7044, %v7010
        %v7073 = vshrl.u32 %v7010, 16
        %v7074 = vshrl.u32 %v7044, 16
        %v7075 = vpack.i.b16 %v7074, %v7073
        %7077 = vxpose.xlu0.c.b16.start [1/8] %v7047, 128
        %7078 = vxpose.xlu0.c.b16.cont [2/8] 0, 128
        %7079 = vxpose.xlu0.c.b16.cont [3/8] 0, 128
        %7080 = vxpose.xlu0.c.b16.cont [4/8] 0, 128
        %7081 = vxpose.xlu0.c.b16.cont [5/8] 0, 128
        %7082 = vxpose.xlu0.c.b16.cont [6/8] 0, 128
        %7083 = vxpose.xlu0.c.b16.cont [7/8] 0, 128
        %7084 = vxpose.xlu0.c.b16.end [8/8] 0, 128
        %v7085 = vpop.trf.xlu0
        %v7086 = vpop.trf.xlu0
        %v7087 = vpop.trf.xlu0
        %v7088 = vpop.trf.xlu0
        %v7089 = vpop.trf.xlu0
        %v7090 = vpop.trf.xlu0
        %v7091 = vpop.trf.xlu0
        %v7092 = vpop.trf.xlu0
        %7093 = vxpose.xlu0.c.b16.start [1/8] %v7051, 128
        %7094 = vxpose.xlu0.c.b16.cont [2/8] 0, 128
        %7095 = vxpose.xlu0.c.b16.cont [3/8] 0, 128
        %7096 = vxpose.xlu0.c.b16.cont [4/8] 0, 128
        %7097 = vxpose.xlu0.c.b16.cont [5/8] 0, 128
        %7098 = vxpose.xlu0.c.b16.cont [6/8] 0, 128
        %7099 = vxpose.xlu0.c.b16.cont [7/8] 0, 128
        %7100 = vxpose.xlu0.c.b16.end [8/8] 0, 128
        %v7101 = vpop.trf.xlu0
        %v7102 = vpop.trf.xlu0
        %v7103 = vpop.trf.xlu0
        %v7104 = vpop.trf.xlu0
        %v7105 = vpop.trf.xlu0
        %v7106 = vpop.trf.xlu0
        %v7107 = vpop.trf.xlu0
        %v7108 = vpop.trf.xlu0
        %7109 = vxpose.xlu0.c.b16.start [1/8] %v7055, 128
        %7110 = vxpose.xlu0.c.b16.cont [2/8] 0, 128
        %7111 = vxpose.xlu0.c.b16.cont [3/8] 0, 128
        %7112 = vxpose.xlu0.c.b16.cont [4/8] 0, 128
        %7113 = vxpose.xlu0.c.b16.cont [5/8] 0, 128
        %7114 = vxpose.xlu0.c.b16.cont [6/8] 0, 128
        %7115 = vxpose.xlu0.c.b16.cont [7/8] 0, 128
        %7116 = vxpose.xlu0.c.b16.end [8/8] 0, 128
        %v7117 = vpop.trf.xlu0
        %v7118 = vpop.trf.xlu0
        %v7119 = vpop.trf.xlu0
        %v7120 = vpop.trf.xlu0
        %v7121 = vpop.trf.xlu0
        %v7122 = vpop.trf.xlu0
        %v7123 = vpop.trf.xlu0
        %v7124 = vpop.trf.xlu0
        %7125 = vxpose.xlu0.c.b16.start [1/8] %v7059, 128
        %7126 = vxpose.xlu0.c.b16.cont [2/8] 0, 128
        %7127 = vxpose.xlu0.c.b16.cont [3/8] 0, 128
        %7128 = vxpose.xlu0.c.b16.cont [4/8] 0, 128
        %7129 = vxpose.xlu0.c.b16.cont [5/8] 0, 128
        %7130 = vxpose.xlu0.c.b16.cont [6/8] 0, 128
        %7131 = vxpose.xlu0.c.b16.cont [7/8] 0, 128
        %7132 = vxpose.xlu0.c.b16.end [8/8] 0, 128
        %v7133 = vpop.trf.xlu0
        %v7134 = vpop.trf.xlu0
        %v7135 = vpop.trf.xlu0
        %v7136 = vpop.trf.xlu0
        %v7137 = vpop.trf.xlu0
        %v7138 = vpop.trf.xlu0
        %v7139 = vpop.trf.xlu0
        %v7140 = vpop.trf.xlu0
        %7141 = vxpose.xlu0.c.b16.start [1/8] %v7063, 128
        %7142 = vxpose.xlu0.c.b16.cont [2/8] 0, 128
        %7143 = vxpose.xlu0.c.b16.cont [3/8] 0, 128
        %7144 = vxpose.xlu0.c.b16.cont [4/8] 0, 128
        %7145 = vxpose.xlu0.c.b16.cont [5/8] 0, 128
        %7146 = vxpose.xlu0.c.b16.cont [6/8] 0, 128
        %7147 = vxpose.xlu0.c.b16.cont [7/8] 0, 128
        %7148 = vxpose.xlu0.c.b16.end [8/8] 0, 128
        %v7149 = vpop.trf.xlu0
        %v7150 = vpop.trf.xlu0
        %v7151 = vpop.trf.xlu0
        %v7152 = vpop.trf.xlu0
        %v7153 = vpop.trf.xlu0
        %v7154 = vpop.trf.xlu0
        %v7155 = vpop.trf.xlu0
        %v7156 = vpop.trf.xlu0
        %7157 = vxpose.xlu0.c.b16.start [1/8] %v7067, 128
        %7158 = vxpose.xlu0.c.b16.cont [2/8] 0, 128
        %7159 = vxpose.xlu0.c.b16.cont [3/8] 0, 128
        %7160 = vxpose.xlu0.c.b16.cont [4/8] 0, 128
        %7161 = vxpose.xlu0.c.b16.cont [5/8] 0, 128
        %7162 = vxpose.xlu0.c.b16.cont [6/8] 0, 128
        %7163 = vxpose.xlu0.c.b16.cont [7/8] 0, 128
        %7164 = vxpose.xlu0.c.b16.end [8/8] 0, 128
        %v7165 = vpop.trf.xlu0
        %v7166 = vpop.trf.xlu0
        %v7167 = vpop.trf.xlu0
        %v7168 = vpop.trf.xlu0
        %v7169 = vpop.trf.xlu0
        %v7170 = vpop.trf.xlu0
        %v7171 = vpop.trf.xlu0
        %v7172 = vpop.trf.xlu0
        %7173 = vxpose.xlu0.c.b16.start [1/8] %v7071, 128
        %7174 = vxpose.xlu0.c.b16.cont [2/8] 0, 128
        %7175 = vxpose.xlu0.c.b16.cont [3/8] 0, 128
        %7176 = vxpose.xlu0.c.b16.cont [4/8] 0, 128
        %7177 = vxpose.xlu0.c.b16.cont [5/8] 0, 128
        %7178 = vxpose.xlu0.c.b16.cont [6/8] 0, 128
        %7179 = vxpose.xlu0.c.b16.cont [7/8] 0, 128
        %7180 = vxpose.xlu0.c.b16.end [8/8] 0, 128
        %v7181 = vpop.trf.xlu0
        %v7182 = vpop.trf.xlu0
        %v7183 = vpop.trf.xlu0
        %v7184 = vpop.trf.xlu0
        %v7185 = vpop.trf.xlu0
        %v7186 = vpop.trf.xlu0
        %v7187 = vpop.trf.xlu0
        %v7188 = vpop.trf.xlu0
        %7189 = vxpose.xlu0.c.b16.start [1/8] %v7075, 128
        %7190 = vxpose.xlu0.c.b16.cont [2/8] 0, 128
        %7191 = vxpose.xlu0.c.b16.cont [3/8] 0, 128
        %7192 = vxpose.xlu0.c.b16.cont [4/8] 0, 128
        %7193 = vxpose.xlu0.c.b16.cont [5/8] 0, 128
        %7194 = vxpose.xlu0.c.b16.cont [6/8] 0, 128
        %7195 = vxpose.xlu0.c.b16.cont [7/8] 0, 128
        %7196 = vxpose.xlu0.c.b16.end [8/8] 0, 128
        %v7197 = vpop.trf.xlu0
        %v7198 = vpop.trf.xlu0
        %v7199 = vpop.trf.xlu0
        %v7200 = vpop.trf.xlu0
        %v7201 = vpop.trf.xlu0
        %v7202 = vpop.trf.xlu0
        %v7203 = vpop.trf.xlu0
        %v7204 = vpop.trf.xlu0
        %v7205 = vcombine.low %v7085, %v7149
        %v7207 = vunpack.c.l.s4 1983009808
        %v7208 = vunpack.c.0.s8 %v7207
        %v7209 = vlaneseq
        %v7210 = vshrl.u32 %v7209, 7
        %v7211 = vsub.s32 %v7208, %v7210
        %v7212 = vrot.slane %v7205, %v7211
        %v7213 = vcombine.low %v7117, %v7181
        %v7215 = vunpack.c.l.s4 1983009808
        %v7216 = vunpack.c.0.s8 %v7215
        %v7217 = vlaneseq
        %v7218 = vshrl.u32 %v7217, 7
        %v7219 = vsub.s32 %v7216, %v7218
        %v7220 = vrot.slane %v7213, %v7219
        %v7221 = vcombine.low %v7212, %v7220
        %v7223 = vunpack.c.l.s4 1934713408
        %v7224 = vunpack.c.0.s8 %v7223
        %v7225 = vlaneseq
        %v7226 = vshrl.u32 %v7225, 7
        %v7227 = vsub.s32 %v7224, %v7226
        %v7228 = vrot.slane %v7221, %v7227
        %v7229 = vcombine.high %v7228, 0
        %v7230 = vcombine.low %v7101, %v7165
        %v7232 = vunpack.c.l.s4 1983009808
        %v7233 = vunpack.c.0.s8 %v7232
        %v7234 = vlaneseq
        %v7235 = vshrl.u32 %v7234, 7
        %v7236 = vsub.s32 %v7233, %v7235
        %v7237 = vrot.slane %v7230, %v7236
        %v7238 = vcombine.low %v7133, %v7197
        %v7240 = vunpack.c.l.s4 1983009808
        %v7241 = vunpack.c.0.s8 %v7240
        %v7242 = vlaneseq
        %v7243 = vshrl.u32 %v7242, 7
        %v7244 = vsub.s32 %v7241, %v7243
        %v7245 = vrot.slane %v7238, %v7244
        %v7246 = vcombine.low %v7237, %v7245
        %v7248 = vunpack.c.l.s4 1934713408
        %v7249 = vunpack.c.0.s8 %v7248
        %v7250 = vlaneseq
        %v7251 = vshrl.u32 %v7250, 7
        %v7252 = vsub.s32 %v7249, %v7251
        %v7253 = vrot.slane %v7246, %v7252
        %v7254 = vcombine.high %v7253, 0
        %v7257 = vpack.i.b16 %v7253, %v7228
        %v7258 = vshrl.u32 %v7228, 16
        %v7259 = vshrl.u32 %v7253, 16
        %v7260 = vpack.i.b16 %v7259, %v7258
        %v7263 = vpack.i.b16 %v7254, %v7229
        %v7264 = vshrl.u32 %v7229, 16
        %v7265 = vshrl.u32 %v7254, 16
        %v7266 = vpack.i.b16 %v7265, %v7264
        %v7268 = vsel %vm1427, %v6839, 0
        %v7271 = vsel %vm1431, %v7257, 0
        %7273 = vmatprep.subr.bf16.mxu0 0
        %7274 = vmatpush1.bf16.msra.mxu0 %v7271
        %7275 = vmatprep.subr.bf16.mxu0 0
        %7276 = vmatpush1.bf16.msra.mxu0 0
        %7277 = vmatprep.subr.bf16.mxu0 0
        %7278 = vmatpush1.bf16.msra.mxu0 0
        %7279 = vmatprep.subr.bf16.mxu0 0
        %7280 = vmatpush1.bf16.msra.mxu0 0
        %7281 = vmatprep.subr.bf16.mxu0 0
        %7282 = vmatpush1.bf16.msra.mxu0 0
        %7283 = vmatprep.subr.bf16.mxu0 0
        %7284 = vmatpush1.bf16.msra.mxu0 0
        %7285 = vmatprep.subr.bf16.mxu0 0
        %7286 = vmatpush1.bf16.msra.mxu0 0
        %7287 = vmatprep.subr.bf16.mxu0 0
        %7288 = vmatpush1.bf16.msra.mxu0 0
        %7289 = vmatprep.subr.bf16.mxu0 0
        %7290 = vmatpush1.bf16.msra.mxu0 0
        %7291 = vmatprep.subr.bf16.mxu0 0
        %7292 = vmatpush1.bf16.msra.mxu0 0
        %7293 = vmatprep.subr.bf16.mxu0 0
        %7294 = vmatpush1.bf16.msra.mxu0 0
        %7295 = vmatprep.subr.bf16.mxu0 0
        %7296 = vmatpush1.bf16.msra.mxu0 0
        %7297 = vmatprep.subr.bf16.mxu0 0
        %7298 = vmatpush1.bf16.msra.mxu0 0
        %7299 = vmatprep.subr.bf16.mxu0 0
        %7300 = vmatpush1.bf16.msra.mxu0 0
        %7301 = vmatprep.subr.bf16.mxu0 0
        %7302 = vmatpush1.bf16.msra.mxu0 0
        %7303 = vmatprep.subr.bf16.mxu0 0
        %7304 = vmatpush1.bf16.msra.mxu0 0
        %7305 = vmatprep.mubr.bf16.mxu0 0
        %7306 = vmatmul.mubr.bf16.gmra.mrb[0].mxu0 %v7268
        %v7307 = vpop.f32.mrb[0].mxu0
        %v7308 = vadd.f32 %v579, %v7307
        %v7309 = vpop.f32.mrb[0].mxu0
        %v7310 = vpop.f32.mrb[0].mxu0
        %v7311 = vpop.f32.mrb[0].mxu0
        %7312 = vdwg.mxu0
        %v7314 = vsel %vm1427, %v6842, 0
        %v7317 = vsel %vm1431, %v7260, 0
        %7319 = vmatprep.subr.bf16.mxu0 0
        %7320 = vmatpush1.bf16.msra.mxu0 %v7317
        %7321 = vmatprep.subr.bf16.mxu0 0
        %7322 = vmatpush1.bf16.msra.mxu0 0
        %7323 = vmatprep.subr.bf16.mxu0 0
        %7324 = vmatpush1.bf16.msra.mxu0 0
        %7325 = vmatprep.subr.bf16.mxu0 0
        %7326 = vmatpush1.bf16.msra.mxu0 0
        %7327 = vmatprep.subr.bf16.mxu0 0
        %7328 = vmatpush1.bf16.msra.mxu0 0
        %7329 = vmatprep.subr.bf16.mxu0 0
        %7330 = vmatpush1.bf16.msra.mxu0 0
        %7331 = vmatprep.subr.bf16.mxu0 0
        %7332 = vmatpush1.bf16.msra.mxu0 0
        %7333 = vmatprep.subr.bf16.mxu0 0
        %7334 = vmatpush1.bf16.msra.mxu0 0
        %7335 = vmatprep.subr.bf16.mxu0 0
        %7336 = vmatpush1.bf16.msra.mxu0 0
        %7337 = vmatprep.subr.bf16.mxu0 0
        %7338 = vmatpush1.bf16.msra.mxu0 0
        %7339 = vmatprep.subr.bf16.mxu0 0
        %7340 = vmatpush1.bf16.msra.mxu0 0
        %7341 = vmatprep.subr.bf16.mxu0 0
        %7342 = vmatpush1.bf16.msra.mxu0 0
        %7343 = vmatprep.subr.bf16.mxu0 0
        %7344 = vmatpush1.bf16.msra.mxu0 0
        %7345 = vmatprep.subr.bf16.mxu0 0
        %7346 = vmatpush1.bf16.msra.mxu0 0
        %7347 = vmatprep.subr.bf16.mxu0 0
        %7348 = vmatpush1.bf16.msra.mxu0 0
        %7349 = vmatprep.subr.bf16.mxu0 0
        %7350 = vmatpush1.bf16.msra.mxu0 0
        %7351 = vmatprep.mubr.bf16.mxu0 0
        %7352 = vmatmul.mubr.bf16.gmra.mrb[0].mxu0 %v7314
        %v7353 = vpop.f32.mrb[0].mxu0
        %v7354 = vadd.f32 %v579, %v7353
        %v7355 = vpop.f32.mrb[0].mxu0
        %v7356 = vpop.f32.mrb[0].mxu0
        %v7357 = vpop.f32.mrb[0].mxu0
        %7358 = vdwg.mxu0
        %v7360 = vsel %vm1427, %v6845, 0
        %v7363 = vsel %vm1431, %v7263, 0
        %7365 = vmatprep.subr.bf16.mxu0 0
        %7366 = vmatpush1.bf16.msra.mxu0 %v7363
        %7367 = vmatprep.subr.bf16.mxu0 0
        %7368 = vmatpush1.bf16.msra.mxu0 0
        %7369 = vmatprep.subr.bf16.mxu0 0
        %7370 = vmatpush1.bf16.msra.mxu0 0
        %7371 = vmatprep.subr.bf16.mxu0 0
        %7372 = vmatpush1.bf16.msra.mxu0 0
        %7373 = vmatprep.subr.bf16.mxu0 0
        %7374 = vmatpush1.bf16.msra.mxu0 0
        %7375 = vmatprep.subr.bf16.mxu0 0
        %7376 = vmatpush1.bf16.msra.mxu0 0
        %7377 = vmatprep.subr.bf16.mxu0 0
        %7378 = vmatpush1.bf16.msra.mxu0 0
        %7379 = vmatprep.subr.bf16.mxu0 0
        %7380 = vmatpush1.bf16.msra.mxu0 0
        %7381 = vmatprep.subr.bf16.mxu0 0
        %7382 = vmatpush1.bf16.msra.mxu0 0
        %7383 = vmatprep.subr.bf16.mxu0 0
        %7384 = vmatpush1.bf16.msra.mxu0 0
        %7385 = vmatprep.subr.bf16.mxu0 0
        %7386 = vmatpush1.bf16.msra.mxu0 0
        %7387 = vmatprep.subr.bf16.mxu0 0
        %7388 = vmatpush1.bf16.msra.mxu0 0
        %7389 = vmatprep.subr.bf16.mxu0 0
        %7390 = vmatpush1.bf16.msra.mxu0 0
        %7391 = vmatprep.subr.bf16.mxu0 0
        %7392 = vmatpush1.bf16.msra.mxu0 0
        %7393 = vmatprep.subr.bf16.mxu0 0
        %7394 = vmatpush1.bf16.msra.mxu0 0
        %7395 = vmatprep.subr.bf16.mxu0 0
        %7396 = vmatpush1.bf16.msra.mxu0 0
        %7397 = vmatprep.mubr.bf16.mxu0 0
        %7398 = vmatmul.mubr.bf16.gmra.mrb[0].mxu0 %v7360
        %v7399 = vpop.f32.mrb[0].mxu0
        %v7400 = vadd.f32 %v579, %v7399
        %v7401 = vpop.f32.mrb[0].mxu0
        %v7402 = vpop.f32.mrb[0].mxu0
        %v7403 = vpop.f32.mrb[0].mxu0
        %7404 = vdwg.mxu0
        %v7406 = vsel %vm1427, %v6848, 0
        %v7409 = vsel %vm1431, %v7266, 0
        %7411 = vmatprep.subr.bf16.mxu0 0
        %7412 = vmatpush1.bf16.msra.mxu0 %v7409
        %7413 = vmatprep.subr.bf16.mxu0 0
        %7414 = vmatpush1.bf16.msra.mxu0 0
        %7415 = vmatprep.subr.bf16.mxu0 0
        %7416 = vmatpush1.bf16.msra.mxu0 0
        %7417 = vmatprep.subr.bf16.mxu0 0
        %7418 = vmatpush1.bf16.msra.mxu0 0
        %7419 = vmatprep.subr.bf16.mxu0 0
        %7420 = vmatpush1.bf16.msra.mxu0 0
        %7421 = vmatprep.subr.bf16.mxu0 0
        %7422 = vmatpush1.bf16.msra.mxu0 0
        %7423 = vmatprep.subr.bf16.mxu0 0
        %7424 = vmatpush1.bf16.msra.mxu0 0
        %7425 = vmatprep.subr.bf16.mxu0 0
        %7426 = vmatpush1.bf16.msra.mxu0 0
        %7427 = vmatprep.subr.bf16.mxu0 0
        %7428 = vmatpush1.bf16.msra.mxu0 0
        %7429 = vmatprep.subr.bf16.mxu0 0
        %7430 = vmatpush1.bf16.msra.mxu0 0
        %7431 = vmatprep.subr.bf16.mxu0 0
        %7432 = vmatpush1.bf16.msra.mxu0 0
        %7433 = vmatprep.subr.bf16.mxu0 0
        %7434 = vmatpush1.bf16.msra.mxu0 0
        %7435 = vmatprep.subr.bf16.mxu0 0
        %7436 = vmatpush1.bf16.msra.mxu0 0
        %7437 = vmatprep.subr.bf16.mxu0 0
        %7438 = vmatpush1.bf16.msra.mxu0 0
        %7439 = vmatprep.subr.bf16.mxu0 0
        %7440 = vmatpush1.bf16.msra.mxu0 0
        %7441 = vmatprep.subr.bf16.mxu0 0
        %7442 = vmatpush1.bf16.msra.mxu0 0
        %7443 = vmatprep.mubr.bf16.mxu0 0
        %7444 = vmatmul.mubr.bf16.gmra.mrb[0].mxu0 %v7406
        %v7445 = vpop.f32.mrb[0].mxu0
        %v7446 = vadd.f32 %v579, %v7445
        %v7447 = vpop.f32.mrb[0].mxu0
        %v7448 = vpop.f32.mrb[0].mxu0
        %v7449 = vpop.f32.mrb[0].mxu0
        %7450 = vdwg.mxu0
        %v7451 = vsel %vm1427, %v7308, -inf
        %7452 = vmax.xlane.f32.xlu0 %v7451
        %v7453 = vpop.xlane.xlu0 %7452
        %v7454 = vsel %vm1427, %v7354, -inf
        %7455 = vmax.xlane.f32.xlu0 %v7454
        %v7456 = vpop.xlane.xlu0 %7455
        %v7457 = vsel %vm1427, %v7400, -inf
        %7458 = vmax.xlane.f32.xlu0 %v7457
        %v7459 = vpop.xlane.xlu0 %7458
        %v7460 = vsel %vm1427, %v7446, -inf
        %7461 = vmax.xlane.f32.xlu0 %v7460
        %v7462 = vpop.xlane.xlu0 %7461
        %v7463 = vsub.f32 %v7308, %v7453
        %v7464 = vsub.f32 %v7354, %v7456
        %v7465 = vsub.f32 %v7400, %v7459
        %v7466 = vsub.f32 %v7446, %v7462
        %v7467 = vmul.f32 %v7463, 1.442695
        %v7468 = vpow.pop %v7467
        %v7469 = vmul.f32 %v7464, 1.442695
        %v7470 = vpow.pop %v7469
        %v7471 = vmul.f32 %v7465, 1.442695
        %v7472 = vpow.pop %v7471
        %v7473 = vmul.f32 %v7466, 1.442695
        %v7474 = vpow.pop %v7473
        %v7475 = vsel %vm1427, %v7468, 0.0
        %7476 = vadd.xlane.f32.xlu0 %v7475
        %v7477 = vpop.xlane.xlu0 %7476
        %v7478 = vsel %vm1427, %v7470, 0.0
        %7479 = vadd.xlane.f32.xlu0 %v7478
        %v7480 = vpop.xlane.xlu0 %7479
        %v7481 = vsel %vm1427, %v7472, 0.0
        %7482 = vadd.xlane.f32.xlu0 %v7481
        %v7483 = vpop.xlane.xlu0 %7482
        %v7484 = vsel %vm1427, %v7474, 0.0
        %7485 = vadd.xlane.f32.xlu0 %v7484
        %v7486 = vpop.xlane.xlu0 %7485
        %v7487 = vrcp.pop %v7477
        %v7488 = vrcp.pop %v7480
        %v7489 = vrcp.pop %v7483
        %v7490 = vrcp.pop %v7486
        %v7491 = vmul.f32 %v7468, %v7487
        %v7492 = vmul.f32 %v7470, %v7488
        %v7493 = vmul.f32 %v7472, %v7489
        %v7494 = vmul.f32 %v7474, %v7490
        %v7495 = vpack.c.bf16 %v7491, %v7491
        %v7496 = vpack.c.bf16 %v7492, %v7492
        %v7497 = vpack.c.bf16 %v7493, %v7493
        %v7498 = vpack.c.bf16 %v7494, %v7494
        %7499 = vxpose.xlu0.c.b16.start [1/8] %v6779, 128
        %7500 = vxpose.xlu0.c.b16.cont [2/8] 0, 128
        %7501 = vxpose.xlu0.c.b16.cont [3/8] 0, 128
        %7502 = vxpose.xlu0.c.b16.cont [4/8] 0, 128
        %7503 = vxpose.xlu0.c.b16.cont [5/8] 0, 128
        %7504 = vxpose.xlu0.c.b16.cont [6/8] 0, 128
        %7505 = vxpose.xlu0.c.b16.cont [7/8] 0, 128
        %7506 = vxpose.xlu0.c.b16.end [8/8] 0, 128
        %v7507 = vpop.trf.xlu0
        %v7508 = vpop.trf.xlu0
        %v7509 = vpop.trf.xlu0
        %v7510 = vpop.trf.xlu0
        %v7511 = vpop.trf.xlu0
        %v7512 = vpop.trf.xlu0
        %v7513 = vpop.trf.xlu0
        %v7514 = vpop.trf.xlu0
        %7515 = vxpose.xlu0.c.b16.start [1/8] %v6780, 128
        %7516 = vxpose.xlu0.c.b16.cont [2/8] 0, 128
        %7517 = vxpose.xlu0.c.b16.cont [3/8] 0, 128
        %7518 = vxpose.xlu0.c.b16.cont [4/8] 0, 128
        %7519 = vxpose.xlu0.c.b16.cont [5/8] 0, 128
        %7520 = vxpose.xlu0.c.b16.cont [6/8] 0, 128
        %7521 = vxpose.xlu0.c.b16.cont [7/8] 0, 128
        %7522 = vxpose.xlu0.c.b16.end [8/8] 0, 128
        %v7523 = vpop.trf.xlu0
        %v7524 = vpop.trf.xlu0
        %v7525 = vpop.trf.xlu0
        %v7526 = vpop.trf.xlu0
        %v7527 = vpop.trf.xlu0
        %v7528 = vpop.trf.xlu0
        %v7529 = vpop.trf.xlu0
        %v7530 = vpop.trf.xlu0
        %7531 = vxpose.xlu0.c.b16.start [1/8] %v6781, 128
        %7532 = vxpose.xlu0.c.b16.cont [2/8] 0, 128
        %7533 = vxpose.xlu0.c.b16.cont [3/8] 0, 128
        %7534 = vxpose.xlu0.c.b16.cont [4/8] 0, 128
        %7535 = vxpose.xlu0.c.b16.cont [5/8] 0, 128
        %7536 = vxpose.xlu0.c.b16.cont [6/8] 0, 128
        %7537 = vxpose.xlu0.c.b16.cont [7/8] 0, 128
        %7538 = vxpose.xlu0.c.b16.end [8/8] 0, 128
        %v7539 = vpop.trf.xlu0
        %v7540 = vpop.trf.xlu0
        %v7541 = vpop.trf.xlu0
        %v7542 = vpop.trf.xlu0
        %v7543 = vpop.trf.xlu0
        %v7544 = vpop.trf.xlu0
        %v7545 = vpop.trf.xlu0
        %v7546 = vpop.trf.xlu0
        %7547 = vxpose.xlu0.c.b16.start [1/8] %v6782, 128
        %7548 = vxpose.xlu0.c.b16.cont [2/8] 0, 128
        %7549 = vxpose.xlu0.c.b16.cont [3/8] 0, 128
        %7550 = vxpose.xlu0.c.b16.cont [4/8] 0, 128
        %7551 = vxpose.xlu0.c.b16.cont [5/8] 0, 128
        %7552 = vxpose.xlu0.c.b16.cont [6/8] 0, 128
        %7553 = vxpose.xlu0.c.b16.cont [7/8] 0, 128
        %7554 = vxpose.xlu0.c.b16.end [8/8] 0, 128
        %v7555 = vpop.trf.xlu0
        %v7556 = vpop.trf.xlu0
        %v7557 = vpop.trf.xlu0
        %v7558 = vpop.trf.xlu0
        %v7559 = vpop.trf.xlu0
        %v7560 = vpop.trf.xlu0
        %v7561 = vpop.trf.xlu0
        %v7562 = vpop.trf.xlu0
        %7563 = vxpose.xlu0.c.b16.start [1/8] %v6783, 128
        %7564 = vxpose.xlu0.c.b16.cont [2/8] 0, 128
        %7565 = vxpose.xlu0.c.b16.cont [3/8] 0, 128
        %7566 = vxpose.xlu0.c.b16.cont [4/8] 0, 128
        %7567 = vxpose.xlu0.c.b16.cont [5/8] 0, 128
        %7568 = vxpose.xlu0.c.b16.cont [6/8] 0, 128
        %7569 = vxpose.xlu0.c.b16.cont [7/8] 0, 128
        %7570 = vxpose.xlu0.c.b16.end [8/8] 0, 128
        %v7571 = vpop.trf.xlu0
        %v7572 = vpop.trf.xlu0
        %v7573 = vpop.trf.xlu0
        %v7574 = vpop.trf.xlu0
        %v7575 = vpop.trf.xlu0
        %v7576 = vpop.trf.xlu0
        %v7577 = vpop.trf.xlu0
        %v7578 = vpop.trf.xlu0
        %7579 = vxpose.xlu0.c.b16.start [1/8] %v6784, 128
        %7580 = vxpose.xlu0.c.b16.cont [2/8] 0, 128
        %7581 = vxpose.xlu0.c.b16.cont [3/8] 0, 128
        %7582 = vxpose.xlu0.c.b16.cont [4/8] 0, 128
        %7583 = vxpose.xlu0.c.b16.cont [5/8] 0, 128
        %7584 = vxpose.xlu0.c.b16.cont [6/8] 0, 128
        %7585 = vxpose.xlu0.c.b16.cont [7/8] 0, 128
        %7586 = vxpose.xlu0.c.b16.end [8/8] 0, 128
        %v7587 = vpop.trf.xlu0
        %v7588 = vpop.trf.xlu0
        %v7589 = vpop.trf.xlu0
        %v7590 = vpop.trf.xlu0
        %v7591 = vpop.trf.xlu0
        %v7592 = vpop.trf.xlu0
        %v7593 = vpop.trf.xlu0
        %v7594 = vpop.trf.xlu0
        %7595 = vxpose.xlu0.c.b16.start [1/8] %v6785, 128
        %7596 = vxpose.xlu0.c.b16.cont [2/8] 0, 128
        %7597 = vxpose.xlu0.c.b16.cont [3/8] 0, 128
        %7598 = vxpose.xlu0.c.b16.cont [4/8] 0, 128
        %7599 = vxpose.xlu0.c.b16.cont [5/8] 0, 128
        %7600 = vxpose.xlu0.c.b16.cont [6/8] 0, 128
        %7601 = vxpose.xlu0.c.b16.cont [7/8] 0, 128
        %7602 = vxpose.xlu0.c.b16.end [8/8] 0, 128
        %v7603 = vpop.trf.xlu0
        %v7604 = vpop.trf.xlu0
        %v7605 = vpop.trf.xlu0
        %v7606 = vpop.trf.xlu0
        %v7607 = vpop.trf.xlu0
        %v7608 = vpop.trf.xlu0
        %v7609 = vpop.trf.xlu0
        %v7610 = vpop.trf.xlu0
        %7611 = vxpose.xlu0.c.b16.start [1/8] %v6786, 128
        %7612 = vxpose.xlu0.c.b16.cont [2/8] 0, 128
        %7613 = vxpose.xlu0.c.b16.cont [3/8] 0, 128
        %7614 = vxpose.xlu0.c.b16.cont [4/8] 0, 128
        %7615 = vxpose.xlu0.c.b16.cont [5/8] 0, 128
        %7616 = vxpose.xlu0.c.b16.cont [6/8] 0, 128
        %7617 = vxpose.xlu0.c.b16.cont [7/8] 0, 128
        %7618 = vxpose.xlu0.c.b16.end [8/8] 0, 128
        %v7619 = vpop.trf.xlu0
        %v7620 = vpop.trf.xlu0
        %v7621 = vpop.trf.xlu0
        %v7622 = vpop.trf.xlu0
        %v7623 = vpop.trf.xlu0
        %v7624 = vpop.trf.xlu0
        %v7625 = vpop.trf.xlu0
        %v7626 = vpop.trf.xlu0
        %v7627 = vcombine.low %v7507, %v7571
        %v7629 = vunpack.c.l.s4 1983009808
        %v7630 = vunpack.c.0.s8 %v7629
        %v7631 = vlaneseq
        %v7632 = vshrl.u32 %v7631, 7
        %v7633 = vsub.s32 %v7630, %v7632
        %v7634 = vrot.slane %v7627, %v7633
        %v7635 = vcombine.low %v7539, %v7603
        %v7637 = vunpack.c.l.s4 1983009808
        %v7638 = vunpack.c.0.s8 %v7637
        %v7639 = vlaneseq
        %v7640 = vshrl.u32 %v7639, 7
        %v7641 = vsub.s32 %v7638, %v7640
        %v7642 = vrot.slane %v7635, %v7641
        %v7643 = vcombine.low %v7634, %v7642
        %v7644 = vcombine.high %v7634, %v7642
        %v7646 = vunpack.c.l.s4 1934713408
        %v7647 = vunpack.c.0.s8 %v7646
        %v7648 = vlaneseq
        %v7649 = vshrl.u32 %v7648, 7
        %v7650 = vsub.s32 %v7647, %v7649
        %v7651 = vrot.slane %v7643, %v7650
        %v7653 = vunpack.c.l.s4 1934713408
        %v7654 = vunpack.c.0.s8 %v7653
        %v7655 = vlaneseq
        %v7656 = vshrl.u32 %v7655, 7
        %v7657 = vsub.s32 %v7654, %v7656
        %v7658 = vrot.slane %v7644, %v7657
        %v7659 = vcombine.high %v7651, 0
        %v7660 = vcombine.high %v7658, 0
        %v7661 = vcombine.low %v7523, %v7587
        %v7663 = vunpack.c.l.s4 1983009808
        %v7664 = vunpack.c.0.s8 %v7663
        %v7665 = vlaneseq
        %v7666 = vshrl.u32 %v7665, 7
        %v7667 = vsub.s32 %v7664, %v7666
        %v7668 = vrot.slane %v7661, %v7667
        %v7669 = vcombine.low %v7555, %v7619
        %v7671 = vunpack.c.l.s4 1983009808
        %v7672 = vunpack.c.0.s8 %v7671
        %v7673 = vlaneseq
        %v7674 = vshrl.u32 %v7673, 7
        %v7675 = vsub.s32 %v7672, %v7674
        %v7676 = vrot.slane %v7669, %v7675
        %v7677 = vcombine.low %v7668, %v7676
        %v7678 = vcombine.high %v7668, %v7676
        %v7680 = vunpack.c.l.s4 1934713408
        %v7681 = vunpack.c.0.s8 %v7680
        %v7682 = vlaneseq
        %v7683 = vshrl.u32 %v7682, 7
        %v7684 = vsub.s32 %v7681, %v7683
        %v7685 = vrot.slane %v7677, %v7684
        %v7687 = vunpack.c.l.s4 1934713408
        %v7688 = vunpack.c.0.s8 %v7687
        %v7689 = vlaneseq
        %v7690 = vshrl.u32 %v7689, 7
        %v7691 = vsub.s32 %v7688, %v7690
        %v7692 = vrot.slane %v7678, %v7691
        %v7693 = vcombine.high %v7685, 0
        %v7694 = vcombine.high %v7692, 0
        %v7697 = vpack.i.b16 %v7685, %v7651
        %v7699 = vshrl.u32 %v7651, 16
        %v7700 = vshrl.u32 %v7685, 16
        %v7701 = vpack.i.b16 %v7700, %v7699
        %v7705 = vpack.i.b16 %v7693, %v7659
        %v7707 = vshrl.u32 %v7659, 16
        %v7708 = vshrl.u32 %v7693, 16
        %v7709 = vpack.i.b16 %v7708, %v7707
        %v7713 = vpack.i.b16 %v7692, %v7658
        %v7715 = vshrl.u32 %v7658, 16
        %v7716 = vshrl.u32 %v7692, 16
        %v7717 = vpack.i.b16 %v7716, %v7715
        %v7721 = vpack.i.b16 %v7694, %v7660
        %v7723 = vshrl.u32 %v7660, 16
        %v7724 = vshrl.u32 %v7694, 16
        %v7725 = vpack.i.b16 %v7724, %v7723
        %7727 = vxpose.xlu0.c.b16.start [1/8] %v7697, 128
        %7728 = vxpose.xlu0.c.b16.cont [2/8] 0, 128
        %7729 = vxpose.xlu0.c.b16.cont [3/8] 0, 128
        %7730 = vxpose.xlu0.c.b16.cont [4/8] 0, 128
        %7731 = vxpose.xlu0.c.b16.cont [5/8] 0, 128
        %7732 = vxpose.xlu0.c.b16.cont [6/8] 0, 128
        %7733 = vxpose.xlu0.c.b16.cont [7/8] 0, 128
        %7734 = vxpose.xlu0.c.b16.end [8/8] 0, 128
        %v7735 = vpop.trf.xlu0
        %v7736 = vpop.trf.xlu0
        %v7737 = vpop.trf.xlu0
        %v7738 = vpop.trf.xlu0
        %v7739 = vpop.trf.xlu0
        %v7740 = vpop.trf.xlu0
        %v7741 = vpop.trf.xlu0
        %v7742 = vpop.trf.xlu0
        %7743 = vxpose.xlu0.c.b16.start [1/8] %v7701, 128
        %7744 = vxpose.xlu0.c.b16.cont [2/8] 0, 128
        %7745 = vxpose.xlu0.c.b16.cont [3/8] 0, 128
        %7746 = vxpose.xlu0.c.b16.cont [4/8] 0, 128
        %7747 = vxpose.xlu0.c.b16.cont [5/8] 0, 128
        %7748 = vxpose.xlu0.c.b16.cont [6/8] 0, 128
        %7749 = vxpose.xlu0.c.b16.cont [7/8] 0, 128
        %7750 = vxpose.xlu0.c.b16.end [8/8] 0, 128
        %v7751 = vpop.trf.xlu0
        %v7752 = vpop.trf.xlu0
        %v7753 = vpop.trf.xlu0
        %v7754 = vpop.trf.xlu0
        %v7755 = vpop.trf.xlu0
        %v7756 = vpop.trf.xlu0
        %v7757 = vpop.trf.xlu0
        %v7758 = vpop.trf.xlu0
        %7759 = vxpose.xlu0.c.b16.start [1/8] %v7705, 128
        %7760 = vxpose.xlu0.c.b16.cont [2/8] 0, 128
        %7761 = vxpose.xlu0.c.b16.cont [3/8] 0, 128
        %7762 = vxpose.xlu0.c.b16.cont [4/8] 0, 128
        %7763 = vxpose.xlu0.c.b16.cont [5/8] 0, 128
        %7764 = vxpose.xlu0.c.b16.cont [6/8] 0, 128
        %7765 = vxpose.xlu0.c.b16.cont [7/8] 0, 128
        %7766 = vxpose.xlu0.c.b16.end [8/8] 0, 128
        %v7767 = vpop.trf.xlu0
        %v7768 = vpop.trf.xlu0
        %v7769 = vpop.trf.xlu0
        %v7770 = vpop.trf.xlu0
        %v7771 = vpop.trf.xlu0
        %v7772 = vpop.trf.xlu0
        %v7773 = vpop.trf.xlu0
        %v7774 = vpop.trf.xlu0
        %7775 = vxpose.xlu0.c.b16.start [1/8] %v7709, 128
        %7776 = vxpose.xlu0.c.b16.cont [2/8] 0, 128
        %7777 = vxpose.xlu0.c.b16.cont [3/8] 0, 128
        %7778 = vxpose.xlu0.c.b16.cont [4/8] 0, 128
        %7779 = vxpose.xlu0.c.b16.cont [5/8] 0, 128
        %7780 = vxpose.xlu0.c.b16.cont [6/8] 0, 128
        %7781 = vxpose.xlu0.c.b16.cont [7/8] 0, 128
        %7782 = vxpose.xlu0.c.b16.end [8/8] 0, 128
        %v7783 = vpop.trf.xlu0
        %v7784 = vpop.trf.xlu0
        %v7785 = vpop.trf.xlu0
        %v7786 = vpop.trf.xlu0
        %v7787 = vpop.trf.xlu0
        %v7788 = vpop.trf.xlu0
        %v7789 = vpop.trf.xlu0
        %v7790 = vpop.trf.xlu0
        %7791 = vxpose.xlu0.c.b16.start [1/8] %v7713, 128
        %7792 = vxpose.xlu0.c.b16.cont [2/8] 0, 128
        %7793 = vxpose.xlu0.c.b16.cont [3/8] 0, 128
        %7794 = vxpose.xlu0.c.b16.cont [4/8] 0, 128
        %7795 = vxpose.xlu0.c.b16.cont [5/8] 0, 128
        %7796 = vxpose.xlu0.c.b16.cont [6/8] 0, 128
        %7797 = vxpose.xlu0.c.b16.cont [7/8] 0, 128
        %7798 = vxpose.xlu0.c.b16.end [8/8] 0, 128
        %v7799 = vpop.trf.xlu0
        %v7800 = vpop.trf.xlu0
        %v7801 = vpop.trf.xlu0
        %v7802 = vpop.trf.xlu0
        %v7803 = vpop.trf.xlu0
        %v7804 = vpop.trf.xlu0
        %v7805 = vpop.trf.xlu0
        %v7806 = vpop.trf.xlu0
        %7807 = vxpose.xlu0.c.b16.start [1/8] %v7717, 128
        %7808 = vxpose.xlu0.c.b16.cont [2/8] 0, 128
        %7809 = vxpose.xlu0.c.b16.cont [3/8] 0, 128
        %7810 = vxpose.xlu0.c.b16.cont [4/8] 0, 128
        %7811 = vxpose.xlu0.c.b16.cont [5/8] 0, 128
        %7812 = vxpose.xlu0.c.b16.cont [6/8] 0, 128
        %7813 = vxpose.xlu0.c.b16.cont [7/8] 0, 128
        %7814 = vxpose.xlu0.c.b16.end [8/8] 0, 128
        %v7815 = vpop.trf.xlu0
        %v7816 = vpop.trf.xlu0
        %v7817 = vpop.trf.xlu0
        %v7818 = vpop.trf.xlu0
        %v7819 = vpop.trf.xlu0
        %v7820 = vpop.trf.xlu0
        %v7821 = vpop.trf.xlu0
        %v7822 = vpop.trf.xlu0
        %7823 = vxpose.xlu0.c.b16.start [1/8] %v7721, 128
        %7824 = vxpose.xlu0.c.b16.cont [2/8] 0, 128
        %7825 = vxpose.xlu0.c.b16.cont [3/8] 0, 128
        %7826 = vxpose.xlu0.c.b16.cont [4/8] 0, 128
        %7827 = vxpose.xlu0.c.b16.cont [5/8] 0, 128
        %7828 = vxpose.xlu0.c.b16.cont [6/8] 0, 128
        %7829 = vxpose.xlu0.c.b16.cont [7/8] 0, 128
        %7830 = vxpose.xlu0.c.b16.end [8/8] 0, 128
        %v7831 = vpop.trf.xlu0
        %v7832 = vpop.trf.xlu0
        %v7833 = vpop.trf.xlu0
        %v7834 = vpop.trf.xlu0
        %v7835 = vpop.trf.xlu0
        %v7836 = vpop.trf.xlu0
        %v7837 = vpop.trf.xlu0
        %v7838 = vpop.trf.xlu0
        %7839 = vxpose.xlu0.c.b16.start [1/8] %v7725, 128
        %7840 = vxpose.xlu0.c.b16.cont [2/8] 0, 128
        %7841 = vxpose.xlu0.c.b16.cont [3/8] 0, 128
        %7842 = vxpose.xlu0.c.b16.cont [4/8] 0, 128
        %7843 = vxpose.xlu0.c.b16.cont [5/8] 0, 128
        %7844 = vxpose.xlu0.c.b16.cont [6/8] 0, 128
        %7845 = vxpose.xlu0.c.b16.cont [7/8] 0, 128
        %7846 = vxpose.xlu0.c.b16.end [8/8] 0, 128
        %v7847 = vpop.trf.xlu0
        %v7848 = vpop.trf.xlu0
        %v7849 = vpop.trf.xlu0
        %v7850 = vpop.trf.xlu0
        %v7851 = vpop.trf.xlu0
        %v7852 = vpop.trf.xlu0
        %v7853 = vpop.trf.xlu0
        %v7854 = vpop.trf.xlu0
        %v7855 = vcombine.low %v7735, %v7799
        %v7857 = vunpack.c.l.s4 1983009808
        %v7858 = vunpack.c.0.s8 %v7857
        %v7859 = vlaneseq
        %v7860 = vshrl.u32 %v7859, 7
        %v7861 = vsub.s32 %v7858, %v7860
        %v7862 = vrot.slane %v7855, %v7861
        %v7863 = vcombine.low %v7767, %v7831
        %v7865 = vunpack.c.l.s4 1983009808
        %v7866 = vunpack.c.0.s8 %v7865
        %v7867 = vlaneseq
        %v7868 = vshrl.u32 %v7867, 7
        %v7869 = vsub.s32 %v7866, %v7868
        %v7870 = vrot.slane %v7863, %v7869
        %v7871 = vcombine.low %v7862, %v7870
        %v7873 = vunpack.c.l.s4 1934713408
        %v7874 = vunpack.c.0.s8 %v7873
        %v7875 = vlaneseq
        %v7876 = vshrl.u32 %v7875, 7
        %v7877 = vsub.s32 %v7874, %v7876
        %v7878 = vrot.slane %v7871, %v7877
        %v7879 = vcombine.high %v7878, 0
        %v7880 = vcombine.low %v7751, %v7815
        %v7882 = vunpack.c.l.s4 1983009808
        %v7883 = vunpack.c.0.s8 %v7882
        %v7884 = vlaneseq
        %v7885 = vshrl.u32 %v7884, 7
        %v7886 = vsub.s32 %v7883, %v7885
        %v7887 = vrot.slane %v7880, %v7886
        %v7888 = vcombine.low %v7783, %v7847
        %v7890 = vunpack.c.l.s4 1983009808
        %v7891 = vunpack.c.0.s8 %v7890
        %v7892 = vlaneseq
        %v7893 = vshrl.u32 %v7892, 7
        %v7894 = vsub.s32 %v7891, %v7893
        %v7895 = vrot.slane %v7888, %v7894
        %v7896 = vcombine.low %v7887, %v7895
        %v7898 = vunpack.c.l.s4 1934713408
        %v7899 = vunpack.c.0.s8 %v7898
        %v7900 = vlaneseq
        %v7901 = vshrl.u32 %v7900, 7
        %v7902 = vsub.s32 %v7899, %v7901
        %v7903 = vrot.slane %v7896, %v7902
        %v7904 = vcombine.high %v7903, 0
        %v7907 = vpack.i.b16 %v7903, %v7878
        %v7908 = vshrl.u32 %v7878, 16
        %v7909 = vshrl.u32 %v7903, 16
        %v7910 = vpack.i.b16 %v7909, %v7908
        %v7913 = vpack.i.b16 %v7904, %v7879
        %v7914 = vshrl.u32 %v7879, 16
        %v7915 = vshrl.u32 %v7904, 16
        %v7916 = vpack.i.b16 %v7915, %v7914
        %v7918 = vsel %vm1427, %v7907, 0
        %v7921 = vsel %vm1427, %v7495, 0
        %7923 = vmatprep.subr.bf16.mxu0 0
        %7924 = vmatpush1.bf16.xpose.msra.mxu0 %v7921
        %7925 = vmatprep.subr.bf16.mxu0 0
        %7926 = vmatpush1.bf16.xpose.msra.mxu0 0
        %7927 = vmatprep.subr.bf16.mxu0 0
        %7928 = vmatpush1.bf16.xpose.msra.mxu0 0
        %7929 = vmatprep.subr.bf16.mxu0 0
        %7930 = vmatpush1.bf16.xpose.msra.mxu0 0
        %7931 = vmatprep.subr.bf16.mxu0 0
        %7932 = vmatpush1.bf16.xpose.msra.mxu0 0
        %7933 = vmatprep.subr.bf16.mxu0 0
        %7934 = vmatpush1.bf16.xpose.msra.mxu0 0
        %7935 = vmatprep.subr.bf16.mxu0 0
        %7936 = vmatpush1.bf16.xpose.msra.mxu0 0
        %7937 = vmatprep.subr.bf16.mxu0 0
        %7938 = vmatpush1.bf16.xpose.msra.mxu0 0
        %7939 = vmatprep.subr.bf16.mxu0 0
        %7940 = vmatpush1.bf16.xpose.msra.mxu0 0
        %7941 = vmatprep.subr.bf16.mxu0 0
        %7942 = vmatpush1.bf16.xpose.msra.mxu0 0
        %7943 = vmatprep.subr.bf16.mxu0 0
        %7944 = vmatpush1.bf16.xpose.msra.mxu0 0
        %7945 = vmatprep.subr.bf16.mxu0 0
        %7946 = vmatpush1.bf16.xpose.msra.mxu0 0
        %7947 = vmatprep.subr.bf16.mxu0 0
        %7948 = vmatpush1.bf16.xpose.msra.mxu0 0
        %7949 = vmatprep.subr.bf16.mxu0 0
        %7950 = vmatpush1.bf16.xpose.msra.mxu0 0
        %7951 = vmatprep.subr.bf16.mxu0 0
        %7952 = vmatpush1.bf16.xpose.msra.mxu0 0
        %7953 = vmatprep.subr.bf16.mxu0 0
        %7954 = vmatpush1.bf16.xpose.msra.mxu0 0
        %7955 = vmatprep.mubr.bf16.mxu0 0
        %7956 = vmatmul.mubr.bf16.gmra.mrb[0].mxu0 %v7918
        %v7957 = vpop.f32.mrb[0].mxu0
        %v7958 = vadd.f32 0.0, %v7957
        %v7959 = vpop.f32.mrb[0].mxu0
        %v7960 = vpop.f32.mrb[0].mxu0
        %v7961 = vpop.f32.mrb[0].mxu0
        %7962 = vdwg.mxu0
        %v7964 = vsel %vm1427, %v7910, 0
        %v7967 = vsel %vm1427, %v7496, 0
        %7969 = vmatprep.subr.bf16.mxu0 0
        %7970 = vmatpush1.bf16.xpose.msra.mxu0 %v7967
        %7971 = vmatprep.subr.bf16.mxu0 0
        %7972 = vmatpush1.bf16.xpose.msra.mxu0 0
        %7973 = vmatprep.subr.bf16.mxu0 0
        %7974 = vmatpush1.bf16.xpose.msra.mxu0 0
        %7975 = vmatprep.subr.bf16.mxu0 0
        %7976 = vmatpush1.bf16.xpose.msra.mxu0 0
        %7977 = vmatprep.subr.bf16.mxu0 0
        %7978 = vmatpush1.bf16.xpose.msra.mxu0 0
        %7979 = vmatprep.subr.bf16.mxu0 0
        %7980 = vmatpush1.bf16.xpose.msra.mxu0 0
        %7981 = vmatprep.subr.bf16.mxu0 0
        %7982 = vmatpush1.bf16.xpose.msra.mxu0 0
        %7983 = vmatprep.subr.bf16.mxu0 0
        %7984 = vmatpush1.bf16.xpose.msra.mxu0 0
        %7985 = vmatprep.subr.bf16.mxu0 0
        %7986 = vmatpush1.bf16.xpose.msra.mxu0 0
        %7987 = vmatprep.subr.bf16.mxu0 0
        %7988 = vmatpush1.bf16.xpose.msra.mxu0 0
        %7989 = vmatprep.subr.bf16.mxu0 0
        %7990 = vmatpush1.bf16.xpose.msra.mxu0 0
        %7991 = vmatprep.subr.bf16.mxu0 0
        %7992 = vmatpush1.bf16.xpose.msra.mxu0 0
        %7993 = vmatprep.subr.bf16.mxu0 0
        %7994 = vmatpush1.bf16.xpose.msra.mxu0 0
        %7995 = vmatprep.subr.bf16.mxu0 0
        %7996 = vmatpush1.bf16.xpose.msra.mxu0 0
        %7997 = vmatprep.subr.bf16.mxu0 0
        %7998 = vmatpush1.bf16.xpose.msra.mxu0 0
        %7999 = vmatprep.subr.bf16.mxu0 0
        %8000 = vmatpush1.bf16.xpose.msra.mxu0 0
        %8001 = vmatprep.mubr.bf16.mxu0 0
        %8002 = vmatmul.mubr.bf16.gmra.mrb[0].mxu0 %v7964
        %v8003 = vpop.f32.mrb[0].mxu0
        %v8004 = vadd.f32 0.0, %v8003
        %v8005 = vpop.f32.mrb[0].mxu0
        %v8006 = vpop.f32.mrb[0].mxu0
        %v8007 = vpop.f32.mrb[0].mxu0
        %8008 = vdwg.mxu0
        %v8010 = vsel %vm1427, %v7913, 0
        %v8013 = vsel %vm1427, %v7497, 0
        %8015 = vmatprep.subr.bf16.mxu0 0
        %8016 = vmatpush1.bf16.xpose.msra.mxu0 %v8013
        %8017 = vmatprep.subr.bf16.mxu0 0
        %8018 = vmatpush1.bf16.xpose.msra.mxu0 0
        %8019 = vmatprep.subr.bf16.mxu0 0
        %8020 = vmatpush1.bf16.xpose.msra.mxu0 0
        %8021 = vmatprep.subr.bf16.mxu0 0
        %8022 = vmatpush1.bf16.xpose.msra.mxu0 0
        %8023 = vmatprep.subr.bf16.mxu0 0
        %8024 = vmatpush1.bf16.xpose.msra.mxu0 0
        %8025 = vmatprep.subr.bf16.mxu0 0
        %8026 = vmatpush1.bf16.xpose.msra.mxu0 0
        %8027 = vmatprep.subr.bf16.mxu0 0
        %8028 = vmatpush1.bf16.xpose.msra.mxu0 0
        %8029 = vmatprep.subr.bf16.mxu0 0
        %8030 = vmatpush1.bf16.xpose.msra.mxu0 0
        %8031 = vmatprep.subr.bf16.mxu0 0
        %8032 = vmatpush1.bf16.xpose.msra.mxu0 0
        %8033 = vmatprep.subr.bf16.mxu0 0
        %8034 = vmatpush1.bf16.xpose.msra.mxu0 0
        %8035 = vmatprep.subr.bf16.mxu0 0
        %8036 = vmatpush1.bf16.xpose.msra.mxu0 0
        %8037 = vmatprep.subr.bf16.mxu0 0
        %8038 = vmatpush1.bf16.xpose.msra.mxu0 0
        %8039 = vmatprep.subr.bf16.mxu0 0
        %8040 = vmatpush1.bf16.xpose.msra.mxu0 0
        %8041 = vmatprep.subr.bf16.mxu0 0
        %8042 = vmatpush1.bf16.xpose.msra.mxu0 0
        %8043 = vmatprep.subr.bf16.mxu0 0
        %8044 = vmatpush1.bf16.xpose.msra.mxu0 0
        %8045 = vmatprep.subr.bf16.mxu0 0
        %8046 = vmatpush1.bf16.xpose.msra.mxu0 0
        %8047 = vmatprep.mubr.bf16.mxu0 0
        %8048 = vmatmul.mubr.bf16.gmra.mrb[0].mxu0 %v8010
        %v8049 = vpop.f32.mrb[0].mxu0
        %v8050 = vadd.f32 0.0, %v8049
        %v8051 = vpop.f32.mrb[0].mxu0
        %v8052 = vpop.f32.mrb[0].mxu0
        %v8053 = vpop.f32.mrb[0].mxu0
        %8054 = vdwg.mxu0
        %v8056 = vsel %vm1427, %v7916, 0
        %v8059 = vsel %vm1427, %v7498, 0
        %8061 = vmatprep.subr.bf16.mxu0 0
        %8062 = vmatpush1.bf16.xpose.msra.mxu0 %v8059
        %8063 = vmatprep.subr.bf16.mxu0 0
        %8064 = vmatpush1.bf16.xpose.msra.mxu0 0
        %8065 = vmatprep.subr.bf16.mxu0 0
        %8066 = vmatpush1.bf16.xpose.msra.mxu0 0
        %8067 = vmatprep.subr.bf16.mxu0 0
        %8068 = vmatpush1.bf16.xpose.msra.mxu0 0
        %8069 = vmatprep.subr.bf16.mxu0 0
        %8070 = vmatpush1.bf16.xpose.msra.mxu0 0
        %8071 = vmatprep.subr.bf16.mxu0 0
        %8072 = vmatpush1.bf16.xpose.msra.mxu0 0
        %8073 = vmatprep.subr.bf16.mxu0 0
        %8074 = vmatpush1.bf16.xpose.msra.mxu0 0
        %8075 = vmatprep.subr.bf16.mxu0 0
        %8076 = vmatpush1.bf16.xpose.msra.mxu0 0
        %8077 = vmatprep.subr.bf16.mxu0 0
        %8078 = vmatpush1.bf16.xpose.msra.mxu0 0
        %8079 = vmatprep.subr.bf16.mxu0 0
        %8080 = vmatpush1.bf16.xpose.msra.mxu0 0
        %8081 = vmatprep.subr.bf16.mxu0 0
        %8082 = vmatpush1.bf16.xpose.msra.mxu0 0
        %8083 = vmatprep.subr.bf16.mxu0 0
        %8084 = vmatpush1.bf16.xpose.msra.mxu0 0
        %8085 = vmatprep.subr.bf16.mxu0 0
        %8086 = vmatpush1.bf16.xpose.msra.mxu0 0
        %8087 = vmatprep.subr.bf16.mxu0 0
        %8088 = vmatpush1.bf16.xpose.msra.mxu0 0
        %8089 = vmatprep.subr.bf16.mxu0 0
        %8090 = vmatpush1.bf16.xpose.msra.mxu0 0
        %8091 = vmatprep.subr.bf16.mxu0 0
        %8092 = vmatpush1.bf16.xpose.msra.mxu0 0
        %8093 = vmatprep.mubr.bf16.mxu0 0
        %8094 = vmatmul.mubr.bf16.gmra.mrb[0].mxu0 %v8056
        %v8095 = vpop.f32.mrb[0].mxu0
        %v8096 = vadd.f32 0.0, %v8095
        %v8097 = vpop.f32.mrb[0].mxu0
        %v8098 = vpop.f32.mrb[0].mxu0
        %v8099 = vpop.f32.mrb[0].mxu0
        %8100 = vdwg.mxu0
        %8101 = vxpose.xlu0.b32.start [1/16] %v7958, 128
        %8102 = vxpose.xlu0.b32.cont [2/16] 0.0, 128
        %8103 = vxpose.xlu0.b32.cont [3/16] 0.0, 128
        %8104 = vxpose.xlu0.b32.cont [4/16] 0.0, 128
        %8105 = vxpose.xlu0.b32.cont [5/16] 0.0, 128
        %8106 = vxpose.xlu0.b32.cont [6/16] 0.0, 128
        %8107 = vxpose.xlu0.b32.cont [7/16] 0.0, 128
        %8108 = vxpose.xlu0.b32.cont [8/16] 0.0, 128
        %8109 = vxpose.xlu0.b32.cont [9/16] 0.0, 128
        %8110 = vxpose.xlu0.b32.cont [10/16] 0.0, 128
        %8111 = vxpose.xlu0.b32.cont [11/16] 0.0, 128
        %8112 = vxpose.xlu0.b32.cont [12/16] 0.0, 128
        %8113 = vxpose.xlu0.b32.cont [13/16] 0.0, 128
        %8114 = vxpose.xlu0.b32.cont [14/16] 0.0, 128
        %8115 = vxpose.xlu0.b32.cont [15/16] 0.0, 128
        %8116 = vxpose.xlu0.b32.end [16/16] 0.0, 128
        %v8117 = vpop.trf.xlu0
        %v8118 = vpop.trf.xlu0
        %v8119 = vpop.trf.xlu0
        %v8120 = vpop.trf.xlu0
        %v8121 = vpop.trf.xlu0
        %v8122 = vpop.trf.xlu0
        %v8123 = vpop.trf.xlu0
        %v8124 = vpop.trf.xlu0
        %v8125 = vpop.trf.xlu0
        %v8126 = vpop.trf.xlu0
        %v8127 = vpop.trf.xlu0
        %v8128 = vpop.trf.xlu0
        %v8129 = vpop.trf.xlu0
        %v8130 = vpop.trf.xlu0
        %v8131 = vpop.trf.xlu0
        %v8132 = vpop.trf.xlu0
        %8133 = vxpose.xlu0.b32.start [1/16] %v8004, 128
        %8134 = vxpose.xlu0.b32.cont [2/16] 0.0, 128
        %8135 = vxpose.xlu0.b32.cont [3/16] 0.0, 128
        %8136 = vxpose.xlu0.b32.cont [4/16] 0.0, 128
        %8137 = vxpose.xlu0.b32.cont [5/16] 0.0, 128
        %8138 = vxpose.xlu0.b32.cont [6/16] 0.0, 128
        %8139 = vxpose.xlu0.b32.cont [7/16] 0.0, 128
        %8140 = vxpose.xlu0.b32.cont [8/16] 0.0, 128
        %8141 = vxpose.xlu0.b32.cont [9/16] 0.0, 128
        %8142 = vxpose.xlu0.b32.cont [10/16] 0.0, 128
        %8143 = vxpose.xlu0.b32.cont [11/16] 0.0, 128
        %8144 = vxpose.xlu0.b32.cont [12/16] 0.0, 128
        %8145 = vxpose.xlu0.b32.cont [13/16] 0.0, 128
        %8146 = vxpose.xlu0.b32.cont [14/16] 0.0, 128
        %8147 = vxpose.xlu0.b32.cont [15/16] 0.0, 128
        %8148 = vxpose.xlu0.b32.end [16/16] 0.0, 128
        %v8149 = vpop.trf.xlu0
        %v8150 = vpop.trf.xlu0
        %v8151 = vpop.trf.xlu0
        %v8152 = vpop.trf.xlu0
        %v8153 = vpop.trf.xlu0
        %v8154 = vpop.trf.xlu0
        %v8155 = vpop.trf.xlu0
        %v8156 = vpop.trf.xlu0
        %v8157 = vpop.trf.xlu0
        %v8158 = vpop.trf.xlu0
        %v8159 = vpop.trf.xlu0
        %v8160 = vpop.trf.xlu0
        %v8161 = vpop.trf.xlu0
        %v8162 = vpop.trf.xlu0
        %v8163 = vpop.trf.xlu0
        %v8164 = vpop.trf.xlu0
        %8165 = vxpose.xlu0.b32.start [1/16] %v8050, 128
        %8166 = vxpose.xlu0.b32.cont [2/16] 0.0, 128
        %8167 = vxpose.xlu0.b32.cont [3/16] 0.0, 128
        %8168 = vxpose.xlu0.b32.cont [4/16] 0.0, 128
        %8169 = vxpose.xlu0.b32.cont [5/16] 0.0, 128
        %8170 = vxpose.xlu0.b32.cont [6/16] 0.0, 128
        %8171 = vxpose.xlu0.b32.cont [7/16] 0.0, 128
        %8172 = vxpose.xlu0.b32.cont [8/16] 0.0, 128
        %8173 = vxpose.xlu0.b32.cont [9/16] 0.0, 128
        %8174 = vxpose.xlu0.b32.cont [10/16] 0.0, 128
        %8175 = vxpose.xlu0.b32.cont [11/16] 0.0, 128
        %8176 = vxpose.xlu0.b32.cont [12/16] 0.0, 128
        %8177 = vxpose.xlu0.b32.cont [13/16] 0.0, 128
        %8178 = vxpose.xlu0.b32.cont [14/16] 0.0, 128
        %8179 = vxpose.xlu0.b32.cont [15/16] 0.0, 128
        %8180 = vxpose.xlu0.b32.end [16/16] 0.0, 128
        %v8181 = vpop.trf.xlu0
        %v8182 = vpop.trf.xlu0
        %v8183 = vpop.trf.xlu0
        %v8184 = vpop.trf.xlu0
        %v8185 = vpop.trf.xlu0
        %v8186 = vpop.trf.xlu0
        %v8187 = vpop.trf.xlu0
        %v8188 = vpop.trf.xlu0
        %v8189 = vpop.trf.xlu0
        %v8190 = vpop.trf.xlu0
        %v8191 = vpop.trf.xlu0
        %v8192 = vpop.trf.xlu0
        %v8193 = vpop.trf.xlu0
        %v8194 = vpop.trf.xlu0
        %v8195 = vpop.trf.xlu0
        %v8196 = vpop.trf.xlu0
        %8197 = vxpose.xlu0.b32.start [1/16] %v8096, 128
        %8198 = vxpose.xlu0.b32.cont [2/16] 0.0, 128
        %8199 = vxpose.xlu0.b32.cont [3/16] 0.0, 128
        %8200 = vxpose.xlu0.b32.cont [4/16] 0.0, 128
        %8201 = vxpose.xlu0.b32.cont [5/16] 0.0, 128
        %8202 = vxpose.xlu0.b32.cont [6/16] 0.0, 128
        %8203 = vxpose.xlu0.b32.cont [7/16] 0.0, 128
        %8204 = vxpose.xlu0.b32.cont [8/16] 0.0, 128
        %8205 = vxpose.xlu0.b32.cont [9/16] 0.0, 128
        %8206 = vxpose.xlu0.b32.cont [10/16] 0.0, 128
        %8207 = vxpose.xlu0.b32.cont [11/16] 0.0, 128
        %8208 = vxpose.xlu0.b32.cont [12/16] 0.0, 128
        %8209 = vxpose.xlu0.b32.cont [13/16] 0.0, 128
        %8210 = vxpose.xlu0.b32.cont [14/16] 0.0, 128
        %8211 = vxpose.xlu0.b32.cont [15/16] 0.0, 128
        %8212 = vxpose.xlu0.b32.end [16/16] 0.0, 128
        %v8213 = vpop.trf.xlu0
        %v8214 = vpop.trf.xlu0
        %v8215 = vpop.trf.xlu0
        %v8216 = vpop.trf.xlu0
        %v8217 = vpop.trf.xlu0
        %v8218 = vpop.trf.xlu0
        %v8219 = vpop.trf.xlu0
        %v8220 = vpop.trf.xlu0
        %v8221 = vpop.trf.xlu0
        %v8222 = vpop.trf.xlu0
        %v8223 = vpop.trf.xlu0
        %v8224 = vpop.trf.xlu0
        %v8225 = vpop.trf.xlu0
        %v8226 = vpop.trf.xlu0
        %v8227 = vpop.trf.xlu0
        %v8228 = vpop.trf.xlu0
        %v8229 = vcombine.low %v8117, %v8181
        %v8230 = vcombine.high %v8117, %v8181
        %v8232 = vunpack.c.l.s4 1983009808
        %v8233 = vunpack.c.0.s8 %v8232
        %v8234 = vlaneseq
        %v8235 = vshrl.u32 %v8234, 7
        %v8236 = vsub.s32 %v8233, %v8235
        %v8237 = vrot.slane %v8229, %v8236
        %v8239 = vunpack.c.l.s4 1983009808
        %v8240 = vunpack.c.0.s8 %v8239
        %v8241 = vlaneseq
        %v8242 = vshrl.u32 %v8241, 7
        %v8243 = vsub.s32 %v8240, %v8242
        %v8244 = vrot.slane %v8230, %v8243
        %v8245 = vcombine.low %v8149, %v8213
        %v8246 = vcombine.high %v8149, %v8213
        %v8248 = vunpack.c.l.s4 1983009808
        %v8249 = vunpack.c.0.s8 %v8248
        %v8250 = vlaneseq
        %v8251 = vshrl.u32 %v8250, 7
        %v8252 = vsub.s32 %v8249, %v8251
        %v8253 = vrot.slane %v8245, %v8252
        %v8255 = vunpack.c.l.s4 1983009808
        %v8256 = vunpack.c.0.s8 %v8255
        %v8257 = vlaneseq
        %v8258 = vshrl.u32 %v8257, 7
        %v8259 = vsub.s32 %v8256, %v8258
        %v8260 = vrot.slane %v8246, %v8259
        %v8261 = vcombine.low %v8237, %v8253
        %v8262 = vcombine.high %v8237, %v8253
        %v8264 = vunpack.c.l.s4 1934713408
        %v8265 = vunpack.c.0.s8 %v8264
        %v8266 = vlaneseq
        %v8267 = vshrl.u32 %v8266, 7
        %v8268 = vsub.s32 %v8265, %v8267
        %v8269 = vrot.slane %v8261, %v8268
        %v8271 = vunpack.c.l.s4 1934713408
        %v8272 = vunpack.c.0.s8 %v8271
        %v8273 = vlaneseq
        %v8274 = vshrl.u32 %v8273, 7
        %v8275 = vsub.s32 %v8272, %v8274
        %v8276 = vrot.slane %v8262, %v8275
        %v8277 = vcombine.low %v8244, %v8260
        %v8278 = vcombine.high %v8244, %v8260
        %v8280 = vunpack.c.l.s4 1934713408
        %v8281 = vunpack.c.0.s8 %v8280
        %v8282 = vlaneseq
        %v8283 = vshrl.u32 %v8282, 7
        %v8284 = vsub.s32 %v8281, %v8283
        %v8285 = vrot.slane %v8277, %v8284
        %v8287 = vunpack.c.l.s4 1934713408
        %v8288 = vunpack.c.0.s8 %v8287
        %v8289 = vlaneseq
        %v8290 = vshrl.u32 %v8289, 7
        %v8291 = vsub.s32 %v8288, %v8290
        %v8292 = vrot.slane %v8278, %v8291
        %v8293 = vcombine.high %v8269, 0.0
        %v8294 = vcombine.high %v8276, 0.0
        %v8295 = vcombine.high %v8285, 0.0
        %v8296 = vcombine.high %v8292, 0.0
        %v8297 = vcombine.low %v8269, %v8276
        %v8299 = vunpack.c.l.s4 1983009808
        %v8300 = vunpack.c.0.s8 %v8299
        %v8301 = vlaneseq
        %v8302 = vshrl.u32 %v8301, 7
        %v8303 = vsub.s32 %v8300, %v8302
        %v8304 = vrot.slane %v8297, %v8303
        %v8305 = vcombine.low %v8293, %v8294
        %v8307 = vunpack.c.l.s4 1983009808
        %v8308 = vunpack.c.0.s8 %v8307
        %v8309 = vlaneseq
        %v8310 = vshrl.u32 %v8309, 7
        %v8311 = vsub.s32 %v8308, %v8310
        %v8312 = vrot.slane %v8305, %v8311
        %v8313 = vcombine.low %v8285, %v8292
        %v8315 = vunpack.c.l.s4 1983009808
        %v8316 = vunpack.c.0.s8 %v8315
        %v8317 = vlaneseq
        %v8318 = vshrl.u32 %v8317, 7
        %v8319 = vsub.s32 %v8316, %v8318
        %v8320 = vrot.slane %v8313, %v8319
        %v8321 = vcombine.low %v8295, %v8296
        %v8323 = vunpack.c.l.s4 1983009808
        %v8324 = vunpack.c.0.s8 %v8323
        %v8325 = vlaneseq
        %v8326 = vshrl.u32 %v8325, 7
        %v8327 = vsub.s32 %v8324, %v8326
        %v8328 = vrot.slane %v8321, %v8327
        %v8329 = vcombine.low %v8304, %v8312
        %v8330 = vcombine.high %v8304, %v8312
        %v8332 = vunpack.c.l.s4 1934713408
        %v8333 = vunpack.c.0.s8 %v8332
        %v8334 = vlaneseq
        %v8335 = vshrl.u32 %v8334, 7
        %v8336 = vsub.s32 %v8333, %v8335
        %v8337 = vrot.slane %v8329, %v8336
        %v8339 = vunpack.c.l.s4 1934713408
        %v8340 = vunpack.c.0.s8 %v8339
        %v8341 = vlaneseq
        %v8342 = vshrl.u32 %v8341, 7
        %v8343 = vsub.s32 %v8340, %v8342
        %v8344 = vrot.slane %v8330, %v8343
        %v8345 = vcombine.low %v8320, %v8328
        %v8346 = vcombine.high %v8320, %v8328
        %v8348 = vunpack.c.l.s4 1934713408
        %v8349 = vunpack.c.0.s8 %v8348
        %v8350 = vlaneseq
        %v8351 = vshrl.u32 %v8350, 7
        %v8352 = vsub.s32 %v8349, %v8351
        %v8353 = vrot.slane %v8345, %v8352
        %v8355 = vunpack.c.l.s4 1934713408
        %v8356 = vunpack.c.0.s8 %v8355
        %v8357 = vlaneseq
        %v8358 = vshrl.u32 %v8357, 7
        %v8359 = vsub.s32 %v8356, %v8358
        %v8360 = vrot.slane %v8346, %v8359
        %v8361 = vcombine.low %v8337, %v8353
        %v8362 = vcombine.high %v8337, %v8353
        %v8363 = vcombine.low %v8344, %v8360
        %v8364 = vcombine.high %v8344, %v8360
        %8366 = vrot.lane.b32.xlu0 %v8362, 8
        %v8367 = vpop.permute.xlu0 %8366
        %8370 = vrot.lane.b32.xlu0 %v8363, 16
        %v8371 = vpop.permute.xlu0 %8370
        %8374 = vrot.lane.b32.xlu0 %v8364, 24
        %v8375 = vpop.permute.xlu0 %8374
        %v8377 = vsel %vm1427, %v8361, %v8367
        %v8378 = vsel %vm2540, %v8377, %v8371
        %v8379 = vsel %vm2542, %v8378, %v8375
        %v8380 = vpack.c.bf16 %v8379, %v6519
        %v8381 = vld [vmem:[%s537] sm:$0xf]
        %v8382 = vld [vmem:[%s537 + $0x4] sm:$0xf]
        %v8383 = vld [vmem:[%s537 + $0x8] sm:$0xf]
        %v8384 = vld [vmem:[%s537 + $0xc] sm:$0xf]
        %v8385 = vlaneseq
        %v8386 = vshrl.u32 %v8385, 7
        %v8387 = vsub.s32 1, %v8386
        %v8388 = vrot.slane %v578, %v8387
        %v8393 = vunpack.c.l.b16 %v8381
        %v8394 = vunpack.c.l.b16 %v8382
        %v8395 = vunpack.c.l.b16 %v8383
        %v8396 = vunpack.c.l.b16 %v8384
        %v8397 = vpack.c.b16 %v8394, %v8393
        %v8398 = vpack.c.b16 %v8396, %v8395
        %v8402 = vsel %vm600, %v8380, 0
        %8404 = vmatprep.subr.bf16.mxu0 0
        %8405 = vmatpush1.bf16.msra.mxu0 %v8397
        %8406 = vmatprep.subr.bf16.mxu0 0
        %8407 = vmatpush1.bf16.msra.mxu0 %v8398
        %8408 = vmatprep.subr.bf16.mxu0 0
        %8409 = vmatpush1.bf16.msra.mxu0 0
        %8410 = vmatprep.subr.bf16.mxu0 0
        %8411 = vmatpush1.bf16.msra.mxu0 0
        %8412 = vmatprep.subr.bf16.mxu0 0
        %8413 = vmatpush1.bf16.msra.mxu0 0
        %8414 = vmatprep.subr.bf16.mxu0 0
        %8415 = vmatpush1.bf16.msra.mxu0 0
        %8416 = vmatprep.subr.bf16.mxu0 0
        %8417 = vmatpush1.bf16.msra.mxu0 0
        %8418 = vmatprep.subr.bf16.mxu0 0
        %8419 = vmatpush1.bf16.msra.mxu0 0
        %8420 = vmatprep.subr.bf16.mxu0 0
        %8421 = vmatpush1.bf16.msra.mxu0 0
        %8422 = vmatprep.subr.bf16.mxu0 0
        %8423 = vmatpush1.bf16.msra.mxu0 0
        %8424 = vmatprep.subr.bf16.mxu0 0
        %8425 = vmatpush1.bf16.msra.mxu0 0
        %8426 = vmatprep.subr.bf16.mxu0 0
        %8427 = vmatpush1.bf16.msra.mxu0 0
        %8428 = vmatprep.subr.bf16.mxu0 0
        %8429 = vmatpush1.bf16.msra.mxu0 0
        %8430 = vmatprep.subr.bf16.mxu0 0
        %8431 = vmatpush1.bf16.msra.mxu0 0
        %8432 = vmatprep.subr.bf16.mxu0 0
        %8433 = vmatpush1.bf16.msra.mxu0 0
        %8434 = vmatprep.subr.bf16.mxu0 0
        %8435 = vmatpush1.bf16.msra.mxu0 0
        %8436 = vmatprep.mubr.bf16.mxu0 0
        %8437 = vmatmul.mubr.bf16.gmra.mrb[0].mxu0 %v8402
        %v8438 = vpop.f32.mrb[0].mxu0
        %v8439 = vadd.f32 %v8388, %v8438
        %v8440 = vpop.f32.mrb[0].mxu0
        %v8441 = vpop.f32.mrb[0].mxu0
        %v8442 = vadd.f32 %v8388, %v8441
        %v8443 = vpop.f32.mrb[0].mxu0
        %8444 = vdwg.mxu0
        %v8445 = vadd.f32 %v4517, %v8439
        %v8446 = vadd.f32 %v4518, %v8442
        %v8447 = vsel %vm600, %v8445, 0.0
        %8448 = vadd.xlane.f32.xlu0 %v8447
        %v8449 = vpop.xlane.xlu0 %8448
        %v8450 = vsel %vm600, %v8446, 0.0
        %8451 = vadd.xlane.f32.xlu0 %v8450
        %v8452 = vpop.xlane.xlu0 %8451
        %v8453 = vmul.f32 %v8449, %v4486
        %v8454 = vmul.f32 %v8452, %v4486
        %v8455 = vsub.f32 %v8445, %v8453
        %v8456 = vsub.f32 %v8446, %v8454
        %v8457 = vmul.f32 %v8455, %v8455
        %v8458 = vmul.f32 %v8456, %v8456
        %v8459 = vsel %vm600, %v8457, 0.0
        %8460 = vadd.xlane.f32.xlu0 %v8459
        %v8461 = vpop.xlane.xlu0 %8460
        %v8462 = vsel %vm600, %v8458, 0.0
        %8463 = vadd.xlane.f32.xlu0 %v8462
        %v8464 = vpop.xlane.xlu0 %8463
        %v8465 = vmul.f32 %v8461, %v4486
        %v8466 = vmul.f32 %v8464, %v4486
        %v8467 = vadd.f32 %v8465, 1e-05
        %v8468 = vadd.f32 %v8466, 1e-05
        %v8469 = vrsqrt.pop %v8467
        %v8470 = vrsqrt.pop %v8468
        %v8471 = vmul.f32 %v8455, %v8469
        %v8472 = vmul.f32 %v8456, %v8470
        %v8473 = vlaneseq
        %v8474 = vshrl.u32 %v8473, 7
        %v8475 = vsub.s32 2, %v8474
        %v8476 = vrot.slane %v578, %v8475
        %v8477 = vmul.f32 %v8471, %v8476
        %v8478 = vmul.f32 %v8472, %v8476
        %v8479 = vlaneseq
        %v8480 = vshrl.u32 %v8479, 7
        %v8481 = vsub.s32 3, %v8480
        %v8482 = vrot.slane %v578, %v8481
        %v8483 = vadd.f32 %v8477, %v8482
        %v8484 = vadd.f32 %v8478, %v8482
        %v8485 = vpack.c.bf16 %v8484, %v8483
        %v8486 = vld [vmem:[%s542] sm:$0xff]
        %v8487 = vld [vmem:[%s542 + $0x8] sm:$0xff]
        %v8488 = vld [vmem:[%s542 + $0x10] sm:$0xff]
        %v8489 = vld [vmem:[%s542 + $0x18] sm:$0xff]
        %v8490 = vld [vmem:[%s542 + $0x20] sm:$0xff]
        %v8491 = vld [vmem:[%s542 + $0x28] sm:$0xff]
        %v8492 = vld [vmem:[%s542 + $0x30] sm:$0xff]
        %v8493 = vld [vmem:[%s542 + $0x38] sm:$0xff]
        %v8494 = vld [vmem:[%s542 + $0x40] sm:$0xff]
        %v8495 = vld [vmem:[%s542 + $0x48] sm:$0xff]
        %v8496 = vld [vmem:[%s542 + $0x50] sm:$0xff]
        %v8497 = vld [vmem:[%s542 + $0x58] sm:$0xff]
        %v8498 = vld [vmem:[%s542 + $0x60] sm:$0xff]
        %v8499 = vld [vmem:[%s542 + $0x68] sm:$0xff]
        %v8500 = vld [vmem:[%s542 + $0x70] sm:$0xff]
        %v8501 = vld [vmem:[%s542 + $0x78] sm:$0xff]
        %v8502 = vld [vmem:[%s542 + $0x80] sm:$0xff]
        %v8503 = vld [vmem:[%s542 + $0x88] sm:$0xff]
        %v8504 = vld [vmem:[%s542 + $0x90] sm:$0xff]
        %v8505 = vld [vmem:[%s542 + $0x98] sm:$0xff]
        %v8506 = vld [vmem:[%s542 + $0xa0] sm:$0xff]
        %v8507 = vld [vmem:[%s542 + $0xa8] sm:$0xff]
        %v8508 = vld [vmem:[%s542 + $0xb0] sm:$0xff]
        %v8509 = vld [vmem:[%s542 + $0xb8] sm:$0xff]
        %v8510 = vld [vmem:[%s542 + $0xc0] sm:$0xff]
        %v8511 = vld [vmem:[%s542 + $0xc8] sm:$0xff]
        %v8512 = vld [vmem:[%s542 + $0xd0] sm:$0xff]
        %v8513 = vld [vmem:[%s542 + $0xd8] sm:$0xff]
        %v8514 = vld [vmem:[%s542 + $0xe0] sm:$0xff]
        %v8515 = vld [vmem:[%s542 + $0xe8] sm:$0xff]
        %v8516 = vld [vmem:[%s542 + $0xf0] sm:$0xff]
        %v8517 = vld [vmem:[%s542 + $0xf8] sm:$0xff]
        %v8518 = vld [vmem:[%s556] sm:$0xff]
        %v8519 = vld [vmem:[%s556 + $0x8] sm:$0xff]
        %v8522 = vlaneseq
        %v8523 = vshrl.u32 %v8522, 7
        %v8524 = vsub.s32 0, %v8523
        %v8525 = vrot.slane %v8518, %v8524
        %v8526 = vlaneseq
        %v8527 = vshrl.u32 %v8526, 7
        %v8528 = vsub.s32 1, %v8527
        %v8529 = vrot.slane %v8518, %v8528
        %v8530 = vlaneseq
        %v8531 = vshrl.u32 %v8530, 7
        %v8532 = vsub.s32 2, %v8531
        %v8533 = vrot.slane %v8518, %v8532
        %v8534 = vlaneseq
        %v8535 = vshrl.u32 %v8534, 7
        %v8536 = vsub.s32 3, %v8535
        %v8537 = vrot.slane %v8518, %v8536
        %v8538 = vlaneseq
        %v8539 = vshrl.u32 %v8538, 7
        %v8540 = vsub.s32 4, %v8539
        %v8541 = vrot.slane %v8518, %v8540
        %v8542 = vlaneseq
        %v8543 = vshrl.u32 %v8542, 7
        %v8544 = vsub.s32 5, %v8543
        %v8545 = vrot.slane %v8518, %v8544
        %v8546 = vlaneseq
        %v8547 = vshrl.u32 %v8546, 7
        %v8548 = vsub.s32 6, %v8547
        %v8549 = vrot.slane %v8518, %v8548
        %v8550 = vlaneseq
        %v8551 = vshrl.u32 %v8550, 7
        %v8552 = vsub.s32 7, %v8551
        %v8553 = vrot.slane %v8518, %v8552
        %v8554 = vlaneseq
        %v8555 = vshrl.u32 %v8554, 7
        %v8556 = vsub.s32 0, %v8555
        %v8557 = vrot.slane %v8519, %v8556
        %v8558 = vlaneseq
        %v8559 = vshrl.u32 %v8558, 7
        %v8560 = vsub.s32 1, %v8559
        %v8561 = vrot.slane %v8519, %v8560
        %v8562 = vlaneseq
        %v8563 = vshrl.u32 %v8562, 7
        %v8564 = vsub.s32 2, %v8563
        %v8565 = vrot.slane %v8519, %v8564
        %v8566 = vlaneseq
        %v8567 = vshrl.u32 %v8566, 7
        %v8568 = vsub.s32 3, %v8567
        %v8569 = vrot.slane %v8519, %v8568
        %v8570 = vlaneseq
        %v8571 = vshrl.u32 %v8570, 7
        %v8572 = vsub.s32 4, %v8571
        %v8573 = vrot.slane %v8519, %v8572
        %v8574 = vlaneseq
        %v8575 = vshrl.u32 %v8574, 7
        %v8576 = vsub.s32 5, %v8575
        %v8577 = vrot.slane %v8519, %v8576
        %v8578 = vlaneseq
        %v8579 = vshrl.u32 %v8578, 7
        %v8580 = vsub.s32 6, %v8579
        %v8581 = vrot.slane %v8519, %v8580
        %v8582 = vlaneseq
        %v8583 = vshrl.u32 %v8582, 7
        %v8584 = vsub.s32 7, %v8583
        %v8585 = vrot.slane %v8519, %v8584
        %v8634 = vunpack.c.l.b16 %v8486
        %v8635 = vunpack.c.h.b16 %v8486
        %v8636 = vunpack.c.l.b16 %v8487
        %v8637 = vunpack.c.h.b16 %v8487
        %v8638 = vunpack.c.l.b16 %v8488
        %v8639 = vunpack.c.h.b16 %v8488
        %v8640 = vunpack.c.l.b16 %v8489
        %v8641 = vunpack.c.h.b16 %v8489
        %v8642 = vunpack.c.l.b16 %v8490
        %v8643 = vunpack.c.h.b16 %v8490
        %v8644 = vunpack.c.l.b16 %v8491
        %v8645 = vunpack.c.h.b16 %v8491
        %v8646 = vunpack.c.l.b16 %v8492
        %v8647 = vunpack.c.h.b16 %v8492
        %v8648 = vunpack.c.l.b16 %v8493
        %v8649 = vunpack.c.h.b16 %v8493
        %v8650 = vunpack.c.l.b16 %v8494
        %v8651 = vunpack.c.h.b16 %v8494
        %v8652 = vunpack.c.l.b16 %v8495
        %v8653 = vunpack.c.h.b16 %v8495
        %v8654 = vunpack.c.l.b16 %v8496
        %v8655 = vunpack.c.h.b16 %v8496
        %v8656 = vunpack.c.l.b16 %v8497
        %v8657 = vunpack.c.h.b16 %v8497
        %v8658 = vunpack.c.l.b16 %v8498
        %v8659 = vunpack.c.h.b16 %v8498
        %v8660 = vunpack.c.l.b16 %v8499
        %v8661 = vunpack.c.h.b16 %v8499
        %v8662 = vunpack.c.l.b16 %v8500
        %v8663 = vunpack.c.h.b16 %v8500
        %v8664 = vunpack.c.l.b16 %v8501
        %v8665 = vunpack.c.h.b16 %v8501
        %v8666 = vunpack.c.l.b16 %v8502
        %v8667 = vunpack.c.h.b16 %v8502
        %v8668 = vunpack.c.l.b16 %v8503
        %v8669 = vunpack.c.h.b16 %v8503
        %v8670 = vunpack.c.l.b16 %v8504
        %v8671 = vunpack.c.h.b16 %v8504
        %v8672 = vunpack.c.l.b16 %v8505
        %v8673 = vunpack.c.h.b16 %v8505
        %v8674 = vunpack.c.l.b16 %v8506
        %v8675 = vunpack.c.h.b16 %v8506
        %v8676 = vunpack.c.l.b16 %v8507
        %v8677 = vunpack.c.h.b16 %v8507
        %v8678 = vunpack.c.l.b16 %v8508
        %v8679 = vunpack.c.h.b16 %v8508
        %v8680 = vunpack.c.l.b16 %v8509
        %v8681 = vunpack.c.h.b16 %v8509
        %v8682 = vunpack.c.l.b16 %v8510
        %v8683 = vunpack.c.h.b16 %v8510
        %v8684 = vunpack.c.l.b16 %v8511
        %v8685 = vunpack.c.h.b16 %v8511
        %v8686 = vunpack.c.l.b16 %v8512
        %v8687 = vunpack.c.h.b16 %v8512
        %v8688 = vunpack.c.l.b16 %v8513
        %v8689 = vunpack.c.h.b16 %v8513
        %v8690 = vunpack.c.l.b16 %v8514
        %v8691 = vunpack.c.h.b16 %v8514
        %v8692 = vunpack.c.l.b16 %v8515
        %v8693 = vunpack.c.h.b16 %v8515
        %v8694 = vunpack.c.l.b16 %v8516
        %v8695 = vunpack.c.h.b16 %v8516
        %v8696 = vunpack.c.l.b16 %v8517
        %v8697 = vunpack.c.h.b16 %v8517
        %v8698 = vpack.c.b16 %v8650, %v8634
        %v8699 = vpack.c.b16 %v8651, %v8635
        %v8700 = vpack.c.b16 %v8652, %v8636
        %v8701 = vpack.c.b16 %v8653, %v8637
        %v8702 = vpack.c.b16 %v8654, %v8638
        %v8703 = vpack.c.b16 %v8655, %v8639
        %v8704 = vpack.c.b16 %v8656, %v8640
        %v8705 = vpack.c.b16 %v8657, %v8641
        %v8706 = vpack.c.b16 %v8658, %v8642
        %v8707 = vpack.c.b16 %v8659, %v8643
        %v8708 = vpack.c.b16 %v8660, %v8644
        %v8709 = vpack.c.b16 %v8661, %v8645
        %v8710 = vpack.c.b16 %v8662, %v8646
        %v8711 = vpack.c.b16 %v8663, %v8647
        %v8712 = vpack.c.b16 %v8664, %v8648
        %v8713 = vpack.c.b16 %v8665, %v8649
        %v8714 = vpack.c.b16 %v8682, %v8666
        %v8715 = vpack.c.b16 %v8683, %v8667
        %v8716 = vpack.c.b16 %v8684, %v8668
        %v8717 = vpack.c.b16 %v8685, %v8669
        %v8718 = vpack.c.b16 %v8686, %v8670
        %v8719 = vpack.c.b16 %v8687, %v8671
        %v8720 = vpack.c.b16 %v8688, %v8672
        %v8721 = vpack.c.b16 %v8689, %v8673
        %v8722 = vpack.c.b16 %v8690, %v8674
        %v8723 = vpack.c.b16 %v8691, %v8675
        %v8724 = vpack.c.b16 %v8692, %v8676
        %v8725 = vpack.c.b16 %v8693, %v8677
        %v8726 = vpack.c.b16 %v8694, %v8678
        %v8727 = vpack.c.b16 %v8695, %v8679
        %v8728 = vpack.c.b16 %v8696, %v8680
        %v8729 = vpack.c.b16 %v8697, %v8681
        %v8763 = vsel %vm600, %v8485, 0
        %8765 = vmatprep.subr.bf16.mxu0 %v8699
        %8766 = vmatpush1.bf16.msra.mxu0 %v8698
        %8767 = vmatprep.subr.bf16.mxu0 %v8715
        %8768 = vmatpush1.bf16.msra.mxu0 %v8714
        %8769 = vmatprep.subr.bf16.mxu0 0
        %8770 = vmatpush1.bf16.msra.mxu0 0
        %8771 = vmatprep.subr.bf16.mxu0 0
        %8772 = vmatpush1.bf16.msra.mxu0 0
        %8773 = vmatprep.subr.bf16.mxu0 0
        %8774 = vmatpush1.bf16.msra.mxu0 0
        %8775 = vmatprep.subr.bf16.mxu0 0
        %8776 = vmatpush1.bf16.msra.mxu0 0
        %8777 = vmatprep.subr.bf16.mxu0 0
        %8778 = vmatpush1.bf16.msra.mxu0 0
        %8779 = vmatprep.subr.bf16.mxu0 0
        %8780 = vmatpush1.bf16.msra.mxu0 0
        %8781 = vmatprep.subr.bf16.mxu0 0
        %8782 = vmatpush1.bf16.msra.mxu0 0
        %8783 = vmatprep.subr.bf16.mxu0 0
        %8784 = vmatpush1.bf16.msra.mxu0 0
        %8785 = vmatprep.subr.bf16.mxu0 0
        %8786 = vmatpush1.bf16.msra.mxu0 0
        %8787 = vmatprep.subr.bf16.mxu0 0
        %8788 = vmatpush1.bf16.msra.mxu0 0
        %8789 = vmatprep.subr.bf16.mxu0 0
        %8790 = vmatpush1.bf16.msra.mxu0 0
        %8791 = vmatprep.subr.bf16.mxu0 0
        %8792 = vmatpush1.bf16.msra.mxu0 0
        %8793 = vmatprep.subr.bf16.mxu0 0
        %8794 = vmatpush1.bf16.msra.mxu0 0
        %8795 = vmatprep.subr.bf16.mxu0 0
        %8796 = vmatpush1.bf16.msra.mxu0 0
        %8797 = vmatprep.mubr.bf16.mxu0 0
        %8798 = vmatmul.mubr.bf16.gmra.mrb[0].mxu0 %v8763
        %v8799 = vpop.f32.mrb[0].mxu0
        %v8800 = vadd.f32 %v8525, %v8799
        %v8801 = vpop.f32.mrb[0].mxu0
        %v8802 = vadd.f32 %v8529, %v8801
        %v8803 = vpop.f32.mrb[0].mxu0
        %v8804 = vadd.f32 %v8525, %v8803
        %v8805 = vpop.f32.mrb[0].mxu0
        %v8806 = vadd.f32 %v8529, %v8805
        %8807 = vdwg.mxu0
        %8808 = vmatprep.subr.bf16.mxu0 %v8701
        %8809 = vmatpush1.bf16.msra.mxu0 %v8700
        %8810 = vmatprep.subr.bf16.mxu0 %v8717
        %8811 = vmatpush1.bf16.msra.mxu0 %v8716
        %8812 = vmatprep.subr.bf16.mxu0 0
        %8813 = vmatpush1.bf16.msra.mxu0 0
        %8814 = vmatprep.subr.bf16.mxu0 0
        %8815 = vmatpush1.bf16.msra.mxu0 0
        %8816 = vmatprep.subr.bf16.mxu0 0
        %8817 = vmatpush1.bf16.msra.mxu0 0
        %8818 = vmatprep.subr.bf16.mxu0 0
        %8819 = vmatpush1.bf16.msra.mxu0 0
        %8820 = vmatprep.subr.bf16.mxu0 0
        %8821 = vmatpush1.bf16.msra.mxu0 0
        %8822 = vmatprep.subr.bf16.mxu0 0
        %8823 = vmatpush1.bf16.msra.mxu0 0
        %8824 = vmatprep.subr.bf16.mxu0 0
        %8825 = vmatpush1.bf16.msra.mxu0 0
        %8826 = vmatprep.subr.bf16.mxu0 0
        %8827 = vmatpush1.bf16.msra.mxu0 0
        %8828 = vmatprep.subr.bf16.mxu0 0
        %8829 = vmatpush1.bf16.msra.mxu0 0
        %8830 = vmatprep.subr.bf16.mxu0 0
        %8831 = vmatpush1.bf16.msra.mxu0 0
        %8832 = vmatprep.subr.bf16.mxu0 0
        %8833 = vmatpush1.bf16.msra.mxu0 0
        %8834 = vmatprep.subr.bf16.mxu0 0
        %8835 = vmatpush1.bf16.msra.mxu0 0
        %8836 = vmatprep.subr.bf16.mxu0 0
        %8837 = vmatpush1.bf16.msra.mxu0 0
        %8838 = vmatprep.subr.bf16.mxu0 0
        %8839 = vmatpush1.bf16.msra.mxu0 0
        %8840 = vmatprep.mubr.bf16.mxu0 0
        %8841 = vmatmul.mubr.bf16.gmra.mrb[0].mxu0 %v8763
        %v8842 = vpop.f32.mrb[0].mxu0
        %v8843 = vadd.f32 %v8533, %v8842
        %v8844 = vpop.f32.mrb[0].mxu0
        %v8845 = vadd.f32 %v8537, %v8844
        %v8846 = vpop.f32.mrb[0].mxu0
        %v8847 = vadd.f32 %v8533, %v8846
        %v8848 = vpop.f32.mrb[0].mxu0
        %v8849 = vadd.f32 %v8537, %v8848
        %8850 = vdwg.mxu0
        %8851 = vmatprep.subr.bf16.mxu0 %v8703
        %8852 = vmatpush1.bf16.msra.mxu0 %v8702
        %8853 = vmatprep.subr.bf16.mxu0 %v8719
        %8854 = vmatpush1.bf16.msra.mxu0 %v8718
        %8855 = vmatprep.subr.bf16.mxu0 0
        %8856 = vmatpush1.bf16.msra.mxu0 0
        %8857 = vmatprep.subr.bf16.mxu0 0
        %8858 = vmatpush1.bf16.msra.mxu0 0
        %8859 = vmatprep.subr.bf16.mxu0 0
        %8860 = vmatpush1.bf16.msra.mxu0 0
        %8861 = vmatprep.subr.bf16.mxu0 0
        %8862 = vmatpush1.bf16.msra.mxu0 0
        %8863 = vmatprep.subr.bf16.mxu0 0
        %8864 = vmatpush1.bf16.msra.mxu0 0
        %8865 = vmatprep.subr.bf16.mxu0 0
        %8866 = vmatpush1.bf16.msra.mxu0 0
        %8867 = vmatprep.subr.bf16.mxu0 0
        %8868 = vmatpush1.bf16.msra.mxu0 0
        %8869 = vmatprep.subr.bf16.mxu0 0
        %8870 = vmatpush1.bf16.msra.mxu0 0
        %8871 = vmatprep.subr.bf16.mxu0 0
        %8872 = vmatpush1.bf16.msra.mxu0 0
        %8873 = vmatprep.subr.bf16.mxu0 0
        %8874 = vmatpush1.bf16.msra.mxu0 0
        %8875 = vmatprep.subr.bf16.mxu0 0
        %8876 = vmatpush1.bf16.msra.mxu0 0
        %8877 = vmatprep.subr.bf16.mxu0 0
        %8878 = vmatpush1.bf16.msra.mxu0 0
        %8879 = vmatprep.subr.bf16.mxu0 0
        %8880 = vmatpush1.bf16.msra.mxu0 0
        %8881 = vmatprep.subr.bf16.mxu0 0
        %8882 = vmatpush1.bf16.msra.mxu0 0
        %8883 = vmatprep.mubr.bf16.mxu0 0
        %8884 = vmatmul.mubr.bf16.gmra.mrb[0].mxu0 %v8763
        %v8885 = vpop.f32.mrb[0].mxu0
        %v8886 = vadd.f32 %v8541, %v8885
        %v8887 = vpop.f32.mrb[0].mxu0
        %v8888 = vadd.f32 %v8545, %v8887
        %v8889 = vpop.f32.mrb[0].mxu0
        %v8890 = vadd.f32 %v8541, %v8889
        %v8891 = vpop.f32.mrb[0].mxu0
        %v8892 = vadd.f32 %v8545, %v8891
        %8893 = vdwg.mxu0
        %8894 = vmatprep.subr.bf16.mxu0 %v8705
        %8895 = vmatpush1.bf16.msra.mxu0 %v8704
        %8896 = vmatprep.subr.bf16.mxu0 %v8721
        %8897 = vmatpush1.bf16.msra.mxu0 %v8720
        %8898 = vmatprep.subr.bf16.mxu0 0
        %8899 = vmatpush1.bf16.msra.mxu0 0
        %8900 = vmatprep.subr.bf16.mxu0 0
        %8901 = vmatpush1.bf16.msra.mxu0 0
        %8902 = vmatprep.subr.bf16.mxu0 0
        %8903 = vmatpush1.bf16.msra.mxu0 0
        %8904 = vmatprep.subr.bf16.mxu0 0
        %8905 = vmatpush1.bf16.msra.mxu0 0
        %8906 = vmatprep.subr.bf16.mxu0 0
        %8907 = vmatpush1.bf16.msra.mxu0 0
        %8908 = vmatprep.subr.bf16.mxu0 0
        %8909 = vmatpush1.bf16.msra.mxu0 0
        %8910 = vmatprep.subr.bf16.mxu0 0
        %8911 = vmatpush1.bf16.msra.mxu0 0
        %8912 = vmatprep.subr.bf16.mxu0 0
        %8913 = vmatpush1.bf16.msra.mxu0 0
        %8914 = vmatprep.subr.bf16.mxu0 0
        %8915 = vmatpush1.bf16.msra.mxu0 0
        %8916 = vmatprep.subr.bf16.mxu0 0
        %8917 = vmatpush1.bf16.msra.mxu0 0
        %8918 = vmatprep.subr.bf16.mxu0 0
        %8919 = vmatpush1.bf16.msra.mxu0 0
        %8920 = vmatprep.subr.bf16.mxu0 0
        %8921 = vmatpush1.bf16.msra.mxu0 0
        %8922 = vmatprep.subr.bf16.mxu0 0
        %8923 = vmatpush1.bf16.msra.mxu0 0
        %8924 = vmatprep.subr.bf16.mxu0 0
        %8925 = vmatpush1.bf16.msra.mxu0 0
        %8926 = vmatprep.mubr.bf16.mxu0 0
        %8927 = vmatmul.mubr.bf16.gmra.mrb[0].mxu0 %v8763
        %v8928 = vpop.f32.mrb[0].mxu0
        %v8929 = vadd.f32 %v8549, %v8928
        %v8930 = vpop.f32.mrb[0].mxu0
        %v8931 = vadd.f32 %v8553, %v8930
        %v8932 = vpop.f32.mrb[0].mxu0
        %v8933 = vadd.f32 %v8549, %v8932
        %v8934 = vpop.f32.mrb[0].mxu0
        %v8935 = vadd.f32 %v8553, %v8934
        %8936 = vdwg.mxu0
        %8937 = vmatprep.subr.bf16.mxu0 %v8707
        %8938 = vmatpush1.bf16.msra.mxu0 %v8706
        %8939 = vmatprep.subr.bf16.mxu0 %v8723
        %8940 = vmatpush1.bf16.msra.mxu0 %v8722
        %8941 = vmatprep.subr.bf16.mxu0 0
        %8942 = vmatpush1.bf16.msra.mxu0 0
        %8943 = vmatprep.subr.bf16.mxu0 0
        %8944 = vmatpush1.bf16.msra.mxu0 0
        %8945 = vmatprep.subr.bf16.mxu0 0
        %8946 = vmatpush1.bf16.msra.mxu0 0
        %8947 = vmatprep.subr.bf16.mxu0 0
        %8948 = vmatpush1.bf16.msra.mxu0 0
        %8949 = vmatprep.subr.bf16.mxu0 0
        %8950 = vmatpush1.bf16.msra.mxu0 0
        %8951 = vmatprep.subr.bf16.mxu0 0
        %8952 = vmatpush1.bf16.msra.mxu0 0
        %8953 = vmatprep.subr.bf16.mxu0 0
        %8954 = vmatpush1.bf16.msra.mxu0 0
        %8955 = vmatprep.subr.bf16.mxu0 0
        %8956 = vmatpush1.bf16.msra.mxu0 0
        %8957 = vmatprep.subr.bf16.mxu0 0
        %8958 = vmatpush1.bf16.msra.mxu0 0
        %8959 = vmatprep.subr.bf16.mxu0 0
        %8960 = vmatpush1.bf16.msra.mxu0 0
        %8961 = vmatprep.subr.bf16.mxu0 0
        %8962 = vmatpush1.bf16.msra.mxu0 0
        %8963 = vmatprep.subr.bf16.mxu0 0
        %8964 = vmatpush1.bf16.msra.mxu0 0
        %8965 = vmatprep.subr.bf16.mxu0 0
        %8966 = vmatpush1.bf16.msra.mxu0 0
        %8967 = vmatprep.subr.bf16.mxu0 0
        %8968 = vmatpush1.bf16.msra.mxu0 0
        %8969 = vmatprep.mubr.bf16.mxu0 0
        %8970 = vmatmul.mubr.bf16.gmra.mrb[0].mxu0 %v8763
        %v8971 = vpop.f32.mrb[0].mxu0
        %v8972 = vadd.f32 %v8557, %v8971
        %v8973 = vpop.f32.mrb[0].mxu0
        %v8974 = vadd.f32 %v8561, %v8973
        %v8975 = vpop.f32.mrb[0].mxu0
        %v8976 = vadd.f32 %v8557, %v8975
        %v8977 = vpop.f32.mrb[0].mxu0
        %v8978 = vadd.f32 %v8561, %v8977
        %8979 = vdwg.mxu0
        %8980 = vmatprep.subr.bf16.mxu0 %v8709
        %8981 = vmatpush1.bf16.msra.mxu0 %v8708
        %8982 = vmatprep.subr.bf16.mxu0 %v8725
        %8983 = vmatpush1.bf16.msra.mxu0 %v8724
        %8984 = vmatprep.subr.bf16.mxu0 0
        %8985 = vmatpush1.bf16.msra.mxu0 0
        %8986 = vmatprep.subr.bf16.mxu0 0
        %8987 = vmatpush1.bf16.msra.mxu0 0
        %8988 = vmatprep.subr.bf16.mxu0 0
        %8989 = vmatpush1.bf16.msra.mxu0 0
        %8990 = vmatprep.subr.bf16.mxu0 0
        %8991 = vmatpush1.bf16.msra.mxu0 0
        %8992 = vmatprep.subr.bf16.mxu0 0
        %8993 = vmatpush1.bf16.msra.mxu0 0
        %8994 = vmatprep.subr.bf16.mxu0 0
        %8995 = vmatpush1.bf16.msra.mxu0 0
        %8996 = vmatprep.subr.bf16.mxu0 0
        %8997 = vmatpush1.bf16.msra.mxu0 0
        %8998 = vmatprep.subr.bf16.mxu0 0
        %8999 = vmatpush1.bf16.msra.mxu0 0
        %9000 = vmatprep.subr.bf16.mxu0 0
        %9001 = vmatpush1.bf16.msra.mxu0 0
        %9002 = vmatprep.subr.bf16.mxu0 0
        %9003 = vmatpush1.bf16.msra.mxu0 0
        %9004 = vmatprep.subr.bf16.mxu0 0
        %9005 = vmatpush1.bf16.msra.mxu0 0
        %9006 = vmatprep.subr.bf16.mxu0 0
        %9007 = vmatpush1.bf16.msra.mxu0 0
        %9008 = vmatprep.subr.bf16.mxu0 0
        %9009 = vmatpush1.bf16.msra.mxu0 0
        %9010 = vmatprep.subr.bf16.mxu0 0
        %9011 = vmatpush1.bf16.msra.mxu0 0
        %9012 = vmatprep.mubr.bf16.mxu0 0
        %9013 = vmatmul.mubr.bf16.gmra.mrb[0].mxu0 %v8763
        %v9014 = vpop.f32.mrb[0].mxu0
        %v9015 = vadd.f32 %v8565, %v9014
        %v9016 = vpop.f32.mrb[0].mxu0
        %v9017 = vadd.f32 %v8569, %v9016
        %v9018 = vpop.f32.mrb[0].mxu0
        %v9019 = vadd.f32 %v8565, %v9018
        %v9020 = vpop.f32.mrb[0].mxu0
        %v9021 = vadd.f32 %v8569, %v9020
        %9022 = vdwg.mxu0
        %9023 = vmatprep.subr.bf16.mxu0 %v8711
        %9024 = vmatpush1.bf16.msra.mxu0 %v8710
        %9025 = vmatprep.subr.bf16.mxu0 %v8727
        %9026 = vmatpush1.bf16.msra.mxu0 %v8726
        %9027 = vmatprep.subr.bf16.mxu0 0
        %9028 = vmatpush1.bf16.msra.mxu0 0
        %9029 = vmatprep.subr.bf16.mxu0 0
        %9030 = vmatpush1.bf16.msra.mxu0 0
        %9031 = vmatprep.subr.bf16.mxu0 0
        %9032 = vmatpush1.bf16.msra.mxu0 0
        %9033 = vmatprep.subr.bf16.mxu0 0
        %9034 = vmatpush1.bf16.msra.mxu0 0
        %9035 = vmatprep.subr.bf16.mxu0 0
        %9036 = vmatpush1.bf16.msra.mxu0 0
        %9037 = vmatprep.subr.bf16.mxu0 0
        %9038 = vmatpush1.bf16.msra.mxu0 0
        %9039 = vmatprep.subr.bf16.mxu0 0
        %9040 = vmatpush1.bf16.msra.mxu0 0
        %9041 = vmatprep.subr.bf16.mxu0 0
        %9042 = vmatpush1.bf16.msra.mxu0 0
        %9043 = vmatprep.subr.bf16.mxu0 0
        %9044 = vmatpush1.bf16.msra.mxu0 0
        %9045 = vmatprep.subr.bf16.mxu0 0
        %9046 = vmatpush1.bf16.msra.mxu0 0
        %9047 = vmatprep.subr.bf16.mxu0 0
        %9048 = vmatpush1.bf16.msra.mxu0 0
        %9049 = vmatprep.subr.bf16.mxu0 0
        %9050 = vmatpush1.bf16.msra.mxu0 0
        %9051 = vmatprep.subr.bf16.mxu0 0
        %9052 = vmatpush1.bf16.msra.mxu0 0
        %9053 = vmatprep.subr.bf16.mxu0 0
        %9054 = vmatpush1.bf16.msra.mxu0 0
        %9055 = vmatprep.mubr.bf16.mxu0 0
        %9056 = vmatmul.mubr.bf16.gmra.mrb[0].mxu0 %v8763
        %v9057 = vpop.f32.mrb[0].mxu0
        %v9058 = vadd.f32 %v8573, %v9057
        %v9059 = vpop.f32.mrb[0].mxu0
        %v9060 = vadd.f32 %v8577, %v9059
        %v9061 = vpop.f32.mrb[0].mxu0
        %v9062 = vadd.f32 %v8573, %v9061
        %v9063 = vpop.f32.mrb[0].mxu0
        %v9064 = vadd.f32 %v8577, %v9063
        %9065 = vdwg.mxu0
        %9066 = vmatprep.subr.bf16.mxu0 %v8713
        %9067 = vmatpush1.bf16.msra.mxu0 %v8712
        %9068 = vmatprep.subr.bf16.mxu0 %v8729
        %9069 = vmatpush1.bf16.msra.mxu0 %v8728
        %9070 = vmatprep.subr.bf16.mxu0 0
        %9071 = vmatpush1.bf16.msra.mxu0 0
        %9072 = vmatprep.subr.bf16.mxu0 0
        %9073 = vmatpush1.bf16.msra.mxu0 0
        %9074 = vmatprep.subr.bf16.mxu0 0
        %9075 = vmatpush1.bf16.msra.mxu0 0
        %9076 = vmatprep.subr.bf16.mxu0 0
        %9077 = vmatpush1.bf16.msra.mxu0 0
        %9078 = vmatprep.subr.bf16.mxu0 0
        %9079 = vmatpush1.bf16.msra.mxu0 0
        %9080 = vmatprep.subr.bf16.mxu0 0
        %9081 = vmatpush1.bf16.msra.mxu0 0
        %9082 = vmatprep.subr.bf16.mxu0 0
        %9083 = vmatpush1.bf16.msra.mxu0 0
        %9084 = vmatprep.subr.bf16.mxu0 0
        %9085 = vmatpush1.bf16.msra.mxu0 0
        %9086 = vmatprep.subr.bf16.mxu0 0
        %9087 = vmatpush1.bf16.msra.mxu0 0
        %9088 = vmatprep.subr.bf16.mxu0 0
        %9089 = vmatpush1.bf16.msra.mxu0 0
        %9090 = vmatprep.subr.bf16.mxu0 0
        %9091 = vmatpush1.bf16.msra.mxu0 0
        %9092 = vmatprep.subr.bf16.mxu0 0
        %9093 = vmatpush1.bf16.msra.mxu0 0
        %9094 = vmatprep.subr.bf16.mxu0 0
        %9095 = vmatpush1.bf16.msra.mxu0 0
        %9096 = vmatprep.subr.bf16.mxu0 0
        %9097 = vmatpush1.bf16.msra.mxu0 0
        %9098 = vmatprep.mubr.bf16.mxu0 0
        %9099 = vmatmul.mubr.bf16.gmra.mrb[0].mxu0 %v8763
        %v9100 = vpop.f32.mrb[0].mxu0
        %v9101 = vadd.f32 %v8581, %v9100
        %v9102 = vpop.f32.mrb[0].mxu0
        %v9103 = vadd.f32 %v8585, %v9102
        %v9104 = vpop.f32.mrb[0].mxu0
        %v9105 = vadd.f32 %v8581, %v9104
        %v9106 = vpop.f32.mrb[0].mxu0
        %v9107 = vadd.f32 %v8585, %v9106
        %9108 = vdwg.mxu0
        %v9109 = vmax.f32 %v8800, 0.0
        %v9110 = vmax.f32 %v8802, 0.0
        %v9111 = vmax.f32 %v8843, 0.0
        %v9112 = vmax.f32 %v8845, 0.0
        %v9113 = vmax.f32 %v8886, 0.0
        %v9114 = vmax.f32 %v8888, 0.0
        %v9115 = vmax.f32 %v8929, 0.0
        %v9116 = vmax.f32 %v8931, 0.0
        %v9117 = vmax.f32 %v8972, 0.0
        %v9118 = vmax.f32 %v8974, 0.0
        %v9119 = vmax.f32 %v9015, 0.0
        %v9120 = vmax.f32 %v9017, 0.0
        %v9121 = vmax.f32 %v9058, 0.0
        %v9122 = vmax.f32 %v9060, 0.0
        %v9123 = vmax.f32 %v9101, 0.0
        %v9124 = vmax.f32 %v9103, 0.0
        %v9125 = vmax.f32 %v8804, 0.0
        %v9126 = vmax.f32 %v8806, 0.0
        %v9127 = vmax.f32 %v8847, 0.0
        %v9128 = vmax.f32 %v8849, 0.0
        %v9129 = vmax.f32 %v8890, 0.0
        %v9130 = vmax.f32 %v8892, 0.0
        %v9131 = vmax.f32 %v8933, 0.0
        %v9132 = vmax.f32 %v8935, 0.0
        %v9133 = vmax.f32 %v8976, 0.0
        %v9134 = vmax.f32 %v8978, 0.0
        %v9135 = vmax.f32 %v9019, 0.0
        %v9136 = vmax.f32 %v9021, 0.0
        %v9137 = vmax.f32 %v9062, 0.0
        %v9138 = vmax.f32 %v9064, 0.0
        %v9139 = vmax.f32 %v9105, 0.0
        %v9140 = vmax.f32 %v9107, 0.0
        %v9141 = vpack.c.bf16 %v9125, %v9109
        %v9142 = vpack.c.bf16 %v9126, %v9110
        %v9143 = vpack.c.bf16 %v9127, %v9111
        %v9144 = vpack.c.bf16 %v9128, %v9112
        %v9145 = vpack.c.bf16 %v9129, %v9113
        %v9146 = vpack.c.bf16 %v9130, %v9114
        %v9147 = vpack.c.bf16 %v9131, %v9115
        %v9148 = vpack.c.bf16 %v9132, %v9116
        %v9149 = vpack.c.bf16 %v9133, %v9117
        %v9150 = vpack.c.bf16 %v9134, %v9118
        %v9151 = vpack.c.bf16 %v9135, %v9119
        %v9152 = vpack.c.bf16 %v9136, %v9120
        %v9153 = vpack.c.bf16 %v9137, %v9121
        %v9154 = vpack.c.bf16 %v9138, %v9122
        %v9155 = vpack.c.bf16 %v9139, %v9123
        %v9156 = vpack.c.bf16 %v9140, %v9124
        %v9157 = vld [vmem:[%s547] sm:$0xf]
        %v9158 = vld [vmem:[%s547 + $0x4] sm:$0xf]
        %v9159 = vld [vmem:[%s547 + $0x8] sm:$0xf]
        %v9160 = vld [vmem:[%s547 + $0xc] sm:$0xf]
        %v9161 = vld [vmem:[%s547 + $0x10] sm:$0xf]
        %v9162 = vld [vmem:[%s547 + $0x14] sm:$0xf]
        %v9163 = vld [vmem:[%s547 + $0x18] sm:$0xf]
        %v9164 = vld [vmem:[%s547 + $0x1c] sm:$0xf]
        %v9165 = vld [vmem:[%s547 + $0x20] sm:$0xf]
        %v9166 = vld [vmem:[%s547 + $0x24] sm:$0xf]
        %v9167 = vld [vmem:[%s547 + $0x28] sm:$0xf]
        %v9168 = vld [vmem:[%s547 + $0x2c] sm:$0xf]
        %v9169 = vld [vmem:[%s547 + $0x30] sm:$0xf]
        %v9170 = vld [vmem:[%s547 + $0x34] sm:$0xf]
        %v9171 = vld [vmem:[%s547 + $0x38] sm:$0xf]
        %v9172 = vld [vmem:[%s547 + $0x3c] sm:$0xf]
        %v9173 = vld [vmem:[%s547 + $0x40] sm:$0xf]
        %v9174 = vld [vmem:[%s547 + $0x44] sm:$0xf]
        %v9175 = vld [vmem:[%s547 + $0x48] sm:$0xf]
        %v9176 = vld [vmem:[%s547 + $0x4c] sm:$0xf]
        %v9177 = vld [vmem:[%s547 + $0x50] sm:$0xf]
        %v9178 = vld [vmem:[%s547 + $0x54] sm:$0xf]
        %v9179 = vld [vmem:[%s547 + $0x58] sm:$0xf]
        %v9180 = vld [vmem:[%s547 + $0x5c] sm:$0xf]
        %v9181 = vld [vmem:[%s547 + $0x60] sm:$0xf]
        %v9182 = vld [vmem:[%s547 + $0x64] sm:$0xf]
        %v9183 = vld [vmem:[%s547 + $0x68] sm:$0xf]
        %v9184 = vld [vmem:[%s547 + $0x6c] sm:$0xf]
        %v9185 = vld [vmem:[%s547 + $0x70] sm:$0xf]
        %v9186 = vld [vmem:[%s547 + $0x74] sm:$0xf]
        %v9187 = vld [vmem:[%s547 + $0x78] sm:$0xf]
        %v9188 = vld [vmem:[%s547 + $0x7c] sm:$0xf]
        %v9189 = vld [vmem:[%s547 + $0x80] sm:$0xf]
        %v9190 = vld [vmem:[%s547 + $0x84] sm:$0xf]
        %v9191 = vld [vmem:[%s547 + $0x88] sm:$0xf]
        %v9192 = vld [vmem:[%s547 + $0x8c] sm:$0xf]
        %v9193 = vld [vmem:[%s547 + $0x90] sm:$0xf]
        %v9194 = vld [vmem:[%s547 + $0x94] sm:$0xf]
        %v9195 = vld [vmem:[%s547 + $0x98] sm:$0xf]
        %v9196 = vld [vmem:[%s547 + $0x9c] sm:$0xf]
        %v9197 = vld [vmem:[%s547 + $0xa0] sm:$0xf]
        %v9198 = vld [vmem:[%s547 + $0xa4] sm:$0xf]
        %v9199 = vld [vmem:[%s547 + $0xa8] sm:$0xf]
        %v9200 = vld [vmem:[%s547 + $0xac] sm:$0xf]
        %v9201 = vld [vmem:[%s547 + $0xb0] sm:$0xf]
        %v9202 = vld [vmem:[%s547 + $0xb4] sm:$0xf]
        %v9203 = vld [vmem:[%s547 + $0xb8] sm:$0xf]
        %v9204 = vld [vmem:[%s547 + $0xbc] sm:$0xf]
        %v9205 = vld [vmem:[%s547 + $0xc0] sm:$0xf]
        %v9206 = vld [vmem:[%s547 + $0xc4] sm:$0xf]
        %v9207 = vld [vmem:[%s547 + $0xc8] sm:$0xf]
        %v9208 = vld [vmem:[%s547 + $0xcc] sm:$0xf]
        %v9209 = vld [vmem:[%s547 + $0xd0] sm:$0xf]
        %v9210 = vld [vmem:[%s547 + $0xd4] sm:$0xf]
        %v9211 = vld [vmem:[%s547 + $0xd8] sm:$0xf]
        %v9212 = vld [vmem:[%s547 + $0xdc] sm:$0xf]
        %v9213 = vld [vmem:[%s547 + $0xe0] sm:$0xf]
        %v9214 = vld [vmem:[%s547 + $0xe4] sm:$0xf]
        %v9215 = vld [vmem:[%s547 + $0xe8] sm:$0xf]
        %v9216 = vld [vmem:[%s547 + $0xec] sm:$0xf]
        %v9217 = vld [vmem:[%s547 + $0xf0] sm:$0xf]
        %v9218 = vld [vmem:[%s547 + $0xf4] sm:$0xf]
        %v9219 = vld [vmem:[%s547 + $0xf8] sm:$0xf]
        %v9220 = vld [vmem:[%s547 + $0xfc] sm:$0xf]
        %v9221 = vld [vmem:[%s547 + $0x100] sm:$0xf]
        %v9222 = vld [vmem:[%s547 + $0x104] sm:$0xf]
        %v9223 = vld [vmem:[%s547 + $0x108] sm:$0xf]
        %v9224 = vld [vmem:[%s547 + $0x10c] sm:$0xf]
        %v9225 = vld [vmem:[%s547 + $0x110] sm:$0xf]
        %v9226 = vld [vmem:[%s547 + $0x114] sm:$0xf]
        %v9227 = vld [vmem:[%s547 + $0x118] sm:$0xf]
        %v9228 = vld [vmem:[%s547 + $0x11c] sm:$0xf]
        %v9229 = vld [vmem:[%s547 + $0x120] sm:$0xf]
        %v9230 = vld [vmem:[%s547 + $0x124] sm:$0xf]
        %v9231 = vld [vmem:[%s547 + $0x128] sm:$0xf]
        %v9232 = vld [vmem:[%s547 + $0x12c] sm:$0xf]
        %v9233 = vld [vmem:[%s547 + $0x130] sm:$0xf]
        %v9234 = vld [vmem:[%s547 + $0x134] sm:$0xf]
        %v9235 = vld [vmem:[%s547 + $0x138] sm:$0xf]
        %v9236 = vld [vmem:[%s547 + $0x13c] sm:$0xf]
        %v9237 = vld [vmem:[%s547 + $0x140] sm:$0xf]
        %v9238 = vld [vmem:[%s547 + $0x144] sm:$0xf]
        %v9239 = vld [vmem:[%s547 + $0x148] sm:$0xf]
        %v9240 = vld [vmem:[%s547 + $0x14c] sm:$0xf]
        %v9241 = vld [vmem:[%s547 + $0x150] sm:$0xf]
        %v9242 = vld [vmem:[%s547 + $0x154] sm:$0xf]
        %v9243 = vld [vmem:[%s547 + $0x158] sm:$0xf]
        %v9244 = vld [vmem:[%s547 + $0x15c] sm:$0xf]
        %v9245 = vld [vmem:[%s547 + $0x160] sm:$0xf]
        %v9246 = vld [vmem:[%s547 + $0x164] sm:$0xf]
        %v9247 = vld [vmem:[%s547 + $0x168] sm:$0xf]
        %v9248 = vld [vmem:[%s547 + $0x16c] sm:$0xf]
        %v9249 = vld [vmem:[%s547 + $0x170] sm:$0xf]
        %v9250 = vld [vmem:[%s547 + $0x174] sm:$0xf]
        %v9251 = vld [vmem:[%s547 + $0x178] sm:$0xf]
        %v9252 = vld [vmem:[%s547 + $0x17c] sm:$0xf]
        %v9253 = vld [vmem:[%s547 + $0x180] sm:$0xf]
        %v9254 = vld [vmem:[%s547 + $0x184] sm:$0xf]
        %v9255 = vld [vmem:[%s547 + $0x188] sm:$0xf]
        %v9256 = vld [vmem:[%s547 + $0x18c] sm:$0xf]
        %v9257 = vld [vmem:[%s547 + $0x190] sm:$0xf]
        %v9258 = vld [vmem:[%s547 + $0x194] sm:$0xf]
        %v9259 = vld [vmem:[%s547 + $0x198] sm:$0xf]
        %v9260 = vld [vmem:[%s547 + $0x19c] sm:$0xf]
        %v9261 = vld [vmem:[%s547 + $0x1a0] sm:$0xf]
        %v9262 = vld [vmem:[%s547 + $0x1a4] sm:$0xf]
        %v9263 = vld [vmem:[%s547 + $0x1a8] sm:$0xf]
        %v9264 = vld [vmem:[%s547 + $0x1ac] sm:$0xf]
        %v9265 = vld [vmem:[%s547 + $0x1b0] sm:$0xf]
        %v9266 = vld [vmem:[%s547 + $0x1b4] sm:$0xf]
        %v9267 = vld [vmem:[%s547 + $0x1b8] sm:$0xf]
        %v9268 = vld [vmem:[%s547 + $0x1bc] sm:$0xf]
        %v9269 = vld [vmem:[%s547 + $0x1c0] sm:$0xf]
        %v9270 = vld [vmem:[%s547 + $0x1c4] sm:$0xf]
        %v9271 = vld [vmem:[%s547 + $0x1c8] sm:$0xf]
        %v9272 = vld [vmem:[%s547 + $0x1cc] sm:$0xf]
        %v9273 = vld [vmem:[%s547 + $0x1d0] sm:$0xf]
        %v9274 = vld [vmem:[%s547 + $0x1d4] sm:$0xf]
        %v9275 = vld [vmem:[%s547 + $0x1d8] sm:$0xf]
        %v9276 = vld [vmem:[%s547 + $0x1dc] sm:$0xf]
        %v9277 = vld [vmem:[%s547 + $0x1e0] sm:$0xf]
        %v9278 = vld [vmem:[%s547 + $0x1e4] sm:$0xf]
        %v9279 = vld [vmem:[%s547 + $0x1e8] sm:$0xf]
        %v9280 = vld [vmem:[%s547 + $0x1ec] sm:$0xf]
        %v9281 = vld [vmem:[%s547 + $0x1f0] sm:$0xf]
        %v9282 = vld [vmem:[%s547 + $0x1f4] sm:$0xf]
        %v9283 = vld [vmem:[%s547 + $0x1f8] sm:$0xf]
        %v9284 = vld [vmem:[%s547 + $0x1fc] sm:$0xf]
        %v9285 = vld [vmem:[%s547 + $0x200] sm:$0xf]
        %v9286 = vld [vmem:[%s547 + $0x204] sm:$0xf]
        %v9287 = vld [vmem:[%s547 + $0x208] sm:$0xf]
        %v9288 = vld [vmem:[%s547 + $0x20c] sm:$0xf]
        %v9289 = vld [vmem:[%s547 + $0x210] sm:$0xf]
        %v9290 = vld [vmem:[%s547 + $0x214] sm:$0xf]
        %v9291 = vld [vmem:[%s547 + $0x218] sm:$0xf]
        %v9292 = vld [vmem:[%s547 + $0x21c] sm:$0xf]
        %v9293 = vld [vmem:[%s547 + $0x220] sm:$0xf]
        %v9294 = vld [vmem:[%s547 + $0x224] sm:$0xf]
        %v9295 = vld [vmem:[%s547 + $0x228] sm:$0xf]
        %v9296 = vld [vmem:[%s547 + $0x22c] sm:$0xf]
        %v9297 = vld [vmem:[%s547 + $0x230] sm:$0xf]
        %v9298 = vld [vmem:[%s547 + $0x234] sm:$0xf]
        %v9299 = vld [vmem:[%s547 + $0x238] sm:$0xf]
        %v9300 = vld [vmem:[%s547 + $0x23c] sm:$0xf]
        %v9301 = vld [vmem:[%s547 + $0x240] sm:$0xf]
        %v9302 = vld [vmem:[%s547 + $0x244] sm:$0xf]
        %v9303 = vld [vmem:[%s547 + $0x248] sm:$0xf]
        %v9304 = vld [vmem:[%s547 + $0x24c] sm:$0xf]
        %v9305 = vld [vmem:[%s547 + $0x250] sm:$0xf]
        %v9306 = vld [vmem:[%s547 + $0x254] sm:$0xf]
        %v9307 = vld [vmem:[%s547 + $0x258] sm:$0xf]
        %v9308 = vld [vmem:[%s547 + $0x25c] sm:$0xf]
        %v9309 = vld [vmem:[%s547 + $0x260] sm:$0xf]
        %v9310 = vld [vmem:[%s547 + $0x264] sm:$0xf]
        %v9311 = vld [vmem:[%s547 + $0x268] sm:$0xf]
        %v9312 = vld [vmem:[%s547 + $0x26c] sm:$0xf]
        %v9313 = vld [vmem:[%s547 + $0x270] sm:$0xf]
        %v9314 = vld [vmem:[%s547 + $0x274] sm:$0xf]
        %v9315 = vld [vmem:[%s547 + $0x278] sm:$0xf]
        %v9316 = vld [vmem:[%s547 + $0x27c] sm:$0xf]
        %v9317 = vld [vmem:[%s547 + $0x280] sm:$0xf]
        %v9318 = vld [vmem:[%s547 + $0x284] sm:$0xf]
        %v9319 = vld [vmem:[%s547 + $0x288] sm:$0xf]
        %v9320 = vld [vmem:[%s547 + $0x28c] sm:$0xf]
        %v9321 = vld [vmem:[%s547 + $0x290] sm:$0xf]
        %v9322 = vld [vmem:[%s547 + $0x294] sm:$0xf]
        %v9323 = vld [vmem:[%s547 + $0x298] sm:$0xf]
        %v9324 = vld [vmem:[%s547 + $0x29c] sm:$0xf]
        %v9325 = vld [vmem:[%s547 + $0x2a0] sm:$0xf]
        %v9326 = vld [vmem:[%s547 + $0x2a4] sm:$0xf]
        %v9327 = vld [vmem:[%s547 + $0x2a8] sm:$0xf]
        %v9328 = vld [vmem:[%s547 + $0x2ac] sm:$0xf]
        %v9329 = vld [vmem:[%s547 + $0x2b0] sm:$0xf]
        %v9330 = vld [vmem:[%s547 + $0x2b4] sm:$0xf]
        %v9331 = vld [vmem:[%s547 + $0x2b8] sm:$0xf]
        %v9332 = vld [vmem:[%s547 + $0x2bc] sm:$0xf]
        %v9333 = vld [vmem:[%s547 + $0x2c0] sm:$0xf]
        %v9334 = vld [vmem:[%s547 + $0x2c4] sm:$0xf]
        %v9335 = vld [vmem:[%s547 + $0x2c8] sm:$0xf]
        %v9336 = vld [vmem:[%s547 + $0x2cc] sm:$0xf]
        %v9337 = vld [vmem:[%s547 + $0x2d0] sm:$0xf]
        %v9338 = vld [vmem:[%s547 + $0x2d4] sm:$0xf]
        %v9339 = vld [vmem:[%s547 + $0x2d8] sm:$0xf]
        %v9340 = vld [vmem:[%s547 + $0x2dc] sm:$0xf]
        %v9341 = vld [vmem:[%s547 + $0x2e0] sm:$0xf]
        %v9342 = vld [vmem:[%s547 + $0x2e4] sm:$0xf]
        %v9343 = vld [vmem:[%s547 + $0x2e8] sm:$0xf]
        %v9344 = vld [vmem:[%s547 + $0x2ec] sm:$0xf]
        %v9345 = vld [vmem:[%s547 + $0x2f0] sm:$0xf]
        %v9346 = vld [vmem:[%s547 + $0x2f4] sm:$0xf]
        %v9347 = vld [vmem:[%s547 + $0x2f8] sm:$0xf]
        %v9348 = vld [vmem:[%s547 + $0x2fc] sm:$0xf]
        %v9349 = vld [vmem:[%s547 + $0x300] sm:$0xf]
        %v9350 = vld [vmem:[%s547 + $0x304] sm:$0xf]
        %v9351 = vld [vmem:[%s547 + $0x308] sm:$0xf]
        %v9352 = vld [vmem:[%s547 + $0x30c] sm:$0xf]
        %v9353 = vld [vmem:[%s547 + $0x310] sm:$0xf]
        %v9354 = vld [vmem:[%s547 + $0x314] sm:$0xf]
        %v9355 = vld [vmem:[%s547 + $0x318] sm:$0xf]
        %v9356 = vld [vmem:[%s547 + $0x31c] sm:$0xf]
        %v9357 = vld [vmem:[%s547 + $0x320] sm:$0xf]
        %v9358 = vld [vmem:[%s547 + $0x324] sm:$0xf]
        %v9359 = vld [vmem:[%s547 + $0x328] sm:$0xf]
        %v9360 = vld [vmem:[%s547 + $0x32c] sm:$0xf]
        %v9361 = vld [vmem:[%s547 + $0x330] sm:$0xf]
        %v9362 = vld [vmem:[%s547 + $0x334] sm:$0xf]
        %v9363 = vld [vmem:[%s547 + $0x338] sm:$0xf]
        %v9364 = vld [vmem:[%s547 + $0x33c] sm:$0xf]
        %v9365 = vld [vmem:[%s547 + $0x340] sm:$0xf]
        %v9366 = vld [vmem:[%s547 + $0x344] sm:$0xf]
        %v9367 = vld [vmem:[%s547 + $0x348] sm:$0xf]
        %v9368 = vld [vmem:[%s547 + $0x34c] sm:$0xf]
        %v9369 = vld [vmem:[%s547 + $0x350] sm:$0xf]
        %v9370 = vld [vmem:[%s547 + $0x354] sm:$0xf]
        %v9371 = vld [vmem:[%s547 + $0x358] sm:$0xf]
        %v9372 = vld [vmem:[%s547 + $0x35c] sm:$0xf]
        %v9373 = vld [vmem:[%s547 + $0x360] sm:$0xf]
        %v9374 = vld [vmem:[%s547 + $0x364] sm:$0xf]
        %v9375 = vld [vmem:[%s547 + $0x368] sm:$0xf]
        %v9376 = vld [vmem:[%s547 + $0x36c] sm:$0xf]
        %v9377 = vld [vmem:[%s547 + $0x370] sm:$0xf]
        %v9378 = vld [vmem:[%s547 + $0x374] sm:$0xf]
        %v9379 = vld [vmem:[%s547 + $0x378] sm:$0xf]
        %v9380 = vld [vmem:[%s547 + $0x37c] sm:$0xf]
        %v9381 = vld [vmem:[%s547 + $0x380] sm:$0xf]
        %v9382 = vld [vmem:[%s547 + $0x384] sm:$0xf]
        %v9383 = vld [vmem:[%s547 + $0x388] sm:$0xf]
        %v9384 = vld [vmem:[%s547 + $0x38c] sm:$0xf]
        %v9385 = vld [vmem:[%s547 + $0x390] sm:$0xf]
        %v9386 = vld [vmem:[%s547 + $0x394] sm:$0xf]
        %v9387 = vld [vmem:[%s547 + $0x398] sm:$0xf]
        %v9388 = vld [vmem:[%s547 + $0x39c] sm:$0xf]
        %v9389 = vld [vmem:[%s547 + $0x3a0] sm:$0xf]
        %v9390 = vld [vmem:[%s547 + $0x3a4] sm:$0xf]
        %v9391 = vld [vmem:[%s547 + $0x3a8] sm:$0xf]
        %v9392 = vld [vmem:[%s547 + $0x3ac] sm:$0xf]
        %v9393 = vld [vmem:[%s547 + $0x3b0] sm:$0xf]
        %v9394 = vld [vmem:[%s547 + $0x3b4] sm:$0xf]
        %v9395 = vld [vmem:[%s547 + $0x3b8] sm:$0xf]
        %v9396 = vld [vmem:[%s547 + $0x3bc] sm:$0xf]
        %v9397 = vld [vmem:[%s547 + $0x3c0] sm:$0xf]
        %v9398 = vld [vmem:[%s547 + $0x3c4] sm:$0xf]
        %v9399 = vld [vmem:[%s547 + $0x3c8] sm:$0xf]
        %v9400 = vld [vmem:[%s547 + $0x3cc] sm:$0xf]
        %v9401 = vld [vmem:[%s547 + $0x3d0] sm:$0xf]
        %v9402 = vld [vmem:[%s547 + $0x3d4] sm:$0xf]
        %v9403 = vld [vmem:[%s547 + $0x3d8] sm:$0xf]
        %v9404 = vld [vmem:[%s547 + $0x3dc] sm:$0xf]
        %v9405 = vld [vmem:[%s547 + $0x3e0] sm:$0xf]
        %v9406 = vld [vmem:[%s547 + $0x3e4] sm:$0xf]
        %v9407 = vld [vmem:[%s547 + $0x3e8] sm:$0xf]
        %v9408 = vld [vmem:[%s547 + $0x3ec] sm:$0xf]
        %v9409 = vld [vmem:[%s547 + $0x3f0] sm:$0xf]
        %v9410 = vld [vmem:[%s547 + $0x3f4] sm:$0xf]
        %v9411 = vld [vmem:[%s547 + $0x3f8] sm:$0xf]
        %v9412 = vld [vmem:[%s547 + $0x3fc] sm:$0xf]
        %v9413 = vlaneseq
        %v9414 = vshrl.u32 %v9413, 7
        %v9415 = vsub.s32 4, %v9414
        %v9416 = vrot.slane %v578, %v9415
        %v9673 = vunpack.c.l.b16 %v9157
        %v9674 = vunpack.c.l.b16 %v9158
        %v9675 = vunpack.c.l.b16 %v9159
        %v9676 = vunpack.c.l.b16 %v9160
        %v9677 = vunpack.c.l.b16 %v9161
        %v9678 = vunpack.c.l.b16 %v9162
        %v9679 = vunpack.c.l.b16 %v9163
        %v9680 = vunpack.c.l.b16 %v9164
        %v9681 = vunpack.c.l.b16 %v9165
        %v9682 = vunpack.c.l.b16 %v9166
        %v9683 = vunpack.c.l.b16 %v9167
        %v9684 = vunpack.c.l.b16 %v9168
        %v9685 = vunpack.c.l.b16 %v9169
        %v9686 = vunpack.c.l.b16 %v9170
        %v9687 = vunpack.c.l.b16 %v9171
        %v9688 = vunpack.c.l.b16 %v9172
        %v9689 = vunpack.c.l.b16 %v9173
        %v9690 = vunpack.c.l.b16 %v9174
        %v9691 = vunpack.c.l.b16 %v9175
        %v9692 = vunpack.c.l.b16 %v9176
        %v9693 = vunpack.c.l.b16 %v9177
        %v9694 = vunpack.c.l.b16 %v9178
        %v9695 = vunpack.c.l.b16 %v9179
        %v9696 = vunpack.c.l.b16 %v9180
        %v9697 = vunpack.c.l.b16 %v9181
        %v9698 = vunpack.c.l.b16 %v9182
        %v9699 = vunpack.c.l.b16 %v9183
        %v9700 = vunpack.c.l.b16 %v9184
        %v9701 = vunpack.c.l.b16 %v9185
        %v9702 = vunpack.c.l.b16 %v9186
        %v9703 = vunpack.c.l.b16 %v9187
        %v9704 = vunpack.c.l.b16 %v9188
        %v9705 = vunpack.c.l.b16 %v9189
        %v9706 = vunpack.c.l.b16 %v9190
        %v9707 = vunpack.c.l.b16 %v9191
        %v9708 = vunpack.c.l.b16 %v9192
        %v9709 = vunpack.c.l.b16 %v9193
        %v9710 = vunpack.c.l.b16 %v9194
        %v9711 = vunpack.c.l.b16 %v9195
        %v9712 = vunpack.c.l.b16 %v9196
        %v9713 = vunpack.c.l.b16 %v9197
        %v9714 = vunpack.c.l.b16 %v9198
        %v9715 = vunpack.c.l.b16 %v9199
        %v9716 = vunpack.c.l.b16 %v9200
        %v9717 = vunpack.c.l.b16 %v9201
        %v9718 = vunpack.c.l.b16 %v9202
        %v9719 = vunpack.c.l.b16 %v9203
        %v9720 = vunpack.c.l.b16 %v9204
        %v9721 = vunpack.c.l.b16 %v9205
        %v9722 = vunpack.c.l.b16 %v9206
        %v9723 = vunpack.c.l.b16 %v9207
        %v9724 = vunpack.c.l.b16 %v9208
        %v9725 = vunpack.c.l.b16 %v9209
        %v9726 = vunpack.c.l.b16 %v9210
        %v9727 = vunpack.c.l.b16 %v9211
        %v9728 = vunpack.c.l.b16 %v9212
        %v9729 = vunpack.c.l.b16 %v9213
        %v9730 = vunpack.c.l.b16 %v9214
        %v9731 = vunpack.c.l.b16 %v9215
        %v9732 = vunpack.c.l.b16 %v9216
        %v9733 = vunpack.c.l.b16 %v9217
        %v9734 = vunpack.c.l.b16 %v9218
        %v9735 = vunpack.c.l.b16 %v9219
        %v9736 = vunpack.c.l.b16 %v9220
        %v9737 = vunpack.c.l.b16 %v9221
        %v9738 = vunpack.c.l.b16 %v9222
        %v9739 = vunpack.c.l.b16 %v9223
        %v9740 = vunpack.c.l.b16 %v9224
        %v9741 = vunpack.c.l.b16 %v9225
        %v9742 = vunpack.c.l.b16 %v9226
        %v9743 = vunpack.c.l.b16 %v9227
        %v9744 = vunpack.c.l.b16 %v9228
        %v9745 = vunpack.c.l.b16 %v9229
        %v9746 = vunpack.c.l.b16 %v9230
        %v9747 = vunpack.c.l.b16 %v9231
        %v9748 = vunpack.c.l.b16 %v9232
        %v9749 = vunpack.c.l.b16 %v9233
        %v9750 = vunpack.c.l.b16 %v9234
        %v9751 = vunpack.c.l.b16 %v9235
        %v9752 = vunpack.c.l.b16 %v9236
        %v9753 = vunpack.c.l.b16 %v9237
        %v9754 = vunpack.c.l.b16 %v9238
        %v9755 = vunpack.c.l.b16 %v9239
        %v9756 = vunpack.c.l.b16 %v9240
        %v9757 = vunpack.c.l.b16 %v9241
        %v9758 = vunpack.c.l.b16 %v9242
        %v9759 = vunpack.c.l.b16 %v9243
        %v9760 = vunpack.c.l.b16 %v9244
        %v9761 = vunpack.c.l.b16 %v9245
        %v9762 = vunpack.c.l.b16 %v9246
        %v9763 = vunpack.c.l.b16 %v9247
        %v9764 = vunpack.c.l.b16 %v9248
        %v9765 = vunpack.c.l.b16 %v9249
        %v9766 = vunpack.c.l.b16 %v9250
        %v9767 = vunpack.c.l.b16 %v9251
        %v9768 = vunpack.c.l.b16 %v9252
        %v9769 = vunpack.c.l.b16 %v9253
        %v9770 = vunpack.c.l.b16 %v9254
        %v9771 = vunpack.c.l.b16 %v9255
        %v9772 = vunpack.c.l.b16 %v9256
        %v9773 = vunpack.c.l.b16 %v9257
        %v9774 = vunpack.c.l.b16 %v9258
        %v9775 = vunpack.c.l.b16 %v9259
        %v9776 = vunpack.c.l.b16 %v9260
        %v9777 = vunpack.c.l.b16 %v9261
        %v9778 = vunpack.c.l.b16 %v9262
        %v9779 = vunpack.c.l.b16 %v9263
        %v9780 = vunpack.c.l.b16 %v9264
        %v9781 = vunpack.c.l.b16 %v9265
        %v9782 = vunpack.c.l.b16 %v9266
        %v9783 = vunpack.c.l.b16 %v9267
        %v9784 = vunpack.c.l.b16 %v9268
        %v9785 = vunpack.c.l.b16 %v9269
        %v9786 = vunpack.c.l.b16 %v9270
        %v9787 = vunpack.c.l.b16 %v9271
        %v9788 = vunpack.c.l.b16 %v9272
        %v9789 = vunpack.c.l.b16 %v9273
        %v9790 = vunpack.c.l.b16 %v9274
        %v9791 = vunpack.c.l.b16 %v9275
        %v9792 = vunpack.c.l.b16 %v9276
        %v9793 = vunpack.c.l.b16 %v9277
        %v9794 = vunpack.c.l.b16 %v9278
        %v9795 = vunpack.c.l.b16 %v9279
        %v9796 = vunpack.c.l.b16 %v9280
        %v9797 = vunpack.c.l.b16 %v9281
        %v9798 = vunpack.c.l.b16 %v9282
        %v9799 = vunpack.c.l.b16 %v9283
        %v9800 = vunpack.c.l.b16 %v9284
        %v9801 = vunpack.c.l.b16 %v9285
        %v9802 = vunpack.c.l.b16 %v9286
        %v9803 = vunpack.c.l.b16 %v9287
        %v9804 = vunpack.c.l.b16 %v9288
        %v9805 = vunpack.c.l.b16 %v9289
        %v9806 = vunpack.c.l.b16 %v9290
        %v9807 = vunpack.c.l.b16 %v9291
        %v9808 = vunpack.c.l.b16 %v9292
        %v9809 = vunpack.c.l.b16 %v9293
        %v9810 = vunpack.c.l.b16 %v9294
        %v9811 = vunpack.c.l.b16 %v9295
        %v9812 = vunpack.c.l.b16 %v9296
        %v9813 = vunpack.c.l.b16 %v9297
        %v9814 = vunpack.c.l.b16 %v9298
        %v9815 = vunpack.c.l.b16 %v9299
        %v9816 = vunpack.c.l.b16 %v9300
        %v9817 = vunpack.c.l.b16 %v9301
        %v9818 = vunpack.c.l.b16 %v9302
        %v9819 = vunpack.c.l.b16 %v9303
        %v9820 = vunpack.c.l.b16 %v9304
        %v9821 = vunpack.c.l.b16 %v9305
        %v9822 = vunpack.c.l.b16 %v9306
        %v9823 = vunpack.c.l.b16 %v9307
        %v9824 = vunpack.c.l.b16 %v9308
        %v9825 = vunpack.c.l.b16 %v9309
        %v9826 = vunpack.c.l.b16 %v9310
        %v9827 = vunpack.c.l.b16 %v9311
        %v9828 = vunpack.c.l.b16 %v9312
        %v9829 = vunpack.c.l.b16 %v9313
        %v9830 = vunpack.c.l.b16 %v9314
        %v9831 = vunpack.c.l.b16 %v9315
        %v9832 = vunpack.c.l.b16 %v9316
        %v9833 = vunpack.c.l.b16 %v9317
        %v9834 = vunpack.c.l.b16 %v9318
        %v9835 = vunpack.c.l.b16 %v9319
        %v9836 = vunpack.c.l.b16 %v9320
        %v9837 = vunpack.c.l.b16 %v9321
        %v9838 = vunpack.c.l.b16 %v9322
        %v9839 = vunpack.c.l.b16 %v9323
        %v9840 = vunpack.c.l.b16 %v9324
        %v9841 = vunpack.c.l.b16 %v9325
        %v9842 = vunpack.c.l.b16 %v9326
        %v9843 = vunpack.c.l.b16 %v9327
        %v9844 = vunpack.c.l.b16 %v9328
        %v9845 = vunpack.c.l.b16 %v9329
        %v9846 = vunpack.c.l.b16 %v9330
        %v9847 = vunpack.c.l.b16 %v9331
        %v9848 = vunpack.c.l.b16 %v9332
        %v9849 = vunpack.c.l.b16 %v9333
        %v9850 = vunpack.c.l.b16 %v9334
        %v9851 = vunpack.c.l.b16 %v9335
        %v9852 = vunpack.c.l.b16 %v9336
        %v9853 = vunpack.c.l.b16 %v9337
        %v9854 = vunpack.c.l.b16 %v9338
        %v9855 = vunpack.c.l.b16 %v9339
        %v9856 = vunpack.c.l.b16 %v9340
        %v9857 = vunpack.c.l.b16 %v9341
        %v9858 = vunpack.c.l.b16 %v9342
        %v9859 = vunpack.c.l.b16 %v9343
        %v9860 = vunpack.c.l.b16 %v9344
        %v9861 = vunpack.c.l.b16 %v9345
        %v9862 = vunpack.c.l.b16 %v9346
        %v9863 = vunpack.c.l.b16 %v9347
        %v9864 = vunpack.c.l.b16 %v9348
        %v9865 = vunpack.c.l.b16 %v9349
        %v9866 = vunpack.c.l.b16 %v9350
        %v9867 = vunpack.c.l.b16 %v9351
        %v9868 = vunpack.c.l.b16 %v9352
        %v9869 = vunpack.c.l.b16 %v9353
        %v9870 = vunpack.c.l.b16 %v9354
        %v9871 = vunpack.c.l.b16 %v9355
        %v9872 = vunpack.c.l.b16 %v9356
        %v9873 = vunpack.c.l.b16 %v9357
        %v9874 = vunpack.c.l.b16 %v9358
        %v9875 = vunpack.c.l.b16 %v9359
        %v9876 = vunpack.c.l.b16 %v9360
        %v9877 = vunpack.c.l.b16 %v9361
        %v9878 = vunpack.c.l.b16 %v9362
        %v9879 = vunpack.c.l.b16 %v9363
        %v9880 = vunpack.c.l.b16 %v9364
        %v9881 = vunpack.c.l.b16 %v9365
        %v9882 = vunpack.c.l.b16 %v9366
        %v9883 = vunpack.c.l.b16 %v9367
        %v9884 = vunpack.c.l.b16 %v9368
        %v9885 = vunpack.c.l.b16 %v9369
        %v9886 = vunpack.c.l.b16 %v9370
        %v9887 = vunpack.c.l.b16 %v9371
        %v9888 = vunpack.c.l.b16 %v9372
        %v9889 = vunpack.c.l.b16 %v9373
        %v9890 = vunpack.c.l.b16 %v9374
        %v9891 = vunpack.c.l.b16 %v9375
        %v9892 = vunpack.c.l.b16 %v9376
        %v9893 = vunpack.c.l.b16 %v9377
        %v9894 = vunpack.c.l.b16 %v9378
        %v9895 = vunpack.c.l.b16 %v9379
        %v9896 = vunpack.c.l.b16 %v9380
        %v9897 = vunpack.c.l.b16 %v9381
        %v9898 = vunpack.c.l.b16 %v9382
        %v9899 = vunpack.c.l.b16 %v9383
        %v9900 = vunpack.c.l.b16 %v9384
        %v9901 = vunpack.c.l.b16 %v9385
        %v9902 = vunpack.c.l.b16 %v9386
        %v9903 = vunpack.c.l.b16 %v9387
        %v9904 = vunpack.c.l.b16 %v9388
        %v9905 = vunpack.c.l.b16 %v9389
        %v9906 = vunpack.c.l.b16 %v9390
        %v9907 = vunpack.c.l.b16 %v9391
        %v9908 = vunpack.c.l.b16 %v9392
        %v9909 = vunpack.c.l.b16 %v9393
        %v9910 = vunpack.c.l.b16 %v9394
        %v9911 = vunpack.c.l.b16 %v9395
        %v9912 = vunpack.c.l.b16 %v9396
        %v9913 = vunpack.c.l.b16 %v9397
        %v9914 = vunpack.c.l.b16 %v9398
        %v9915 = vunpack.c.l.b16 %v9399
        %v9916 = vunpack.c.l.b16 %v9400
        %v9917 = vunpack.c.l.b16 %v9401
        %v9918 = vunpack.c.l.b16 %v9402
        %v9919 = vunpack.c.l.b16 %v9403
        %v9920 = vunpack.c.l.b16 %v9404
        %v9921 = vunpack.c.l.b16 %v9405
        %v9922 = vunpack.c.l.b16 %v9406
        %v9923 = vunpack.c.l.b16 %v9407
        %v9924 = vunpack.c.l.b16 %v9408
        %v9925 = vunpack.c.l.b16 %v9409
        %v9926 = vunpack.c.l.b16 %v9410
        %v9927 = vunpack.c.l.b16 %v9411
        %v9928 = vunpack.c.l.b16 %v9412
        %v9929 = vpack.c.b16 %v9674, %v9673
        %v9930 = vpack.c.b16 %v9676, %v9675
        %v9931 = vpack.c.b16 %v9678, %v9677
        %v9932 = vpack.c.b16 %v9680, %v9679
        %v9933 = vpack.c.b16 %v9682, %v9681
        %v9934 = vpack.c.b16 %v9684, %v9683
        %v9935 = vpack.c.b16 %v9686, %v9685
        %v9936 = vpack.c.b16 %v9688, %v9687
        %v9937 = vpack.c.b16 %v9690, %v9689
        %v9938 = vpack.c.b16 %v9692, %v9691
        %v9939 = vpack.c.b16 %v9694, %v9693
        %v9940 = vpack.c.b16 %v9696, %v9695
        %v9941 = vpack.c.b16 %v9698, %v9697
        %v9942 = vpack.c.b16 %v9700, %v9699
        %v9943 = vpack.c.b16 %v9702, %v9701
        %v9944 = vpack.c.b16 %v9704, %v9703
        %v9945 = vpack.c.b16 %v9706, %v9705
        %v9946 = vpack.c.b16 %v9708, %v9707
        %v9947 = vpack.c.b16 %v9710, %v9709
        %v9948 = vpack.c.b16 %v9712, %v9711
        %v9949 = vpack.c.b16 %v9714, %v9713
        %v9950 = vpack.c.b16 %v9716, %v9715
        %v9951 = vpack.c.b16 %v9718, %v9717
        %v9952 = vpack.c.b16 %v9720, %v9719
        %v9953 = vpack.c.b16 %v9722, %v9721
        %v9954 = vpack.c.b16 %v9724, %v9723
        %v9955 = vpack.c.b16 %v9726, %v9725
        %v9956 = vpack.c.b16 %v9728, %v9727
        %v9957 = vpack.c.b16 %v9730, %v9729
        %v9958 = vpack.c.b16 %v9732, %v9731
        %v9959 = vpack.c.b16 %v9734, %v9733
        %v9960 = vpack.c.b16 %v9736, %v9735
        %v9961 = vpack.c.b16 %v9738, %v9737
        %v9962 = vpack.c.b16 %v9740, %v9739
        %v9963 = vpack.c.b16 %v9742, %v9741
        %v9964 = vpack.c.b16 %v9744, %v9743
        %v9965 = vpack.c.b16 %v9746, %v9745
        %v9966 = vpack.c.b16 %v9748, %v9747
        %v9967 = vpack.c.b16 %v9750, %v9749
        %v9968 = vpack.c.b16 %v9752, %v9751
        %v9969 = vpack.c.b16 %v9754, %v9753
        %v9970 = vpack.c.b16 %v9756, %v9755
        %v9971 = vpack.c.b16 %v9758, %v9757
        %v9972 = vpack.c.b16 %v9760, %v9759
        %v9973 = vpack.c.b16 %v9762, %v9761
        %v9974 = vpack.c.b16 %v9764, %v9763
        %v9975 = vpack.c.b16 %v9766, %v9765
        %v9976 = vpack.c.b16 %v9768, %v9767
        %v9977 = vpack.c.b16 %v9770, %v9769
        %v9978 = vpack.c.b16 %v9772, %v9771
        %v9979 = vpack.c.b16 %v9774, %v9773
        %v9980 = vpack.c.b16 %v9776, %v9775
        %v9981 = vpack.c.b16 %v9778, %v9777
        %v9982 = vpack.c.b16 %v9780, %v9779
        %v9983 = vpack.c.b16 %v9782, %v9781
        %v9984 = vpack.c.b16 %v9784, %v9783
        %v9985 = vpack.c.b16 %v9786, %v9785
        %v9986 = vpack.c.b16 %v9788, %v9787
        %v9987 = vpack.c.b16 %v9790, %v9789
        %v9988 = vpack.c.b16 %v9792, %v9791
        %v9989 = vpack.c.b16 %v9794, %v9793
        %v9990 = vpack.c.b16 %v9796, %v9795
        %v9991 = vpack.c.b16 %v9798, %v9797
        %v9992 = vpack.c.b16 %v9800, %v9799
        %v9993 = vpack.c.b16 %v9802, %v9801
        %v9994 = vpack.c.b16 %v9804, %v9803
        %v9995 = vpack.c.b16 %v9806, %v9805
        %v9996 = vpack.c.b16 %v9808, %v9807
        %v9997 = vpack.c.b16 %v9810, %v9809
        %v9998 = vpack.c.b16 %v9812, %v9811
        %v9999 = vpack.c.b16 %v9814, %v9813
        %v10000 = vpack.c.b16 %v9816, %v9815
        %v10001 = vpack.c.b16 %v9818, %v9817
        %v10002 = vpack.c.b16 %v9820, %v9819
        %v10003 = vpack.c.b16 %v9822, %v9821
        %v10004 = vpack.c.b16 %v9824, %v9823
        %v10005 = vpack.c.b16 %v9826, %v9825
        %v10006 = vpack.c.b16 %v9828, %v9827
        %v10007 = vpack.c.b16 %v9830, %v9829
        %v10008 = vpack.c.b16 %v9832, %v9831
        %v10009 = vpack.c.b16 %v9834, %v9833
        %v10010 = vpack.c.b16 %v9836, %v9835
        %v10011 = vpack.c.b16 %v9838, %v9837
        %v10012 = vpack.c.b16 %v9840, %v9839
        %v10013 = vpack.c.b16 %v9842, %v9841
        %v10014 = vpack.c.b16 %v9844, %v9843
        %v10015 = vpack.c.b16 %v9846, %v9845
        %v10016 = vpack.c.b16 %v9848, %v9847
        %v10017 = vpack.c.b16 %v9850, %v9849
        %v10018 = vpack.c.b16 %v9852, %v9851
        %v10019 = vpack.c.b16 %v9854, %v9853
        %v10020 = vpack.c.b16 %v9856, %v9855
        %v10021 = vpack.c.b16 %v9858, %v9857
        %v10022 = vpack.c.b16 %v9860, %v9859
        %v10023 = vpack.c.b16 %v9862, %v9861
        %v10024 = vpack.c.b16 %v9864, %v9863
        %v10025 = vpack.c.b16 %v9866, %v9865
        %v10026 = vpack.c.b16 %v9868, %v9867
        %v10027 = vpack.c.b16 %v9870, %v9869
        %v10028 = vpack.c.b16 %v9872, %v9871
        %v10029 = vpack.c.b16 %v9874, %v9873
        %v10030 = vpack.c.b16 %v9876, %v9875
        %v10031 = vpack.c.b16 %v9878, %v9877
        %v10032 = vpack.c.b16 %v9880, %v9879
        %v10033 = vpack.c.b16 %v9882, %v9881
        %v10034 = vpack.c.b16 %v9884, %v9883
        %v10035 = vpack.c.b16 %v9886, %v9885
        %v10036 = vpack.c.b16 %v9888, %v9887
        %v10037 = vpack.c.b16 %v9890, %v9889
        %v10038 = vpack.c.b16 %v9892, %v9891
        %v10039 = vpack.c.b16 %v9894, %v9893
        %v10040 = vpack.c.b16 %v9896, %v9895
        %v10041 = vpack.c.b16 %v9898, %v9897
        %v10042 = vpack.c.b16 %v9900, %v9899
        %v10043 = vpack.c.b16 %v9902, %v9901
        %v10044 = vpack.c.b16 %v9904, %v9903
        %v10045 = vpack.c.b16 %v9906, %v9905
        %v10046 = vpack.c.b16 %v9908, %v9907
        %v10047 = vpack.c.b16 %v9910, %v9909
        %v10048 = vpack.c.b16 %v9912, %v9911
        %v10049 = vpack.c.b16 %v9914, %v9913
        %v10050 = vpack.c.b16 %v9916, %v9915
        %v10051 = vpack.c.b16 %v9918, %v9917
        %v10052 = vpack.c.b16 %v9920, %v9919
        %v10053 = vpack.c.b16 %v9922, %v9921
        %v10054 = vpack.c.b16 %v9924, %v9923
        %v10055 = vpack.c.b16 %v9926, %v9925
        %v10056 = vpack.c.b16 %v9928, %v9927
        %10185 = vmatprep.subr.bf16.mxu0 0
        %10186 = vmatpush1.bf16.msra.mxu0 %v9929
        %10187 = vmatprep.subr.bf16.mxu0 0
        %10188 = vmatpush1.bf16.msra.mxu0 %v9930
        %10189 = vmatprep.subr.bf16.mxu0 0
        %10190 = vmatpush1.bf16.msra.mxu0 %v9931
        %10191 = vmatprep.subr.bf16.mxu0 0
        %10192 = vmatpush1.bf16.msra.mxu0 %v9932
        %10193 = vmatprep.subr.bf16.mxu0 0
        %10194 = vmatpush1.bf16.msra.mxu0 %v9933
        %10195 = vmatprep.subr.bf16.mxu0 0
        %10196 = vmatpush1.bf16.msra.mxu0 %v9934
        %10197 = vmatprep.subr.bf16.mxu0 0
        %10198 = vmatpush1.bf16.msra.mxu0 %v9935
        %10199 = vmatprep.subr.bf16.mxu0 0
        %10200 = vmatpush1.bf16.msra.mxu0 %v9936
        %10201 = vmatprep.subr.bf16.mxu0 0
        %10202 = vmatpush1.bf16.msra.mxu0 %v9937
        %10203 = vmatprep.subr.bf16.mxu0 0
        %10204 = vmatpush1.bf16.msra.mxu0 %v9938
        %10205 = vmatprep.subr.bf16.mxu0 0
        %10206 = vmatpush1.bf16.msra.mxu0 %v9939
        %10207 = vmatprep.subr.bf16.mxu0 0
        %10208 = vmatpush1.bf16.msra.mxu0 %v9940
        %10209 = vmatprep.subr.bf16.mxu0 0
        %10210 = vmatpush1.bf16.msra.mxu0 %v9941
        %10211 = vmatprep.subr.bf16.mxu0 0
        %10212 = vmatpush1.bf16.msra.mxu0 %v9942
        %10213 = vmatprep.subr.bf16.mxu0 0
        %10214 = vmatpush1.bf16.msra.mxu0 %v9943
        %10215 = vmatprep.subr.bf16.mxu0 0
        %10216 = vmatpush1.bf16.msra.mxu0 %v9944
        %10217 = vmatprep.mubr.bf16.mxu0 %v9142
        %10218 = vmatmul.mubr.bf16.gmra.mrb[0].mxu0 %v9141
        %v10219 = vpop.f32.mrb[0].mxu0
        %v10220 = vadd.f32 %v9416, %v10219
        %v10221 = vpop.f32.mrb[0].mxu0
        %v10222 = vpop.f32.mrb[0].mxu0
        %v10223 = vadd.f32 %v9416, %v10222
        %v10224 = vpop.f32.mrb[0].mxu0
        %10225 = vdwg.mxu0
        %10226 = vmatprep.subr.bf16.mxu0 0
        %10227 = vmatpush1.bf16.msra.mxu0 %v9945
        %10228 = vmatprep.subr.bf16.mxu0 0
        %10229 = vmatpush1.bf16.msra.mxu0 %v9946
        %10230 = vmatprep.subr.bf16.mxu0 0
        %10231 = vmatpush1.bf16.msra.mxu0 %v9947
        %10232 = vmatprep.subr.bf16.mxu0 0
        %10233 = vmatpush1.bf16.msra.mxu0 %v9948
        %10234 = vmatprep.subr.bf16.mxu0 0
        %10235 = vmatpush1.bf16.msra.mxu0 %v9949
        %10236 = vmatprep.subr.bf16.mxu0 0
        %10237 = vmatpush1.bf16.msra.mxu0 %v9950
        %10238 = vmatprep.subr.bf16.mxu0 0
        %10239 = vmatpush1.bf16.msra.mxu0 %v9951
        %10240 = vmatprep.subr.bf16.mxu0 0
        %10241 = vmatpush1.bf16.msra.mxu0 %v9952
        %10242 = vmatprep.subr.bf16.mxu0 0
        %10243 = vmatpush1.bf16.msra.mxu0 %v9953
        %10244 = vmatprep.subr.bf16.mxu0 0
        %10245 = vmatpush1.bf16.msra.mxu0 %v9954
        %10246 = vmatprep.subr.bf16.mxu0 0
        %10247 = vmatpush1.bf16.msra.mxu0 %v9955
        %10248 = vmatprep.subr.bf16.mxu0 0
        %10249 = vmatpush1.bf16.msra.mxu0 %v9956
        %10250 = vmatprep.subr.bf16.mxu0 0
        %10251 = vmatpush1.bf16.msra.mxu0 %v9957
        %10252 = vmatprep.subr.bf16.mxu0 0
        %10253 = vmatpush1.bf16.msra.mxu0 %v9958
        %10254 = vmatprep.subr.bf16.mxu0 0
        %10255 = vmatpush1.bf16.msra.mxu0 %v9959
        %10256 = vmatprep.subr.bf16.mxu0 0
        %10257 = vmatpush1.bf16.msra.mxu0 %v9960
        %10258 = vmatprep.mubr.bf16.mxu0 %v9144
        %10259 = vmatmul.mubr.bf16.gmra.mrb[0].mxu0 %v9143
        %v10260 = vpop.f32.mrb[0].mxu0
        %v10261 = vadd.f32 %v10220, %v10260
        %v10262 = vpop.f32.mrb[0].mxu0
        %v10263 = vpop.f32.mrb[0].mxu0
        %v10264 = vadd.f32 %v10223, %v10263
        %v10265 = vpop.f32.mrb[0].mxu0
        %10266 = vdwg.mxu0
        %10267 = vmatprep.subr.bf16.mxu0 0
        %10268 = vmatpush1.bf16.msra.mxu0 %v9961
        %10269 = vmatprep.subr.bf16.mxu0 0
        %10270 = vmatpush1.bf16.msra.mxu0 %v9962
        %10271 = vmatprep.subr.bf16.mxu0 0
        %10272 = vmatpush1.bf16.msra.mxu0 %v9963
        %10273 = vmatprep.subr.bf16.mxu0 0
        %10274 = vmatpush1.bf16.msra.mxu0 %v9964
        %10275 = vmatprep.subr.bf16.mxu0 0
        %10276 = vmatpush1.bf16.msra.mxu0 %v9965
        %10277 = vmatprep.subr.bf16.mxu0 0
        %10278 = vmatpush1.bf16.msra.mxu0 %v9966
        %10279 = vmatprep.subr.bf16.mxu0 0
        %10280 = vmatpush1.bf16.msra.mxu0 %v9967
        %10281 = vmatprep.subr.bf16.mxu0 0
        %10282 = vmatpush1.bf16.msra.mxu0 %v9968
        %10283 = vmatprep.subr.bf16.mxu0 0
        %10284 = vmatpush1.bf16.msra.mxu0 %v9969
        %10285 = vmatprep.subr.bf16.mxu0 0
        %10286 = vmatpush1.bf16.msra.mxu0 %v9970
        %10287 = vmatprep.subr.bf16.mxu0 0
        %10288 = vmatpush1.bf16.msra.mxu0 %v9971
        %10289 = vmatprep.subr.bf16.mxu0 0
        %10290 = vmatpush1.bf16.msra.mxu0 %v9972
        %10291 = vmatprep.subr.bf16.mxu0 0
        %10292 = vmatpush1.bf16.msra.mxu0 %v9973
        %10293 = vmatprep.subr.bf16.mxu0 0
        %10294 = vmatpush1.bf16.msra.mxu0 %v9974
        %10295 = vmatprep.subr.bf16.mxu0 0
        %10296 = vmatpush1.bf16.msra.mxu0 %v9975
        %10297 = vmatprep.subr.bf16.mxu0 0
        %10298 = vmatpush1.bf16.msra.mxu0 %v9976
        %10299 = vmatprep.mubr.bf16.mxu0 %v9146
        %10300 = vmatmul.mubr.bf16.gmra.mrb[0].mxu0 %v9145
        %v10301 = vpop.f32.mrb[0].mxu0
        %v10302 = vadd.f32 %v10261, %v10301
        %v10303 = vpop.f32.mrb[0].mxu0
        %v10304 = vpop.f32.mrb[0].mxu0
        %v10305 = vadd.f32 %v10264, %v10304
        %v10306 = vpop.f32.mrb[0].mxu0
        %10307 = vdwg.mxu0
        %10308 = vmatprep.subr.bf16.mxu0 0
        %10309 = vmatpush1.bf16.msra.mxu0 %v9977
        %10310 = vmatprep.subr.bf16.mxu0 0
        %10311 = vmatpush1.bf16.msra.mxu0 %v9978
        %10312 = vmatprep.subr.bf16.mxu0 0
        %10313 = vmatpush1.bf16.msra.mxu0 %v9979
        %10314 = vmatprep.subr.bf16.mxu0 0
        %10315 = vmatpush1.bf16.msra.mxu0 %v9980
        %10316 = vmatprep.subr.bf16.mxu0 0
        %10317 = vmatpush1.bf16.msra.mxu0 %v9981
        %10318 = vmatprep.subr.bf16.mxu0 0
        %10319 = vmatpush1.bf16.msra.mxu0 %v9982
        %10320 = vmatprep.subr.bf16.mxu0 0
        %10321 = vmatpush1.bf16.msra.mxu0 %v9983
        %10322 = vmatprep.subr.bf16.mxu0 0
        %10323 = vmatpush1.bf16.msra.mxu0 %v9984
        %10324 = vmatprep.subr.bf16.mxu0 0
        %10325 = vmatpush1.bf16.msra.mxu0 %v9985
        %10326 = vmatprep.subr.bf16.mxu0 0
        %10327 = vmatpush1.bf16.msra.mxu0 %v9986
        %10328 = vmatprep.subr.bf16.mxu0 0
        %10329 = vmatpush1.bf16.msra.mxu0 %v9987
        %10330 = vmatprep.subr.bf16.mxu0 0
        %10331 = vmatpush1.bf16.msra.mxu0 %v9988
        %10332 = vmatprep.subr.bf16.mxu0 0
        %10333 = vmatpush1.bf16.msra.mxu0 %v9989
        %10334 = vmatprep.subr.bf16.mxu0 0
        %10335 = vmatpush1.bf16.msra.mxu0 %v9990
        %10336 = vmatprep.subr.bf16.mxu0 0
        %10337 = vmatpush1.bf16.msra.mxu0 %v9991
        %10338 = vmatprep.subr.bf16.mxu0 0
        %10339 = vmatpush1.bf16.msra.mxu0 %v9992
        %10340 = vmatprep.mubr.bf16.mxu0 %v9148
        %10341 = vmatmul.mubr.bf16.gmra.mrb[0].mxu0 %v9147
        %v10342 = vpop.f32.mrb[0].mxu0
        %v10343 = vadd.f32 %v10302, %v10342
        %v10344 = vpop.f32.mrb[0].mxu0
        %v10345 = vpop.f32.mrb[0].mxu0
        %v10346 = vadd.f32 %v10305, %v10345
        %v10347 = vpop.f32.mrb[0].mxu0
        %10348 = vdwg.mxu0
        %10349 = vmatprep.subr.bf16.mxu0 0
        %10350 = vmatpush1.bf16.msra.mxu0 %v9993
        %10351 = vmatprep.subr.bf16.mxu0 0
        %10352 = vmatpush1.bf16.msra.mxu0 %v9994
        %10353 = vmatprep.subr.bf16.mxu0 0
        %10354 = vmatpush1.bf16.msra.mxu0 %v9995
        %10355 = vmatprep.subr.bf16.mxu0 0
        %10356 = vmatpush1.bf16.msra.mxu0 %v9996
        %10357 = vmatprep.subr.bf16.mxu0 0
        %10358 = vmatpush1.bf16.msra.mxu0 %v9997
        %10359 = vmatprep.subr.bf16.mxu0 0
        %10360 = vmatpush1.bf16.msra.mxu0 %v9998
        %10361 = vmatprep.subr.bf16.mxu0 0
        %10362 = vmatpush1.bf16.msra.mxu0 %v9999
        %10363 = vmatprep.subr.bf16.mxu0 0
        %10364 = vmatpush1.bf16.msra.mxu0 %v10000
        %10365 = vmatprep.subr.bf16.mxu0 0
        %10366 = vmatpush1.bf16.msra.mxu0 %v10001
        %10367 = vmatprep.subr.bf16.mxu0 0
        %10368 = vmatpush1.bf16.msra.mxu0 %v10002
        %10369 = vmatprep.subr.bf16.mxu0 0
        %10370 = vmatpush1.bf16.msra.mxu0 %v10003
        %10371 = vmatprep.subr.bf16.mxu0 0
        %10372 = vmatpush1.bf16.msra.mxu0 %v10004
        %10373 = vmatprep.subr.bf16.mxu0 0
        %10374 = vmatpush1.bf16.msra.mxu0 %v10005
        %10375 = vmatprep.subr.bf16.mxu0 0
        %10376 = vmatpush1.bf16.msra.mxu0 %v10006
        %10377 = vmatprep.subr.bf16.mxu0 0
        %10378 = vmatpush1.bf16.msra.mxu0 %v10007
        %10379 = vmatprep.subr.bf16.mxu0 0
        %10380 = vmatpush1.bf16.msra.mxu0 %v10008
        %10381 = vmatprep.mubr.bf16.mxu0 %v9150
        %10382 = vmatmul.mubr.bf16.gmra.mrb[0].mxu0 %v9149
        %v10383 = vpop.f32.mrb[0].mxu0
        %v10384 = vadd.f32 %v10343, %v10383
        %v10385 = vpop.f32.mrb[0].mxu0
        %v10386 = vpop.f32.mrb[0].mxu0
        %v10387 = vadd.f32 %v10346, %v10386
        %v10388 = vpop.f32.mrb[0].mxu0
        %10389 = vdwg.mxu0
        %10390 = vmatprep.subr.bf16.mxu0 0
        %10391 = vmatpush1.bf16.msra.mxu0 %v10009
        %10392 = vmatprep.subr.bf16.mxu0 0
        %10393 = vmatpush1.bf16.msra.mxu0 %v10010
        %10394 = vmatprep.subr.bf16.mxu0 0
        %10395 = vmatpush1.bf16.msra.mxu0 %v10011
        %10396 = vmatprep.subr.bf16.mxu0 0
        %10397 = vmatpush1.bf16.msra.mxu0 %v10012
        %10398 = vmatprep.subr.bf16.mxu0 0
        %10399 = vmatpush1.bf16.msra.mxu0 %v10013
        %10400 = vmatprep.subr.bf16.mxu0 0
        %10401 = vmatpush1.bf16.msra.mxu0 %v10014
        %10402 = vmatprep.subr.bf16.mxu0 0
        %10403 = vmatpush1.bf16.msra.mxu0 %v10015
        %10404 = vmatprep.subr.bf16.mxu0 0
        %10405 = vmatpush1.bf16.msra.mxu0 %v10016
        %10406 = vmatprep.subr.bf16.mxu0 0
        %10407 = vmatpush1.bf16.msra.mxu0 %v10017
        %10408 = vmatprep.subr.bf16.mxu0 0
        %10409 = vmatpush1.bf16.msra.mxu0 %v10018
        %10410 = vmatprep.subr.bf16.mxu0 0
        %10411 = vmatpush1.bf16.msra.mxu0 %v10019
        %10412 = vmatprep.subr.bf16.mxu0 0
        %10413 = vmatpush1.bf16.msra.mxu0 %v10020
        %10414 = vmatprep.subr.bf16.mxu0 0
        %10415 = vmatpush1.bf16.msra.mxu0 %v10021
        %10416 = vmatprep.subr.bf16.mxu0 0
        %10417 = vmatpush1.bf16.msra.mxu0 %v10022
        %10418 = vmatprep.subr.bf16.mxu0 0
        %10419 = vmatpush1.bf16.msra.mxu0 %v10023
        %10420 = vmatprep.subr.bf16.mxu0 0
        %10421 = vmatpush1.bf16.msra.mxu0 %v10024
        %10422 = vmatprep.mubr.bf16.mxu0 %v9152
        %10423 = vmatmul.mubr.bf16.gmra.mrb[0].mxu0 %v9151
        %v10424 = vpop.f32.mrb[0].mxu0
        %v10425 = vadd.f32 %v10384, %v10424
        %v10426 = vpop.f32.mrb[0].mxu0
        %v10427 = vpop.f32.mrb[0].mxu0
        %v10428 = vadd.f32 %v10387, %v10427
        %v10429 = vpop.f32.mrb[0].mxu0
        %10430 = vdwg.mxu0
        %10431 = vmatprep.subr.bf16.mxu0 0
        %10432 = vmatpush1.bf16.msra.mxu0 %v10025
        %10433 = vmatprep.subr.bf16.mxu0 0
        %10434 = vmatpush1.bf16.msra.mxu0 %v10026
        %10435 = vmatprep.subr.bf16.mxu0 0
        %10436 = vmatpush1.bf16.msra.mxu0 %v10027
        %10437 = vmatprep.subr.bf16.mxu0 0
        %10438 = vmatpush1.bf16.msra.mxu0 %v10028
        %10439 = vmatprep.subr.bf16.mxu0 0
        %10440 = vmatpush1.bf16.msra.mxu0 %v10029
        %10441 = vmatprep.subr.bf16.mxu0 0
        %10442 = vmatpush1.bf16.msra.mxu0 %v10030
        %10443 = vmatprep.subr.bf16.mxu0 0
        %10444 = vmatpush1.bf16.msra.mxu0 %v10031
        %10445 = vmatprep.subr.bf16.mxu0 0
        %10446 = vmatpush1.bf16.msra.mxu0 %v10032
        %10447 = vmatprep.subr.bf16.mxu0 0
        %10448 = vmatpush1.bf16.msra.mxu0 %v10033
        %10449 = vmatprep.subr.bf16.mxu0 0
        %10450 = vmatpush1.bf16.msra.mxu0 %v10034
        %10451 = vmatprep.subr.bf16.mxu0 0
        %10452 = vmatpush1.bf16.msra.mxu0 %v10035
        %10453 = vmatprep.subr.bf16.mxu0 0
        %10454 = vmatpush1.bf16.msra.mxu0 %v10036
        %10455 = vmatprep.subr.bf16.mxu0 0
        %10456 = vmatpush1.bf16.msra.mxu0 %v10037
        %10457 = vmatprep.subr.bf16.mxu0 0
        %10458 = vmatpush1.bf16.msra.mxu0 %v10038
        %10459 = vmatprep.subr.bf16.mxu0 0
        %10460 = vmatpush1.bf16.msra.mxu0 %v10039
        %10461 = vmatprep.subr.bf16.mxu0 0
        %10462 = vmatpush1.bf16.msra.mxu0 %v10040
        %10463 = vmatprep.mubr.bf16.mxu0 %v9154
        %10464 = vmatmul.mubr.bf16.gmra.mrb[0].mxu0 %v9153
        %v10465 = vpop.f32.mrb[0].mxu0
        %v10466 = vadd.f32 %v10425, %v10465
        %v10467 = vpop.f32.mrb[0].mxu0
        %v10468 = vpop.f32.mrb[0].mxu0
        %v10469 = vadd.f32 %v10428, %v10468
        %v10470 = vpop.f32.mrb[0].mxu0
        %10471 = vdwg.mxu0
        %10472 = vmatprep.subr.bf16.mxu0 0
        %10473 = vmatpush1.bf16.msra.mxu0 %v10041
        %10474 = vmatprep.subr.bf16.mxu0 0
        %10475 = vmatpush1.bf16.msra.mxu0 %v10042
        %10476 = vmatprep.subr.bf16.mxu0 0
        %10477 = vmatpush1.bf16.msra.mxu0 %v10043
        %10478 = vmatprep.subr.bf16.mxu0 0
        %10479 = vmatpush1.bf16.msra.mxu0 %v10044
        %10480 = vmatprep.subr.bf16.mxu0 0
        %10481 = vmatpush1.bf16.msra.mxu0 %v10045
        %10482 = vmatprep.subr.bf16.mxu0 0
        %10483 = vmatpush1.bf16.msra.mxu0 %v10046
        %10484 = vmatprep.subr.bf16.mxu0 0
        %10485 = vmatpush1.bf16.msra.mxu0 %v10047
        %10486 = vmatprep.subr.bf16.mxu0 0
        %10487 = vmatpush1.bf16.msra.mxu0 %v10048
        %10488 = vmatprep.subr.bf16.mxu0 0
        %10489 = vmatpush1.bf16.msra.mxu0 %v10049
        %10490 = vmatprep.subr.bf16.mxu0 0
        %10491 = vmatpush1.bf16.msra.mxu0 %v10050
        %10492 = vmatprep.subr.bf16.mxu0 0
        %10493 = vmatpush1.bf16.msra.mxu0 %v10051
        %10494 = vmatprep.subr.bf16.mxu0 0
        %10495 = vmatpush1.bf16.msra.mxu0 %v10052
        %10496 = vmatprep.subr.bf16.mxu0 0
        %10497 = vmatpush1.bf16.msra.mxu0 %v10053
        %10498 = vmatprep.subr.bf16.mxu0 0
        %10499 = vmatpush1.bf16.msra.mxu0 %v10054
        %10500 = vmatprep.subr.bf16.mxu0 0
        %10501 = vmatpush1.bf16.msra.mxu0 %v10055
        %10502 = vmatprep.subr.bf16.mxu0 0
        %10503 = vmatpush1.bf16.msra.mxu0 %v10056
        %10504 = vmatprep.mubr.bf16.mxu0 %v9156
        %10505 = vmatmul.mubr.bf16.gmra.mrb[0].mxu0 %v9155
        %v10506 = vpop.f32.mrb[0].mxu0
        %v10507 = vadd.f32 %v10466, %v10506
        %v10508 = vpop.f32.mrb[0].mxu0
        %v10509 = vpop.f32.mrb[0].mxu0
        %v10510 = vadd.f32 %v10469, %v10509
        %v10511 = vpop.f32.mrb[0].mxu0
        %10512 = vdwg.mxu0
        %v10513 = vadd.f32 %v8483, %v10507
        %v10514 = vadd.f32 %v8484, %v10510
        %v10515 = vsel %vm600, %v10513, 0.0
        %10516 = vadd.xlane.f32.xlu0 %v10515
        %v10517 = vpop.xlane.xlu0 %10516
        %v10518 = vsel %vm600, %v10514, 0.0
        %10519 = vadd.xlane.f32.xlu0 %v10518
        %v10520 = vpop.xlane.xlu0 %10519
        %v10521 = vmul.f32 %v10517, %v4486
        %v10522 = vmul.f32 %v10520, %v4486
        %v10523 = vsub.f32 %v10513, %v10521
        %v10524 = vsub.f32 %v10514, %v10522
        %v10525 = vmul.f32 %v10523, %v10523
        %v10526 = vmul.f32 %v10524, %v10524
        %v10527 = vsel %vm600, %v10525, 0.0
        %10528 = vadd.xlane.f32.xlu0 %v10527
        %v10529 = vpop.xlane.xlu0 %10528
        %v10530 = vsel %vm600, %v10526, 0.0
        %10531 = vadd.xlane.f32.xlu0 %v10530
        %v10532 = vpop.xlane.xlu0 %10531
        %v10533 = vmul.f32 %v10529, %v4486
        %v10534 = vmul.f32 %v10532, %v4486
        %v10535 = vadd.f32 %v10533, 1e-05
        %v10536 = vadd.f32 %v10534, 1e-05
        %v10537 = vrsqrt.pop %v10535
        %v10538 = vrsqrt.pop %v10536
        %v10539 = vmul.f32 %v10523, %v10537
        %v10540 = vmul.f32 %v10524, %v10538
        %v10541 = vlaneseq
        %v10542 = vshrl.u32 %v10541, 7
        %v10543 = vsub.s32 5, %v10542
        %v10544 = vrot.slane %v578, %v10543
        %v10545 = vmul.f32 %v10539, %v10544
        %v10546 = vmul.f32 %v10540, %v10544
        %v10547 = vlaneseq
        %v10548 = vshrl.u32 %v10547, 7
        %v10549 = vsub.s32 6, %v10548
        %v10550 = vrot.slane %v578, %v10549
        %v10551 = vadd.f32 %v10545, %v10550
        %v10552 = vadd.f32 %v10546, %v10550
        %10553 = vst.msk [vmem:[#allocation2] sm:$0xff] %vm600, %v10551
        %10554 = vst.msk [vmem:[#allocation2 + $0x8] sm:$0xff] %vm600, %v10552
        %p10555 = scmp.eq.s32.totalorder %s24, 1
        // Predicated region
        $region73: #{tpu_custom_call.1} parent=67 // pred_check
          %p10556 = pneg %p10555
        $region74: #{tpu_custom_call.1} parent=67 // pred_check_branch
          %10558 = sbr.rel (%p10556) target = $region76
        $region75: #{tpu_custom_call.1} parent=67 // pred_region
          %v10559 = vpack.c.bf16 %v10551, %v10551
          %v10560 = vpack.c.bf16 %v10552, %v10552
          %v10561 = vld [vmem:[%s10] sm:$0xf]
          %v10562 = vld [vmem:[%s10 + $0x4] sm:$0xf]
          %v10563 = vld [vmem:[%s10 + $0x8] sm:$0xf]
          %v10564 = vld [vmem:[%s10 + $0xc] sm:$0xf]
          %v10565 = vld [vmem:[%s11] sm:$0x1]
          %v10567 = vlaneseq
          %v10568 = vshrl.u32 %v10567, 7
          %v10569 = vsub.s32 0, %v10568
          %v10570 = vrot.slane %v10565, %v10569
          %v10574 = vunpack.c.l.b16 %v10559
          %v10575 = vunpack.c.l.b16 %v10560
          %v10576 = vrot.slane %v10574, 7
          %v10577 = vrot.slane %v10575, 6
          %vm10578 = vcmask 1041409
          %v10579 = vsel %vm10578, %v10577, %v10576
          %v10580 = vpack.c.b16 %v10579, %v10579
          %v10585 = vunpack.c.l.b16 %v10561
          %v10586 = vunpack.c.l.b16 %v10562
          %v10587 = vunpack.c.l.b16 %v10563
          %v10588 = vunpack.c.l.b16 %v10564
          %v10589 = vpack.c.b16 %v10586, %v10585
          %v10590 = vpack.c.b16 %v10588, %v10587
          %v10594 = vsel %vm600, %v10580, 0
          %10596 = vmatprep.subr.bf16.mxu0 0
          %10597 = vmatpush1.bf16.msra.mxu0 %v10589
          %10598 = vmatprep.subr.bf16.mxu0 0
          %10599 = vmatpush1.bf16.msra.mxu0 %v10590
          %10600 = vmatprep.subr.bf16.mxu0 0
          %10601 = vmatpush1.bf16.msra.mxu0 0
          %10602 = vmatprep.subr.bf16.mxu0 0
          %10603 = vmatpush1.bf16.msra.mxu0 0
          %10604 = vmatprep.subr.bf16.mxu0 0
          %10605 = vmatpush1.bf16.msra.mxu0 0
          %10606 = vmatprep.subr.bf16.mxu0 0
          %10607 = vmatpush1.bf16.msra.mxu0 0
          %10608 = vmatprep.subr.bf16.mxu0 0
          %10609 = vmatpush1.bf16.msra.mxu0 0
          %10610 = vmatprep.subr.bf16.mxu0 0
          %10611 = vmatpush1.bf16.msra.mxu0 0
          %10612 = vmatprep.subr.bf16.mxu0 0
          %10613 = vmatpush1.bf16.msra.mxu0 0
          %10614 = vmatprep.subr.bf16.mxu0 0
          %10615 = vmatpush1.bf16.msra.mxu0 0
          %10616 = vmatprep.subr.bf16.mxu0 0
          %10617 = vmatpush1.bf16.msra.mxu0 0
          %10618 = vmatprep.subr.bf16.mxu0 0
          %10619 = vmatpush1.bf16.msra.mxu0 0
          %10620 = vmatprep.subr.bf16.mxu0 0
          %10621 = vmatpush1.bf16.msra.mxu0 0
          %10622 = vmatprep.subr.bf16.mxu0 0
          %10623 = vmatpush1.bf16.msra.mxu0 0
          %10624 = vmatprep.subr.bf16.mxu0 0
          %10625 = vmatpush1.bf16.msra.mxu0 0
          %10626 = vmatprep.subr.bf16.mxu0 0
          %10627 = vmatpush1.bf16.msra.mxu0 0
          %10628 = vmatprep.mubr.bf16.mxu0 0
          %10629 = vmatmul.mubr.bf16.gmra.mrb[0].mxu0 %v10594
          %v10630 = vpop.f32.mrb[0].mxu0
          %v10631 = vadd.f32 %v10570, %v10630
          %v10632 = vpop.f32.mrb[0].mxu0
          %v10633 = vpop.f32.mrb[0].mxu0
          %v10634 = vpop.f32.mrb[0].mxu0
          %10635 = vdwg.mxu0
          %10636 = vst [vmem:[#allocation5] sm:$0x3] %v10631
        $region76: #{tpu_custom_call.1} parent=67 // pred_fallthru
          _
        // Predicated region
        $region77: #{tpu_custom_call.1} parent=67 // pred_check
          %p10637 = pneg %p334
        $region78: #{tpu_custom_call.1} parent=67 // pred_check_branch
          %10639 = sbr.rel (%p10637) target = $region80
        $region79: #{tpu_custom_call.1} parent=67 // pred_region
          %s10641 = ssub.s32 32, 32
          %10642 = vsyncadd [#allocation6], %s10641
          %s10644 = sshll.u32 [#allocation5], 4
          %s10645 = int_to_ptr.vmem [resolvable:$true] %s10644
          %10647 = dma.vmem_to_hbm [thread:$0]  %s10645, 32, %s12, [#allocation6]
        $region80: #{tpu_custom_call.1} parent=67 // pred_fallthru
          _
        // Predicated region
        $region81: #{tpu_custom_call.1} parent=67 // pred_check
          %p10648 = pneg %p334
        $region82: #{tpu_custom_call.1} parent=67 // pred_check_branch
          %10650 = sbr.rel (%p10648) target = $region84
        $region83: #{tpu_custom_call.1} parent=67 // pred_region
          %10651 = dma.done [#allocation6], 32
        $region84: #{tpu_custom_call.1} parent=67 // pred_fallthru
          _
      $region68: #{tpu_custom_call.1} parent=5 // pred_fallthru
        _
      %p10652 = scmp.le.s32.totalorder 2, %s19
      // Predicated region
      $region85: #{tpu_custom_call.1} parent=5 // pred_check
        %p10653 = pneg %p10652
      $region86: #{tpu_custom_call.1} parent=5 // pred_check_branch
        %10655 = sbr.rel (%p10653) target = $region88
      $region87: #{tpu_custom_call.1} parent=5 // pred_region
        %s10656 = ssub.s32 %s19, 2
      $region88: #{tpu_custom_call.1} parent=5 // pred_fallthru
        _
    $region6: #{tpu_custom_call.1} parent=1 // loop_footer
      %s23 = sadd.s32 1, %s19
    $region7: #{tpu_custom_call.1} parent=1 // loop_footer_branch
      %18 = sbr.rel target = $region3
    $region8: #{tpu_custom_call.1} parent=1 // loop_exit
      _
    %10657 = vsyncpa [#allocation6], 1
    %s10658 = scalar_lea.sflag [#allocation6], 1
    %10659 = vsyncpa %s10658, 1

</llo_original>
